<compile_context>
chip_gen: v6e
topology: v6e:2x2x1
jax: 0.10.0
libtpu: 0.0.40
codegen_flags: <defaults>
</compile_context>

<pallas_src>
import jax
import jax.numpy as jnp
from jax.experimental import pallas as pl
from jax.experimental.pallas import tpu as pltpu


# ----------------------------------------------------------------------------
# Helpers
# ----------------------------------------------------------------------------
def _mxu(a_f32, w_bf16):
    """Activation (f32) x resident bf16 weight on the MXU, f32 accumulation."""
    return jnp.dot(a_f32.astype(jnp.bfloat16), w_bf16,
                   preferred_element_type=jnp.float32)


def _layer_norm(x, g, b):
    mu = jnp.mean(x, axis=-1, keepdims=True)
    var = jnp.mean((x - mu) ** 2, axis=-1, keepdims=True)
    return (x - mu) * jax.lax.rsqrt(var + 1e-12) * g + b


def _res_spec(arr):
    """Full-array VMEM block with a constant index_map -> resident across grid."""
    nd = arr.ndim
    return pl.BlockSpec(arr.shape, lambda *_: (0,) * nd)


# ----------------------------------------------------------------------------
# Fused forward kernel (one grid step == one batch example)
# ----------------------------------------------------------------------------
def fused_forward_kernel(
        # scalar-prefetch (SMEM)
        rev_ids_ref, meta_ids_ref,
        # HBM tables (manual row-gather DMA)
        tok_emb_hbm, meta_emb_hbm,
        # per-example VMEM inputs
        neg_mask_ref, price_ref,
        # resident weights / params
        pos_emb_ref, lne_g_ref, lne_b_ref,
        wqkv_ref, bqkv_ref, wo_ref, bo_ref, ln1_g_ref, ln1_b_ref,
        w1_ref, b1_ref, w2_ref, b2_ref, ln2_g_ref, ln2_b_ref,
        cw0_ref, cw1_ref, cw2_ref, cb_ref,
        wr_ref, br_ref, wp_ref, bp_ref,
        wmp_m_ref, wmp_p_ref, bmp_ref,
        wf_r_ref, wf_m_ref, bf_ref, ws_ref, bs_ref,
        # outputs
        score_ref, fused_ref,
        # scratch
        tokbuf, metabuf, tok_sem, meta_sem):
    b = pl.program_id(0)
    Lr, H = tokbuf.shape
    Lm, C = metabuf.shape

    # ---- embedding row-gathers: tables stay in HBM, DMA only the needed rows
    for i in range(Lr):
        pltpu.make_async_copy(tok_emb_hbm.at[pl.ds(rev_ids_ref[b, i], 1)],
                              tokbuf.at[pl.ds(i, 1)], tok_sem.at[i]).start()
    for i in range(Lm):
        pltpu.make_async_copy(meta_emb_hbm.at[pl.ds(meta_ids_ref[b, i], 1)],
                              metabuf.at[pl.ds(i, 1)], meta_sem.at[i]).start()
    for i in range(Lr):
        pltpu.make_async_copy(tok_emb_hbm.at[pl.ds(0, 1)],
                              tokbuf.at[pl.ds(i, 1)], tok_sem.at[i]).wait()
    for i in range(Lm):
        pltpu.make_async_copy(meta_emb_hbm.at[pl.ds(0, 1)],
                              metabuf.at[pl.ds(i, 1)], meta_sem.at[i]).wait()

    # ---- review branch: single-layer BERT stand-in (per example, 2D layout) --
    x = tokbuf[...] + pos_emb_ref[...]                              # (Lr, H) f32
    x = _layer_norm(x, lne_g_ref[...], lne_b_ref[...])

    qkv = _mxu(x, wqkv_ref[...]) + bqkv_ref[...]                    # (Lr, 3H)
    q = qkv[:, 0:H]                                                 # 128-aligned
    k = qkv[:, H:2 * H]
    v = qkv[:, 2 * H:3 * H]

    s = jnp.einsum('lh,mh->lm', q.astype(jnp.bfloat16), k.astype(jnp.bfloat16),
                   preferred_element_type=jnp.float32)
    s = s * (float(H) ** -0.5) + neg_mask_ref[...]                  # (Lr, Lr)
    s = s - jnp.max(s, axis=-1, keepdims=True)
    p = jnp.exp(s)
    p = p * pl.reciprocal(jnp.sum(p, axis=-1, keepdims=True), approx=True)

    ctx = jnp.dot(p.astype(jnp.bfloat16), v.astype(jnp.bfloat16),
                  preferred_element_type=jnp.float32)               # (Lr, H)
    x = _layer_norm(x + _mxu(ctx, wo_ref[...]) + bo_ref[...],
                    ln1_g_ref[...], ln1_b_ref[...])

    h = _mxu(x, w1_ref[...]) + b1_ref[...]
    # TODO(synk): tanh-approx GELU; nn.GELU / real BERT use the exact erf form.
    h = jax.nn.gelu(h, approximate=True)
    x = _layer_norm(x + _mxu(h, w2_ref[...]) + b2_ref[...],
                    ln2_g_ref[...], ln2_b_ref[...])

    cls = x[0:1, :]                                                 # (1, H)

    # ---- metadata branch ------------------------------------------------------
    # Embedding(padding_idx=0): table row 0 is zero, gather maps id 0 -> zeros.
    meta2 = metabuf[...]                                            # (Lm, C)
    l_idx = jax.lax.broadcasted_iota(jnp.int32, (Lm, C), 0)
    x_prev = jnp.where(l_idx == 0, 0.0, pltpu.roll(meta2, 1, 0))
    x_next = jnp.where(l_idx == Lm - 1, 0.0, pltpu.roll(meta2, Lm - 1, 0))
    # Conv1d(C, C, k=3, pad=1) as three accumulated (C, C) matmuls (no im2col).
    conv = (_mxu(x_prev, cw0_ref[...]) + _mxu(meta2, cw1_ref[...])
            + _mxu(x_next, cw2_ref[...]) + cb_ref[...])
    conv = jnp.maximum(conv, 0.0)                                   # ReLU
    meta_pooled = jnp.max(conv, axis=0, keepdims=True)              # (1, C)

    # ---- fusion head ----------------------------------------------------------
    review_emb = _mxu(cls, wr_ref[...]) + br_ref[...]               # (1, 256)

    # Linear(1, 64) + ReLU as a VPU broadcast (contraction dim 1 -> no MXU).
    price_vec = jnp.maximum(price_ref[...] * wp_ref[...] + bp_ref[...], 0.0)

    # concat([meta_pooled, price_vec]) @ Wmp  ==  split matmuls (identical math)
    meta_price = jnp.maximum(
        _mxu(meta_pooled, wmp_m_ref[...]) + _mxu(price_vec, wmp_p_ref[...])
        + bmp_ref[...], 0.0)

    fused = jnp.maximum(
        _mxu(review_emb, wf_r_ref[...]) + _mxu(meta_price, wf_m_ref[...])
        + bf_ref[...], 0.0)

    fused_ref[...] = fused
    # Linear(256, 1) as a VPU lane reduce; store lane-dense (broadcast to 128).
    score = jnp.sum(fused * ws_ref[...], axis=-1, keepdims=True) + bs_ref[...]
    score_ref[...] = jnp.broadcast_to(score, score_ref.shape)


# ----------------------------------------------------------------------------
# Parameter init (deterministic, kernel-ready layout; MXU weights pre-cast bf16)
# ----------------------------------------------------------------------------
def init_params(key, *, bert_vocab, Lr, H, F, meta_vocab, C):
    keys = iter(jax.random.split(key, 32))

    def w(shape, scale=0.02, dtype=jnp.bfloat16):
        return (jax.random.normal(next(keys), shape, jnp.float32) * scale).astype(dtype)

    p = {}
    # BERT stand-in (embedding tables stay f32: row-gathered, never raw MXU input)
    p['tok_emb'] = w((bert_vocab, H), dtype=jnp.float32)
    p['pos_emb'] = w((Lr, H), dtype=jnp.float32)
    p['lne_g'] = jnp.ones((1, H), jnp.float32); p['lne_b'] = jnp.zeros((1, H), jnp.float32)
    p['wqkv'] = w((H, 3 * H))                       # [Wq | Wk | Wv] fused
    p['bqkv'] = jnp.zeros((1, 3 * H), jnp.float32)
    p['wo'] = w((H, H)); p['bo'] = jnp.zeros((1, H), jnp.float32)
    p['ln1_g'] = jnp.ones((1, H), jnp.float32); p['ln1_b'] = jnp.zeros((1, H), jnp.float32)
    p['w1'] = w((H, F)); p['b1'] = jnp.zeros((1, F), jnp.float32)
    p['w2'] = w((F, H)); p['b2'] = jnp.zeros((1, H), jnp.float32)
    p['ln2_g'] = jnp.ones((1, H), jnp.float32); p['ln2_b'] = jnp.zeros((1, H), jnp.float32)

    # meta embedding (padding_idx=0 -> row 0 zero); Conv1d split into 3 taps.
    # TODO(synk): porting real PyTorch Conv1d weights (Cout, Cin, 3): conv_wj = W[:, :, j].T
    emb = w((meta_vocab, C), dtype=jnp.float32)
    p['meta_emb'] = emb.at[0].set(0.0)
    p['conv_w0'] = w((C, C)); p['conv_w1'] = w((C, C)); p['conv_w2'] = w((C, C))
    p['conv_b'] = jnp.zeros((1, C), jnp.float32)

    # fusion head
    p['wr'] = w((H, 256));   p['br'] = jnp.zeros((1, 256), jnp.float32)
    p['wp'] = w((1, 64), dtype=jnp.float32)          # VPU path, keep f32
    p['bp'] = jnp.zeros((1, 64), jnp.float32)
    p['wmp_m'] = w((C, 256)); p['wmp_p'] = w((64, 256))
    p['bmp'] = jnp.zeros((1, 256), jnp.float32)
    p['wf_r'] = w((256, 256)); p['wf_m'] = w((256, 256))
    p['bf'] = jnp.zeros((1, 256), jnp.float32)
    p['ws'] = w((1, 256), dtype=jnp.float32)         # VPU lane-reduce, keep f32
    p['bs'] = jnp.zeros((1, 1), jnp.float32)
    return p


# ----------------------------------------------------------------------------
# Forward wrapper: one pallas_call, grid over batch
# ----------------------------------------------------------------------------
@jax.jit
def review_metadata_score_forward(params, review_input_ids, review_attention_mask,
                                  meta_input_ids, meta_attention_mask, price):
    del meta_attention_mask  # unused in the reference forward()
    p = params
    B, Lr = review_input_ids.shape
    _, Lm = meta_input_ids.shape
    H = p['pos_emb'].shape[1]
    C = p['meta_emb'].shape[1]

    rev_ids = review_input_ids.astype(jnp.int32)
    meta_ids = meta_input_ids.astype(jnp.int32)
    # additive attention mask precomputed once in the wrapper
    neg_mask = ((1.0 - review_attention_mask.astype(jnp.float32)) * -1e9
                ).reshape(B, 1, Lr)
    price3 = price.reshape(B, 1, 1).astype(jnp.float32)

    resident = [p[k] for k in (
        'pos_emb', 'lne_g', 'lne_b',
        'wqkv', 'bqkv', 'wo', 'bo', 'ln1_g', 'ln1_b',
        'w1', 'b1', 'w2', 'b2', 'ln2_g', 'ln2_b',
        'conv_w0', 'conv_w1', 'conv_w2', 'conv_b',
        'wr', 'br', 'wp', 'bp',
        'wmp_m', 'wmp_p', 'bmp',
        'wf_r', 'wf_m', 'bf', 'ws', 'bs')]

    in_args = [p['tok_emb'], p['meta_emb'], neg_mask, price3] + resident
    in_specs = ([pl.BlockSpec(memory_space=pl.ANY),            # tok_emb in HBM
                 pl.BlockSpec(memory_space=pl.ANY),            # meta_emb in HBM
                 pl.BlockSpec((None, 1, Lr), lambda b, *_: (b, 0, 0)),
                 pl.BlockSpec((None, 1, 1), lambda b, *_: (b, 0, 0))]
                + [_res_spec(w) for w in resident])

    grid_spec = pltpu.PrefetchScalarGridSpec(
        num_scalar_prefetch=2,            # rev_ids, meta_ids -> SMEM
        grid=(B,),
        in_specs=in_specs,
        out_specs=(pl.BlockSpec((None, 1, 128), lambda b, *_: (b, 0, 0)),
                   pl.BlockSpec((None, 1, 256), lambda b, *_: (b, 0, 0))),
        scratch_shapes=[pltpu.VMEM((Lr, H), jnp.float32),
                        pltpu.VMEM((Lm, C), jnp.float32),
                        pltpu.SemaphoreType.DMA((Lr,)),
                        pltpu.SemaphoreType.DMA((Lm,))],
    )

    score_lanes, fused3 = pl.pallas_call(
        fused_forward_kernel,
        out_shape=(jax.ShapeDtypeStruct((B, 1, 128), jnp.float32),
                   jax.ShapeDtypeStruct((B, 1, 256), jnp.float32)),
        grid_spec=grid_spec,
        compiler_params=pltpu.CompilerParams(
            dimension_semantics=("parallel",),     # split batch across TCs (v7x)
            vmem_limit_bytes=32 * 1024 * 1024),
    )(rev_ids, meta_ids, *in_args)

    return score_lanes[:, 0, 0], fused3[:, 0, :]


# ----------------------------------------------------------------------------
# Main
# ----------------------------------------------------------------------------
if __name__ == "__main__":
    B, Lr, H, F = 2, 8, 128, 512         # stand-in BERT dims (H lane-aligned)
    Lm, C = 16, 128                      # meta sequence / embedding dims
    BERT_VOCAB, META_VOCAB = 64, 32

    key = jax.random.PRNGKey(0)
    k_param, k_rev, k_meta, k_price = jax.random.split(key, 4)

    params = init_params(k_param, bert_vocab=BERT_VOCAB, Lr=Lr, H=H, F=F,
                         meta_vocab=META_VOCAB, C=C)

    review_input_ids = jax.random.randint(k_rev, (B, Lr), 1, BERT_VOCAB, jnp.int32)
    review_attention_mask = jnp.ones((B, Lr), jnp.int32).at[1, Lr - 2:].set(0)
    meta_input_ids = jax.random.randint(k_meta, (B, Lm), 0, META_VOCAB, jnp.int32)
    meta_attention_mask = (meta_input_ids != 0).astype(jnp.int32)
    price = jax.random.uniform(k_price, (B,), jnp.float32, 1.0, 100.0)

    score, fused_output = review_metadata_score_forward(
        params, review_input_ids, review_attention_mask,
        meta_input_ids, meta_attention_mask, price)

    jax.block_until_ready((score, fused_output))
    assert score.shape == (B,) and fused_output.shape == (B, 256)
    assert jnp.all(jnp.isfinite(score)) and jnp.all(jnp.isfinite(fused_output))
    print("KERNEL_OK")
</pallas_src>

<mosaic_0001>
module attributes {stable_mosaic.version = 11 : i64} {
  func.func @fused_forward_kernel(%arg0: i32, %arg1: memref<2x8xi32, #tpu.memory_space<smem>>, %arg2: memref<2x16xi32, #tpu.memory_space<smem>>, %arg3: memref<64x128xf32, #tpu.memory_space<any>>, %arg4: memref<32x128xf32, #tpu.memory_space<any>>, %arg5: memref<1x1x8xf32, #tpu.memory_space<vmem>>, %arg6: memref<1x1x1xf32, #tpu.memory_space<vmem>>, %arg7: memref<8x128xf32, #tpu.memory_space<vmem>>, %arg8: memref<1x128xf32, #tpu.memory_space<vmem>>, %arg9: memref<1x128xf32, #tpu.memory_space<vmem>>, %arg10: memref<128x384xbf16, #tpu.memory_space<vmem>>, %arg11: memref<1x384xf32, #tpu.memory_space<vmem>>, %arg12: memref<128x128xbf16, #tpu.memory_space<vmem>>, %arg13: memref<1x128xf32, #tpu.memory_space<vmem>>, %arg14: memref<1x128xf32, #tpu.memory_space<vmem>>, %arg15: memref<1x128xf32, #tpu.memory_space<vmem>>, %arg16: memref<128x512xbf16, #tpu.memory_space<vmem>>, %arg17: memref<1x512xf32, #tpu.memory_space<vmem>>, %arg18: memref<512x128xbf16, #tpu.memory_space<vmem>>, %arg19: memref<1x128xf32, #tpu.memory_space<vmem>>, %arg20: memref<1x128xf32, #tpu.memory_space<vmem>>, %arg21: memref<1x128xf32, #tpu.memory_space<vmem>>, %arg22: memref<128x128xbf16, #tpu.memory_space<vmem>>, %arg23: memref<128x128xbf16, #tpu.memory_space<vmem>>, %arg24: memref<128x128xbf16, #tpu.memory_space<vmem>>, %arg25: memref<1x128xf32, #tpu.memory_space<vmem>>, %arg26: memref<128x256xbf16, #tpu.memory_space<vmem>>, %arg27: memref<1x256xf32, #tpu.memory_space<vmem>>, %arg28: memref<1x64xf32, #tpu.memory_space<vmem>>, %arg29: memref<1x64xf32, #tpu.memory_space<vmem>>, %arg30: memref<128x256xbf16, #tpu.memory_space<vmem>>, %arg31: memref<64x256xbf16, #tpu.memory_space<vmem>>, %arg32: memref<1x256xf32, #tpu.memory_space<vmem>>, %arg33: memref<256x256xbf16, #tpu.memory_space<vmem>>, %arg34: memref<256x256xbf16, #tpu.memory_space<vmem>>, %arg35: memref<1x256xf32, #tpu.memory_space<vmem>>, %arg36: memref<1x256xf32, #tpu.memory_space<vmem>>, %arg37: memref<1x1xf32, #tpu.memory_space<vmem>>, %arg38: memref<1x1x128xf32, #tpu.memory_space<vmem>>, %arg39: memref<1x1x256xf32, #tpu.memory_space<vmem>>, %arg40: memref<8x128xf32, #tpu.memory_space<vmem>>, %arg41: memref<16x128xf32, #tpu.memory_space<vmem>>, %arg42: memref<8x!tpu.dma_semaphore, #tpu.memory_space<semaphore_mem>>, %arg43: memref<16x!tpu.dma_semaphore, #tpu.memory_space<semaphore_mem>>) attributes {dimension_semantics = [#tpu.dimension_semantics<parallel>], iteration_bounds = array<i64: 2>, scalar_prefetch = 2 : i64, scratch_operands = 4 : i64, tpu.core_type = #tpu.core_type<tc>, window_params = [{}, {}, {transform_indices = @transform_2, window_bounds = array<i64: 1, 1, 8>}, {transform_indices = @transform_3, window_bounds = array<i64: 1, 1, 1>}, {pipeline_mode = #tpu.pipeline_mode<synchronous>, transform_indices = @transform_4, window_bounds = array<i64: 8, 128>}, {pipeline_mode = #tpu.pipeline_mode<synchronous>, transform_indices = @transform_5, window_bounds = array<i64: 1, 128>}, {pipeline_mode = #tpu.pipeline_mode<synchronous>, transform_indices = @transform_6, window_bounds = array<i64: 1, 128>}, {pipeline_mode = #tpu.pipeline_mode<synchronous>, transform_indices = @transform_7, window_bounds = array<i64: 128, 384>}, {pipeline_mode = #tpu.pipeline_mode<synchronous>, transform_indices = @transform_8, window_bounds = array<i64: 1, 384>}, {pipeline_mode = #tpu.pipeline_mode<synchronous>, transform_indices = @transform_9, window_bounds = array<i64: 128, 128>}, {pipeline_mode = #tpu.pipeline_mode<synchronous>, transform_indices = @transform_10, window_bounds = array<i64: 1, 128>}, {pipeline_mode = #tpu.pipeline_mode<synchronous>, transform_indices = @transform_11, window_bounds = array<i64: 1, 128>}, {pipeline_mode = #tpu.pipeline_mode<synchronous>, transform_indices = @transform_12, window_bounds = array<i64: 1, 128>}, {pipeline_mode = #tpu.pipeline_mode<synchronous>, transform_indices = @transform_13, window_bounds = array<i64: 128, 512>}, {pipeline_mode = #tpu.pipeline_mode<synchronous>, transform_indices = @transform_14, window_bounds = array<i64: 1, 512>}, {pipeline_mode = #tpu.pipeline_mode<synchronous>, transform_indices = @transform_15, window_bounds = array<i64: 512, 128>}, {pipeline_mode = #tpu.pipeline_mode<synchronous>, transform_indices = @transform_16, window_bounds = array<i64: 1, 128>}, {pipeline_mode = #tpu.pipeline_mode<synchronous>, transform_indices = @transform_17, window_bounds = array<i64: 1, 128>}, {pipeline_mode = #tpu.pipeline_mode<synchronous>, transform_indices = @transform_18, window_bounds = array<i64: 1, 128>}, {pipeline_mode = #tpu.pipeline_mode<synchronous>, transform_indices = @transform_19, window_bounds = array<i64: 128, 128>}, {pipeline_mode = #tpu.pipeline_mode<synchronous>, transform_indices = @transform_20, window_bounds = array<i64: 128, 128>}, {pipeline_mode = #tpu.pipeline_mode<synchronous>, transform_indices = @transform_21, window_bounds = array<i64: 128, 128>}, {pipeline_mode = #tpu.pipeline_mode<synchronous>, transform_indices = @transform_22, window_bounds = array<i64: 1, 128>}, {pipeline_mode = #tpu.pipeline_mode<synchronous>, transform_indices = @transform_23, window_bounds = array<i64: 128, 256>}, {pipeline_mode = #tpu.pipeline_mode<synchronous>, transform_indices = @transform_24, window_bounds = array<i64: 1, 256>}, {pipeline_mode = #tpu.pipeline_mode<synchronous>, transform_indices = @transform_25, window_bounds = array<i64: 1, 64>}, {pipeline_mode = #tpu.pipeline_mode<synchronous>, transform_indices = @transform_26, window_bounds = array<i64: 1, 64>}, {pipeline_mode = #tpu.pipeline_mode<synchronous>, transform_indices = @transform_27, window_bounds = array<i64: 128, 256>}, {pipeline_mode = #tpu.pipeline_mode<synchronous>, transform_indices = @transform_28, window_bounds = array<i64: 64, 256>}, {pipeline_mode = #tpu.pipeline_mode<synchronous>, transform_indices = @transform_29, window_bounds = array<i64: 1, 256>}, {pipeline_mode = #tpu.pipeline_mode<synchronous>, transform_indices = @transform_30, window_bounds = array<i64: 256, 256>}, {pipeline_mode = #tpu.pipeline_mode<synchronous>, transform_indices = @transform_31, window_bounds = array<i64: 256, 256>}, {pipeline_mode = #tpu.pipeline_mode<synchronous>, transform_indices = @transform_32, window_bounds = array<i64: 1, 256>}, {pipeline_mode = #tpu.pipeline_mode<synchronous>, transform_indices = @transform_33, window_bounds = array<i64: 1, 256>}, {pipeline_mode = #tpu.pipeline_mode<synchronous>, transform_indices = @transform_34, window_bounds = array<i64: 1, 1>}, {transform_indices = @transform_35, window_bounds = array<i64: 1, 1, 128>}, {transform_indices = @transform_36, window_bounds = array<i64: 1, 1, 256>}]} {
    %0 = arith.index_cast %arg0 : i32 to index
    %c0 = arith.constant 0 : index
    %1 = memref.load %arg1[%0, %c0] : memref<2x8xi32, #tpu.memory_space<smem>>
    %c0_i32 = arith.constant 0 : i32
    %c0_i32_0 = arith.constant 0 : i32
    %2 = tpu.memref_slice %arg3[%1, %c0_i32_0] : memref<64x128xf32, #tpu.memory_space<any>> -> memref<1x128xf32, #tpu.memory_space<any>>
    %c0_i32_1 = arith.constant 0 : i32
    %c0_i32_2 = arith.constant 0 : i32
    %3 = tpu.memref_slice %arg40[%c0_i32_1, %c0_i32_2] : memref<8x128xf32, #tpu.memory_space<vmem>> -> memref<1x128xf32, #tpu.memory_space<vmem>>
    %4 = tpu.memref_slice %arg42[%c0_i32] : memref<8x!tpu.dma_semaphore, #tpu.memory_space<semaphore_mem>> -> memref<1x!tpu.dma_semaphore, #tpu.memory_space<semaphore_mem>>
    %5 = tpu.memref_squeeze %4 : memref<1x!tpu.dma_semaphore, #tpu.memory_space<semaphore_mem>> -> memref<!tpu.dma_semaphore, #tpu.memory_space<semaphore_mem>>
    tpu.enqueue_dma source(%2 : memref<1x128xf32, #tpu.memory_space<any>>) target(%3 : memref<1x128xf32, #tpu.memory_space<vmem>>) target_semaphore(%5 : memref<!tpu.dma_semaphore, #tpu.memory_space<semaphore_mem>>)
    %6 = arith.index_cast %arg0 : i32 to index
    %c1 = arith.constant 1 : index
    %7 = memref.load %arg1[%6, %c1] : memref<2x8xi32, #tpu.memory_space<smem>>
    %c1_i32 = arith.constant 1 : i32
    %c0_i32_3 = arith.constant 0 : i32
    %8 = tpu.memref_slice %arg3[%7, %c0_i32_3] : memref<64x128xf32, #tpu.memory_space<any>> -> memref<1x128xf32, #tpu.memory_space<any>>
    %c1_i32_4 = arith.constant 1 : i32
    %c0_i32_5 = arith.constant 0 : i32
    %9 = tpu.memref_slice %arg40[%c1_i32_4, %c0_i32_5] : memref<8x128xf32, #tpu.memory_space<vmem>> -> memref<1x128xf32, #tpu.memory_space<vmem>>
    %10 = tpu.memref_slice %arg42[%c1_i32] : memref<8x!tpu.dma_semaphore, #tpu.memory_space<semaphore_mem>> -> memref<1x!tpu.dma_semaphore, #tpu.memory_space<semaphore_mem>>
    %11 = tpu.memref_squeeze %10 : memref<1x!tpu.dma_semaphore, #tpu.memory_space<semaphore_mem>> -> memref<!tpu.dma_semaphore, #tpu.memory_space<semaphore_mem>>
    tpu.enqueue_dma source(%8 : memref<1x128xf32, #tpu.memory_space<any>>) target(%9 : memref<1x128xf32, #tpu.memory_space<vmem>>) target_semaphore(%11 : memref<!tpu.dma_semaphore, #tpu.memory_space<semaphore_mem>>)
    %12 = arith.index_cast %arg0 : i32 to index
    %c2 = arith.constant 2 : index
    %13 = memref.load %arg1[%12, %c2] : memref<2x8xi32, #tpu.memory_space<smem>>
    %c2_i32 = arith.constant 2 : i32
    %c0_i32_6 = arith.constant 0 : i32
    %14 = tpu.memref_slice %arg3[%13, %c0_i32_6] : memref<64x128xf32, #tpu.memory_space<any>> -> memref<1x128xf32, #tpu.memory_space<any>>
    %c2_i32_7 = arith.constant 2 : i32
    %c0_i32_8 = arith.constant 0 : i32
    %15 = tpu.memref_slice %arg40[%c2_i32_7, %c0_i32_8] : memref<8x128xf32, #tpu.memory_space<vmem>> -> memref<1x128xf32, #tpu.memory_space<vmem>>
    %16 = tpu.memref_slice %arg42[%c2_i32] : memref<8x!tpu.dma_semaphore, #tpu.memory_space<semaphore_mem>> -> memref<1x!tpu.dma_semaphore, #tpu.memory_space<semaphore_mem>>
    %17 = tpu.memref_squeeze %16 : memref<1x!tpu.dma_semaphore, #tpu.memory_space<semaphore_mem>> -> memref<!tpu.dma_semaphore, #tpu.memory_space<semaphore_mem>>
    tpu.enqueue_dma source(%14 : memref<1x128xf32, #tpu.memory_space<any>>) target(%15 : memref<1x128xf32, #tpu.memory_space<vmem>>) target_semaphore(%17 : memref<!tpu.dma_semaphore, #tpu.memory_space<semaphore_mem>>)
    %18 = arith.index_cast %arg0 : i32 to index
    %c3 = arith.constant 3 : index
    %19 = memref.load %arg1[%18, %c3] : memref<2x8xi32, #tpu.memory_space<smem>>
    %c3_i32 = arith.constant 3 : i32
    %c0_i32_9 = arith.constant 0 : i32
    %20 = tpu.memref_slice %arg3[%19, %c0_i32_9] : memref<64x128xf32, #tpu.memory_space<any>> -> memref<1x128xf32, #tpu.memory_space<any>>
    %c3_i32_10 = arith.constant 3 : i32
    %c0_i32_11 = arith.constant 0 : i32
    %21 = tpu.memref_slice %arg40[%c3_i32_10, %c0_i32_11] : memref<8x128xf32, #tpu.memory_space<vmem>> -> memref<1x128xf32, #tpu.memory_space<vmem>>
    %22 = tpu.memref_slice %arg42[%c3_i32] : memref<8x!tpu.dma_semaphore, #tpu.memory_space<semaphore_mem>> -> memref<1x!tpu.dma_semaphore, #tpu.memory_space<semaphore_mem>>
    %23 = tpu.memref_squeeze %22 : memref<1x!tpu.dma_semaphore, #tpu.memory_space<semaphore_mem>> -> memref<!tpu.dma_semaphore, #tpu.memory_space<semaphore_mem>>
    tpu.enqueue_dma source(%20 : memref<1x128xf32, #tpu.memory_space<any>>) target(%21 : memref<1x128xf32, #tpu.memory_space<vmem>>) target_semaphore(%23 : memref<!tpu.dma_semaphore, #tpu.memory_space<semaphore_mem>>)
    %24 = arith.index_cast %arg0 : i32 to index
    %c4 = arith.constant 4 : index
    %25 = memref.load %arg1[%24, %c4] : memref<2x8xi32, #tpu.memory_space<smem>>
    %c4_i32 = arith.constant 4 : i32
    %c0_i32_12 = arith.constant 0 : i32
    %26 = tpu.memref_slice %arg3[%25, %c0_i32_12] : memref<64x128xf32, #tpu.memory_space<any>> -> memref<1x128xf32, #tpu.memory_space<any>>
    %c4_i32_13 = arith.constant 4 : i32
    %c0_i32_14 = arith.constant 0 : i32
    %27 = tpu.memref_slice %arg40[%c4_i32_13, %c0_i32_14] : memref<8x128xf32, #tpu.memory_space<vmem>> -> memref<1x128xf32, #tpu.memory_space<vmem>>
    %28 = tpu.memref_slice %arg42[%c4_i32] : memref<8x!tpu.dma_semaphore, #tpu.memory_space<semaphore_mem>> -> memref<1x!tpu.dma_semaphore, #tpu.memory_space<semaphore_mem>>
    %29 = tpu.memref_squeeze %28 : memref<1x!tpu.dma_semaphore, #tpu.memory_space<semaphore_mem>> -> memref<!tpu.dma_semaphore, #tpu.memory_space<semaphore_mem>>
    tpu.enqueue_dma source(%26 : memref<1x128xf32, #tpu.memory_space<any>>) target(%27 : memref<1x128xf32, #tpu.memory_space<vmem>>) target_semaphore(%29 : memref<!tpu.dma_semaphore, #tpu.memory_space<semaphore_mem>>)
    %30 = arith.index_cast %arg0 : i32 to index
    %c5 = arith.constant 5 : index
    %31 = memref.load %arg1[%30, %c5] : memref<2x8xi32, #tpu.memory_space<smem>>
    %c5_i32 = arith.constant 5 : i32
    %c0_i32_15 = arith.constant 0 : i32
    %32 = tpu.memref_slice %arg3[%31, %c0_i32_15] : memref<64x128xf32, #tpu.memory_space<any>> -> memref<1x128xf32, #tpu.memory_space<any>>
    %c5_i32_16 = arith.constant 5 : i32
    %c0_i32_17 = arith.constant 0 : i32
    %33 = tpu.memref_slice %arg40[%c5_i32_16, %c0_i32_17] : memref<8x128xf32, #tpu.memory_space<vmem>> -> memref<1x128xf32, #tpu.memory_space<vmem>>
    %34 = tpu.memref_slice %arg42[%c5_i32] : memref<8x!tpu.dma_semaphore, #tpu.memory_space<semaphore_mem>> -> memref<1x!tpu.dma_semaphore, #tpu.memory_space<semaphore_mem>>
    %35 = tpu.memref_squeeze %34 : memref<1x!tpu.dma_semaphore, #tpu.memory_space<semaphore_mem>> -> memref<!tpu.dma_semaphore, #tpu.memory_space<semaphore_mem>>
    tpu.enqueue_dma source(%32 : memref<1x128xf32, #tpu.memory_space<any>>) target(%33 : memref<1x128xf32, #tpu.memory_space<vmem>>) target_semaphore(%35 : memref<!tpu.dma_semaphore, #tpu.memory_space<semaphore_mem>>)
    %36 = arith.index_cast %arg0 : i32 to index
    %c6 = arith.constant 6 : index
    %37 = memref.load %arg1[%36, %c6] : memref<2x8xi32, #tpu.memory_space<smem>>
    %c6_i32 = arith.constant 6 : i32
    %c0_i32_18 = arith.constant 0 : i32
    %38 = tpu.memref_slice %arg3[%37, %c0_i32_18] : memref<64x128xf32, #tpu.memory_space<any>> -> memref<1x128xf32, #tpu.memory_space<any>>
    %c6_i32_19 = arith.constant 6 : i32
    %c0_i32_20 = arith.constant 0 : i32
    %39 = tpu.memref_slice %arg40[%c6_i32_19, %c0_i32_20] : memref<8x128xf32, #tpu.memory_space<vmem>> -> memref<1x128xf32, #tpu.memory_space<vmem>>
    %40 = tpu.memref_slice %arg42[%c6_i32] : memref<8x!tpu.dma_semaphore, #tpu.memory_space<semaphore_mem>> -> memref<1x!tpu.dma_semaphore, #tpu.memory_space<semaphore_mem>>
    %41 = tpu.memref_squeeze %40 : memref<1x!tpu.dma_semaphore, #tpu.memory_space<semaphore_mem>> -> memref<!tpu.dma_semaphore, #tpu.memory_space<semaphore_mem>>
    tpu.enqueue_dma source(%38 : memref<1x128xf32, #tpu.memory_space<any>>) target(%39 : memref<1x128xf32, #tpu.memory_space<vmem>>) target_semaphore(%41 : memref<!tpu.dma_semaphore, #tpu.memory_space<semaphore_mem>>)
    %42 = arith.index_cast %arg0 : i32 to index
    %c7 = arith.constant 7 : index
    %43 = memref.load %arg1[%42, %c7] : memref<2x8xi32, #tpu.memory_space<smem>>
    %c7_i32 = arith.constant 7 : i32
    %c0_i32_21 = arith.constant 0 : i32
    %44 = tpu.memref_slice %arg3[%43, %c0_i32_21] : memref<64x128xf32, #tpu.memory_space<any>> -> memref<1x128xf32, #tpu.memory_space<any>>
    %c7_i32_22 = arith.constant 7 : i32
    %c0_i32_23 = arith.constant 0 : i32
    %45 = tpu.memref_slice %arg40[%c7_i32_22, %c0_i32_23] : memref<8x128xf32, #tpu.memory_space<vmem>> -> memref<1x128xf32, #tpu.memory_space<vmem>>
    %46 = tpu.memref_slice %arg42[%c7_i32] : memref<8x!tpu.dma_semaphore, #tpu.memory_space<semaphore_mem>> -> memref<1x!tpu.dma_semaphore, #tpu.memory_space<semaphore_mem>>
    %47 = tpu.memref_squeeze %46 : memref<1x!tpu.dma_semaphore, #tpu.memory_space<semaphore_mem>> -> memref<!tpu.dma_semaphore, #tpu.memory_space<semaphore_mem>>
    tpu.enqueue_dma source(%44 : memref<1x128xf32, #tpu.memory_space<any>>) target(%45 : memref<1x128xf32, #tpu.memory_space<vmem>>) target_semaphore(%47 : memref<!tpu.dma_semaphore, #tpu.memory_space<semaphore_mem>>)
    %48 = arith.index_cast %arg0 : i32 to index
    %c0_24 = arith.constant 0 : index
    %49 = memref.load %arg2[%48, %c0_24] : memref<2x16xi32, #tpu.memory_space<smem>>
    %c0_i32_25 = arith.constant 0 : i32
    %c0_i32_26 = arith.constant 0 : i32
    %50 = tpu.memref_slice %arg4[%49, %c0_i32_26] : memref<32x128xf32, #tpu.memory_space<any>> -> memref<1x128xf32, #tpu.memory_space<any>>
    %c0_i32_27 = arith.constant 0 : i32
    %c0_i32_28 = arith.constant 0 : i32
    %51 = tpu.memref_slice %arg41[%c0_i32_27, %c0_i32_28] : memref<16x128xf32, #tpu.memory_space<vmem>> -> memref<1x128xf32, #tpu.memory_space<vmem>>
    %52 = tpu.memref_slice %arg43[%c0_i32_25] : memref<16x!tpu.dma_semaphore, #tpu.memory_space<semaphore_mem>> -> memref<1x!tpu.dma_semaphore, #tpu.memory_space<semaphore_mem>>
    %53 = tpu.memref_squeeze %52 : memref<1x!tpu.dma_semaphore, #tpu.memory_space<semaphore_mem>> -> memref<!tpu.dma_semaphore, #tpu.memory_space<semaphore_mem>>
    tpu.enqueue_dma source(%50 : memref<1x128xf32, #tpu.memory_space<any>>) target(%51 : memref<1x128xf32, #tpu.memory_space<vmem>>) target_semaphore(%53 : memref<!tpu.dma_semaphore, #tpu.memory_space<semaphore_mem>>)
    %54 = arith.index_cast %arg0 : i32 to index
    %c1_29 = arith.constant 1 : index
    %55 = memref.load %arg2[%54, %c1_29] : memref<2x16xi32, #tpu.memory_space<smem>>
    %c1_i32_30 = arith.constant 1 : i32
    %c0_i32_31 = arith.constant 0 : i32
    %56 = tpu.memref_slice %arg4[%55, %c0_i32_31] : memref<32x128xf32, #tpu.memory_space<any>> -> memref<1x128xf32, #tpu.memory_space<any>>
    %c1_i32_32 = arith.constant 1 : i32
    %c0_i32_33 = arith.constant 0 : i32
    %57 = tpu.memref_slice %arg41[%c1_i32_32, %c0_i32_33] : memref<16x128xf32, #tpu.memory_space<vmem>> -> memref<1x128xf32, #tpu.memory_space<vmem>>
    %58 = tpu.memref_slice %arg43[%c1_i32_30] : memref<16x!tpu.dma_semaphore, #tpu.memory_space<semaphore_mem>> -> memref<1x!tpu.dma_semaphore, #tpu.memory_space<semaphore_mem>>
    %59 = tpu.memref_squeeze %58 : memref<1x!tpu.dma_semaphore, #tpu.memory_space<semaphore_mem>> -> memref<!tpu.dma_semaphore, #tpu.memory_space<semaphore_mem>>
    tpu.enqueue_dma source(%56 : memref<1x128xf32, #tpu.memory_space<any>>) target(%57 : memref<1x128xf32, #tpu.memory_space<vmem>>) target_semaphore(%59 : memref<!tpu.dma_semaphore, #tpu.memory_space<semaphore_mem>>)
    %60 = arith.index_cast %arg0 : i32 to index
    %c2_34 = arith.constant 2 : index
    %61 = memref.load %arg2[%60, %c2_34] : memref<2x16xi32, #tpu.memory_space<smem>>
    %c2_i32_35 = arith.constant 2 : i32
    %c0_i32_36 = arith.constant 0 : i32
    %62 = tpu.memref_slice %arg4[%61, %c0_i32_36] : memref<32x128xf32, #tpu.memory_space<any>> -> memref<1x128xf32, #tpu.memory_space<any>>
    %c2_i32_37 = arith.constant 2 : i32
    %c0_i32_38 = arith.constant 0 : i32
    %63 = tpu.memref_slice %arg41[%c2_i32_37, %c0_i32_38] : memref<16x128xf32, #tpu.memory_space<vmem>> -> memref<1x128xf32, #tpu.memory_space<vmem>>
    %64 = tpu.memref_slice %arg43[%c2_i32_35] : memref<16x!tpu.dma_semaphore, #tpu.memory_space<semaphore_mem>> -> memref<1x!tpu.dma_semaphore, #tpu.memory_space<semaphore_mem>>
    %65 = tpu.memref_squeeze %64 : memref<1x!tpu.dma_semaphore, #tpu.memory_space<semaphore_mem>> -> memref<!tpu.dma_semaphore, #tpu.memory_space<semaphore_mem>>
    tpu.enqueue_dma source(%62 : memref<1x128xf32, #tpu.memory_space<any>>) target(%63 : memref<1x128xf32, #tpu.memory_space<vmem>>) target_semaphore(%65 : memref<!tpu.dma_semaphore, #tpu.memory_space<semaphore_mem>>)
    %66 = arith.index_cast %arg0 : i32 to index
    %c3_39 = arith.constant 3 : index
    %67 = memref.load %arg2[%66, %c3_39] : memref<2x16xi32, #tpu.memory_space<smem>>
    %c3_i32_40 = arith.constant 3 : i32
    %c0_i32_41 = arith.constant 0 : i32
    %68 = tpu.memref_slice %arg4[%67, %c0_i32_41] : memref<32x128xf32, #tpu.memory_space<any>> -> memref<1x128xf32, #tpu.memory_space<any>>
    %c3_i32_42 = arith.constant 3 : i32
    %c0_i32_43 = arith.constant 0 : i32
    %69 = tpu.memref_slice %arg41[%c3_i32_42, %c0_i32_43] : memref<16x128xf32, #tpu.memory_space<vmem>> -> memref<1x128xf32, #tpu.memory_space<vmem>>
    %70 = tpu.memref_slice %arg43[%c3_i32_40] : memref<16x!tpu.dma_semaphore, #tpu.memory_space<semaphore_mem>> -> memref<1x!tpu.dma_semaphore, #tpu.memory_space<semaphore_mem>>
    %71 = tpu.memref_squeeze %70 : memref<1x!tpu.dma_semaphore, #tpu.memory_space<semaphore_mem>> -> memref<!tpu.dma_semaphore, #tpu.memory_space<semaphore_mem>>
    tpu.enqueue_dma source(%68 : memref<1x128xf32, #tpu.memory_space<any>>) target(%69 : memref<1x128xf32, #tpu.memory_space<vmem>>) target_semaphore(%71 : memref<!tpu.dma_semaphore, #tpu.memory_space<semaphore_mem>>)
    %72 = arith.index_cast %arg0 : i32 to index
    %c4_44 = arith.constant 4 : index
    %73 = memref.load %arg2[%72, %c4_44] : memref<2x16xi32, #tpu.memory_space<smem>>
    %c4_i32_45 = arith.constant 4 : i32
    %c0_i32_46 = arith.constant 0 : i32
    %74 = tpu.memref_slice %arg4[%73, %c0_i32_46] : memref<32x128xf32, #tpu.memory_space<any>> -> memref<1x128xf32, #tpu.memory_space<any>>
    %c4_i32_47 = arith.constant 4 : i32
    %c0_i32_48 = arith.constant 0 : i32
    %75 = tpu.memref_slice %arg41[%c4_i32_47, %c0_i32_48] : memref<16x128xf32, #tpu.memory_space<vmem>> -> memref<1x128xf32, #tpu.memory_space<vmem>>
    %76 = tpu.memref_slice %arg43[%c4_i32_45] : memref<16x!tpu.dma_semaphore, #tpu.memory_space<semaphore_mem>> -> memref<1x!tpu.dma_semaphore, #tpu.memory_space<semaphore_mem>>
    %77 = tpu.memref_squeeze %76 : memref<1x!tpu.dma_semaphore, #tpu.memory_space<semaphore_mem>> -> memref<!tpu.dma_semaphore, #tpu.memory_space<semaphore_mem>>
    tpu.enqueue_dma source(%74 : memref<1x128xf32, #tpu.memory_space<any>>) target(%75 : memref<1x128xf32, #tpu.memory_space<vmem>>) target_semaphore(%77 : memref<!tpu.dma_semaphore, #tpu.memory_space<semaphore_mem>>)
    %78 = arith.index_cast %arg0 : i32 to index
    %c5_49 = arith.constant 5 : index
    %79 = memref.load %arg2[%78, %c5_49] : memref<2x16xi32, #tpu.memory_space<smem>>
    %c5_i32_50 = arith.constant 5 : i32
    %c0_i32_51 = arith.constant 0 : i32
    %80 = tpu.memref_slice %arg4[%79, %c0_i32_51] : memref<32x128xf32, #tpu.memory_space<any>> -> memref<1x128xf32, #tpu.memory_space<any>>
    %c5_i32_52 = arith.constant 5 : i32
    %c0_i32_53 = arith.constant 0 : i32
    %81 = tpu.memref_slice %arg41[%c5_i32_52, %c0_i32_53] : memref<16x128xf32, #tpu.memory_space<vmem>> -> memref<1x128xf32, #tpu.memory_space<vmem>>
    %82 = tpu.memref_slice %arg43[%c5_i32_50] : memref<16x!tpu.dma_semaphore, #tpu.memory_space<semaphore_mem>> -> memref<1x!tpu.dma_semaphore, #tpu.memory_space<semaphore_mem>>
    %83 = tpu.memref_squeeze %82 : memref<1x!tpu.dma_semaphore, #tpu.memory_space<semaphore_mem>> -> memref<!tpu.dma_semaphore, #tpu.memory_space<semaphore_mem>>
    tpu.enqueue_dma source(%80 : memref<1x128xf32, #tpu.memory_space<any>>) target(%81 : memref<1x128xf32, #tpu.memory_space<vmem>>) target_semaphore(%83 : memref<!tpu.dma_semaphore, #tpu.memory_space<semaphore_mem>>)
    %84 = arith.index_cast %arg0 : i32 to index
    %c6_54 = arith.constant 6 : index
    %85 = memref.load %arg2[%84, %c6_54] : memref<2x16xi32, #tpu.memory_space<smem>>
    %c6_i32_55 = arith.constant 6 : i32
    %c0_i32_56 = arith.constant 0 : i32
    %86 = tpu.memref_slice %arg4[%85, %c0_i32_56] : memref<32x128xf32, #tpu.memory_space<any>> -> memref<1x128xf32, #tpu.memory_space<any>>
    %c6_i32_57 = arith.constant 6 : i32
    %c0_i32_58 = arith.constant 0 : i32
    %87 = tpu.memref_slice %arg41[%c6_i32_57, %c0_i32_58] : memref<16x128xf32, #tpu.memory_space<vmem>> -> memref<1x128xf32, #tpu.memory_space<vmem>>
    %88 = tpu.memref_slice %arg43[%c6_i32_55] : memref<16x!tpu.dma_semaphore, #tpu.memory_space<semaphore_mem>> -> memref<1x!tpu.dma_semaphore, #tpu.memory_space<semaphore_mem>>
    %89 = tpu.memref_squeeze %88 : memref<1x!tpu.dma_semaphore, #tpu.memory_space<semaphore_mem>> -> memref<!tpu.dma_semaphore, #tpu.memory_space<semaphore_mem>>
    tpu.enqueue_dma source(%86 : memref<1x128xf32, #tpu.memory_space<any>>) target(%87 : memref<1x128xf32, #tpu.memory_space<vmem>>) target_semaphore(%89 : memref<!tpu.dma_semaphore, #tpu.memory_space<semaphore_mem>>)
    %90 = arith.index_cast %arg0 : i32 to index
    %c7_59 = arith.constant 7 : index
    %91 = memref.load %arg2[%90, %c7_59] : memref<2x16xi32, #tpu.memory_space<smem>>
    %c7_i32_60 = arith.constant 7 : i32
    %c0_i32_61 = arith.constant 0 : i32
    %92 = tpu.memref_slice %arg4[%91, %c0_i32_61] : memref<32x128xf32, #tpu.memory_space<any>> -> memref<1x128xf32, #tpu.memory_space<any>>
    %c7_i32_62 = arith.constant 7 : i32
    %c0_i32_63 = arith.constant 0 : i32
    %93 = tpu.memref_slice %arg41[%c7_i32_62, %c0_i32_63] : memref<16x128xf32, #tpu.memory_space<vmem>> -> memref<1x128xf32, #tpu.memory_space<vmem>>
    %94 = tpu.memref_slice %arg43[%c7_i32_60] : memref<16x!tpu.dma_semaphore, #tpu.memory_space<semaphore_mem>> -> memref<1x!tpu.dma_semaphore, #tpu.memory_space<semaphore_mem>>
    %95 = tpu.memref_squeeze %94 : memref<1x!tpu.dma_semaphore, #tpu.memory_space<semaphore_mem>> -> memref<!tpu.dma_semaphore, #tpu.memory_space<semaphore_mem>>
    tpu.enqueue_dma source(%92 : memref<1x128xf32, #tpu.memory_space<any>>) target(%93 : memref<1x128xf32, #tpu.memory_space<vmem>>) target_semaphore(%95 : memref<!tpu.dma_semaphore, #tpu.memory_space<semaphore_mem>>)
    %96 = arith.index_cast %arg0 : i32 to index
    %c8 = arith.constant 8 : index
    %97 = memref.load %arg2[%96, %c8] : memref<2x16xi32, #tpu.memory_space<smem>>
    %c8_i32 = arith.constant 8 : i32
    %c0_i32_64 = arith.constant 0 : i32
    %98 = tpu.memref_slice %arg4[%97, %c0_i32_64] : memref<32x128xf32, #tpu.memory_space<any>> -> memref<1x128xf32, #tpu.memory_space<any>>
    %c8_i32_65 = arith.constant 8 : i32
    %c0_i32_66 = arith.constant 0 : i32
    %99 = tpu.memref_slice %arg41[%c8_i32_65, %c0_i32_66] : memref<16x128xf32, #tpu.memory_space<vmem>> -> memref<1x128xf32, #tpu.memory_space<vmem>>
    %100 = tpu.memref_slice %arg43[%c8_i32] : memref<16x!tpu.dma_semaphore, #tpu.memory_space<semaphore_mem>> -> memref<1x!tpu.dma_semaphore, #tpu.memory_space<semaphore_mem>>
    %101 = tpu.memref_squeeze %100 : memref<1x!tpu.dma_semaphore, #tpu.memory_space<semaphore_mem>> -> memref<!tpu.dma_semaphore, #tpu.memory_space<semaphore_mem>>
    tpu.enqueue_dma source(%98 : memref<1x128xf32, #tpu.memory_space<any>>) target(%99 : memref<1x128xf32, #tpu.memory_space<vmem>>) target_semaphore(%101 : memref<!tpu.dma_semaphore, #tpu.memory_space<semaphore_mem>>)
    %102 = arith.index_cast %arg0 : i32 to index
    %c9 = arith.constant 9 : index
    %103 = memref.load %arg2[%102, %c9] : memref<2x16xi32, #tpu.memory_space<smem>>
    %c9_i32 = arith.constant 9 : i32
    %c0_i32_67 = arith.constant 0 : i32
    %104 = tpu.memref_slice %arg4[%103, %c0_i32_67] : memref<32x128xf32, #tpu.memory_space<any>> -> memref<1x128xf32, #tpu.memory_space<any>>
    %c9_i32_68 = arith.constant 9 : i32
    %c0_i32_69 = arith.constant 0 : i32
    %105 = tpu.memref_slice %arg41[%c9_i32_68, %c0_i32_69] : memref<16x128xf32, #tpu.memory_space<vmem>> -> memref<1x128xf32, #tpu.memory_space<vmem>>
    %106 = tpu.memref_slice %arg43[%c9_i32] : memref<16x!tpu.dma_semaphore, #tpu.memory_space<semaphore_mem>> -> memref<1x!tpu.dma_semaphore, #tpu.memory_space<semaphore_mem>>
    %107 = tpu.memref_squeeze %106 : memref<1x!tpu.dma_semaphore, #tpu.memory_space<semaphore_mem>> -> memref<!tpu.dma_semaphore, #tpu.memory_space<semaphore_mem>>
    tpu.enqueue_dma source(%104 : memref<1x128xf32, #tpu.memory_space<any>>) target(%105 : memref<1x128xf32, #tpu.memory_space<vmem>>) target_semaphore(%107 : memref<!tpu.dma_semaphore, #tpu.memory_space<semaphore_mem>>)
    %108 = arith.index_cast %arg0 : i32 to index
    %c10 = arith.constant 10 : index
    %109 = memref.load %arg2[%108, %c10] : memref<2x16xi32, #tpu.memory_space<smem>>
    %c10_i32 = arith.constant 10 : i32
    %c0_i32_70 = arith.constant 0 : i32
    %110 = tpu.memref_slice %arg4[%109, %c0_i32_70] : memref<32x128xf32, #tpu.memory_space<any>> -> memref<1x128xf32, #tpu.memory_space<any>>
    %c10_i32_71 = arith.constant 10 : i32
    %c0_i32_72 = arith.constant 0 : i32
    %111 = tpu.memref_slice %arg41[%c10_i32_71, %c0_i32_72] : memref<16x128xf32, #tpu.memory_space<vmem>> -> memref<1x128xf32, #tpu.memory_space<vmem>>
    %112 = tpu.memref_slice %arg43[%c10_i32] : memref<16x!tpu.dma_semaphore, #tpu.memory_space<semaphore_mem>> -> memref<1x!tpu.dma_semaphore, #tpu.memory_space<semaphore_mem>>
    %113 = tpu.memref_squeeze %112 : memref<1x!tpu.dma_semaphore, #tpu.memory_space<semaphore_mem>> -> memref<!tpu.dma_semaphore, #tpu.memory_space<semaphore_mem>>
    tpu.enqueue_dma source(%110 : memref<1x128xf32, #tpu.memory_space<any>>) target(%111 : memref<1x128xf32, #tpu.memory_space<vmem>>) target_semaphore(%113 : memref<!tpu.dma_semaphore, #tpu.memory_space<semaphore_mem>>)
    %114 = arith.index_cast %arg0 : i32 to index
    %c11 = arith.constant 11 : index
    %115 = memref.load %arg2[%114, %c11] : memref<2x16xi32, #tpu.memory_space<smem>>
    %c11_i32 = arith.constant 11 : i32
    %c0_i32_73 = arith.constant 0 : i32
    %116 = tpu.memref_slice %arg4[%115, %c0_i32_73] : memref<32x128xf32, #tpu.memory_space<any>> -> memref<1x128xf32, #tpu.memory_space<any>>
    %c11_i32_74 = arith.constant 11 : i32
    %c0_i32_75 = arith.constant 0 : i32
    %117 = tpu.memref_slice %arg41[%c11_i32_74, %c0_i32_75] : memref<16x128xf32, #tpu.memory_space<vmem>> -> memref<1x128xf32, #tpu.memory_space<vmem>>
    %118 = tpu.memref_slice %arg43[%c11_i32] : memref<16x!tpu.dma_semaphore, #tpu.memory_space<semaphore_mem>> -> memref<1x!tpu.dma_semaphore, #tpu.memory_space<semaphore_mem>>
    %119 = tpu.memref_squeeze %118 : memref<1x!tpu.dma_semaphore, #tpu.memory_space<semaphore_mem>> -> memref<!tpu.dma_semaphore, #tpu.memory_space<semaphore_mem>>
    tpu.enqueue_dma source(%116 : memref<1x128xf32, #tpu.memory_space<any>>) target(%117 : memref<1x128xf32, #tpu.memory_space<vmem>>) target_semaphore(%119 : memref<!tpu.dma_semaphore, #tpu.memory_space<semaphore_mem>>)
    %120 = arith.index_cast %arg0 : i32 to index
    %c12 = arith.constant 12 : index
    %121 = memref.load %arg2[%120, %c12] : memref<2x16xi32, #tpu.memory_space<smem>>
    %c12_i32 = arith.constant 12 : i32
    %c0_i32_76 = arith.constant 0 : i32
    %122 = tpu.memref_slice %arg4[%121, %c0_i32_76] : memref<32x128xf32, #tpu.memory_space<any>> -> memref<1x128xf32, #tpu.memory_space<any>>
    %c12_i32_77 = arith.constant 12 : i32
    %c0_i32_78 = arith.constant 0 : i32
    %123 = tpu.memref_slice %arg41[%c12_i32_77, %c0_i32_78] : memref<16x128xf32, #tpu.memory_space<vmem>> -> memref<1x128xf32, #tpu.memory_space<vmem>>
    %124 = tpu.memref_slice %arg43[%c12_i32] : memref<16x!tpu.dma_semaphore, #tpu.memory_space<semaphore_mem>> -> memref<1x!tpu.dma_semaphore, #tpu.memory_space<semaphore_mem>>
    %125 = tpu.memref_squeeze %124 : memref<1x!tpu.dma_semaphore, #tpu.memory_space<semaphore_mem>> -> memref<!tpu.dma_semaphore, #tpu.memory_space<semaphore_mem>>
    tpu.enqueue_dma source(%122 : memref<1x128xf32, #tpu.memory_space<any>>) target(%123 : memref<1x128xf32, #tpu.memory_space<vmem>>) target_semaphore(%125 : memref<!tpu.dma_semaphore, #tpu.memory_space<semaphore_mem>>)
    %126 = arith.index_cast %arg0 : i32 to index
    %c13 = arith.constant 13 : index
    %127 = memref.load %arg2[%126, %c13] : memref<2x16xi32, #tpu.memory_space<smem>>
    %c13_i32 = arith.constant 13 : i32
    %c0_i32_79 = arith.constant 0 : i32
    %128 = tpu.memref_slice %arg4[%127, %c0_i32_79] : memref<32x128xf32, #tpu.memory_space<any>> -> memref<1x128xf32, #tpu.memory_space<any>>
    %c13_i32_80 = arith.constant 13 : i32
    %c0_i32_81 = arith.constant 0 : i32
    %129 = tpu.memref_slice %arg41[%c13_i32_80, %c0_i32_81] : memref<16x128xf32, #tpu.memory_space<vmem>> -> memref<1x128xf32, #tpu.memory_space<vmem>>
    %130 = tpu.memref_slice %arg43[%c13_i32] : memref<16x!tpu.dma_semaphore, #tpu.memory_space<semaphore_mem>> -> memref<1x!tpu.dma_semaphore, #tpu.memory_space<semaphore_mem>>
    %131 = tpu.memref_squeeze %130 : memref<1x!tpu.dma_semaphore, #tpu.memory_space<semaphore_mem>> -> memref<!tpu.dma_semaphore, #tpu.memory_space<semaphore_mem>>
    tpu.enqueue_dma source(%128 : memref<1x128xf32, #tpu.memory_space<any>>) target(%129 : memref<1x128xf32, #tpu.memory_space<vmem>>) target_semaphore(%131 : memref<!tpu.dma_semaphore, #tpu.memory_space<semaphore_mem>>)
    %132 = arith.index_cast %arg0 : i32 to index
    %c14 = arith.constant 14 : index
    %133 = memref.load %arg2[%132, %c14] : memref<2x16xi32, #tpu.memory_space<smem>>
    %c14_i32 = arith.constant 14 : i32
    %c0_i32_82 = arith.constant 0 : i32
    %134 = tpu.memref_slice %arg4[%133, %c0_i32_82] : memref<32x128xf32, #tpu.memory_space<any>> -> memref<1x128xf32, #tpu.memory_space<any>>
    %c14_i32_83 = arith.constant 14 : i32
    %c0_i32_84 = arith.constant 0 : i32
    %135 = tpu.memref_slice %arg41[%c14_i32_83, %c0_i32_84] : memref<16x128xf32, #tpu.memory_space<vmem>> -> memref<1x128xf32, #tpu.memory_space<vmem>>
    %136 = tpu.memref_slice %arg43[%c14_i32] : memref<16x!tpu.dma_semaphore, #tpu.memory_space<semaphore_mem>> -> memref<1x!tpu.dma_semaphore, #tpu.memory_space<semaphore_mem>>
    %137 = tpu.memref_squeeze %136 : memref<1x!tpu.dma_semaphore, #tpu.memory_space<semaphore_mem>> -> memref<!tpu.dma_semaphore, #tpu.memory_space<semaphore_mem>>
    tpu.enqueue_dma source(%134 : memref<1x128xf32, #tpu.memory_space<any>>) target(%135 : memref<1x128xf32, #tpu.memory_space<vmem>>) target_semaphore(%137 : memref<!tpu.dma_semaphore, #tpu.memory_space<semaphore_mem>>)
    %138 = arith.index_cast %arg0 : i32 to index
    %c15 = arith.constant 15 : index
    %139 = memref.load %arg2[%138, %c15] : memref<2x16xi32, #tpu.memory_space<smem>>
    %c15_i32 = arith.constant 15 : i32
    %c0_i32_85 = arith.constant 0 : i32
    %140 = tpu.memref_slice %arg4[%139, %c0_i32_85] : memref<32x128xf32, #tpu.memory_space<any>> -> memref<1x128xf32, #tpu.memory_space<any>>
    %c15_i32_86 = arith.constant 15 : i32
    %c0_i32_87 = arith.constant 0 : i32
    %141 = tpu.memref_slice %arg41[%c15_i32_86, %c0_i32_87] : memref<16x128xf32, #tpu.memory_space<vmem>> -> memref<1x128xf32, #tpu.memory_space<vmem>>
    %142 = tpu.memref_slice %arg43[%c15_i32] : memref<16x!tpu.dma_semaphore, #tpu.memory_space<semaphore_mem>> -> memref<1x!tpu.dma_semaphore, #tpu.memory_space<semaphore_mem>>
    %143 = tpu.memref_squeeze %142 : memref<1x!tpu.dma_semaphore, #tpu.memory_space<semaphore_mem>> -> memref<!tpu.dma_semaphore, #tpu.memory_space<semaphore_mem>>
    tpu.enqueue_dma source(%140 : memref<1x128xf32, #tpu.memory_space<any>>) target(%141 : memref<1x128xf32, #tpu.memory_space<vmem>>) target_semaphore(%143 : memref<!tpu.dma_semaphore, #tpu.memory_space<semaphore_mem>>)
    %c0_i32_88 = arith.constant 0 : i32
    %c0_i32_89 = arith.constant 0 : i32
    %c0_i32_90 = arith.constant 0 : i32
    %144 = tpu.memref_slice %arg3[%c0_i32_89, %c0_i32_90] : memref<64x128xf32, #tpu.memory_space<any>> -> memref<1x128xf32, #tpu.memory_space<any>>
    %c0_i32_91 = arith.constant 0 : i32
    %c0_i32_92 = arith.constant 0 : i32
    %145 = tpu.memref_slice %arg40[%c0_i32_91, %c0_i32_92] : memref<8x128xf32, #tpu.memory_space<vmem>> -> memref<1x128xf32, #tpu.memory_space<vmem>>
    %146 = tpu.memref_slice %arg42[%c0_i32_88] : memref<8x!tpu.dma_semaphore, #tpu.memory_space<semaphore_mem>> -> memref<1x!tpu.dma_semaphore, #tpu.memory_space<semaphore_mem>>
    %147 = tpu.memref_squeeze %146 : memref<1x!tpu.dma_semaphore, #tpu.memory_space<semaphore_mem>> -> memref<!tpu.dma_semaphore, #tpu.memory_space<semaphore_mem>>
    tpu.wait_dma2 semaphore(%147 : memref<!tpu.dma_semaphore, #tpu.memory_space<semaphore_mem>>) src(%144 : memref<1x128xf32, #tpu.memory_space<any>>) dst(%145 : memref<1x128xf32, #tpu.memory_space<vmem>>)
    %c1_i32_93 = arith.constant 1 : i32
    %c0_i32_94 = arith.constant 0 : i32
    %c0_i32_95 = arith.constant 0 : i32
    %148 = tpu.memref_slice %arg3[%c0_i32_94, %c0_i32_95] : memref<64x128xf32, #tpu.memory_space<any>> -> memref<1x128xf32, #tpu.memory_space<any>>
    %c1_i32_96 = arith.constant 1 : i32
    %c0_i32_97 = arith.constant 0 : i32
    %149 = tpu.memref_slice %arg40[%c1_i32_96, %c0_i32_97] : memref<8x128xf32, #tpu.memory_space<vmem>> -> memref<1x128xf32, #tpu.memory_space<vmem>>
    %150 = tpu.memref_slice %arg42[%c1_i32_93] : memref<8x!tpu.dma_semaphore, #tpu.memory_space<semaphore_mem>> -> memref<1x!tpu.dma_semaphore, #tpu.memory_space<semaphore_mem>>
    %151 = tpu.memref_squeeze %150 : memref<1x!tpu.dma_semaphore, #tpu.memory_space<semaphore_mem>> -> memref<!tpu.dma_semaphore, #tpu.memory_space<semaphore_mem>>
    tpu.wait_dma2 semaphore(%151 : memref<!tpu.dma_semaphore, #tpu.memory_space<semaphore_mem>>) src(%148 : memref<1x128xf32, #tpu.memory_space<any>>) dst(%149 : memref<1x128xf32, #tpu.memory_space<vmem>>)
    %c2_i32_98 = arith.constant 2 : i32
    %c0_i32_99 = arith.constant 0 : i32
    %c0_i32_100 = arith.constant 0 : i32
    %152 = tpu.memref_slice %arg3[%c0_i32_99, %c0_i32_100] : memref<64x128xf32, #tpu.memory_space<any>> -> memref<1x128xf32, #tpu.memory_space<any>>
    %c2_i32_101 = arith.constant 2 : i32
    %c0_i32_102 = arith.constant 0 : i32
    %153 = tpu.memref_slice %arg40[%c2_i32_101, %c0_i32_102] : memref<8x128xf32, #tpu.memory_space<vmem>> -> memref<1x128xf32, #tpu.memory_space<vmem>>
    %154 = tpu.memref_slice %arg42[%c2_i32_98] : memref<8x!tpu.dma_semaphore, #tpu.memory_space<semaphore_mem>> -> memref<1x!tpu.dma_semaphore, #tpu.memory_space<semaphore_mem>>
    %155 = tpu.memref_squeeze %154 : memref<1x!tpu.dma_semaphore, #tpu.memory_space<semaphore_mem>> -> memref<!tpu.dma_semaphore, #tpu.memory_space<semaphore_mem>>
    tpu.wait_dma2 semaphore(%155 : memref<!tpu.dma_semaphore, #tpu.memory_space<semaphore_mem>>) src(%152 : memref<1x128xf32, #tpu.memory_space<any>>) dst(%153 : memref<1x128xf32, #tpu.memory_space<vmem>>)
    %c3_i32_103 = arith.constant 3 : i32
    %c0_i32_104 = arith.constant 0 : i32
    %c0_i32_105 = arith.constant 0 : i32
    %156 = tpu.memref_slice %arg3[%c0_i32_104, %c0_i32_105] : memref<64x128xf32, #tpu.memory_space<any>> -> memref<1x128xf32, #tpu.memory_space<any>>
    %c3_i32_106 = arith.constant 3 : i32
    %c0_i32_107 = arith.constant 0 : i32
    %157 = tpu.memref_slice %arg40[%c3_i32_106, %c0_i32_107] : memref<8x128xf32, #tpu.memory_space<vmem>> -> memref<1x128xf32, #tpu.memory_space<vmem>>
    %158 = tpu.memref_slice %arg42[%c3_i32_103] : memref<8x!tpu.dma_semaphore, #tpu.memory_space<semaphore_mem>> -> memref<1x!tpu.dma_semaphore, #tpu.memory_space<semaphore_mem>>
    %159 = tpu.memref_squeeze %158 : memref<1x!tpu.dma_semaphore, #tpu.memory_space<semaphore_mem>> -> memref<!tpu.dma_semaphore, #tpu.memory_space<semaphore_mem>>
    tpu.wait_dma2 semaphore(%159 : memref<!tpu.dma_semaphore, #tpu.memory_space<semaphore_mem>>) src(%156 : memref<1x128xf32, #tpu.memory_space<any>>) dst(%157 : memref<1x128xf32, #tpu.memory_space<vmem>>)
    %c4_i32_108 = arith.constant 4 : i32
    %c0_i32_109 = arith.constant 0 : i32
    %c0_i32_110 = arith.constant 0 : i32
    %160 = tpu.memref_slice %arg3[%c0_i32_109, %c0_i32_110] : memref<64x128xf32, #tpu.memory_space<any>> -> memref<1x128xf32, #tpu.memory_space<any>>
    %c4_i32_111 = arith.constant 4 : i32
    %c0_i32_112 = arith.constant 0 : i32
    %161 = tpu.memref_slice %arg40[%c4_i32_111, %c0_i32_112] : memref<8x128xf32, #tpu.memory_space<vmem>> -> memref<1x128xf32, #tpu.memory_space<vmem>>
    %162 = tpu.memref_slice %arg42[%c4_i32_108] : memref<8x!tpu.dma_semaphore, #tpu.memory_space<semaphore_mem>> -> memref<1x!tpu.dma_semaphore, #tpu.memory_space<semaphore_mem>>
    %163 = tpu.memref_squeeze %162 : memref<1x!tpu.dma_semaphore, #tpu.memory_space<semaphore_mem>> -> memref<!tpu.dma_semaphore, #tpu.memory_space<semaphore_mem>>
    tpu.wait_dma2 semaphore(%163 : memref<!tpu.dma_semaphore, #tpu.memory_space<semaphore_mem>>) src(%160 : memref<1x128xf32, #tpu.memory_space<any>>) dst(%161 : memref<1x128xf32, #tpu.memory_space<vmem>>)
    %c5_i32_113 = arith.constant 5 : i32
    %c0_i32_114 = arith.constant 0 : i32
    %c0_i32_115 = arith.constant 0 : i32
    %164 = tpu.memref_slice %arg3[%c0_i32_114, %c0_i32_115] : memref<64x128xf32, #tpu.memory_space<any>> -> memref<1x128xf32, #tpu.memory_space<any>>
    %c5_i32_116 = arith.constant 5 : i32
    %c0_i32_117 = arith.constant 0 : i32
    %165 = tpu.memref_slice %arg40[%c5_i32_116, %c0_i32_117] : memref<8x128xf32, #tpu.memory_space<vmem>> -> memref<1x128xf32, #tpu.memory_space<vmem>>
    %166 = tpu.memref_slice %arg42[%c5_i32_113] : memref<8x!tpu.dma_semaphore, #tpu.memory_space<semaphore_mem>> -> memref<1x!tpu.dma_semaphore, #tpu.memory_space<semaphore_mem>>
    %167 = tpu.memref_squeeze %166 : memref<1x!tpu.dma_semaphore, #tpu.memory_space<semaphore_mem>> -> memref<!tpu.dma_semaphore, #tpu.memory_space<semaphore_mem>>
    tpu.wait_dma2 semaphore(%167 : memref<!tpu.dma_semaphore, #tpu.memory_space<semaphore_mem>>) src(%164 : memref<1x128xf32, #tpu.memory_space<any>>) dst(%165 : memref<1x128xf32, #tpu.memory_space<vmem>>)
    %c6_i32_118 = arith.constant 6 : i32
    %c0_i32_119 = arith.constant 0 : i32
    %c0_i32_120 = arith.constant 0 : i32
    %168 = tpu.memref_slice %arg3[%c0_i32_119, %c0_i32_120] : memref<64x128xf32, #tpu.memory_space<any>> -> memref<1x128xf32, #tpu.memory_space<any>>
    %c6_i32_121 = arith.constant 6 : i32
    %c0_i32_122 = arith.constant 0 : i32
    %169 = tpu.memref_slice %arg40[%c6_i32_121, %c0_i32_122] : memref<8x128xf32, #tpu.memory_space<vmem>> -> memref<1x128xf32, #tpu.memory_space<vmem>>
    %170 = tpu.memref_slice %arg42[%c6_i32_118] : memref<8x!tpu.dma_semaphore, #tpu.memory_space<semaphore_mem>> -> memref<1x!tpu.dma_semaphore, #tpu.memory_space<semaphore_mem>>
    %171 = tpu.memref_squeeze %170 : memref<1x!tpu.dma_semaphore, #tpu.memory_space<semaphore_mem>> -> memref<!tpu.dma_semaphore, #tpu.memory_space<semaphore_mem>>
    tpu.wait_dma2 semaphore(%171 : memref<!tpu.dma_semaphore, #tpu.memory_space<semaphore_mem>>) src(%168 : memref<1x128xf32, #tpu.memory_space<any>>) dst(%169 : memref<1x128xf32, #tpu.memory_space<vmem>>)
    %c7_i32_123 = arith.constant 7 : i32
    %c0_i32_124 = arith.constant 0 : i32
    %c0_i32_125 = arith.constant 0 : i32
    %172 = tpu.memref_slice %arg3[%c0_i32_124, %c0_i32_125] : memref<64x128xf32, #tpu.memory_space<any>> -> memref<1x128xf32, #tpu.memory_space<any>>
    %c7_i32_126 = arith.constant 7 : i32
    %c0_i32_127 = arith.constant 0 : i32
    %173 = tpu.memref_slice %arg40[%c7_i32_126, %c0_i32_127] : memref<8x128xf32, #tpu.memory_space<vmem>> -> memref<1x128xf32, #tpu.memory_space<vmem>>
    %174 = tpu.memref_slice %arg42[%c7_i32_123] : memref<8x!tpu.dma_semaphore, #tpu.memory_space<semaphore_mem>> -> memref<1x!tpu.dma_semaphore, #tpu.memory_space<semaphore_mem>>
    %175 = tpu.memref_squeeze %174 : memref<1x!tpu.dma_semaphore, #tpu.memory_space<semaphore_mem>> -> memref<!tpu.dma_semaphore, #tpu.memory_space<semaphore_mem>>
    tpu.wait_dma2 semaphore(%175 : memref<!tpu.dma_semaphore, #tpu.memory_space<semaphore_mem>>) src(%172 : memref<1x128xf32, #tpu.memory_space<any>>) dst(%173 : memref<1x128xf32, #tpu.memory_space<vmem>>)
    %c0_i32_128 = arith.constant 0 : i32
    %c0_i32_129 = arith.constant 0 : i32
    %c0_i32_130 = arith.constant 0 : i32
    %176 = tpu.memref_slice %arg4[%c0_i32_129, %c0_i32_130] : memref<32x128xf32, #tpu.memory_space<any>> -> memref<1x128xf32, #tpu.memory_space<any>>
    %c0_i32_131 = arith.constant 0 : i32
    %c0_i32_132 = arith.constant 0 : i32
    %177 = tpu.memref_slice %arg41[%c0_i32_131, %c0_i32_132] : memref<16x128xf32, #tpu.memory_space<vmem>> -> memref<1x128xf32, #tpu.memory_space<vmem>>
    %178 = tpu.memref_slice %arg43[%c0_i32_128] : memref<16x!tpu.dma_semaphore, #tpu.memory_space<semaphore_mem>> -> memref<1x!tpu.dma_semaphore, #tpu.memory_space<semaphore_mem>>
    %179 = tpu.memref_squeeze %178 : memref<1x!tpu.dma_semaphore, #tpu.memory_space<semaphore_mem>> -> memref<!tpu.dma_semaphore, #tpu.memory_space<semaphore_mem>>
    tpu.wait_dma2 semaphore(%179 : memref<!tpu.dma_semaphore, #tpu.memory_space<semaphore_mem>>) src(%176 : memref<1x128xf32, #tpu.memory_space<any>>) dst(%177 : memref<1x128xf32, #tpu.memory_space<vmem>>)
    %c1_i32_133 = arith.constant 1 : i32
    %c0_i32_134 = arith.constant 0 : i32
    %c0_i32_135 = arith.constant 0 : i32
    %180 = tpu.memref_slice %arg4[%c0_i32_134, %c0_i32_135] : memref<32x128xf32, #tpu.memory_space<any>> -> memref<1x128xf32, #tpu.memory_space<any>>
    %c1_i32_136 = arith.constant 1 : i32
    %c0_i32_137 = arith.constant 0 : i32
    %181 = tpu.memref_slice %arg41[%c1_i32_136, %c0_i32_137] : memref<16x128xf32, #tpu.memory_space<vmem>> -> memref<1x128xf32, #tpu.memory_space<vmem>>
    %182 = tpu.memref_slice %arg43[%c1_i32_133] : memref<16x!tpu.dma_semaphore, #tpu.memory_space<semaphore_mem>> -> memref<1x!tpu.dma_semaphore, #tpu.memory_space<semaphore_mem>>
    %183 = tpu.memref_squeeze %182 : memref<1x!tpu.dma_semaphore, #tpu.memory_space<semaphore_mem>> -> memref<!tpu.dma_semaphore, #tpu.memory_space<semaphore_mem>>
    tpu.wait_dma2 semaphore(%183 : memref<!tpu.dma_semaphore, #tpu.memory_space<semaphore_mem>>) src(%180 : memref<1x128xf32, #tpu.memory_space<any>>) dst(%181 : memref<1x128xf32, #tpu.memory_space<vmem>>)
    %c2_i32_138 = arith.constant 2 : i32
    %c0_i32_139 = arith.constant 0 : i32
    %c0_i32_140 = arith.constant 0 : i32
    %184 = tpu.memref_slice %arg4[%c0_i32_139, %c0_i32_140] : memref<32x128xf32, #tpu.memory_space<any>> -> memref<1x128xf32, #tpu.memory_space<any>>
    %c2_i32_141 = arith.constant 2 : i32
    %c0_i32_142 = arith.constant 0 : i32
    %185 = tpu.memref_slice %arg41[%c2_i32_141, %c0_i32_142] : memref<16x128xf32, #tpu.memory_space<vmem>> -> memref<1x128xf32, #tpu.memory_space<vmem>>
    %186 = tpu.memref_slice %arg43[%c2_i32_138] : memref<16x!tpu.dma_semaphore, #tpu.memory_space<semaphore_mem>> -> memref<1x!tpu.dma_semaphore, #tpu.memory_space<semaphore_mem>>
    %187 = tpu.memref_squeeze %186 : memref<1x!tpu.dma_semaphore, #tpu.memory_space<semaphore_mem>> -> memref<!tpu.dma_semaphore, #tpu.memory_space<semaphore_mem>>
    tpu.wait_dma2 semaphore(%187 : memref<!tpu.dma_semaphore, #tpu.memory_space<semaphore_mem>>) src(%184 : memref<1x128xf32, #tpu.memory_space<any>>) dst(%185 : memref<1x128xf32, #tpu.memory_space<vmem>>)
    %c3_i32_143 = arith.constant 3 : i32
    %c0_i32_144 = arith.constant 0 : i32
    %c0_i32_145 = arith.constant 0 : i32
    %188 = tpu.memref_slice %arg4[%c0_i32_144, %c0_i32_145] : memref<32x128xf32, #tpu.memory_space<any>> -> memref<1x128xf32, #tpu.memory_space<any>>
    %c3_i32_146 = arith.constant 3 : i32
    %c0_i32_147 = arith.constant 0 : i32
    %189 = tpu.memref_slice %arg41[%c3_i32_146, %c0_i32_147] : memref<16x128xf32, #tpu.memory_space<vmem>> -> memref<1x128xf32, #tpu.memory_space<vmem>>
    %190 = tpu.memref_slice %arg43[%c3_i32_143] : memref<16x!tpu.dma_semaphore, #tpu.memory_space<semaphore_mem>> -> memref<1x!tpu.dma_semaphore, #tpu.memory_space<semaphore_mem>>
    %191 = tpu.memref_squeeze %190 : memref<1x!tpu.dma_semaphore, #tpu.memory_space<semaphore_mem>> -> memref<!tpu.dma_semaphore, #tpu.memory_space<semaphore_mem>>
    tpu.wait_dma2 semaphore(%191 : memref<!tpu.dma_semaphore, #tpu.memory_space<semaphore_mem>>) src(%188 : memref<1x128xf32, #tpu.memory_space<any>>) dst(%189 : memref<1x128xf32, #tpu.memory_space<vmem>>)
    %c4_i32_148 = arith.constant 4 : i32
    %c0_i32_149 = arith.constant 0 : i32
    %c0_i32_150 = arith.constant 0 : i32
    %192 = tpu.memref_slice %arg4[%c0_i32_149, %c0_i32_150] : memref<32x128xf32, #tpu.memory_space<any>> -> memref<1x128xf32, #tpu.memory_space<any>>
    %c4_i32_151 = arith.constant 4 : i32
    %c0_i32_152 = arith.constant 0 : i32
    %193 = tpu.memref_slice %arg41[%c4_i32_151, %c0_i32_152] : memref<16x128xf32, #tpu.memory_space<vmem>> -> memref<1x128xf32, #tpu.memory_space<vmem>>
    %194 = tpu.memref_slice %arg43[%c4_i32_148] : memref<16x!tpu.dma_semaphore, #tpu.memory_space<semaphore_mem>> -> memref<1x!tpu.dma_semaphore, #tpu.memory_space<semaphore_mem>>
    %195 = tpu.memref_squeeze %194 : memref<1x!tpu.dma_semaphore, #tpu.memory_space<semaphore_mem>> -> memref<!tpu.dma_semaphore, #tpu.memory_space<semaphore_mem>>
    tpu.wait_dma2 semaphore(%195 : memref<!tpu.dma_semaphore, #tpu.memory_space<semaphore_mem>>) src(%192 : memref<1x128xf32, #tpu.memory_space<any>>) dst(%193 : memref<1x128xf32, #tpu.memory_space<vmem>>)
    %c5_i32_153 = arith.constant 5 : i32
    %c0_i32_154 = arith.constant 0 : i32
    %c0_i32_155 = arith.constant 0 : i32
    %196 = tpu.memref_slice %arg4[%c0_i32_154, %c0_i32_155] : memref<32x128xf32, #tpu.memory_space<any>> -> memref<1x128xf32, #tpu.memory_space<any>>
    %c5_i32_156 = arith.constant 5 : i32
    %c0_i32_157 = arith.constant 0 : i32
    %197 = tpu.memref_slice %arg41[%c5_i32_156, %c0_i32_157] : memref<16x128xf32, #tpu.memory_space<vmem>> -> memref<1x128xf32, #tpu.memory_space<vmem>>
    %198 = tpu.memref_slice %arg43[%c5_i32_153] : memref<16x!tpu.dma_semaphore, #tpu.memory_space<semaphore_mem>> -> memref<1x!tpu.dma_semaphore, #tpu.memory_space<semaphore_mem>>
    %199 = tpu.memref_squeeze %198 : memref<1x!tpu.dma_semaphore, #tpu.memory_space<semaphore_mem>> -> memref<!tpu.dma_semaphore, #tpu.memory_space<semaphore_mem>>
    tpu.wait_dma2 semaphore(%199 : memref<!tpu.dma_semaphore, #tpu.memory_space<semaphore_mem>>) src(%196 : memref<1x128xf32, #tpu.memory_space<any>>) dst(%197 : memref<1x128xf32, #tpu.memory_space<vmem>>)
    %c6_i32_158 = arith.constant 6 : i32
    %c0_i32_159 = arith.constant 0 : i32
    %c0_i32_160 = arith.constant 0 : i32
    %200 = tpu.memref_slice %arg4[%c0_i32_159, %c0_i32_160] : memref<32x128xf32, #tpu.memory_space<any>> -> memref<1x128xf32, #tpu.memory_space<any>>
    %c6_i32_161 = arith.constant 6 : i32
    %c0_i32_162 = arith.constant 0 : i32
    %201 = tpu.memref_slice %arg41[%c6_i32_161, %c0_i32_162] : memref<16x128xf32, #tpu.memory_space<vmem>> -> memref<1x128xf32, #tpu.memory_space<vmem>>
    %202 = tpu.memref_slice %arg43[%c6_i32_158] : memref<16x!tpu.dma_semaphore, #tpu.memory_space<semaphore_mem>> -> memref<1x!tpu.dma_semaphore, #tpu.memory_space<semaphore_mem>>
    %203 = tpu.memref_squeeze %202 : memref<1x!tpu.dma_semaphore, #tpu.memory_space<semaphore_mem>> -> memref<!tpu.dma_semaphore, #tpu.memory_space<semaphore_mem>>
    tpu.wait_dma2 semaphore(%203 : memref<!tpu.dma_semaphore, #tpu.memory_space<semaphore_mem>>) src(%200 : memref<1x128xf32, #tpu.memory_space<any>>) dst(%201 : memref<1x128xf32, #tpu.memory_space<vmem>>)
    %c7_i32_163 = arith.constant 7 : i32
    %c0_i32_164 = arith.constant 0 : i32
    %c0_i32_165 = arith.constant 0 : i32
    %204 = tpu.memref_slice %arg4[%c0_i32_164, %c0_i32_165] : memref<32x128xf32, #tpu.memory_space<any>> -> memref<1x128xf32, #tpu.memory_space<any>>
    %c7_i32_166 = arith.constant 7 : i32
    %c0_i32_167 = arith.constant 0 : i32
    %205 = tpu.memref_slice %arg41[%c7_i32_166, %c0_i32_167] : memref<16x128xf32, #tpu.memory_space<vmem>> -> memref<1x128xf32, #tpu.memory_space<vmem>>
    %206 = tpu.memref_slice %arg43[%c7_i32_163] : memref<16x!tpu.dma_semaphore, #tpu.memory_space<semaphore_mem>> -> memref<1x!tpu.dma_semaphore, #tpu.memory_space<semaphore_mem>>
    %207 = tpu.memref_squeeze %206 : memref<1x!tpu.dma_semaphore, #tpu.memory_space<semaphore_mem>> -> memref<!tpu.dma_semaphore, #tpu.memory_space<semaphore_mem>>
    tpu.wait_dma2 semaphore(%207 : memref<!tpu.dma_semaphore, #tpu.memory_space<semaphore_mem>>) src(%204 : memref<1x128xf32, #tpu.memory_space<any>>) dst(%205 : memref<1x128xf32, #tpu.memory_space<vmem>>)
    %c8_i32_168 = arith.constant 8 : i32
    %c0_i32_169 = arith.constant 0 : i32
    %c0_i32_170 = arith.constant 0 : i32
    %208 = tpu.memref_slice %arg4[%c0_i32_169, %c0_i32_170] : memref<32x128xf32, #tpu.memory_space<any>> -> memref<1x128xf32, #tpu.memory_space<any>>
    %c8_i32_171 = arith.constant 8 : i32
    %c0_i32_172 = arith.constant 0 : i32
    %209 = tpu.memref_slice %arg41[%c8_i32_171, %c0_i32_172] : memref<16x128xf32, #tpu.memory_space<vmem>> -> memref<1x128xf32, #tpu.memory_space<vmem>>
    %210 = tpu.memref_slice %arg43[%c8_i32_168] : memref<16x!tpu.dma_semaphore, #tpu.memory_space<semaphore_mem>> -> memref<1x!tpu.dma_semaphore, #tpu.memory_space<semaphore_mem>>
    %211 = tpu.memref_squeeze %210 : memref<1x!tpu.dma_semaphore, #tpu.memory_space<semaphore_mem>> -> memref<!tpu.dma_semaphore, #tpu.memory_space<semaphore_mem>>
    tpu.wait_dma2 semaphore(%211 : memref<!tpu.dma_semaphore, #tpu.memory_space<semaphore_mem>>) src(%208 : memref<1x128xf32, #tpu.memory_space<any>>) dst(%209 : memref<1x128xf32, #tpu.memory_space<vmem>>)
    %c9_i32_173 = arith.constant 9 : i32
    %c0_i32_174 = arith.constant 0 : i32
    %c0_i32_175 = arith.constant 0 : i32
    %212 = tpu.memref_slice %arg4[%c0_i32_174, %c0_i32_175] : memref<32x128xf32, #tpu.memory_space<any>> -> memref<1x128xf32, #tpu.memory_space<any>>
    %c9_i32_176 = arith.constant 9 : i32
    %c0_i32_177 = arith.constant 0 : i32
    %213 = tpu.memref_slice %arg41[%c9_i32_176, %c0_i32_177] : memref<16x128xf32, #tpu.memory_space<vmem>> -> memref<1x128xf32, #tpu.memory_space<vmem>>
    %214 = tpu.memref_slice %arg43[%c9_i32_173] : memref<16x!tpu.dma_semaphore, #tpu.memory_space<semaphore_mem>> -> memref<1x!tpu.dma_semaphore, #tpu.memory_space<semaphore_mem>>
    %215 = tpu.memref_squeeze %214 : memref<1x!tpu.dma_semaphore, #tpu.memory_space<semaphore_mem>> -> memref<!tpu.dma_semaphore, #tpu.memory_space<semaphore_mem>>
    tpu.wait_dma2 semaphore(%215 : memref<!tpu.dma_semaphore, #tpu.memory_space<semaphore_mem>>) src(%212 : memref<1x128xf32, #tpu.memory_space<any>>) dst(%213 : memref<1x128xf32, #tpu.memory_space<vmem>>)
    %c10_i32_178 = arith.constant 10 : i32
    %c0_i32_179 = arith.constant 0 : i32
    %c0_i32_180 = arith.constant 0 : i32
    %216 = tpu.memref_slice %arg4[%c0_i32_179, %c0_i32_180] : memref<32x128xf32, #tpu.memory_space<any>> -> memref<1x128xf32, #tpu.memory_space<any>>
    %c10_i32_181 = arith.constant 10 : i32
    %c0_i32_182 = arith.constant 0 : i32
    %217 = tpu.memref_slice %arg41[%c10_i32_181, %c0_i32_182] : memref<16x128xf32, #tpu.memory_space<vmem>> -> memref<1x128xf32, #tpu.memory_space<vmem>>
    %218 = tpu.memref_slice %arg43[%c10_i32_178] : memref<16x!tpu.dma_semaphore, #tpu.memory_space<semaphore_mem>> -> memref<1x!tpu.dma_semaphore, #tpu.memory_space<semaphore_mem>>
    %219 = tpu.memref_squeeze %218 : memref<1x!tpu.dma_semaphore, #tpu.memory_space<semaphore_mem>> -> memref<!tpu.dma_semaphore, #tpu.memory_space<semaphore_mem>>
    tpu.wait_dma2 semaphore(%219 : memref<!tpu.dma_semaphore, #tpu.memory_space<semaphore_mem>>) src(%216 : memref<1x128xf32, #tpu.memory_space<any>>) dst(%217 : memref<1x128xf32, #tpu.memory_space<vmem>>)
    %c11_i32_183 = arith.constant 11 : i32
    %c0_i32_184 = arith.constant 0 : i32
    %c0_i32_185 = arith.constant 0 : i32
    %220 = tpu.memref_slice %arg4[%c0_i32_184, %c0_i32_185] : memref<32x128xf32, #tpu.memory_space<any>> -> memref<1x128xf32, #tpu.memory_space<any>>
    %c11_i32_186 = arith.constant 11 : i32
    %c0_i32_187 = arith.constant 0 : i32
    %221 = tpu.memref_slice %arg41[%c11_i32_186, %c0_i32_187] : memref<16x128xf32, #tpu.memory_space<vmem>> -> memref<1x128xf32, #tpu.memory_space<vmem>>
    %222 = tpu.memref_slice %arg43[%c11_i32_183] : memref<16x!tpu.dma_semaphore, #tpu.memory_space<semaphore_mem>> -> memref<1x!tpu.dma_semaphore, #tpu.memory_space<semaphore_mem>>
    %223 = tpu.memref_squeeze %222 : memref<1x!tpu.dma_semaphore, #tpu.memory_space<semaphore_mem>> -> memref<!tpu.dma_semaphore, #tpu.memory_space<semaphore_mem>>
    tpu.wait_dma2 semaphore(%223 : memref<!tpu.dma_semaphore, #tpu.memory_space<semaphore_mem>>) src(%220 : memref<1x128xf32, #tpu.memory_space<any>>) dst(%221 : memref<1x128xf32, #tpu.memory_space<vmem>>)
    %c12_i32_188 = arith.constant 12 : i32
    %c0_i32_189 = arith.constant 0 : i32
    %c0_i32_190 = arith.constant 0 : i32
    %224 = tpu.memref_slice %arg4[%c0_i32_189, %c0_i32_190] : memref<32x128xf32, #tpu.memory_space<any>> -> memref<1x128xf32, #tpu.memory_space<any>>
    %c12_i32_191 = arith.constant 12 : i32
    %c0_i32_192 = arith.constant 0 : i32
    %225 = tpu.memref_slice %arg41[%c12_i32_191, %c0_i32_192] : memref<16x128xf32, #tpu.memory_space<vmem>> -> memref<1x128xf32, #tpu.memory_space<vmem>>
    %226 = tpu.memref_slice %arg43[%c12_i32_188] : memref<16x!tpu.dma_semaphore, #tpu.memory_space<semaphore_mem>> -> memref<1x!tpu.dma_semaphore, #tpu.memory_space<semaphore_mem>>
    %227 = tpu.memref_squeeze %226 : memref<1x!tpu.dma_semaphore, #tpu.memory_space<semaphore_mem>> -> memref<!tpu.dma_semaphore, #tpu.memory_space<semaphore_mem>>
    tpu.wait_dma2 semaphore(%227 : memref<!tpu.dma_semaphore, #tpu.memory_space<semaphore_mem>>) src(%224 : memref<1x128xf32, #tpu.memory_space<any>>) dst(%225 : memref<1x128xf32, #tpu.memory_space<vmem>>)
    %c13_i32_193 = arith.constant 13 : i32
    %c0_i32_194 = arith.constant 0 : i32
    %c0_i32_195 = arith.constant 0 : i32
    %228 = tpu.memref_slice %arg4[%c0_i32_194, %c0_i32_195] : memref<32x128xf32, #tpu.memory_space<any>> -> memref<1x128xf32, #tpu.memory_space<any>>
    %c13_i32_196 = arith.constant 13 : i32
    %c0_i32_197 = arith.constant 0 : i32
    %229 = tpu.memref_slice %arg41[%c13_i32_196, %c0_i32_197] : memref<16x128xf32, #tpu.memory_space<vmem>> -> memref<1x128xf32, #tpu.memory_space<vmem>>
    %230 = tpu.memref_slice %arg43[%c13_i32_193] : memref<16x!tpu.dma_semaphore, #tpu.memory_space<semaphore_mem>> -> memref<1x!tpu.dma_semaphore, #tpu.memory_space<semaphore_mem>>
    %231 = tpu.memref_squeeze %230 : memref<1x!tpu.dma_semaphore, #tpu.memory_space<semaphore_mem>> -> memref<!tpu.dma_semaphore, #tpu.memory_space<semaphore_mem>>
    tpu.wait_dma2 semaphore(%231 : memref<!tpu.dma_semaphore, #tpu.memory_space<semaphore_mem>>) src(%228 : memref<1x128xf32, #tpu.memory_space<any>>) dst(%229 : memref<1x128xf32, #tpu.memory_space<vmem>>)
    %c14_i32_198 = arith.constant 14 : i32
    %c0_i32_199 = arith.constant 0 : i32
    %c0_i32_200 = arith.constant 0 : i32
    %232 = tpu.memref_slice %arg4[%c0_i32_199, %c0_i32_200] : memref<32x128xf32, #tpu.memory_space<any>> -> memref<1x128xf32, #tpu.memory_space<any>>
    %c14_i32_201 = arith.constant 14 : i32
    %c0_i32_202 = arith.constant 0 : i32
    %233 = tpu.memref_slice %arg41[%c14_i32_201, %c0_i32_202] : memref<16x128xf32, #tpu.memory_space<vmem>> -> memref<1x128xf32, #tpu.memory_space<vmem>>
    %234 = tpu.memref_slice %arg43[%c14_i32_198] : memref<16x!tpu.dma_semaphore, #tpu.memory_space<semaphore_mem>> -> memref<1x!tpu.dma_semaphore, #tpu.memory_space<semaphore_mem>>
    %235 = tpu.memref_squeeze %234 : memref<1x!tpu.dma_semaphore, #tpu.memory_space<semaphore_mem>> -> memref<!tpu.dma_semaphore, #tpu.memory_space<semaphore_mem>>
    tpu.wait_dma2 semaphore(%235 : memref<!tpu.dma_semaphore, #tpu.memory_space<semaphore_mem>>) src(%232 : memref<1x128xf32, #tpu.memory_space<any>>) dst(%233 : memref<1x128xf32, #tpu.memory_space<vmem>>)
    %c15_i32_203 = arith.constant 15 : i32
    %c0_i32_204 = arith.constant 0 : i32
    %c0_i32_205 = arith.constant 0 : i32
    %236 = tpu.memref_slice %arg4[%c0_i32_204, %c0_i32_205] : memref<32x128xf32, #tpu.memory_space<any>> -> memref<1x128xf32, #tpu.memory_space<any>>
    %c15_i32_206 = arith.constant 15 : i32
    %c0_i32_207 = arith.constant 0 : i32
    %237 = tpu.memref_slice %arg41[%c15_i32_206, %c0_i32_207] : memref<16x128xf32, #tpu.memory_space<vmem>> -> memref<1x128xf32, #tpu.memory_space<vmem>>
    %238 = tpu.memref_slice %arg43[%c15_i32_203] : memref<16x!tpu.dma_semaphore, #tpu.memory_space<semaphore_mem>> -> memref<1x!tpu.dma_semaphore, #tpu.memory_space<semaphore_mem>>
    %239 = tpu.memref_squeeze %238 : memref<1x!tpu.dma_semaphore, #tpu.memory_space<semaphore_mem>> -> memref<!tpu.dma_semaphore, #tpu.memory_space<semaphore_mem>>
    tpu.wait_dma2 semaphore(%239 : memref<!tpu.dma_semaphore, #tpu.memory_space<semaphore_mem>>) src(%236 : memref<1x128xf32, #tpu.memory_space<any>>) dst(%237 : memref<1x128xf32, #tpu.memory_space<vmem>>)
    %c0_208 = arith.constant 0 : index
    %c0_209 = arith.constant 0 : index
    %240 = vector.load %arg40[%c0_208, %c0_209] : memref<8x128xf32, #tpu.memory_space<vmem>>, vector<8x128xf32>
    %c0_210 = arith.constant 0 : index
    %c0_211 = arith.constant 0 : index
    %241 = vector.load %arg7[%c0_210, %c0_211] : memref<8x128xf32, #tpu.memory_space<vmem>>, vector<8x128xf32>
    %242 = arith.addf %240, %241 : vector<8x128xf32>
    %c0_212 = arith.constant 0 : index
    %c0_213 = arith.constant 0 : index
    %243 = vector.load %arg8[%c0_212, %c0_213] : memref<1x128xf32, #tpu.memory_space<vmem>>, vector<1x128xf32>
    %c0_214 = arith.constant 0 : index
    %c0_215 = arith.constant 0 : index
    %244 = vector.load %arg9[%c0_214, %c0_215] : memref<1x128xf32, #tpu.memory_space<vmem>>, vector<1x128xf32>
    %cst = arith.constant dense<0.000000e+00> : vector<8xf32>
    %245 = vector.multi_reduction <add>, %242, %cst [1] : vector<8x128xf32> to vector<8xf32>
    %246 = vector.shape_cast %245 : vector<8xf32> to vector<8x1xf32>
    %cst_216 = arith.constant 1.280000e+02 : f32
    %247 = vector.broadcast %cst_216 : f32 to vector<8x1xf32>
    %248 = arith.divf %246, %247 : vector<8x1xf32>
    %249 = vector.broadcast %248 : vector<8x1xf32> to vector<8x128xf32>
    %250 = arith.subf %242, %249 : vector<8x128xf32>
    %251 = arith.mulf %250, %250 : vector<8x128xf32>
    %cst_217 = arith.constant dense<0.000000e+00> : vector<8xf32>
    %252 = vector.multi_reduction <add>, %251, %cst_217 [1] : vector<8x128xf32> to vector<8xf32>
    %253 = vector.shape_cast %252 : vector<8xf32> to vector<8x1xf32>
    %cst_218 = arith.constant 1.280000e+02 : f32
    %254 = vector.broadcast %cst_218 : f32 to vector<8x1xf32>
    %255 = arith.divf %253, %254 : vector<8x1xf32>
    %256 = vector.broadcast %248 : vector<8x1xf32> to vector<8x128xf32>
    %257 = arith.subf %242, %256 : vector<8x128xf32>
    %cst_219 = arith.constant 9.99999996E-13 : f32
    %258 = vector.broadcast %cst_219 : f32 to vector<8x1xf32>
    %259 = arith.addf %255, %258 : vector<8x1xf32>
    %260 = math.rsqrt %259 : vector<8x1xf32>
    %261 = vector.broadcast %260 : vector<8x1xf32> to vector<8x128xf32>
    %262 = arith.mulf %257, %261 : vector<8x128xf32>
    %263 = vector.broadcast %243 : vector<1x128xf32> to vector<8x128xf32>
    %264 = arith.mulf %262, %263 : vector<8x128xf32>
    %265 = vector.broadcast %244 : vector<1x128xf32> to vector<8x128xf32>
    %266 = arith.addf %264, %265 : vector<8x128xf32>
    %c0_220 = arith.constant 0 : index
    %c0_221 = arith.constant 0 : index
    %267 = vector.load %arg10[%c0_220, %c0_221] : memref<128x384xbf16, #tpu.memory_space<vmem>>, vector<128x384xbf16>
    %268 = arith.truncf %266 : vector<8x128xf32> to vector<8x128xbf16>
    %cst_222 = arith.constant dense<0.000000e+00> : vector<8x384xf32>
    %269 = tpu.matmul %268, %267, %cst_222 {dimension_numbers = #tpu.dot_dimension_numbers<[1], [0], [0], [1], [0, 0, 1, 1], [], []>} : vector<8x128xbf16>, vector<128x384xbf16>, vector<8x384xf32> -> vector<8x384xf32>
    %c0_223 = arith.constant 0 : index
    %c0_224 = arith.constant 0 : index
    %270 = vector.load %arg11[%c0_223, %c0_224] : memref<1x384xf32, #tpu.memory_space<vmem>>, vector<1x384xf32>
    %271 = vector.broadcast %270 : vector<1x384xf32> to vector<8x384xf32>
    %272 = arith.addf %269, %271 : vector<8x384xf32>
    %273 = vector.extract_strided_slice %272 {offsets = [0, 0], sizes = [8, 128], strides = [1, 1]} : vector<8x384xf32> to vector<8x128xf32>
    %274 = vector.extract_strided_slice %272 {offsets = [0, 128], sizes = [8, 128], strides = [1, 1]} : vector<8x384xf32> to vector<8x128xf32>
    %275 = vector.extract_strided_slice %272 {offsets = [0, 256], sizes = [8, 128], strides = [1, 1]} : vector<8x384xf32> to vector<8x128xf32>
    %276 = arith.truncf %273 : vector<8x128xf32> to vector<8x128xbf16>
    %277 = arith.truncf %274 : vector<8x128xf32> to vector<8x128xbf16>
    "tpu.trace_start"() <{level = 10 : i32, message = "lh,mh->lm"}> : () -> ()
    %cst_225 = arith.constant dense<0.000000e+00> : vector<8x8xf32>
    %278 = tpu.matmul %276, %277, %cst_225 {dimension_numbers = #tpu.dot_dimension_numbers<[1], [1], [0], [0], [0, 0, 1, 0], [], []>} : vector<8x128xbf16>, vector<8x128xbf16>, vector<8x8xf32> -> vector<8x8xf32>
    "tpu.trace_stop"() : () -> ()
    %cst_226 = arith.constant 0.0883883461 : f32
    %279 = vector.broadcast %cst_226 : f32 to vector<8x8xf32>
    %280 = arith.mulf %278, %279 : vector<8x8xf32>
    %c0_227 = arith.constant 0 : index
    %c0_228 = arith.constant 0 : index
    %c0_229 = arith.constant 0 : index
    %281 = vector.load %arg5[%c0_227, %c0_228, %c0_229] : memref<1x1x8xf32, #tpu.memory_space<vmem>>, vector<1x1x8xf32>
    %282 = vector.shape_cast %281 : vector<1x1x8xf32> to vector<1x8xf32>
    %283 = vector.broadcast %282 : vector<1x8xf32> to vector<8x8xf32>
    %284 = arith.addf %280, %283 : vector<8x8xf32>
    %cst_230 = arith.constant dense<0xFF800000> : vector<8xf32>
    %285 = vector.multi_reduction <maximumf>, %284, %cst_230 [1] : vector<8x8xf32> to vector<8xf32>
    %286 = vector.shape_cast %285 : vector<8xf32> to vector<8x1xf32>
    %287 = vector.broadcast %286 : vector<8x1xf32> to vector<8x8xf32>
    %288 = arith.subf %284, %287 : vector<8x8xf32>
    %289 = math.exp %288 : vector<8x8xf32>
    %cst_231 = arith.constant dense<0.000000e+00> : vector<8xf32>
    %290 = vector.multi_reduction <add>, %289, %cst_231 [1] : vector<8x8xf32> to vector<8xf32>
    %291 = vector.shape_cast %290 : vector<8xf32> to vector<8x1xf32>
    %292 = tpu.reciprocal %291 {approx = true} : vector<8x1xf32> -> vector<8x1xf32>
    %293 = vector.broadcast %292 : vector<8x1xf32> to vector<8x8xf32>
    %294 = arith.mulf %289, %293 : vector<8x8xf32>
    %295 = arith.truncf %294 : vector<8x8xf32> to vector<8x8xbf16>
    %296 = arith.truncf %275 : vector<8x128xf32> to vector<8x128xbf16>
    %cst_232 = arith.constant dense<0.000000e+00> : vector<8x128xf32>
    %297 = tpu.matmul %295, %296, %cst_232 {dimension_numbers = #tpu.dot_dimension_numbers<[1], [0], [0], [1], [0, 0, 1, 1], [], []>} : vector<8x8xbf16>, vector<8x128xbf16>, vector<8x128xf32> -> vector<8x128xf32>
    %c0_233 = arith.constant 0 : index
    %c0_234 = arith.constant 0 : index
    %298 = vector.load %arg12[%c0_233, %c0_234] : memref<128x128xbf16, #tpu.memory_space<vmem>>, vector<128x128xbf16>
    %299 = arith.truncf %297 : vector<8x128xf32> to vector<8x128xbf16>
    %cst_235 = arith.constant dense<0.000000e+00> : vector<8x128xf32>
    %300 = tpu.matmul %299, %298, %cst_235 {dimension_numbers = #tpu.dot_dimension_numbers<[1], [0], [0], [1], [0, 0, 1, 1], [], []>} : vector<8x128xbf16>, vector<128x128xbf16>, vector<8x128xf32> -> vector<8x128xf32>
    %301 = arith.addf %266, %300 : vector<8x128xf32>
    %c0_236 = arith.constant 0 : index
    %c0_237 = arith.constant 0 : index
    %302 = vector.load %arg13[%c0_236, %c0_237] : memref<1x128xf32, #tpu.memory_space<vmem>>, vector<1x128xf32>
    %303 = vector.broadcast %302 : vector<1x128xf32> to vector<8x128xf32>
    %304 = arith.addf %301, %303 : vector<8x128xf32>
    %c0_238 = arith.constant 0 : index
    %c0_239 = arith.constant 0 : index
    %305 = vector.load %arg14[%c0_238, %c0_239] : memref<1x128xf32, #tpu.memory_space<vmem>>, vector<1x128xf32>
    %c0_240 = arith.constant 0 : index
    %c0_241 = arith.constant 0 : index
    %306 = vector.load %arg15[%c0_240, %c0_241] : memref<1x128xf32, #tpu.memory_space<vmem>>, vector<1x128xf32>
    %cst_242 = arith.constant dense<0.000000e+00> : vector<8xf32>
    %307 = vector.multi_reduction <add>, %304, %cst_242 [1] : vector<8x128xf32> to vector<8xf32>
    %308 = vector.shape_cast %307 : vector<8xf32> to vector<8x1xf32>
    %cst_243 = arith.constant 1.280000e+02 : f32
    %309 = vector.broadcast %cst_243 : f32 to vector<8x1xf32>
    %310 = arith.divf %308, %309 : vector<8x1xf32>
    %311 = vector.broadcast %310 : vector<8x1xf32> to vector<8x128xf32>
    %312 = arith.subf %304, %311 : vector<8x128xf32>
    %313 = arith.mulf %312, %312 : vector<8x128xf32>
    %cst_244 = arith.constant dense<0.000000e+00> : vector<8xf32>
    %314 = vector.multi_reduction <add>, %313, %cst_244 [1] : vector<8x128xf32> to vector<8xf32>
    %315 = vector.shape_cast %314 : vector<8xf32> to vector<8x1xf32>
    %cst_245 = arith.constant 1.280000e+02 : f32
    %316 = vector.broadcast %cst_245 : f32 to vector<8x1xf32>
    %317 = arith.divf %315, %316 : vector<8x1xf32>
    %318 = vector.broadcast %310 : vector<8x1xf32> to vector<8x128xf32>
    %319 = arith.subf %304, %318 : vector<8x128xf32>
    %cst_246 = arith.constant 9.99999996E-13 : f32
    %320 = vector.broadcast %cst_246 : f32 to vector<8x1xf32>
    %321 = arith.addf %317, %320 : vector<8x1xf32>
    %322 = math.rsqrt %321 : vector<8x1xf32>
    %323 = vector.broadcast %322 : vector<8x1xf32> to vector<8x128xf32>
    %324 = arith.mulf %319, %323 : vector<8x128xf32>
    %325 = vector.broadcast %305 : vector<1x128xf32> to vector<8x128xf32>
    %326 = arith.mulf %324, %325 : vector<8x128xf32>
    %327 = vector.broadcast %306 : vector<1x128xf32> to vector<8x128xf32>
    %328 = arith.addf %326, %327 : vector<8x128xf32>
    %c0_247 = arith.constant 0 : index
    %c0_248 = arith.constant 0 : index
    %329 = vector.load %arg16[%c0_247, %c0_248] : memref<128x512xbf16, #tpu.memory_space<vmem>>, vector<128x512xbf16>
    %330 = arith.truncf %328 : vector<8x128xf32> to vector<8x128xbf16>
    %cst_249 = arith.constant dense<0.000000e+00> : vector<8x512xf32>
    %331 = tpu.matmul %330, %329, %cst_249 {dimension_numbers = #tpu.dot_dimension_numbers<[1], [0], [0], [1], [0, 0, 1, 1], [], []>} : vector<8x128xbf16>, vector<128x512xbf16>, vector<8x512xf32> -> vector<8x512xf32>
    %c0_250 = arith.constant 0 : index
    %c0_251 = arith.constant 0 : index
    %332 = vector.load %arg17[%c0_250, %c0_251] : memref<1x512xf32, #tpu.memory_space<vmem>>, vector<1x512xf32>
    %333 = vector.broadcast %332 : vector<1x512xf32> to vector<8x512xf32>
    %334 = arith.addf %331, %333 : vector<8x512xf32>
    %335 = arith.mulf %334, %334 : vector<8x512xf32>
    %336 = arith.mulf %334, %335 : vector<8x512xf32>
    %cst_252 = arith.constant 4.471500e-02 : f32
    %337 = vector.broadcast %cst_252 : f32 to vector<8x512xf32>
    %338 = arith.mulf %337, %336 : vector<8x512xf32>
    %339 = arith.addf %334, %338 : vector<8x512xf32>
    %cst_253 = arith.constant 0.797884583 : f32
    %340 = vector.broadcast %cst_253 : f32 to vector<8x512xf32>
    %341 = arith.mulf %340, %339 : vector<8x512xf32>
    %342 = math.tanh %341 : vector<8x512xf32>
    %cst_254 = arith.constant 1.000000e+00 : f32
    %343 = vector.broadcast %cst_254 : f32 to vector<8x512xf32>
    %344 = arith.addf %343, %342 : vector<8x512xf32>
    %cst_255 = arith.constant 5.000000e-01 : f32
    %345 = vector.broadcast %cst_255 : f32 to vector<8x512xf32>
    %346 = arith.mulf %345, %344 : vector<8x512xf32>
    %347 = arith.mulf %334, %346 : vector<8x512xf32>
    %c0_256 = arith.constant 0 : index
    %c0_257 = arith.constant 0 : index
    %348 = vector.load %arg18[%c0_256, %c0_257] : memref<512x128xbf16, #tpu.memory_space<vmem>>, vector<512x128xbf16>
    %349 = arith.truncf %347 : vector<8x512xf32> to vector<8x512xbf16>
    %cst_258 = arith.constant dense<0.000000e+00> : vector<8x128xf32>
    %350 = tpu.matmul %349, %348, %cst_258 {dimension_numbers = #tpu.dot_dimension_numbers<[1], [0], [0], [1], [0, 0, 1, 1], [], []>} : vector<8x512xbf16>, vector<512x128xbf16>, vector<8x128xf32> -> vector<8x128xf32>
    %351 = arith.addf %328, %350 : vector<8x128xf32>
    %c0_259 = arith.constant 0 : index
    %c0_260 = arith.constant 0 : index
    %352 = vector.load %arg19[%c0_259, %c0_260] : memref<1x128xf32, #tpu.memory_space<vmem>>, vector<1x128xf32>
    %353 = vector.broadcast %352 : vector<1x128xf32> to vector<8x128xf32>
    %354 = arith.addf %351, %353 : vector<8x128xf32>
    %c0_261 = arith.constant 0 : index
    %c0_262 = arith.constant 0 : index
    %355 = vector.load %arg20[%c0_261, %c0_262] : memref<1x128xf32, #tpu.memory_space<vmem>>, vector<1x128xf32>
    %c0_263 = arith.constant 0 : index
    %c0_264 = arith.constant 0 : index
    %356 = vector.load %arg21[%c0_263, %c0_264] : memref<1x128xf32, #tpu.memory_space<vmem>>, vector<1x128xf32>
    %cst_265 = arith.constant dense<0.000000e+00> : vector<8xf32>
    %357 = vector.multi_reduction <add>, %354, %cst_265 [1] : vector<8x128xf32> to vector<8xf32>
    %358 = vector.shape_cast %357 : vector<8xf32> to vector<8x1xf32>
    %cst_266 = arith.constant 1.280000e+02 : f32
    %359 = vector.broadcast %cst_266 : f32 to vector<8x1xf32>
    %360 = arith.divf %358, %359 : vector<8x1xf32>
    %361 = vector.broadcast %360 : vector<8x1xf32> to vector<8x128xf32>
    %362 = arith.subf %354, %361 : vector<8x128xf32>
    %363 = arith.mulf %362, %362 : vector<8x128xf32>
    %cst_267 = arith.constant dense<0.000000e+00> : vector<8xf32>
    %364 = vector.multi_reduction <add>, %363, %cst_267 [1] : vector<8x128xf32> to vector<8xf32>
    %365 = vector.shape_cast %364 : vector<8xf32> to vector<8x1xf32>
    %cst_268 = arith.constant 1.280000e+02 : f32
    %366 = vector.broadcast %cst_268 : f32 to vector<8x1xf32>
    %367 = arith.divf %365, %366 : vector<8x1xf32>
    %368 = vector.broadcast %360 : vector<8x1xf32> to vector<8x128xf32>
    %369 = arith.subf %354, %368 : vector<8x128xf32>
    %cst_269 = arith.constant 9.99999996E-13 : f32
    %370 = vector.broadcast %cst_269 : f32 to vector<8x1xf32>
    %371 = arith.addf %367, %370 : vector<8x1xf32>
    %372 = math.rsqrt %371 : vector<8x1xf32>
    %373 = vector.broadcast %372 : vector<8x1xf32> to vector<8x128xf32>
    %374 = arith.mulf %369, %373 : vector<8x128xf32>
    %375 = vector.broadcast %355 : vector<1x128xf32> to vector<8x128xf32>
    %376 = arith.mulf %374, %375 : vector<8x128xf32>
    %377 = vector.broadcast %356 : vector<1x128xf32> to vector<8x128xf32>
    %378 = arith.addf %376, %377 : vector<8x128xf32>
    %379 = vector.extract_strided_slice %378 {offsets = [0, 0], sizes = [1, 128], strides = [1, 1]} : vector<8x128xf32> to vector<1x128xf32>
    %c0_270 = arith.constant 0 : index
    %c0_271 = arith.constant 0 : index
    %380 = vector.load %arg41[%c0_270, %c0_271] : memref<16x128xf32, #tpu.memory_space<vmem>>, vector<16x128xf32>
    %381 = tpu.iota {dimensions = array<i32: 0>} : vector<16x128xi32>
    %c0_i32_272 = arith.constant 0 : i32
    %382 = vector.broadcast %c0_i32_272 : i32 to vector<16x128xi32>
    %383 = arith.cmpi eq, %381, %382 : vector<16x128xi32>
    %c1_i32_273 = arith.constant 1 : i32
    %384 = tpu.dynamic_rotate %380 by %c1_i32_273 dim 0 : vector<16x128xf32>, i32 -> vector<16x128xf32>
    %cst_274 = arith.constant 0.000000e+00 : f32
    %385 = vector.broadcast %cst_274 : f32 to vector<16x128xf32>
    %386 = arith.select %383, %385, %384 : vector<16x128xi1>, vector<16x128xf32>
    %c15_i32_275 = arith.constant 15 : i32
    %387 = vector.broadcast %c15_i32_275 : i32 to vector<16x128xi32>
    %388 = arith.cmpi eq, %381, %387 : vector<16x128xi32>
    %c15_i32_276 = arith.constant 15 : i32
    %389 = tpu.dynamic_rotate %380 by %c15_i32_276 dim 0 : vector<16x128xf32>, i32 -> vector<16x128xf32>
    %cst_277 = arith.constant 0.000000e+00 : f32
    %390 = vector.broadcast %cst_277 : f32 to vector<16x128xf32>
    %391 = arith.select %388, %390, %389 : vector<16x128xi1>, vector<16x128xf32>
    %c0_278 = arith.constant 0 : index
    %c0_279 = arith.constant 0 : index
    %392 = vector.load %arg22[%c0_278, %c0_279] : memref<128x128xbf16, #tpu.memory_space<vmem>>, vector<128x128xbf16>
    %393 = arith.truncf %386 : vector<16x128xf32> to vector<16x128xbf16>
    %cst_280 = arith.constant dense<0.000000e+00> : vector<16x128xf32>
    %394 = tpu.matmul %393, %392, %cst_280 {dimension_numbers = #tpu.dot_dimension_numbers<[1], [0], [0], [1], [0, 0, 1, 1], [], []>} : vector<16x128xbf16>, vector<128x128xbf16>, vector<16x128xf32> -> vector<16x128xf32>
    %c0_281 = arith.constant 0 : index
    %c0_282 = arith.constant 0 : index
    %395 = vector.load %arg23[%c0_281, %c0_282] : memref<128x128xbf16, #tpu.memory_space<vmem>>, vector<128x128xbf16>
    %396 = arith.truncf %380 : vector<16x128xf32> to vector<16x128xbf16>
    %cst_283 = arith.constant dense<0.000000e+00> : vector<16x128xf32>
    %397 = tpu.matmul %396, %395, %cst_283 {dimension_numbers = #tpu.dot_dimension_numbers<[1], [0], [0], [1], [0, 0, 1, 1], [], []>} : vector<16x128xbf16>, vector<128x128xbf16>, vector<16x128xf32> -> vector<16x128xf32>
    %398 = arith.addf %394, %397 : vector<16x128xf32>
    %c0_284 = arith.constant 0 : index
    %c0_285 = arith.constant 0 : index
    %399 = vector.load %arg24[%c0_284, %c0_285] : memref<128x128xbf16, #tpu.memory_space<vmem>>, vector<128x128xbf16>
    %400 = arith.truncf %391 : vector<16x128xf32> to vector<16x128xbf16>
    %cst_286 = arith.constant dense<0.000000e+00> : vector<16x128xf32>
    %401 = tpu.matmul %400, %399, %cst_286 {dimension_numbers = #tpu.dot_dimension_numbers<[1], [0], [0], [1], [0, 0, 1, 1], [], []>} : vector<16x128xbf16>, vector<128x128xbf16>, vector<16x128xf32> -> vector<16x128xf32>
    %402 = arith.addf %398, %401 : vector<16x128xf32>
    %c0_287 = arith.constant 0 : index
    %c0_288 = arith.constant 0 : index
    %403 = vector.load %arg25[%c0_287, %c0_288] : memref<1x128xf32, #tpu.memory_space<vmem>>, vector<1x128xf32>
    %404 = vector.broadcast %403 : vector<1x128xf32> to vector<16x128xf32>
    %405 = arith.addf %402, %404 : vector<16x128xf32>
    %cst_289 = arith.constant 0.000000e+00 : f32
    %406 = vector.broadcast %cst_289 : f32 to vector<16x128xf32>
    %407 = arith.maximumf %405, %406 : vector<16x128xf32>
    %cst_290 = arith.constant dense<0xFF800000> : vector<128xf32>
    %408 = vector.multi_reduction <maximumf>, %407, %cst_290 [0] : vector<16x128xf32> to vector<128xf32>
    %409 = vector.shape_cast %408 : vector<128xf32> to vector<1x128xf32>
    %c0_291 = arith.constant 0 : index
    %c0_292 = arith.constant 0 : index
    %410 = vector.load %arg26[%c0_291, %c0_292] : memref<128x256xbf16, #tpu.memory_space<vmem>>, vector<128x256xbf16>
    %411 = arith.truncf %379 : vector<1x128xf32> to vector<1x128xbf16>
    %cst_293 = arith.constant dense<0.000000e+00> : vector<1x256xf32>
    %412 = tpu.matmul %411, %410, %cst_293 {dimension_numbers = #tpu.dot_dimension_numbers<[1], [0], [0], [1], [0, 0, 1, 1], [], []>} : vector<1x128xbf16>, vector<128x256xbf16>, vector<1x256xf32> -> vector<1x256xf32>
    %c0_294 = arith.constant 0 : index
    %c0_295 = arith.constant 0 : index
    %413 = vector.load %arg27[%c0_294, %c0_295] : memref<1x256xf32, #tpu.memory_space<vmem>>, vector<1x256xf32>
    %414 = arith.addf %412, %413 : vector<1x256xf32>
    %c0_296 = arith.constant 0 : index
    %c0_297 = arith.constant 0 : index
    %c0_298 = arith.constant 0 : index
    %415 = vector.load %arg6[%c0_296, %c0_297, %c0_298] : memref<1x1x1xf32, #tpu.memory_space<vmem>>, vector<1x1x1xf32>
    %416 = vector.shape_cast %415 : vector<1x1x1xf32> to vector<1x1xf32>
    %c0_299 = arith.constant 0 : index
    %c0_300 = arith.constant 0 : index
    %417 = vector.load %arg28[%c0_299, %c0_300] : memref<1x64xf32, #tpu.memory_space<vmem>>, vector<1x64xf32>
    %418 = vector.broadcast %416 : vector<1x1xf32> to vector<1x64xf32>
    %419 = arith.mulf %418, %417 : vector<1x64xf32>
    %c0_301 = arith.constant 0 : index
    %c0_302 = arith.constant 0 : index
    %420 = vector.load %arg29[%c0_301, %c0_302] : memref<1x64xf32, #tpu.memory_space<vmem>>, vector<1x64xf32>
    %421 = arith.addf %419, %420 : vector<1x64xf32>
    %cst_303 = arith.constant 0.000000e+00 : f32
    %422 = vector.broadcast %cst_303 : f32 to vector<1x64xf32>
    %423 = arith.maximumf %421, %422 : vector<1x64xf32>
    %c0_304 = arith.constant 0 : index
    %c0_305 = arith.constant 0 : index
    %424 = vector.load %arg30[%c0_304, %c0_305] : memref<128x256xbf16, #tpu.memory_space<vmem>>, vector<128x256xbf16>
    %425 = arith.truncf %409 : vector<1x128xf32> to vector<1x128xbf16>
    %cst_306 = arith.constant dense<0.000000e+00> : vector<1x256xf32>
    %426 = tpu.matmul %425, %424, %cst_306 {dimension_numbers = #tpu.dot_dimension_numbers<[1], [0], [0], [1], [0, 0, 1, 1], [], []>} : vector<1x128xbf16>, vector<128x256xbf16>, vector<1x256xf32> -> vector<1x256xf32>
    %c0_307 = arith.constant 0 : index
    %c0_308 = arith.constant 0 : index
    %427 = vector.load %arg31[%c0_307, %c0_308] : memref<64x256xbf16, #tpu.memory_space<vmem>>, vector<64x256xbf16>
    %428 = arith.truncf %423 : vector<1x64xf32> to vector<1x64xbf16>
    %cst_309 = arith.constant dense<0.000000e+00> : vector<1x256xf32>
    %429 = tpu.matmul %428, %427, %cst_309 {dimension_numbers = #tpu.dot_dimension_numbers<[1], [0], [0], [1], [0, 0, 1, 1], [], []>} : vector<1x64xbf16>, vector<64x256xbf16>, vector<1x256xf32> -> vector<1x256xf32>
    %430 = arith.addf %426, %429 : vector<1x256xf32>
    %c0_310 = arith.constant 0 : index
    %c0_311 = arith.constant 0 : index
    %431 = vector.load %arg32[%c0_310, %c0_311] : memref<1x256xf32, #tpu.memory_space<vmem>>, vector<1x256xf32>
    %432 = arith.addf %430, %431 : vector<1x256xf32>
    %cst_312 = arith.constant 0.000000e+00 : f32
    %433 = vector.broadcast %cst_312 : f32 to vector<1x256xf32>
    %434 = arith.maximumf %432, %433 : vector<1x256xf32>
    %c0_313 = arith.constant 0 : index
    %c0_314 = arith.constant 0 : index
    %435 = vector.load %arg33[%c0_313, %c0_314] : memref<256x256xbf16, #tpu.memory_space<vmem>>, vector<256x256xbf16>
    %436 = arith.truncf %414 : vector<1x256xf32> to vector<1x256xbf16>
    %cst_315 = arith.constant dense<0.000000e+00> : vector<1x256xf32>
    %437 = tpu.matmul %436, %435, %cst_315 {dimension_numbers = #tpu.dot_dimension_numbers<[1], [0], [0], [1], [0, 0, 1, 1], [], []>} : vector<1x256xbf16>, vector<256x256xbf16>, vector<1x256xf32> -> vector<1x256xf32>
    %c0_316 = arith.constant 0 : index
    %c0_317 = arith.constant 0 : index
    %438 = vector.load %arg34[%c0_316, %c0_317] : memref<256x256xbf16, #tpu.memory_space<vmem>>, vector<256x256xbf16>
    %439 = arith.truncf %434 : vector<1x256xf32> to vector<1x256xbf16>
    %cst_318 = arith.constant dense<0.000000e+00> : vector<1x256xf32>
    %440 = tpu.matmul %439, %438, %cst_318 {dimension_numbers = #tpu.dot_dimension_numbers<[1], [0], [0], [1], [0, 0, 1, 1], [], []>} : vector<1x256xbf16>, vector<256x256xbf16>, vector<1x256xf32> -> vector<1x256xf32>
    %441 = arith.addf %437, %440 : vector<1x256xf32>
    %c0_319 = arith.constant 0 : index
    %c0_320 = arith.constant 0 : index
    %442 = vector.load %arg35[%c0_319, %c0_320] : memref<1x256xf32, #tpu.memory_space<vmem>>, vector<1x256xf32>
    %443 = arith.addf %441, %442 : vector<1x256xf32>
    %cst_321 = arith.constant 0.000000e+00 : f32
    %444 = vector.broadcast %cst_321 : f32 to vector<1x256xf32>
    %445 = arith.maximumf %443, %444 : vector<1x256xf32>
    %c0_322 = arith.constant 0 : index
    %c0_323 = arith.constant 0 : index
    %c0_324 = arith.constant 0 : index
    %446 = vector.load %arg39[%c0_322, %c0_323, %c0_324] : memref<1x1x256xf32, #tpu.memory_space<vmem>>, vector<1x1x256xf32>
    %447 = vector.shape_cast %446 : vector<1x1x256xf32> to vector<1x256xf32>
    %448 = vector.shape_cast %445 : vector<1x256xf32> to vector<1x1x256xf32>
    tpu.vector_store %arg39[%c0_322, %c0_323, %c0_324], %448 {strides = array<i32>} : memref<1x1x256xf32, #tpu.memory_space<vmem>>, vector<1x1x256xf32>,
    %c0_325 = arith.constant 0 : index
    %c0_326 = arith.constant 0 : index
    %449 = vector.load %arg36[%c0_325, %c0_326] : memref<1x256xf32, #tpu.memory_space<vmem>>, vector<1x256xf32>
    %450 = arith.mulf %445, %449 : vector<1x256xf32>
    %cst_327 = arith.constant dense<0.000000e+00> : vector<1xf32>
    %451 = vector.multi_reduction <add>, %450, %cst_327 [1] : vector<1x256xf32> to vector<1xf32>
    %452 = vector.shape_cast %451 : vector<1xf32> to vector<1x1xf32>
    %c0_328 = arith.constant 0 : index
    %c0_329 = arith.constant 0 : index
    %453 = vector.load %arg37[%c0_328, %c0_329] : memref<1x1xf32, #tpu.memory_space<vmem>>, vector<1x1xf32>
    %454 = arith.addf %452, %453 : vector<1x1xf32>
    %455 = vector.shape_cast %454 : vector<1x1xf32> to vector<1x1xf32>
    %456 = vector.broadcast %455 : vector<1x1xf32> to vector<1x128xf32>
    %c0_330 = arith.constant 0 : index
    %c0_331 = arith.constant 0 : index
    %c0_332 = arith.constant 0 : index
    %457 = vector.load %arg38[%c0_330, %c0_331, %c0_332] : memref<1x1x128xf32, #tpu.memory_space<vmem>>, vector<1x1x128xf32>
    %458 = vector.shape_cast %457 : vector<1x1x128xf32> to vector<1x128xf32>
    %459 = vector.shape_cast %456 : vector<1x128xf32> to vector<1x1x128xf32>
    tpu.vector_store %arg38[%c0_330, %c0_331, %c0_332], %459 {strides = array<i32>} : memref<1x1x128xf32, #tpu.memory_space<vmem>>, vector<1x1x128xf32>,
    return
  }
  func.func @transform_2(%arg0: i32, %arg1: memref<2x8xi32, #tpu.memory_space<smem>>, %arg2: memref<2x16xi32, #tpu.memory_space<smem>>) -> (i32, i32, i32) {
    %c0_i32 = arith.constant 0 : i32
    %c0_i32_0 = arith.constant 0 : i32
    %c0_i32_1 = arith.constant 0 : i32
    return %arg0, %c0_i32, %c0_i32_0 : i32, i32, i32
  }
  func.func @transform_3(%arg0: i32, %arg1: memref<2x8xi32, #tpu.memory_space<smem>>, %arg2: memref<2x16xi32, #tpu.memory_space<smem>>) -> (i32, i32, i32) {
    %c0_i32 = arith.constant 0 : i32
    %c0_i32_0 = arith.constant 0 : i32
    %c0_i32_1 = arith.constant 0 : i32
    return %arg0, %c0_i32, %c0_i32_0 : i32, i32, i32
  }
  func.func @transform_4(%arg0: i32, %arg1: memref<2x8xi32, #tpu.memory_space<smem>>, %arg2: memref<2x16xi32, #tpu.memory_space<smem>>) -> (i32, i32) {
    %c0_i32 = arith.constant 0 : i32
    %c0_i32_0 = arith.constant 0 : i32
    %c0_i32_1 = arith.constant 0 : i32
    return %c0_i32, %c0_i32_0 : i32, i32
  }
  func.func @transform_5(%arg0: i32, %arg1: memref<2x8xi32, #tpu.memory_space<smem>>, %arg2: memref<2x16xi32, #tpu.memory_space<smem>>) -> (i32, i32) {
    %c0_i32 = arith.constant 0 : i32
    %c0_i32_0 = arith.constant 0 : i32
    %c0_i32_1 = arith.constant 0 : i32
    return %c0_i32, %c0_i32_0 : i32, i32
  }
  func.func @transform_6(%arg0: i32, %arg1: memref<2x8xi32, #tpu.memory_space<smem>>, %arg2: memref<2x16xi32, #tpu.memory_space<smem>>) -> (i32, i32) {
    %c0_i32 = arith.constant 0 : i32
    %c0_i32_0 = arith.constant 0 : i32
    %c0_i32_1 = arith.constant 0 : i32
    return %c0_i32, %c0_i32_0 : i32, i32
  }
  func.func @transform_7(%arg0: i32, %arg1: memref<2x8xi32, #tpu.memory_space<smem>>, %arg2: memref<2x16xi32, #tpu.memory_space<smem>>) -> (i32, i32) {
    %c0_i32 = arith.constant 0 : i32
    %c0_i32_0 = arith.constant 0 : i32
    %c0_i32_1 = arith.constant 0 : i32
    return %c0_i32, %c0_i32_0 : i32, i32
  }
  func.func @transform_8(%arg0: i32, %arg1: memref<2x8xi32, #tpu.memory_space<smem>>, %arg2: memref<2x16xi32, #tpu.memory_space<smem>>) -> (i32, i32) {
    %c0_i32 = arith.constant 0 : i32
    %c0_i32_0 = arith.constant 0 : i32
    %c0_i32_1 = arith.constant 0 : i32
    return %c0_i32, %c0_i32_0 : i32, i32
  }
  func.func @transform_9(%arg0: i32, %arg1: memref<2x8xi32, #tpu.memory_space<smem>>, %arg2: memref<2x16xi32, #tpu.memory_space<smem>>) -> (i32, i32) {
    %c0_i32 = arith.constant 0 : i32
    %c0_i32_0 = arith.constant 0 : i32
    %c0_i32_1 = arith.constant 0 : i32
    return %c0_i32, %c0_i32_0 : i32, i32
  }
  func.func @transform_10(%arg0: i32, %arg1: memref<2x8xi32, #tpu.memory_space<smem>>, %arg2: memref<2x16xi32, #tpu.memory_space<smem>>) -> (i32, i32) {
    %c0_i32 = arith.constant 0 : i32
    %c0_i32_0 = arith.constant 0 : i32
    %c0_i32_1 = arith.constant 0 : i32
    return %c0_i32, %c0_i32_0 : i32, i32
  }
  func.func @transform_11(%arg0: i32, %arg1: memref<2x8xi32, #tpu.memory_space<smem>>, %arg2: memref<2x16xi32, #tpu.memory_space<smem>>) -> (i32, i32) {
    %c0_i32 = arith.constant 0 : i32
    %c0_i32_0 = arith.constant 0 : i32
    %c0_i32_1 = arith.constant 0 : i32
    return %c0_i32, %c0_i32_0 : i32, i32
  }
  func.func @transform_12(%arg0: i32, %arg1: memref<2x8xi32, #tpu.memory_space<smem>>, %arg2: memref<2x16xi32, #tpu.memory_space<smem>>) -> (i32, i32) {
    %c0_i32 = arith.constant 0 : i32
    %c0_i32_0 = arith.constant 0 : i32
    %c0_i32_1 = arith.constant 0 : i32
    return %c0_i32, %c0_i32_0 : i32, i32
  }
  func.func @transform_13(%arg0: i32, %arg1: memref<2x8xi32, #tpu.memory_space<smem>>, %arg2: memref<2x16xi32, #tpu.memory_space<smem>>) -> (i32, i32) {
    %c0_i32 = arith.constant 0 : i32
    %c0_i32_0 = arith.constant 0 : i32
    %c0_i32_1 = arith.constant 0 : i32
    return %c0_i32, %c0_i32_0 : i32, i32
  }
  func.func @transform_14(%arg0: i32, %arg1: memref<2x8xi32, #tpu.memory_space<smem>>, %arg2: memref<2x16xi32, #tpu.memory_space<smem>>) -> (i32, i32) {
    %c0_i32 = arith.constant 0 : i32
    %c0_i32_0 = arith.constant 0 : i32
    %c0_i32_1 = arith.constant 0 : i32
    return %c0_i32, %c0_i32_0 : i32, i32
  }
  func.func @transform_15(%arg0: i32, %arg1: memref<2x8xi32, #tpu.memory_space<smem>>, %arg2: memref<2x16xi32, #tpu.memory_space<smem>>) -> (i32, i32) {
    %c0_i32 = arith.constant 0 : i32
    %c0_i32_0 = arith.constant 0 : i32
    %c0_i32_1 = arith.constant 0 : i32
    return %c0_i32, %c0_i32_0 : i32, i32
  }
  func.func @transform_16(%arg0: i32, %arg1: memref<2x8xi32, #tpu.memory_space<smem>>, %arg2: memref<2x16xi32, #tpu.memory_space<smem>>) -> (i32, i32) {
    %c0_i32 = arith.constant 0 : i32
    %c0_i32_0 = arith.constant 0 : i32
    %c0_i32_1 = arith.constant 0 : i32
    return %c0_i32, %c0_i32_0 : i32, i32
  }
  func.func @transform_17(%arg0: i32, %arg1: memref<2x8xi32, #tpu.memory_space<smem>>, %arg2: memref<2x16xi32, #tpu.memory_space<smem>>) -> (i32, i32) {
    %c0_i32 = arith.constant 0 : i32
    %c0_i32_0 = arith.constant 0 : i32
    %c0_i32_1 = arith.constant 0 : i32
    return %c0_i32, %c0_i32_0 : i32, i32
  }
  func.func @transform_18(%arg0: i32, %arg1: memref<2x8xi32, #tpu.memory_space<smem>>, %arg2: memref<2x16xi32, #tpu.memory_space<smem>>) -> (i32, i32) {
    %c0_i32 = arith.constant 0 : i32
    %c0_i32_0 = arith.constant 0 : i32
    %c0_i32_1 = arith.constant 0 : i32
    return %c0_i32, %c0_i32_0 : i32, i32
  }
  func.func @transform_19(%arg0: i32, %arg1: memref<2x8xi32, #tpu.memory_space<smem>>, %arg2: memref<2x16xi32, #tpu.memory_space<smem>>) -> (i32, i32) {
    %c0_i32 = arith.constant 0 : i32
    %c0_i32_0 = arith.constant 0 : i32
    %c0_i32_1 = arith.constant 0 : i32
    return %c0_i32, %c0_i32_0 : i32, i32
  }
  func.func @transform_20(%arg0: i32, %arg1: memref<2x8xi32, #tpu.memory_space<smem>>, %arg2: memref<2x16xi32, #tpu.memory_space<smem>>) -> (i32, i32) {
    %c0_i32 = arith.constant 0 : i32
    %c0_i32_0 = arith.constant 0 : i32
    %c0_i32_1 = arith.constant 0 : i32
    return %c0_i32, %c0_i32_0 : i32, i32
  }
  func.func @transform_21(%arg0: i32, %arg1: memref<2x8xi32, #tpu.memory_space<smem>>, %arg2: memref<2x16xi32, #tpu.memory_space<smem>>) -> (i32, i32) {
    %c0_i32 = arith.constant 0 : i32
    %c0_i32_0 = arith.constant 0 : i32
    %c0_i32_1 = arith.constant 0 : i32
    return %c0_i32, %c0_i32_0 : i32, i32
  }
  func.func @transform_22(%arg0: i32, %arg1: memref<2x8xi32, #tpu.memory_space<smem>>, %arg2: memref<2x16xi32, #tpu.memory_space<smem>>) -> (i32, i32) {
    %c0_i32 = arith.constant 0 : i32
    %c0_i32_0 = arith.constant 0 : i32
    %c0_i32_1 = arith.constant 0 : i32
    return %c0_i32, %c0_i32_0 : i32, i32
  }
  func.func @transform_23(%arg0: i32, %arg1: memref<2x8xi32, #tpu.memory_space<smem>>, %arg2: memref<2x16xi32, #tpu.memory_space<smem>>) -> (i32, i32) {
    %c0_i32 = arith.constant 0 : i32
    %c0_i32_0 = arith.constant 0 : i32
    %c0_i32_1 = arith.constant 0 : i32
    return %c0_i32, %c0_i32_0 : i32, i32
  }
  func.func @transform_24(%arg0: i32, %arg1: memref<2x8xi32, #tpu.memory_space<smem>>, %arg2: memref<2x16xi32, #tpu.memory_space<smem>>) -> (i32, i32) {
    %c0_i32 = arith.constant 0 : i32
    %c0_i32_0 = arith.constant 0 : i32
    %c0_i32_1 = arith.constant 0 : i32
    return %c0_i32, %c0_i32_0 : i32, i32
  }
  func.func @transform_25(%arg0: i32, %arg1: memref<2x8xi32, #tpu.memory_space<smem>>, %arg2: memref<2x16xi32, #tpu.memory_space<smem>>) -> (i32, i32) {
    %c0_i32 = arith.constant 0 : i32
    %c0_i32_0 = arith.constant 0 : i32
    %c0_i32_1 = arith.constant 0 : i32
    return %c0_i32, %c0_i32_0 : i32, i32
  }
  func.func @transform_26(%arg0: i32, %arg1: memref<2x8xi32, #tpu.memory_space<smem>>, %arg2: memref<2x16xi32, #tpu.memory_space<smem>>) -> (i32, i32) {
    %c0_i32 = arith.constant 0 : i32
    %c0_i32_0 = arith.constant 0 : i32
    %c0_i32_1 = arith.constant 0 : i32
    return %c0_i32, %c0_i32_0 : i32, i32
  }
  func.func @transform_27(%arg0: i32, %arg1: memref<2x8xi32, #tpu.memory_space<smem>>, %arg2: memref<2x16xi32, #tpu.memory_space<smem>>) -> (i32, i32) {
    %c0_i32 = arith.constant 0 : i32
    %c0_i32_0 = arith.constant 0 : i32
    %c0_i32_1 = arith.constant 0 : i32
    return %c0_i32, %c0_i32_0 : i32, i32
  }
  func.func @transform_28(%arg0: i32, %arg1: memref<2x8xi32, #tpu.memory_space<smem>>, %arg2: memref<2x16xi32, #tpu.memory_space<smem>>) -> (i32, i32) {
    %c0_i32 = arith.constant 0 : i32
    %c0_i32_0 = arith.constant 0 : i32
    %c0_i32_1 = arith.constant 0 : i32
    return %c0_i32, %c0_i32_0 : i32, i32
  }
  func.func @transform_29(%arg0: i32, %arg1: memref<2x8xi32, #tpu.memory_space<smem>>, %arg2: memref<2x16xi32, #tpu.memory_space<smem>>) -> (i32, i32) {
    %c0_i32 = arith.constant 0 : i32
    %c0_i32_0 = arith.constant 0 : i32
    %c0_i32_1 = arith.constant 0 : i32
    return %c0_i32, %c0_i32_0 : i32, i32
  }
  func.func @transform_30(%arg0: i32, %arg1: memref<2x8xi32, #tpu.memory_space<smem>>, %arg2: memref<2x16xi32, #tpu.memory_space<smem>>) -> (i32, i32) {
    %c0_i32 = arith.constant 0 : i32
    %c0_i32_0 = arith.constant 0 : i32
    %c0_i32_1 = arith.constant 0 : i32
    return %c0_i32, %c0_i32_0 : i32, i32
  }
  func.func @transform_31(%arg0: i32, %arg1: memref<2x8xi32, #tpu.memory_space<smem>>, %arg2: memref<2x16xi32, #tpu.memory_space<smem>>) -> (i32, i32) {
    %c0_i32 = arith.constant 0 : i32
    %c0_i32_0 = arith.constant 0 : i32
    %c0_i32_1 = arith.constant 0 : i32
    return %c0_i32, %c0_i32_0 : i32, i32
  }
  func.func @transform_32(%arg0: i32, %arg1: memref<2x8xi32, #tpu.memory_space<smem>>, %arg2: memref<2x16xi32, #tpu.memory_space<smem>>) -> (i32, i32) {
    %c0_i32 = arith.constant 0 : i32
    %c0_i32_0 = arith.constant 0 : i32
    %c0_i32_1 = arith.constant 0 : i32
    return %c0_i32, %c0_i32_0 : i32, i32
  }
  func.func @transform_33(%arg0: i32, %arg1: memref<2x8xi32, #tpu.memory_space<smem>>, %arg2: memref<2x16xi32, #tpu.memory_space<smem>>) -> (i32, i32) {
    %c0_i32 = arith.constant 0 : i32
    %c0_i32_0 = arith.constant 0 : i32
    %c0_i32_1 = arith.constant 0 : i32
    return %c0_i32, %c0_i32_0 : i32, i32
  }
  func.func @transform_34(%arg0: i32, %arg1: memref<2x8xi32, #tpu.memory_space<smem>>, %arg2: memref<2x16xi32, #tpu.memory_space<smem>>) -> (i32, i32) {
    %c0_i32 = arith.constant 0 : i32
    %c0_i32_0 = arith.constant 0 : i32
    %c0_i32_1 = arith.constant 0 : i32
    return %c0_i32, %c0_i32_0 : i32, i32
  }
  func.func @transform_35(%arg0: i32, %arg1: memref<2x8xi32, #tpu.memory_space<smem>>, %arg2: memref<2x16xi32, #tpu.memory_space<smem>>) -> (i32, i32, i32) {
    %c0_i32 = arith.constant 0 : i32
    %c0_i32_0 = arith.constant 0 : i32
    %c0_i32_1 = arith.constant 0 : i32
    return %arg0, %c0_i32, %c0_i32_0 : i32, i32, i32
  }
  func.func @transform_36(%arg0: i32, %arg1: memref<2x8xi32, #tpu.memory_space<smem>>, %arg2: memref<2x16xi32, #tpu.memory_space<smem>>) -> (i32, i32, i32) {
    %c0_i32 = arith.constant 0 : i32
    %c0_i32_0 = arith.constant 0 : i32
    %c0_i32_1 = arith.constant 0 : i32
    return %arg0, %c0_i32, %c0_i32_0 : i32, i32, i32
  }
}

</mosaic_0001>

<llo_original>
// kernel: review_metadata_score_forward.1
$region0: #{review_metadata_score_forward.1}
  #allocation0 [shape = 'u32[]', space=smem, size = 0x4, offset = 0x4, fixed_abs, tag = 'smem constant byte address 0x4 - core index']
  #allocation1 [shape = 'u32[144,128]{1,0:T(1,128)}', space=vmem, size = 0x12000, scoped, tag = 'internal scratch']
  #allocation2 [shape = 'f32[8,128]{1,0:T(8,128)}', space=vmem, size = 0x1000, scoped, tag = 'scratch operand']
  #allocation3 [shape = 'f32[16,128]{1,0:T(8,128)}', space=vmem, size = 0x2000, scoped, tag = 'scratch operand']
  #allocation4 [shape = 's32[8]{0}', space=sflag, size = 0x20, scoped, tag = 'scratch operand']
  #allocation5 [shape = 's32[16]{0}', space=sflag, size = 0x40, scoped, tag = 'scratch operand']
  #allocation6 [shape = 's32[1]{0}', space=sflag, size = 0x4, scoped, tag = 'scoped memory for review_metadata_score_forward.1']
  #allocation7 [shape = 'u8[1024]{0}', space=smem, size = 0x400, scoped, tag = 'prefetched SMEM operand 0']
  #allocation8 [shape = 'u8[1024]{0}', space=smem, size = 0x400, scoped, tag = 'prefetched SMEM operand 1']
  #allocation9 [shape = 'f32[1,1]{1,0:T(1,128)S(1)}', space=vmem, size = 0x200, scoped, tag = 'scoped memory for review_metadata_score_forward.1']
  #allocation50 [shape = 's32[]', space=sflag, size = 0x4, offset = 0, fixed_abs, tag = 'sflag constant byte address 0x0 - dummy sync flag']
  #allocation51 [shape = 's32[]', space=sflag, size = 0x4, offset = 0, fixed_abs, tag = 'sflag constant byte address 0x0 - dummy sync flag']
  #allocation52 [shape = 'u32[]', space=smem, size = 0x4, offset = 0x44, fixed_abs, tag = 'smem constant byte address 0x44 - assertion arg 0']
  #allocation53 [shape = 'u32[]', space=smem, size = 0x4, offset = 0x48, fixed_abs, tag = 'smem constant byte address 0x48 - assertion arg 1']
  #allocation54 [shape = 's32[]', space=sflag, size = 0x4, offset = 0, fixed_abs, tag = 'sflag constant byte address 0x0 - dummy sync flag']
  #allocation55 [shape = 's32[]', space=sflag, size = 0x4, offset = 0, fixed_abs, tag = 'sflag constant byte address 0x0 - dummy sync flag']
  #allocation56 [shape = 's32[]', space=sflag, size = 0x4, offset = 0, fixed_abs, tag = 'sflag constant byte address 0x0 - dummy sync flag']
  #allocation57 [shape = 's32[]', space=sflag, size = 0x4, offset = 0, fixed_abs, tag = 'sflag constant byte address 0x0 - dummy sync flag']
  #allocation58 [shape = 's32[]', space=sflag, size = 0x4, offset = 0, fixed_abs, tag = 'sflag constant byte address 0x0 - dummy sync flag']
  #allocation59 [shape = 's32[]', space=sflag, size = 0x4, offset = 0, fixed_abs, tag = 'sflag constant byte address 0x0 - dummy sync flag']
  #allocation60 [shape = 's32[]', space=sflag, size = 0x4, offset = 0, fixed_abs, tag = 'sflag constant byte address 0x0 - dummy sync flag']
  #allocation61 [shape = 's32[]', space=sflag, size = 0x4, offset = 0, fixed_abs, tag = 'sflag constant byte address 0x0 - dummy sync flag']
  #allocation62 [shape = 's32[]', space=sflag, size = 0x4, offset = 0, fixed_abs, tag = 'sflag constant byte address 0x0 - dummy sync flag']
  #allocation63 [shape = 's32[]', space=sflag, size = 0x4, offset = 0, fixed_abs, tag = 'sflag constant byte address 0x0 - dummy sync flag']
  #allocation64 [shape = 's32[]', space=sflag, size = 0x4, offset = 0, fixed_abs, tag = 'sflag constant byte address 0x0 - dummy sync flag']
  #allocation65 [shape = 's32[]', space=sflag, size = 0x4, offset = 0, fixed_abs, tag = 'sflag constant byte address 0x0 - dummy sync flag']
  #allocation66 [shape = 's32[]', space=sflag, size = 0x4, offset = 0, fixed_abs, tag = 'sflag constant byte address 0x0 - dummy sync flag']
  #allocation67 [shape = 's32[]', space=sflag, size = 0x4, offset = 0, fixed_abs, tag = 'sflag constant byte address 0x0 - dummy sync flag']
  #allocation68 [shape = 's32[]', space=sflag, size = 0x4, offset = 0, fixed_abs, tag = 'sflag constant byte address 0x0 - dummy sync flag']
  #allocation69 [shape = 's32[]', space=sflag, size = 0x4, offset = 0, fixed_abs, tag = 'sflag constant byte address 0x0 - dummy sync flag']
  #allocation70 [shape = 's32[]', space=sflag, size = 0x4, offset = 0, fixed_abs, tag = 'sflag constant byte address 0x0 - dummy sync flag']
  #allocation71 [shape = 's32[]', space=sflag, size = 0x4, offset = 0, fixed_abs, tag = 'sflag constant byte address 0x0 - dummy sync flag']
  #allocation72 [shape = 's32[]', space=sflag, size = 0x4, offset = 0, fixed_abs, tag = 'sflag constant byte address 0x0 - dummy sync flag']
  #allocation73 [shape = 's32[]', space=sflag, size = 0x4, offset = 0, fixed_abs, tag = 'sflag constant byte address 0x0 - dummy sync flag']
  #allocation74 [shape = 's32[]', space=sflag, size = 0x4, offset = 0, fixed_abs, tag = 'sflag constant byte address 0x0 - dummy sync flag']
  #allocation75 [shape = 's32[]', space=sflag, size = 0x4, offset = 0, fixed_abs, tag = 'sflag constant byte address 0x0 - dummy sync flag']
  #allocation76 [shape = 's32[]', space=sflag, size = 0x4, offset = 0, fixed_abs, tag = 'sflag constant byte address 0x0 - dummy sync flag']
  #allocation77 [shape = 's32[]', space=sflag, size = 0x4, offset = 0, fixed_abs, tag = 'sflag constant byte address 0x0 - dummy sync flag']
  #allocation78 [shape = 's32[]', space=sflag, size = 0x4, offset = 0, fixed_abs, tag = 'sflag constant byte address 0x0 - dummy sync flag']
  #allocation79 [shape = 's32[]', space=sflag, size = 0x4, offset = 0, fixed_abs, tag = 'sflag constant byte address 0x0 - dummy sync flag']
  #allocation80 [shape = 's32[]', space=sflag, size = 0x4, offset = 0, fixed_abs, tag = 'sflag constant byte address 0x0 - dummy sync flag']
  #allocation81 [shape = 's32[]', space=sflag, size = 0x4, offset = 0, fixed_abs, tag = 'sflag constant byte address 0x0 - dummy sync flag']
  #allocation82 [shape = 's32[]', space=sflag, size = 0x4, offset = 0, fixed_abs, tag = 'sflag constant byte address 0x0 - dummy sync flag']
  #allocation83 [shape = 's32[]', space=sflag, size = 0x4, offset = 0, fixed_abs, tag = 'sflag constant byte address 0x0 - dummy sync flag']
  %s0 = inlined_call_operand.smem [shape: u32[39], index: -1, kind: input, shape index: {}]
  %s1 = sld [smem:[%s0]]
  %s2 = scalar_lea.smem %s0, 1
  %s3 = sld [smem:[%s2]]
  %s4 = scalar_lea.smem %s0, 2
  %s5 = sld [smem:[%s4]]
  %s6 = scalar_lea.smem %s0, 3
  %s7 = sld [smem:[%s6]]
  %s8 = scalar_lea.smem %s0, 4
  %s9 = sld [smem:[%s8]]
  %s10 = scalar_lea.smem %s0, 5
  %s11 = sld [smem:[%s10]]
  %s12 = scalar_lea.smem %s0, 6
  %s13 = sld [smem:[%s12]]
  %s14 = scalar_lea.smem %s0, 7
  %s15 = sld [smem:[%s14]]
  %s16 = scalar_lea.smem %s0, 8
  %s17 = sld [smem:[%s16]]
  %s18 = scalar_lea.smem %s0, 9
  %s19 = sld [smem:[%s18]]
  %s20 = scalar_lea.smem %s0, 10
  %s21 = sld [smem:[%s20]]
  %s22 = scalar_lea.smem %s0, 11
  %s23 = sld [smem:[%s22]]
  %s24 = scalar_lea.smem %s0, 12
  %s25 = sld [smem:[%s24]]
  %s26 = scalar_lea.smem %s0, 13
  %s27 = sld [smem:[%s26]]
  %s28 = scalar_lea.smem %s0, 14
  %s29 = sld [smem:[%s28]]
  %s30 = scalar_lea.smem %s0, 15
  %s31 = sld [smem:[%s30]]
  %s32 = scalar_lea.smem %s0, 16
  %s33 = sld [smem:[%s32]]
  %s34 = scalar_lea.smem %s0, 17
  %s35 = sld [smem:[%s34]]
  %s36 = scalar_lea.smem %s0, 18
  %s37 = sld [smem:[%s36]]
  %s38 = scalar_lea.smem %s0, 19
  %s39 = sld [smem:[%s38]]
  %s40 = scalar_lea.smem %s0, 20
  %s41 = sld [smem:[%s40]]
  %s42 = scalar_lea.smem %s0, 21
  %s43 = sld [smem:[%s42]]
  %s44 = scalar_lea.smem %s0, 22
  %s45 = sld [smem:[%s44]]
  %s46 = scalar_lea.smem %s0, 23
  %s47 = sld [smem:[%s46]]
  %s48 = scalar_lea.smem %s0, 24
  %s49 = sld [smem:[%s48]]
  %s50 = scalar_lea.smem %s0, 25
  %s51 = sld [smem:[%s50]]
  %s52 = scalar_lea.smem %s0, 26
  %s53 = sld [smem:[%s52]]
  %s54 = scalar_lea.smem %s0, 27
  %s55 = sld [smem:[%s54]]
  %s56 = scalar_lea.smem %s0, 28
  %s57 = sld [smem:[%s56]]
  %s58 = scalar_lea.smem %s0, 29
  %s59 = sld [smem:[%s58]]
  %s60 = scalar_lea.smem %s0, 30
  %s61 = sld [smem:[%s60]]
  %s62 = scalar_lea.smem %s0, 31
  %s63 = sld [smem:[%s62]]
  %s64 = scalar_lea.smem %s0, 32
  %s65 = sld [smem:[%s64]]
  %s66 = scalar_lea.smem %s0, 33
  %s67 = sld [smem:[%s66]]
  %s68 = scalar_lea.smem %s0, 34
  %s69 = sld [smem:[%s68]]
  %s70 = scalar_lea.smem %s0, 35
  %s71 = sld [smem:[%s70]]
  %s72 = scalar_lea.smem %s0, 36
  %s73 = sld [smem:[%s72]]
  %s74 = scalar_lea.smem %s0, 37
  %s75 = sld [smem:[%s74]]
  %s76 = scalar_lea.smem %s0, 38
  %s77 = sld [smem:[%s76]]
  %78 = xla_tuple %s75, %s77
  %s79 = sld [smem:[#allocation0]]
  $region789: #{review_metadata_score_forward.1} parent=0
    _
  %s81 = ssub.s32 1, %s79
  %s82 = scalar_select 0, %s81, %s79
  %s83 = sshll.u32 %s1, 4
  %s84 = int_to_ptr.vmem [resolvable:$true] %s83
  %86 = dma.vmem_to_smem %s84, 32, [#allocation7], [#allocation6]
  %s87 = sshll.u32 %s3, 4
  %s88 = int_to_ptr.vmem [resolvable:$true] %s87
  %90 = dma.vmem_to_smem %s88, 32, [#allocation8], [#allocation6]
  %v91 = vstv %s73
  %92 = vst [vmem:[#allocation9] sm:$0x1] %v91
  %93 = dma.done [#allocation6], 64
  %94 = sfence
  $region1: #{review_metadata_score_forward.1} parent=0
    #allocation10 [shape = 'u8[512]{0}', space=vmem, size = 0x400, scoped, tag = 'input window, operand 7, single buffered']
    #allocation11 [shape = 's32[2]{0}', space=sflag, size = 0x8, scoped, tag = 'scoped memory for review_metadata_score_forward.1']
    #allocation12 [shape = 'u8[512]{0}', space=vmem, size = 0x400, scoped, tag = 'input window, operand 8, single buffered']
    #allocation13 [shape = 's32[1]{0}', space=sflag, size = 0x4, scoped, tag = 'scoped memory for review_metadata_score_forward.1']
    #allocation14 [shape = 'u8[98304]{0}', space=vmem, size = 0x18000, scoped, tag = 'input window, operand 9, single buffered']
    #allocation15 [shape = 'u8[1536]{0}', space=vmem, size = 0x800, scoped, tag = 'input window, operand 10, single buffered']
    #allocation16 [shape = 's32[1]{0}', space=sflag, size = 0x4, scoped, tag = 'scoped memory for review_metadata_score_forward.1']
    #allocation17 [shape = 'u8[32768]{0}', space=vmem, size = 0x8000, scoped, tag = 'input window, operand 11, single buffered']
    #allocation18 [shape = 'u8[512]{0}', space=vmem, size = 0x400, scoped, tag = 'input window, operand 12, single buffered']
    #allocation19 [shape = 's32[1]{0}', space=sflag, size = 0x4, scoped, tag = 'scoped memory for review_metadata_score_forward.1']
    #allocation20 [shape = 'u8[512]{0}', space=vmem, size = 0x400, scoped, tag = 'input window, operand 13, single buffered']
    #allocation21 [shape = 'u8[512]{0}', space=vmem, size = 0x400, scoped, tag = 'input window, operand 14, single buffered']
    #allocation22 [shape = 's32[1]{0}', space=sflag, size = 0x4, scoped, tag = 'scoped memory for review_metadata_score_forward.1']
    #allocation23 [shape = 'u8[131072]{0}', space=vmem, size = 0x20000, scoped, tag = 'input window, operand 15, single buffered']
    #allocation24 [shape = 'u8[131072]{0}', space=vmem, size = 0x20000, scoped, tag = 'input window, operand 17, single buffered']
    #allocation25 [shape = 's32[1]{0}', space=sflag, size = 0x4, scoped, tag = 'scoped memory for review_metadata_score_forward.1']
    #allocation26 [shape = 'u8[512]{0}', space=vmem, size = 0x400, scoped, tag = 'input window, operand 18, single buffered']
    #allocation27 [shape = 'u8[512]{0}', space=vmem, size = 0x400, scoped, tag = 'input window, operand 19, single buffered']
    #allocation28 [shape = 's32[1]{0}', space=sflag, size = 0x4, scoped, tag = 'scoped memory for review_metadata_score_forward.1']
    #allocation29 [shape = 'u8[512]{0}', space=vmem, size = 0x400, scoped, tag = 'input window, operand 20, single buffered']
    #allocation30 [shape = 'u8[32768]{0}', space=vmem, size = 0x8000, scoped, tag = 'input window, operand 21, single buffered']
    #allocation31 [shape = 's32[1]{0}', space=sflag, size = 0x4, scoped, tag = 'scoped memory for review_metadata_score_forward.1']
    #allocation32 [shape = 'u8[32768]{0}', space=vmem, size = 0x8000, scoped, tag = 'input window, operand 22, single buffered']
    #allocation33 [shape = 'u8[32768]{0}', space=vmem, size = 0x8000, scoped, tag = 'input window, operand 23, single buffered']
    #allocation34 [shape = 's32[1]{0}', space=sflag, size = 0x4, scoped, tag = 'scoped memory for review_metadata_score_forward.1']
    #allocation35 [shape = 'u8[512]{0}', space=vmem, size = 0x400, scoped, tag = 'input window, operand 24, single buffered']
    #allocation36 [shape = 'u8[65536]{0}', space=vmem, size = 0x10000, scoped, tag = 'input window, operand 25, single buffered']
    #allocation37 [shape = 's32[1]{0}', space=sflag, size = 0x4, scoped, tag = 'scoped memory for review_metadata_score_forward.1']
    #allocation38 [shape = 'u8[1024]{0}', space=vmem, size = 0x400, scoped, tag = 'input window, operand 26, single buffered']
    #allocation39 [shape = 'u8[512]{0}', space=vmem, size = 0x400, scoped, tag = 'input window, operand 28, single buffered']
    #allocation40 [shape = 's32[1]{0}', space=sflag, size = 0x4, scoped, tag = 'scoped memory for review_metadata_score_forward.1']
    #allocation41 [shape = 'u8[65536]{0}', space=vmem, size = 0x10000, scoped, tag = 'input window, operand 29, single buffered']
    #allocation42 [shape = 'u8[32768]{0}', space=vmem, size = 0x8000, scoped, tag = 'input window, operand 30, single buffered']
    #allocation43 [shape = 's32[1]{0}', space=sflag, size = 0x4, scoped, tag = 'scoped memory for review_metadata_score_forward.1']
    #allocation44 [shape = 'u8[1024]{0}', space=vmem, size = 0x400, scoped, tag = 'input window, operand 31, single buffered']
    #allocation45 [shape = 'u8[131072]{0}', space=vmem, size = 0x20000, scoped, tag = 'input window, operand 32, single buffered']
    #allocation46 [shape = 's32[1]{0}', space=sflag, size = 0x4, scoped, tag = 'scoped memory for review_metadata_score_forward.1']
    #allocation47 [shape = 'u8[131072]{0}', space=vmem, size = 0x20000, scoped, tag = 'input window, operand 33, single buffered']
    #allocation48 [shape = 'u8[1024]{0}', space=vmem, size = 0x400, scoped, tag = 'input window, operand 34, single buffered']
    #allocation49 [shape = 's32[1]{0}', space=sflag, size = 0x4, scoped, tag = 'scoped memory for review_metadata_score_forward.1']
    %95 = vsyncpa [#allocation11], 0
    %96 = vsyncpa [#allocation13], 0
    %97 = vsyncpa [#allocation16], 0
    %98 = vsyncpa [#allocation19], 0
    %99 = vsyncpa [#allocation22], 0
    %100 = vsyncpa [#allocation25], 0
    %101 = vsyncpa [#allocation28], 0
    %102 = vsyncpa [#allocation31], 0
    %103 = vsyncpa [#allocation34], 0
    %104 = vsyncpa [#allocation37], 0
    %105 = vsyncpa [#allocation40], 0
    %106 = vsyncpa [#allocation43], 0
    %107 = vsyncpa [#allocation46], 0
    %108 = vsyncpa [#allocation49], 0
    loop: start=0, step=1, limit=4
    $region2: #{review_metadata_score_forward.1} parent=1 // loop_pre_header
      _
    $region3: #{review_metadata_score_forward.1} parent=1 // loop_header
      %s110 = sphi 0, %s114
      %p111 = scmp.ge.s32.totalorder %s110, 4
      %s120 = sphi 0, %s122
      %s123 = sphi 0, %s120
      %s124 = sphi 0, %s123
      %s140 = sphi 0, %s124
      %s146 = sphi 0, %s148
      %s149 = sphi 0, %s146
      %s150 = sphi 0, %s149
      %s166 = sphi 0, %s150
      %s170 = sphi 0, %s170
      %s172 = sphi 0, %s170
      %s173 = sphi 0, %s172
      %s187 = sphi 0, %s173
      %s191 = sphi 0, %s191
      %s193 = sphi 0, %s191
      %s194 = sphi 0, %s193
      %s208 = sphi 0, %s194
      %s212 = sphi 0, %s212
      %s214 = sphi 0, %s212
      %s215 = sphi 0, %s214
      %s229 = sphi 0, %s215
      %s233 = sphi 0, %s233
      %s235 = sphi 0, %s233
      %s236 = sphi 0, %s235
      %s250 = sphi 0, %s236
      %s254 = sphi 0, %s254
      %s256 = sphi 0, %s254
      %s257 = sphi 0, %s256
      %s271 = sphi 0, %s257
      %s275 = sphi 0, %s275
      %s277 = sphi 0, %s275
      %s278 = sphi 0, %s277
      %s292 = sphi 0, %s278
      %s296 = sphi 0, %s296
      %s298 = sphi 0, %s296
      %s299 = sphi 0, %s298
      %s313 = sphi 0, %s299
      %s317 = sphi 0, %s317
      %s319 = sphi 0, %s317
      %s320 = sphi 0, %s319
      %s334 = sphi 0, %s320
      %s338 = sphi 0, %s338
      %s340 = sphi 0, %s338
      %s341 = sphi 0, %s340
      %s355 = sphi 0, %s341
      %s359 = sphi 0, %s359
      %s361 = sphi 0, %s359
      %s362 = sphi 0, %s361
      %s376 = sphi 0, %s362
      %s380 = sphi 0, %s380
      %s382 = sphi 0, %s380
      %s383 = sphi 0, %s382
      %s397 = sphi 0, %s383
      %s401 = sphi 0, %s401
      %s403 = sphi 0, %s401
      %s404 = sphi 0, %s403
      %s418 = sphi 0, %s404
      %s422 = sphi 0, %s422
      %s424 = sphi 0, %s422
      %s425 = sphi 0, %s424
      %s439 = sphi 0, %s425
      %s443 = sphi 0, %s443
      %s445 = sphi 0, %s443
      %s446 = sphi 0, %s445
      %s460 = sphi 0, %s446
      %s464 = sphi 0, %s464
      %s466 = sphi 0, %s464
      %s467 = sphi 0, %s466
      %s481 = sphi 0, %s467
      %s485 = sphi 0, %s485
      %s487 = sphi 0, %s485
      %s488 = sphi 0, %s487
      %s502 = sphi 0, %s488
      %s506 = sphi 0, %s506
      %s508 = sphi 0, %s506
      %s509 = sphi 0, %s508
      %s523 = sphi 0, %s509
      %s527 = sphi 0, %s527
      %s529 = sphi 0, %s527
      %s530 = sphi 0, %s529
      %s544 = sphi 0, %s530
      %s548 = sphi 0, %s548
      %s550 = sphi 0, %s548
      %s551 = sphi 0, %s550
      %s565 = sphi 0, %s551
      %s569 = sphi 0, %s569
      %s571 = sphi 0, %s569
      %s572 = sphi 0, %s571
      %s586 = sphi 0, %s572
      %s590 = sphi 0, %s590
      %s592 = sphi 0, %s590
      %s593 = sphi 0, %s592
      %s607 = sphi 0, %s593
      %s611 = sphi 0, %s611
      %s613 = sphi 0, %s611
      %s614 = sphi 0, %s613
      %s628 = sphi 0, %s614
      %s632 = sphi 0, %s632
      %s634 = sphi 0, %s632
      %s635 = sphi 0, %s634
      %s649 = sphi 0, %s635
      %s653 = sphi 0, %s653
      %s655 = sphi 0, %s653
      %s656 = sphi 0, %s655
      %s670 = sphi 0, %s656
      %s674 = sphi 0, %s674
      %s676 = sphi 0, %s674
      %s677 = sphi 0, %s676
      %s691 = sphi 0, %s677
      %s695 = sphi 0, %s695
      %s697 = sphi 0, %s695
      %s698 = sphi 0, %s697
      %s712 = sphi 0, %s698
      %s716 = sphi 0, %s716
      %s718 = sphi 0, %s716
      %s719 = sphi 0, %s718
      %s733 = sphi 0, %s719
      %s737 = sphi 0, %s737
      %s739 = sphi 0, %s737
      %s740 = sphi 0, %s739
      %s754 = sphi 0, %s740
      %s758 = sphi 0, %s758
      %s760 = sphi 0, %s758
      %s761 = sphi 0, %s760
      %s775 = sphi 0, %s761
      %s779 = sphi 0, %s779
      %s781 = sphi 0, %s779
      %s782 = sphi 0, %s781
      %s796 = sphi 0, %s782
      %s800 = sphi 0, %s800
      %s802 = sphi 0, %s800
      %s803 = sphi 0, %s802
      %s817 = sphi 0, %s803
      %s823 = sphi 0, %s825
      %s826 = sphi 0, %s823
      %s827 = sphi 0, %s826
      %s843 = sphi 0, %s827
      %s849 = sphi 0, %s851
      %s852 = sphi 0, %s849
      %s853 = sphi 0, %s852
      %s869 = sphi 0, %s853
    $region4: #{review_metadata_score_forward.1} parent=1 // loop_header_branch
      %113 = sbr.rel (%p111) target = $region8
    $region5: #{review_metadata_score_forward.1} parent=1 // loop_body
      %s115 = ssub.s32 %s110, 1
      %s116 = ssub.s32 %s110, 2
      %s117 = sadd.s32 %s110, 1
      %s118 = ssub.s32 %s110, %s117
      %p119 = scmp.eq.s32.totalorder %s118, 0
      %s121 = sadd.s32 %s120, 1
      %s122 = scalar_select %p119, %s120, %s121
      %p125 = pneg %p119
      %p126 = scmp.eq.s32.totalorder %s110, 1
      %p127 = por %p125, %p126
      %p128 = scmp.ne.s32.totalorder %s120, %s123
      %p129 = scmp.eq.s32.totalorder %s110, 0
      %p130 = por %p128, %p129
      %p131 = scmp.ne.s32.totalorder %s120, %s123
      %p132 = scmp.eq.s32.totalorder %s115, 1
      %p133 = por %p131, %p132
      %p134 = scmp.ne.s32.totalorder %s123, %s124
      %p135 = scmp.eq.s32.totalorder %s115, 0
      %p136 = por %p134, %p135
      %p137 = scmp.ne.s32.totalorder %s123, %s124
      %p138 = scmp.eq.s32.totalorder %s116, 1
      %p139 = por %p137, %p138
      %p141 = scmp.ne.s32.totalorder %s124, %s140
      %p142 = scmp.eq.s32.totalorder %s116, 0
      %p143 = por %p141, %p142
      %s144 = ssub.s32 %s110, %s117
      %p145 = scmp.eq.s32.totalorder %s144, 0
      %s147 = sadd.s32 %s146, 1
      %s148 = scalar_select %p145, %s146, %s147
      %p151 = pneg %p145
      %p152 = scmp.eq.s32.totalorder %s110, 1
      %p153 = por %p151, %p152
      %p154 = scmp.ne.s32.totalorder %s146, %s149
      %p155 = scmp.eq.s32.totalorder %s110, 0
      %p156 = por %p154, %p155
      %p157 = scmp.ne.s32.totalorder %s146, %s149
      %p158 = scmp.eq.s32.totalorder %s115, 1
      %p159 = por %p157, %p158
      %p160 = scmp.ne.s32.totalorder %s149, %s150
      %p161 = scmp.eq.s32.totalorder %s115, 0
      %p162 = por %p160, %p161
      %p163 = scmp.ne.s32.totalorder %s149, %s150
      %p164 = scmp.eq.s32.totalorder %s116, 1
      %p165 = por %p163, %p164
      %p167 = scmp.ne.s32.totalorder %s150, %s166
      %p168 = scmp.eq.s32.totalorder %s116, 0
      %p169 = por %p167, %p168
      %s171 = sadd.s32 %s170, 1
      %p174 = scmp.eq.s32.totalorder %s110, 1
      %p175 = scmp.ne.s32.totalorder %s170, %s172
      %p176 = scmp.eq.s32.totalorder %s110, 0
      %p177 = por %p175, %p176
      %p178 = scmp.ne.s32.totalorder %s170, %s172
      %p179 = scmp.eq.s32.totalorder %s115, 1
      %p180 = por %p178, %p179
      %p181 = scmp.ne.s32.totalorder %s172, %s173
      %p182 = scmp.eq.s32.totalorder %s115, 0
      %p183 = por %p181, %p182
      %p184 = scmp.ne.s32.totalorder %s172, %s173
      %p185 = scmp.eq.s32.totalorder %s116, 1
      %p186 = por %p184, %p185
      %p188 = scmp.ne.s32.totalorder %s173, %s187
      %p189 = scmp.eq.s32.totalorder %s116, 0
      %p190 = por %p188, %p189
      %s192 = sadd.s32 %s191, 1
      %p195 = scmp.eq.s32.totalorder %s110, 1
      %p196 = scmp.ne.s32.totalorder %s191, %s193
      %p197 = scmp.eq.s32.totalorder %s110, 0
      %p198 = por %p196, %p197
      %p199 = scmp.ne.s32.totalorder %s191, %s193
      %p200 = scmp.eq.s32.totalorder %s115, 1
      %p201 = por %p199, %p200
      %p202 = scmp.ne.s32.totalorder %s193, %s194
      %p203 = scmp.eq.s32.totalorder %s115, 0
      %p204 = por %p202, %p203
      %p205 = scmp.ne.s32.totalorder %s193, %s194
      %p206 = scmp.eq.s32.totalorder %s116, 1
      %p207 = por %p205, %p206
      %p209 = scmp.ne.s32.totalorder %s194, %s208
      %p210 = scmp.eq.s32.totalorder %s116, 0
      %p211 = por %p209, %p210
      %s213 = sadd.s32 %s212, 1
      %p216 = scmp.eq.s32.totalorder %s110, 1
      %p217 = scmp.ne.s32.totalorder %s212, %s214
      %p218 = scmp.eq.s32.totalorder %s110, 0
      %p219 = por %p217, %p218
      %p220 = scmp.ne.s32.totalorder %s212, %s214
      %p221 = scmp.eq.s32.totalorder %s115, 1
      %p222 = por %p220, %p221
      %p223 = scmp.ne.s32.totalorder %s214, %s215
      %p224 = scmp.eq.s32.totalorder %s115, 0
      %p225 = por %p223, %p224
      %p226 = scmp.ne.s32.totalorder %s214, %s215
      %p227 = scmp.eq.s32.totalorder %s116, 1
      %p228 = por %p226, %p227
      %p230 = scmp.ne.s32.totalorder %s215, %s229
      %p231 = scmp.eq.s32.totalorder %s116, 0
      %p232 = por %p230, %p231
      %s234 = sadd.s32 %s233, 1
      %p237 = scmp.eq.s32.totalorder %s110, 1
      %p238 = scmp.ne.s32.totalorder %s233, %s235
      %p239 = scmp.eq.s32.totalorder %s110, 0
      %p240 = por %p238, %p239
      %p241 = scmp.ne.s32.totalorder %s233, %s235
      %p242 = scmp.eq.s32.totalorder %s115, 1
      %p243 = por %p241, %p242
      %p244 = scmp.ne.s32.totalorder %s235, %s236
      %p245 = scmp.eq.s32.totalorder %s115, 0
      %p246 = por %p244, %p245
      %p247 = scmp.ne.s32.totalorder %s235, %s236
      %p248 = scmp.eq.s32.totalorder %s116, 1
      %p249 = por %p247, %p248
      %p251 = scmp.ne.s32.totalorder %s236, %s250
      %p252 = scmp.eq.s32.totalorder %s116, 0
      %p253 = por %p251, %p252
      %s255 = sadd.s32 %s254, 1
      %p258 = scmp.eq.s32.totalorder %s110, 1
      %p259 = scmp.ne.s32.totalorder %s254, %s256
      %p260 = scmp.eq.s32.totalorder %s110, 0
      %p261 = por %p259, %p260
      %p262 = scmp.ne.s32.totalorder %s254, %s256
      %p263 = scmp.eq.s32.totalorder %s115, 1
      %p264 = por %p262, %p263
      %p265 = scmp.ne.s32.totalorder %s256, %s257
      %p266 = scmp.eq.s32.totalorder %s115, 0
      %p267 = por %p265, %p266
      %p268 = scmp.ne.s32.totalorder %s256, %s257
      %p269 = scmp.eq.s32.totalorder %s116, 1
      %p270 = por %p268, %p269
      %p272 = scmp.ne.s32.totalorder %s257, %s271
      %p273 = scmp.eq.s32.totalorder %s116, 0
      %p274 = por %p272, %p273
      %s276 = sadd.s32 %s275, 1
      %p279 = scmp.eq.s32.totalorder %s110, 1
      %p280 = scmp.ne.s32.totalorder %s275, %s277
      %p281 = scmp.eq.s32.totalorder %s110, 0
      %p282 = por %p280, %p281
      %p283 = scmp.ne.s32.totalorder %s275, %s277
      %p284 = scmp.eq.s32.totalorder %s115, 1
      %p285 = por %p283, %p284
      %p286 = scmp.ne.s32.totalorder %s277, %s278
      %p287 = scmp.eq.s32.totalorder %s115, 0
      %p288 = por %p286, %p287
      %p289 = scmp.ne.s32.totalorder %s277, %s278
      %p290 = scmp.eq.s32.totalorder %s116, 1
      %p291 = por %p289, %p290
      %p293 = scmp.ne.s32.totalorder %s278, %s292
      %p294 = scmp.eq.s32.totalorder %s116, 0
      %p295 = por %p293, %p294
      %s297 = sadd.s32 %s296, 1
      %p300 = scmp.eq.s32.totalorder %s110, 1
      %p301 = scmp.ne.s32.totalorder %s296, %s298
      %p302 = scmp.eq.s32.totalorder %s110, 0
      %p303 = por %p301, %p302
      %p304 = scmp.ne.s32.totalorder %s296, %s298
      %p305 = scmp.eq.s32.totalorder %s115, 1
      %p306 = por %p304, %p305
      %p307 = scmp.ne.s32.totalorder %s298, %s299
      %p308 = scmp.eq.s32.totalorder %s115, 0
      %p309 = por %p307, %p308
      %p310 = scmp.ne.s32.totalorder %s298, %s299
      %p311 = scmp.eq.s32.totalorder %s116, 1
      %p312 = por %p310, %p311
      %p314 = scmp.ne.s32.totalorder %s299, %s313
      %p315 = scmp.eq.s32.totalorder %s116, 0
      %p316 = por %p314, %p315
      %s318 = sadd.s32 %s317, 1
      %p321 = scmp.eq.s32.totalorder %s110, 1
      %p322 = scmp.ne.s32.totalorder %s317, %s319
      %p323 = scmp.eq.s32.totalorder %s110, 0
      %p324 = por %p322, %p323
      %p325 = scmp.ne.s32.totalorder %s317, %s319
      %p326 = scmp.eq.s32.totalorder %s115, 1
      %p327 = por %p325, %p326
      %p328 = scmp.ne.s32.totalorder %s319, %s320
      %p329 = scmp.eq.s32.totalorder %s115, 0
      %p330 = por %p328, %p329
      %p331 = scmp.ne.s32.totalorder %s319, %s320
      %p332 = scmp.eq.s32.totalorder %s116, 1
      %p333 = por %p331, %p332
      %p335 = scmp.ne.s32.totalorder %s320, %s334
      %p336 = scmp.eq.s32.totalorder %s116, 0
      %p337 = por %p335, %p336
      %s339 = sadd.s32 %s338, 1
      %p342 = scmp.eq.s32.totalorder %s110, 1
      %p343 = scmp.ne.s32.totalorder %s338, %s340
      %p344 = scmp.eq.s32.totalorder %s110, 0
      %p345 = por %p343, %p344
      %p346 = scmp.ne.s32.totalorder %s338, %s340
      %p347 = scmp.eq.s32.totalorder %s115, 1
      %p348 = por %p346, %p347
      %p349 = scmp.ne.s32.totalorder %s340, %s341
      %p350 = scmp.eq.s32.totalorder %s115, 0
      %p351 = por %p349, %p350
      %p352 = scmp.ne.s32.totalorder %s340, %s341
      %p353 = scmp.eq.s32.totalorder %s116, 1
      %p354 = por %p352, %p353
      %p356 = scmp.ne.s32.totalorder %s341, %s355
      %p357 = scmp.eq.s32.totalorder %s116, 0
      %p358 = por %p356, %p357
      %s360 = sadd.s32 %s359, 1
      %p363 = scmp.eq.s32.totalorder %s110, 1
      %p364 = scmp.ne.s32.totalorder %s359, %s361
      %p365 = scmp.eq.s32.totalorder %s110, 0
      %p366 = por %p364, %p365
      %p367 = scmp.ne.s32.totalorder %s359, %s361
      %p368 = scmp.eq.s32.totalorder %s115, 1
      %p369 = por %p367, %p368
      %p370 = scmp.ne.s32.totalorder %s361, %s362
      %p371 = scmp.eq.s32.totalorder %s115, 0
      %p372 = por %p370, %p371
      %p373 = scmp.ne.s32.totalorder %s361, %s362
      %p374 = scmp.eq.s32.totalorder %s116, 1
      %p375 = por %p373, %p374
      %p377 = scmp.ne.s32.totalorder %s362, %s376
      %p378 = scmp.eq.s32.totalorder %s116, 0
      %p379 = por %p377, %p378
      %s381 = sadd.s32 %s380, 1
      %p384 = scmp.eq.s32.totalorder %s110, 1
      %p385 = scmp.ne.s32.totalorder %s380, %s382
      %p386 = scmp.eq.s32.totalorder %s110, 0
      %p387 = por %p385, %p386
      %p388 = scmp.ne.s32.totalorder %s380, %s382
      %p389 = scmp.eq.s32.totalorder %s115, 1
      %p390 = por %p388, %p389
      %p391 = scmp.ne.s32.totalorder %s382, %s383
      %p392 = scmp.eq.s32.totalorder %s115, 0
      %p393 = por %p391, %p392
      %p394 = scmp.ne.s32.totalorder %s382, %s383
      %p395 = scmp.eq.s32.totalorder %s116, 1
      %p396 = por %p394, %p395
      %p398 = scmp.ne.s32.totalorder %s383, %s397
      %p399 = scmp.eq.s32.totalorder %s116, 0
      %p400 = por %p398, %p399
      %s402 = sadd.s32 %s401, 1
      %p405 = scmp.eq.s32.totalorder %s110, 1
      %p406 = scmp.ne.s32.totalorder %s401, %s403
      %p407 = scmp.eq.s32.totalorder %s110, 0
      %p408 = por %p406, %p407
      %p409 = scmp.ne.s32.totalorder %s401, %s403
      %p410 = scmp.eq.s32.totalorder %s115, 1
      %p411 = por %p409, %p410
      %p412 = scmp.ne.s32.totalorder %s403, %s404
      %p413 = scmp.eq.s32.totalorder %s115, 0
      %p414 = por %p412, %p413
      %p415 = scmp.ne.s32.totalorder %s403, %s404
      %p416 = scmp.eq.s32.totalorder %s116, 1
      %p417 = por %p415, %p416
      %p419 = scmp.ne.s32.totalorder %s404, %s418
      %p420 = scmp.eq.s32.totalorder %s116, 0
      %p421 = por %p419, %p420
      %s423 = sadd.s32 %s422, 1
      %p426 = scmp.eq.s32.totalorder %s110, 1
      %p427 = scmp.ne.s32.totalorder %s422, %s424
      %p428 = scmp.eq.s32.totalorder %s110, 0
      %p429 = por %p427, %p428
      %p430 = scmp.ne.s32.totalorder %s422, %s424
      %p431 = scmp.eq.s32.totalorder %s115, 1
      %p432 = por %p430, %p431
      %p433 = scmp.ne.s32.totalorder %s424, %s425
      %p434 = scmp.eq.s32.totalorder %s115, 0
      %p435 = por %p433, %p434
      %p436 = scmp.ne.s32.totalorder %s424, %s425
      %p437 = scmp.eq.s32.totalorder %s116, 1
      %p438 = por %p436, %p437
      %p440 = scmp.ne.s32.totalorder %s425, %s439
      %p441 = scmp.eq.s32.totalorder %s116, 0
      %p442 = por %p440, %p441
      %s444 = sadd.s32 %s443, 1
      %p447 = scmp.eq.s32.totalorder %s110, 1
      %p448 = scmp.ne.s32.totalorder %s443, %s445
      %p449 = scmp.eq.s32.totalorder %s110, 0
      %p450 = por %p448, %p449
      %p451 = scmp.ne.s32.totalorder %s443, %s445
      %p452 = scmp.eq.s32.totalorder %s115, 1
      %p453 = por %p451, %p452
      %p454 = scmp.ne.s32.totalorder %s445, %s446
      %p455 = scmp.eq.s32.totalorder %s115, 0
      %p456 = por %p454, %p455
      %p457 = scmp.ne.s32.totalorder %s445, %s446
      %p458 = scmp.eq.s32.totalorder %s116, 1
      %p459 = por %p457, %p458
      %p461 = scmp.ne.s32.totalorder %s446, %s460
      %p462 = scmp.eq.s32.totalorder %s116, 0
      %p463 = por %p461, %p462
      %s465 = sadd.s32 %s464, 1
      %p468 = scmp.eq.s32.totalorder %s110, 1
      %p469 = scmp.ne.s32.totalorder %s464, %s466
      %p470 = scmp.eq.s32.totalorder %s110, 0
      %p471 = por %p469, %p470
      %p472 = scmp.ne.s32.totalorder %s464, %s466
      %p473 = scmp.eq.s32.totalorder %s115, 1
      %p474 = por %p472, %p473
      %p475 = scmp.ne.s32.totalorder %s466, %s467
      %p476 = scmp.eq.s32.totalorder %s115, 0
      %p477 = por %p475, %p476
      %p478 = scmp.ne.s32.totalorder %s466, %s467
      %p479 = scmp.eq.s32.totalorder %s116, 1
      %p480 = por %p478, %p479
      %p482 = scmp.ne.s32.totalorder %s467, %s481
      %p483 = scmp.eq.s32.totalorder %s116, 0
      %p484 = por %p482, %p483
      %s486 = sadd.s32 %s485, 1
      %p489 = scmp.eq.s32.totalorder %s110, 1
      %p490 = scmp.ne.s32.totalorder %s485, %s487
      %p491 = scmp.eq.s32.totalorder %s110, 0
      %p492 = por %p490, %p491
      %p493 = scmp.ne.s32.totalorder %s485, %s487
      %p494 = scmp.eq.s32.totalorder %s115, 1
      %p495 = por %p493, %p494
      %p496 = scmp.ne.s32.totalorder %s487, %s488
      %p497 = scmp.eq.s32.totalorder %s115, 0
      %p498 = por %p496, %p497
      %p499 = scmp.ne.s32.totalorder %s487, %s488
      %p500 = scmp.eq.s32.totalorder %s116, 1
      %p501 = por %p499, %p500
      %p503 = scmp.ne.s32.totalorder %s488, %s502
      %p504 = scmp.eq.s32.totalorder %s116, 0
      %p505 = por %p503, %p504
      %s507 = sadd.s32 %s506, 1
      %p510 = scmp.eq.s32.totalorder %s110, 1
      %p511 = scmp.ne.s32.totalorder %s506, %s508
      %p512 = scmp.eq.s32.totalorder %s110, 0
      %p513 = por %p511, %p512
      %p514 = scmp.ne.s32.totalorder %s506, %s508
      %p515 = scmp.eq.s32.totalorder %s115, 1
      %p516 = por %p514, %p515
      %p517 = scmp.ne.s32.totalorder %s508, %s509
      %p518 = scmp.eq.s32.totalorder %s115, 0
      %p519 = por %p517, %p518
      %p520 = scmp.ne.s32.totalorder %s508, %s509
      %p521 = scmp.eq.s32.totalorder %s116, 1
      %p522 = por %p520, %p521
      %p524 = scmp.ne.s32.totalorder %s509, %s523
      %p525 = scmp.eq.s32.totalorder %s116, 0
      %p526 = por %p524, %p525
      %s528 = sadd.s32 %s527, 1
      %p531 = scmp.eq.s32.totalorder %s110, 1
      %p532 = scmp.ne.s32.totalorder %s527, %s529
      %p533 = scmp.eq.s32.totalorder %s110, 0
      %p534 = por %p532, %p533
      %p535 = scmp.ne.s32.totalorder %s527, %s529
      %p536 = scmp.eq.s32.totalorder %s115, 1
      %p537 = por %p535, %p536
      %p538 = scmp.ne.s32.totalorder %s529, %s530
      %p539 = scmp.eq.s32.totalorder %s115, 0
      %p540 = por %p538, %p539
      %p541 = scmp.ne.s32.totalorder %s529, %s530
      %p542 = scmp.eq.s32.totalorder %s116, 1
      %p543 = por %p541, %p542
      %p545 = scmp.ne.s32.totalorder %s530, %s544
      %p546 = scmp.eq.s32.totalorder %s116, 0
      %p547 = por %p545, %p546
      %s549 = sadd.s32 %s548, 1
      %p552 = scmp.eq.s32.totalorder %s110, 1
      %p553 = scmp.ne.s32.totalorder %s548, %s550
      %p554 = scmp.eq.s32.totalorder %s110, 0
      %p555 = por %p553, %p554
      %p556 = scmp.ne.s32.totalorder %s548, %s550
      %p557 = scmp.eq.s32.totalorder %s115, 1
      %p558 = por %p556, %p557
      %p559 = scmp.ne.s32.totalorder %s550, %s551
      %p560 = scmp.eq.s32.totalorder %s115, 0
      %p561 = por %p559, %p560
      %p562 = scmp.ne.s32.totalorder %s550, %s551
      %p563 = scmp.eq.s32.totalorder %s116, 1
      %p564 = por %p562, %p563
      %p566 = scmp.ne.s32.totalorder %s551, %s565
      %p567 = scmp.eq.s32.totalorder %s116, 0
      %p568 = por %p566, %p567
      %s570 = sadd.s32 %s569, 1
      %p573 = scmp.eq.s32.totalorder %s110, 1
      %p574 = scmp.ne.s32.totalorder %s569, %s571
      %p575 = scmp.eq.s32.totalorder %s110, 0
      %p576 = por %p574, %p575
      %p577 = scmp.ne.s32.totalorder %s569, %s571
      %p578 = scmp.eq.s32.totalorder %s115, 1
      %p579 = por %p577, %p578
      %p580 = scmp.ne.s32.totalorder %s571, %s572
      %p581 = scmp.eq.s32.totalorder %s115, 0
      %p582 = por %p580, %p581
      %p583 = scmp.ne.s32.totalorder %s571, %s572
      %p584 = scmp.eq.s32.totalorder %s116, 1
      %p585 = por %p583, %p584
      %p587 = scmp.ne.s32.totalorder %s572, %s586
      %p588 = scmp.eq.s32.totalorder %s116, 0
      %p589 = por %p587, %p588
      %s591 = sadd.s32 %s590, 1
      %p594 = scmp.eq.s32.totalorder %s110, 1
      %p595 = scmp.ne.s32.totalorder %s590, %s592
      %p596 = scmp.eq.s32.totalorder %s110, 0
      %p597 = por %p595, %p596
      %p598 = scmp.ne.s32.totalorder %s590, %s592
      %p599 = scmp.eq.s32.totalorder %s115, 1
      %p600 = por %p598, %p599
      %p601 = scmp.ne.s32.totalorder %s592, %s593
      %p602 = scmp.eq.s32.totalorder %s115, 0
      %p603 = por %p601, %p602
      %p604 = scmp.ne.s32.totalorder %s592, %s593
      %p605 = scmp.eq.s32.totalorder %s116, 1
      %p606 = por %p604, %p605
      %p608 = scmp.ne.s32.totalorder %s593, %s607
      %p609 = scmp.eq.s32.totalorder %s116, 0
      %p610 = por %p608, %p609
      %s612 = sadd.s32 %s611, 1
      %p615 = scmp.eq.s32.totalorder %s110, 1
      %p616 = scmp.ne.s32.totalorder %s611, %s613
      %p617 = scmp.eq.s32.totalorder %s110, 0
      %p618 = por %p616, %p617
      %p619 = scmp.ne.s32.totalorder %s611, %s613
      %p620 = scmp.eq.s32.totalorder %s115, 1
      %p621 = por %p619, %p620
      %p622 = scmp.ne.s32.totalorder %s613, %s614
      %p623 = scmp.eq.s32.totalorder %s115, 0
      %p624 = por %p622, %p623
      %p625 = scmp.ne.s32.totalorder %s613, %s614
      %p626 = scmp.eq.s32.totalorder %s116, 1
      %p627 = por %p625, %p626
      %p629 = scmp.ne.s32.totalorder %s614, %s628
      %p630 = scmp.eq.s32.totalorder %s116, 0
      %p631 = por %p629, %p630
      %s633 = sadd.s32 %s632, 1
      %p636 = scmp.eq.s32.totalorder %s110, 1
      %p637 = scmp.ne.s32.totalorder %s632, %s634
      %p638 = scmp.eq.s32.totalorder %s110, 0
      %p639 = por %p637, %p638
      %p640 = scmp.ne.s32.totalorder %s632, %s634
      %p641 = scmp.eq.s32.totalorder %s115, 1
      %p642 = por %p640, %p641
      %p643 = scmp.ne.s32.totalorder %s634, %s635
      %p644 = scmp.eq.s32.totalorder %s115, 0
      %p645 = por %p643, %p644
      %p646 = scmp.ne.s32.totalorder %s634, %s635
      %p647 = scmp.eq.s32.totalorder %s116, 1
      %p648 = por %p646, %p647
      %p650 = scmp.ne.s32.totalorder %s635, %s649
      %p651 = scmp.eq.s32.totalorder %s116, 0
      %p652 = por %p650, %p651
      %s654 = sadd.s32 %s653, 1
      %p657 = scmp.eq.s32.totalorder %s110, 1
      %p658 = scmp.ne.s32.totalorder %s653, %s655
      %p659 = scmp.eq.s32.totalorder %s110, 0
      %p660 = por %p658, %p659
      %p661 = scmp.ne.s32.totalorder %s653, %s655
      %p662 = scmp.eq.s32.totalorder %s115, 1
      %p663 = por %p661, %p662
      %p664 = scmp.ne.s32.totalorder %s655, %s656
      %p665 = scmp.eq.s32.totalorder %s115, 0
      %p666 = por %p664, %p665
      %p667 = scmp.ne.s32.totalorder %s655, %s656
      %p668 = scmp.eq.s32.totalorder %s116, 1
      %p669 = por %p667, %p668
      %p671 = scmp.ne.s32.totalorder %s656, %s670
      %p672 = scmp.eq.s32.totalorder %s116, 0
      %p673 = por %p671, %p672
      %s675 = sadd.s32 %s674, 1
      %p678 = scmp.eq.s32.totalorder %s110, 1
      %p679 = scmp.ne.s32.totalorder %s674, %s676
      %p680 = scmp.eq.s32.totalorder %s110, 0
      %p681 = por %p679, %p680
      %p682 = scmp.ne.s32.totalorder %s674, %s676
      %p683 = scmp.eq.s32.totalorder %s115, 1
      %p684 = por %p682, %p683
      %p685 = scmp.ne.s32.totalorder %s676, %s677
      %p686 = scmp.eq.s32.totalorder %s115, 0
      %p687 = por %p685, %p686
      %p688 = scmp.ne.s32.totalorder %s676, %s677
      %p689 = scmp.eq.s32.totalorder %s116, 1
      %p690 = por %p688, %p689
      %p692 = scmp.ne.s32.totalorder %s677, %s691
      %p693 = scmp.eq.s32.totalorder %s116, 0
      %p694 = por %p692, %p693
      %s696 = sadd.s32 %s695, 1
      %p699 = scmp.eq.s32.totalorder %s110, 1
      %p700 = scmp.ne.s32.totalorder %s695, %s697
      %p701 = scmp.eq.s32.totalorder %s110, 0
      %p702 = por %p700, %p701
      %p703 = scmp.ne.s32.totalorder %s695, %s697
      %p704 = scmp.eq.s32.totalorder %s115, 1
      %p705 = por %p703, %p704
      %p706 = scmp.ne.s32.totalorder %s697, %s698
      %p707 = scmp.eq.s32.totalorder %s115, 0
      %p708 = por %p706, %p707
      %p709 = scmp.ne.s32.totalorder %s697, %s698
      %p710 = scmp.eq.s32.totalorder %s116, 1
      %p711 = por %p709, %p710
      %p713 = scmp.ne.s32.totalorder %s698, %s712
      %p714 = scmp.eq.s32.totalorder %s116, 0
      %p715 = por %p713, %p714
      %s717 = sadd.s32 %s716, 1
      %p720 = scmp.eq.s32.totalorder %s110, 1
      %p721 = scmp.ne.s32.totalorder %s716, %s718
      %p722 = scmp.eq.s32.totalorder %s110, 0
      %p723 = por %p721, %p722
      %p724 = scmp.ne.s32.totalorder %s716, %s718
      %p725 = scmp.eq.s32.totalorder %s115, 1
      %p726 = por %p724, %p725
      %p727 = scmp.ne.s32.totalorder %s718, %s719
      %p728 = scmp.eq.s32.totalorder %s115, 0
      %p729 = por %p727, %p728
      %p730 = scmp.ne.s32.totalorder %s718, %s719
      %p731 = scmp.eq.s32.totalorder %s116, 1
      %p732 = por %p730, %p731
      %p734 = scmp.ne.s32.totalorder %s719, %s733
      %p735 = scmp.eq.s32.totalorder %s116, 0
      %p736 = por %p734, %p735
      %s738 = sadd.s32 %s737, 1
      %p741 = scmp.eq.s32.totalorder %s110, 1
      %p742 = scmp.ne.s32.totalorder %s737, %s739
      %p743 = scmp.eq.s32.totalorder %s110, 0
      %p744 = por %p742, %p743
      %p745 = scmp.ne.s32.totalorder %s737, %s739
      %p746 = scmp.eq.s32.totalorder %s115, 1
      %p747 = por %p745, %p746
      %p748 = scmp.ne.s32.totalorder %s739, %s740
      %p749 = scmp.eq.s32.totalorder %s115, 0
      %p750 = por %p748, %p749
      %p751 = scmp.ne.s32.totalorder %s739, %s740
      %p752 = scmp.eq.s32.totalorder %s116, 1
      %p753 = por %p751, %p752
      %p755 = scmp.ne.s32.totalorder %s740, %s754
      %p756 = scmp.eq.s32.totalorder %s116, 0
      %p757 = por %p755, %p756
      %s759 = sadd.s32 %s758, 1
      %p762 = scmp.eq.s32.totalorder %s110, 1
      %p763 = scmp.ne.s32.totalorder %s758, %s760
      %p764 = scmp.eq.s32.totalorder %s110, 0
      %p765 = por %p763, %p764
      %p766 = scmp.ne.s32.totalorder %s758, %s760
      %p767 = scmp.eq.s32.totalorder %s115, 1
      %p768 = por %p766, %p767
      %p769 = scmp.ne.s32.totalorder %s760, %s761
      %p770 = scmp.eq.s32.totalorder %s115, 0
      %p771 = por %p769, %p770
      %p772 = scmp.ne.s32.totalorder %s760, %s761
      %p773 = scmp.eq.s32.totalorder %s116, 1
      %p774 = por %p772, %p773
      %p776 = scmp.ne.s32.totalorder %s761, %s775
      %p777 = scmp.eq.s32.totalorder %s116, 0
      %p778 = por %p776, %p777
      %s780 = sadd.s32 %s779, 1
      %p783 = scmp.eq.s32.totalorder %s110, 1
      %p784 = scmp.ne.s32.totalorder %s779, %s781
      %p785 = scmp.eq.s32.totalorder %s110, 0
      %p786 = por %p784, %p785
      %p787 = scmp.ne.s32.totalorder %s779, %s781
      %p788 = scmp.eq.s32.totalorder %s115, 1
      %p789 = por %p787, %p788
      %p790 = scmp.ne.s32.totalorder %s781, %s782
      %p791 = scmp.eq.s32.totalorder %s115, 0
      %p792 = por %p790, %p791
      %p793 = scmp.ne.s32.totalorder %s781, %s782
      %p794 = scmp.eq.s32.totalorder %s116, 1
      %p795 = por %p793, %p794
      %p797 = scmp.ne.s32.totalorder %s782, %s796
      %p798 = scmp.eq.s32.totalorder %s116, 0
      %p799 = por %p797, %p798
      %s801 = sadd.s32 %s800, 1
      %p804 = scmp.eq.s32.totalorder %s110, 1
      %p805 = scmp.ne.s32.totalorder %s800, %s802
      %p806 = scmp.eq.s32.totalorder %s110, 0
      %p807 = por %p805, %p806
      %p808 = scmp.ne.s32.totalorder %s800, %s802
      %p809 = scmp.eq.s32.totalorder %s115, 1
      %p810 = por %p808, %p809
      %p811 = scmp.ne.s32.totalorder %s802, %s803
      %p812 = scmp.eq.s32.totalorder %s115, 0
      %p813 = por %p811, %p812
      %p814 = scmp.ne.s32.totalorder %s802, %s803
      %p815 = scmp.eq.s32.totalorder %s116, 1
      %p816 = por %p814, %p815
      %p818 = scmp.ne.s32.totalorder %s803, %s817
      %p819 = scmp.eq.s32.totalorder %s116, 0
      %p820 = por %p818, %p819
      %s821 = ssub.s32 %s110, %s117
      %p822 = scmp.eq.s32.totalorder %s821, 0
      %s824 = sadd.s32 %s823, 1
      %s825 = scalar_select %p822, %s823, %s824
      %p828 = pneg %p822
      %p829 = scmp.eq.s32.totalorder %s110, 1
      %p830 = por %p828, %p829
      %p831 = scmp.ne.s32.totalorder %s823, %s826
      %p832 = scmp.eq.s32.totalorder %s110, 0
      %p833 = por %p831, %p832
      %p834 = scmp.ne.s32.totalorder %s823, %s826
      %p835 = scmp.eq.s32.totalorder %s115, 1
      %p836 = por %p834, %p835
      %p837 = scmp.ne.s32.totalorder %s826, %s827
      %p838 = scmp.eq.s32.totalorder %s115, 0
      %p839 = por %p837, %p838
      %p840 = scmp.ne.s32.totalorder %s826, %s827
      %p841 = scmp.eq.s32.totalorder %s116, 1
      %p842 = por %p840, %p841
      %p844 = scmp.ne.s32.totalorder %s827, %s843
      %p845 = scmp.eq.s32.totalorder %s116, 0
      %p846 = por %p844, %p845
      %s847 = ssub.s32 %s110, %s117
      %p848 = scmp.eq.s32.totalorder %s847, 0
      %s850 = sadd.s32 %s849, 1
      %s851 = scalar_select %p848, %s849, %s850
      %p854 = pneg %p848
      %p855 = scmp.eq.s32.totalorder %s110, 1
      %p856 = por %p854, %p855
      %p857 = scmp.ne.s32.totalorder %s849, %s852
      %p858 = scmp.eq.s32.totalorder %s110, 0
      %p859 = por %p857, %p858
      %p860 = scmp.ne.s32.totalorder %s849, %s852
      %p861 = scmp.eq.s32.totalorder %s115, 1
      %p862 = por %p860, %p861
      %p863 = scmp.ne.s32.totalorder %s852, %s853
      %p864 = scmp.eq.s32.totalorder %s115, 0
      %p865 = por %p863, %p864
      %p866 = scmp.ne.s32.totalorder %s852, %s853
      %p867 = scmp.eq.s32.totalorder %s116, 1
      %p868 = por %p866, %p867
      %p870 = scmp.ne.s32.totalorder %s853, %s869
      %p871 = scmp.eq.s32.totalorder %s116, 0
      %p872 = por %p870, %p871
      %p873 = scmp.le.s32.totalorder 1, %s110
      %p874 = scmp.lt.s32.totalorder %s110, 3
      %p875 = pnand %p873, %p874
      %p876 = pneg %p875
      // Predicated region
      $region9: #{review_metadata_score_forward.1} parent=5 // pred_check
        _
      $region10: #{review_metadata_score_forward.1} parent=5 // pred_check_branch
        %878 = sbr.rel (%p875) target = $region12
      $region11: #{review_metadata_score_forward.1} parent=5 // pred_region
        %s879 = ssub.s32 %s110, 1
        // Predicated region
        $region13: #{review_metadata_score_forward.1} parent=11 // pred_check
          %p880 = pneg %p183
        $region14: #{review_metadata_score_forward.1} parent=11 // pred_check_branch
          %882 = sbr.rel (%p880) target = $region16
        $region15: #{review_metadata_score_forward.1} parent=11 // pred_region
          _
        $region16: #{review_metadata_score_forward.1} parent=11 // pred_fallthru
          _
        // Predicated region
        $region17: #{review_metadata_score_forward.1} parent=11 // pred_check
          %p883 = pneg %p204
        $region18: #{review_metadata_score_forward.1} parent=11 // pred_check_branch
          %885 = sbr.rel (%p883) target = $region20
        $region19: #{review_metadata_score_forward.1} parent=11 // pred_region
          %s887 = ssub.s32 16, 16
          %888 = vsyncadd [#allocation11], %s887
          %s890 = sshll.u32 [#allocation10], 4
          %s891 = int_to_ptr.vmem [resolvable:$true] %s890
          %893 = dma.hbm_to_vmem [thread:$0]  %s15, 16, %s891, [#allocation11]
        $region20: #{review_metadata_score_forward.1} parent=11 // pred_fallthru
          _
        // Predicated region
        $region21: #{review_metadata_score_forward.1} parent=11 // pred_check
          %p894 = pneg %p225
        $region22: #{review_metadata_score_forward.1} parent=11 // pred_check_branch
          %896 = sbr.rel (%p894) target = $region24
        $region23: #{review_metadata_score_forward.1} parent=11 // pred_region
          %s898 = ssub.s32 16, 16
          %899 = vsyncadd [#allocation13], %s898
          %s901 = sshll.u32 [#allocation12], 4
          %s902 = int_to_ptr.vmem [resolvable:$true] %s901
          %904 = dma.hbm_to_vmem [thread:$0]  %s17, 16, %s902, [#allocation13]
        $region24: #{review_metadata_score_forward.1} parent=11 // pred_fallthru
          _
        // Predicated region
        $region25: #{review_metadata_score_forward.1} parent=11 // pred_check
          %p905 = pneg %p246
        $region26: #{review_metadata_score_forward.1} parent=11 // pred_check_branch
          %907 = sbr.rel (%p905) target = $region28
        $region27: #{review_metadata_score_forward.1} parent=11 // pred_region
          %s909 = ssub.s32 3072, 3072
          %910 = vsyncadd [#allocation13], %s909
          %s911 = sshll.u32 [#allocation14], 4
          %s912 = int_to_ptr.vmem [resolvable:$true] %s911
          %917 = dma.hbm_to_vmem [thread:$0]  %s19, 3072, %s912, [#allocation13], 192, 192, 12
        $region28: #{review_metadata_score_forward.1} parent=11 // pred_fallthru
          _
        // Predicated region
        $region29: #{review_metadata_score_forward.1} parent=11 // pred_check
          %p918 = pneg %p267
        $region30: #{review_metadata_score_forward.1} parent=11 // pred_check_branch
          %920 = sbr.rel (%p918) target = $region32
        $region31: #{review_metadata_score_forward.1} parent=11 // pred_region
          %s922 = ssub.s32 48, 48
          %923 = vsyncadd [#allocation16], %s922
          %s925 = sshll.u32 [#allocation15], 4
          %s926 = int_to_ptr.vmem [resolvable:$true] %s925
          %928 = dma.hbm_to_vmem [thread:$0]  %s21, 48, %s926, [#allocation16]
        $region32: #{review_metadata_score_forward.1} parent=11 // pred_fallthru
          _
        // Predicated region
        $region33: #{review_metadata_score_forward.1} parent=11 // pred_check
          %p929 = pneg %p288
        $region34: #{review_metadata_score_forward.1} parent=11 // pred_check_branch
          %931 = sbr.rel (%p929) target = $region36
        $region35: #{review_metadata_score_forward.1} parent=11 // pred_region
          %s933 = ssub.s32 1024, 1024
          %934 = vsyncadd [#allocation16], %s933
          %s935 = sshll.u32 [#allocation17], 4
          %s936 = int_to_ptr.vmem [resolvable:$true] %s935
          %941 = dma.hbm_to_vmem [thread:$0]  %s23, 1024, %s936, [#allocation16], 64, 64, 4
        $region36: #{review_metadata_score_forward.1} parent=11 // pred_fallthru
          _
        // Predicated region
        $region37: #{review_metadata_score_forward.1} parent=11 // pred_check
          %p942 = pneg %p309
        $region38: #{review_metadata_score_forward.1} parent=11 // pred_check_branch
          %944 = sbr.rel (%p942) target = $region40
        $region39: #{review_metadata_score_forward.1} parent=11 // pred_region
          %s946 = ssub.s32 16, 16
          %947 = vsyncadd [#allocation19], %s946
          %s949 = sshll.u32 [#allocation18], 4
          %s950 = int_to_ptr.vmem [resolvable:$true] %s949
          %952 = dma.hbm_to_vmem [thread:$0]  %s25, 16, %s950, [#allocation19]
        $region40: #{review_metadata_score_forward.1} parent=11 // pred_fallthru
          _
        // Predicated region
        $region41: #{review_metadata_score_forward.1} parent=11 // pred_check
          %p953 = pneg %p330
        $region42: #{review_metadata_score_forward.1} parent=11 // pred_check_branch
          %955 = sbr.rel (%p953) target = $region44
        $region43: #{review_metadata_score_forward.1} parent=11 // pred_region
          %s957 = ssub.s32 16, 16
          %958 = vsyncadd [#allocation19], %s957
          %s960 = sshll.u32 [#allocation20], 4
          %s961 = int_to_ptr.vmem [resolvable:$true] %s960
          %963 = dma.hbm_to_vmem [thread:$0]  %s27, 16, %s961, [#allocation19]
        $region44: #{review_metadata_score_forward.1} parent=11 // pred_fallthru
          _
        // Predicated region
        $region45: #{review_metadata_score_forward.1} parent=11 // pred_check
          %p964 = pneg %p351
        $region46: #{review_metadata_score_forward.1} parent=11 // pred_check_branch
          %966 = sbr.rel (%p964) target = $region48
        $region47: #{review_metadata_score_forward.1} parent=11 // pred_region
          %s968 = ssub.s32 16, 16
          %969 = vsyncadd [#allocation22], %s968
          %s971 = sshll.u32 [#allocation21], 4
          %s972 = int_to_ptr.vmem [resolvable:$true] %s971
          %974 = dma.hbm_to_vmem [thread:$0]  %s29, 16, %s972, [#allocation22]
        $region48: #{review_metadata_score_forward.1} parent=11 // pred_fallthru
          _
        // Predicated region
        $region49: #{review_metadata_score_forward.1} parent=11 // pred_check
          %p975 = pneg %p372
        $region50: #{review_metadata_score_forward.1} parent=11 // pred_check_branch
          %977 = sbr.rel (%p975) target = $region52
        $region51: #{review_metadata_score_forward.1} parent=11 // pred_region
          %s979 = ssub.s32 4096, 4096
          %980 = vsyncadd [#allocation22], %s979
          %s981 = sshll.u32 [#allocation23], 4
          %s982 = int_to_ptr.vmem [resolvable:$true] %s981
          %987 = dma.hbm_to_vmem [thread:$0]  %s31, 4096, %s982, [#allocation22], 256, 256, 16
        $region52: #{review_metadata_score_forward.1} parent=11 // pred_fallthru
          _
        // Predicated region
        $region53: #{review_metadata_score_forward.1} parent=11 // pred_check
          %p988 = pneg %p393
        $region54: #{review_metadata_score_forward.1} parent=11 // pred_check_branch
          %990 = sbr.rel (%p988) target = $region56
        $region55: #{review_metadata_score_forward.1} parent=11 // pred_region
          _
        $region56: #{review_metadata_score_forward.1} parent=11 // pred_fallthru
          _
        // Predicated region
        $region57: #{review_metadata_score_forward.1} parent=11 // pred_check
          %p991 = pneg %p414
        $region58: #{review_metadata_score_forward.1} parent=11 // pred_check_branch
          %993 = sbr.rel (%p991) target = $region60
        $region59: #{review_metadata_score_forward.1} parent=11 // pred_region
          %s995 = ssub.s32 4096, 4096
          %996 = vsyncadd [#allocation25], %s995
          %s997 = sshll.u32 [#allocation24], 4
          %s998 = int_to_ptr.vmem [resolvable:$true] %s997
          %1003 = dma.hbm_to_vmem [thread:$0]  %s35, 4096, %s998, [#allocation25], 64, 64, 4
        $region60: #{review_metadata_score_forward.1} parent=11 // pred_fallthru
          _
        // Predicated region
        $region61: #{review_metadata_score_forward.1} parent=11 // pred_check
          %p1004 = pneg %p435
        $region62: #{review_metadata_score_forward.1} parent=11 // pred_check_branch
          %1006 = sbr.rel (%p1004) target = $region64
        $region63: #{review_metadata_score_forward.1} parent=11 // pred_region
          %s1008 = ssub.s32 16, 16
          %1009 = vsyncadd [#allocation25], %s1008
          %s1011 = sshll.u32 [#allocation26], 4
          %s1012 = int_to_ptr.vmem [resolvable:$true] %s1011
          %1014 = dma.hbm_to_vmem [thread:$0]  %s37, 16, %s1012, [#allocation25]
        $region64: #{review_metadata_score_forward.1} parent=11 // pred_fallthru
          _
        // Predicated region
        $region65: #{review_metadata_score_forward.1} parent=11 // pred_check
          %p1015 = pneg %p456
        $region66: #{review_metadata_score_forward.1} parent=11 // pred_check_branch
          %1017 = sbr.rel (%p1015) target = $region68
        $region67: #{review_metadata_score_forward.1} parent=11 // pred_region
          %s1019 = ssub.s32 16, 16
          %1020 = vsyncadd [#allocation28], %s1019
          %s1022 = sshll.u32 [#allocation27], 4
          %s1023 = int_to_ptr.vmem [resolvable:$true] %s1022
          %1025 = dma.hbm_to_vmem [thread:$0]  %s39, 16, %s1023, [#allocation28]
        $region68: #{review_metadata_score_forward.1} parent=11 // pred_fallthru
          _
        // Predicated region
        $region69: #{review_metadata_score_forward.1} parent=11 // pred_check
          %p1026 = pneg %p477
        $region70: #{review_metadata_score_forward.1} parent=11 // pred_check_branch
          %1028 = sbr.rel (%p1026) target = $region72
        $region71: #{review_metadata_score_forward.1} parent=11 // pred_region
          %s1030 = ssub.s32 16, 16
          %1031 = vsyncadd [#allocation28], %s1030
          %s1033 = sshll.u32 [#allocation29], 4
          %s1034 = int_to_ptr.vmem [resolvable:$true] %s1033
          %1036 = dma.hbm_to_vmem [thread:$0]  %s41, 16, %s1034, [#allocation28]
        $region72: #{review_metadata_score_forward.1} parent=11 // pred_fallthru
          _
        // Predicated region
        $region73: #{review_metadata_score_forward.1} parent=11 // pred_check
          %p1037 = pneg %p498
        $region74: #{review_metadata_score_forward.1} parent=11 // pred_check_branch
          %1039 = sbr.rel (%p1037) target = $region76
        $region75: #{review_metadata_score_forward.1} parent=11 // pred_region
          %s1041 = ssub.s32 1024, 1024
          %1042 = vsyncadd [#allocation31], %s1041
          %s1043 = sshll.u32 [#allocation30], 4
          %s1044 = int_to_ptr.vmem [resolvable:$true] %s1043
          %1049 = dma.hbm_to_vmem [thread:$0]  %s43, 1024, %s1044, [#allocation31], 64, 64, 4
        $region76: #{review_metadata_score_forward.1} parent=11 // pred_fallthru
          _
        // Predicated region
        $region77: #{review_metadata_score_forward.1} parent=11 // pred_check
          %p1050 = pneg %p519
        $region78: #{review_metadata_score_forward.1} parent=11 // pred_check_branch
          %1052 = sbr.rel (%p1050) target = $region80
        $region79: #{review_metadata_score_forward.1} parent=11 // pred_region
          %s1054 = ssub.s32 1024, 1024
          %1055 = vsyncadd [#allocation31], %s1054
          %s1056 = sshll.u32 [#allocation32], 4
          %s1057 = int_to_ptr.vmem [resolvable:$true] %s1056
          %1062 = dma.hbm_to_vmem [thread:$0]  %s45, 1024, %s1057, [#allocation31], 64, 64, 4
        $region80: #{review_metadata_score_forward.1} parent=11 // pred_fallthru
          _
        // Predicated region
        $region81: #{review_metadata_score_forward.1} parent=11 // pred_check
          %p1063 = pneg %p540
        $region82: #{review_metadata_score_forward.1} parent=11 // pred_check_branch
          %1065 = sbr.rel (%p1063) target = $region84
        $region83: #{review_metadata_score_forward.1} parent=11 // pred_region
          %s1067 = ssub.s32 1024, 1024
          %1068 = vsyncadd [#allocation34], %s1067
          %s1069 = sshll.u32 [#allocation33], 4
          %s1070 = int_to_ptr.vmem [resolvable:$true] %s1069
          %1075 = dma.hbm_to_vmem [thread:$0]  %s47, 1024, %s1070, [#allocation34], 64, 64, 4
        $region84: #{review_metadata_score_forward.1} parent=11 // pred_fallthru
          _
        // Predicated region
        $region85: #{review_metadata_score_forward.1} parent=11 // pred_check
          %p1076 = pneg %p561
        $region86: #{review_metadata_score_forward.1} parent=11 // pred_check_branch
          %1078 = sbr.rel (%p1076) target = $region88
        $region87: #{review_metadata_score_forward.1} parent=11 // pred_region
          %s1080 = ssub.s32 16, 16
          %1081 = vsyncadd [#allocation34], %s1080
          %s1083 = sshll.u32 [#allocation35], 4
          %s1084 = int_to_ptr.vmem [resolvable:$true] %s1083
          %1086 = dma.hbm_to_vmem [thread:$0]  %s49, 16, %s1084, [#allocation34]
        $region88: #{review_metadata_score_forward.1} parent=11 // pred_fallthru
          _
        // Predicated region
        $region89: #{review_metadata_score_forward.1} parent=11 // pred_check
          %p1087 = pneg %p582
        $region90: #{review_metadata_score_forward.1} parent=11 // pred_check_branch
          %1089 = sbr.rel (%p1087) target = $region92
        $region91: #{review_metadata_score_forward.1} parent=11 // pred_region
          %s1091 = ssub.s32 2048, 2048
          %1092 = vsyncadd [#allocation37], %s1091
          %s1093 = sshll.u32 [#allocation36], 4
          %s1094 = int_to_ptr.vmem [resolvable:$true] %s1093
          %1099 = dma.hbm_to_vmem [thread:$0]  %s51, 2048, %s1094, [#allocation37], 128, 128, 8
        $region92: #{review_metadata_score_forward.1} parent=11 // pred_fallthru
          _
        // Predicated region
        $region93: #{review_metadata_score_forward.1} parent=11 // pred_check
          %p1100 = pneg %p603
        $region94: #{review_metadata_score_forward.1} parent=11 // pred_check_branch
          %1102 = sbr.rel (%p1100) target = $region96
        $region95: #{review_metadata_score_forward.1} parent=11 // pred_region
          %s1104 = ssub.s32 32, 32
          %1105 = vsyncadd [#allocation37], %s1104
          %s1107 = sshll.u32 [#allocation38], 4
          %s1108 = int_to_ptr.vmem [resolvable:$true] %s1107
          %1110 = dma.hbm_to_vmem [thread:$0]  %s53, 32, %s1108, [#allocation37]
        $region96: #{review_metadata_score_forward.1} parent=11 // pred_fallthru
          _
        // Predicated region
        $region97: #{review_metadata_score_forward.1} parent=11 // pred_check
          %p1111 = pneg %p624
        $region98: #{review_metadata_score_forward.1} parent=11 // pred_check_branch
          %1113 = sbr.rel (%p1111) target = $region100
        $region99: #{review_metadata_score_forward.1} parent=11 // pred_region
          _
        $region100: #{review_metadata_score_forward.1} parent=11 // pred_fallthru
          _
        // Predicated region
        $region101: #{review_metadata_score_forward.1} parent=11 // pred_check
          %p1114 = pneg %p645
        $region102: #{review_metadata_score_forward.1} parent=11 // pred_check_branch
          %1116 = sbr.rel (%p1114) target = $region104
        $region103: #{review_metadata_score_forward.1} parent=11 // pred_region
          %s1118 = ssub.s32 16, 16
          %1119 = vsyncadd [#allocation40], %s1118
          %s1121 = sshll.u32 [#allocation39], 4
          %s1122 = int_to_ptr.vmem [resolvable:$true] %s1121
          %1124 = dma.hbm_to_vmem [thread:$0]  %s57, 16, %s1122, [#allocation40]
        $region104: #{review_metadata_score_forward.1} parent=11 // pred_fallthru
          _
        // Predicated region
        $region105: #{review_metadata_score_forward.1} parent=11 // pred_check
          %p1125 = pneg %p666
        $region106: #{review_metadata_score_forward.1} parent=11 // pred_check_branch
          %1127 = sbr.rel (%p1125) target = $region108
        $region107: #{review_metadata_score_forward.1} parent=11 // pred_region
          %s1129 = ssub.s32 2048, 2048
          %1130 = vsyncadd [#allocation40], %s1129
          %s1131 = sshll.u32 [#allocation41], 4
          %s1132 = int_to_ptr.vmem [resolvable:$true] %s1131
          %1137 = dma.hbm_to_vmem [thread:$0]  %s59, 2048, %s1132, [#allocation40], 128, 128, 8
        $region108: #{review_metadata_score_forward.1} parent=11 // pred_fallthru
          _
        // Predicated region
        $region109: #{review_metadata_score_forward.1} parent=11 // pred_check
          %p1138 = pneg %p687
        $region110: #{review_metadata_score_forward.1} parent=11 // pred_check_branch
          %1140 = sbr.rel (%p1138) target = $region112
        $region111: #{review_metadata_score_forward.1} parent=11 // pred_region
          %s1142 = ssub.s32 1024, 1024
          %1143 = vsyncadd [#allocation43], %s1142
          %s1144 = sshll.u32 [#allocation42], 4
          %s1145 = int_to_ptr.vmem [resolvable:$true] %s1144
          %1150 = dma.hbm_to_vmem [thread:$0]  %s61, 1024, %s1145, [#allocation43], 128, 128, 8
        $region112: #{review_metadata_score_forward.1} parent=11 // pred_fallthru
          _
        // Predicated region
        $region113: #{review_metadata_score_forward.1} parent=11 // pred_check
          %p1151 = pneg %p708
        $region114: #{review_metadata_score_forward.1} parent=11 // pred_check_branch
          %1153 = sbr.rel (%p1151) target = $region116
        $region115: #{review_metadata_score_forward.1} parent=11 // pred_region
          %s1155 = ssub.s32 32, 32
          %1156 = vsyncadd [#allocation43], %s1155
          %s1158 = sshll.u32 [#allocation44], 4
          %s1159 = int_to_ptr.vmem [resolvable:$true] %s1158
          %1161 = dma.hbm_to_vmem [thread:$0]  %s63, 32, %s1159, [#allocation43]
        $region116: #{review_metadata_score_forward.1} parent=11 // pred_fallthru
          _
        // Predicated region
        $region117: #{review_metadata_score_forward.1} parent=11 // pred_check
          %p1162 = pneg %p729
        $region118: #{review_metadata_score_forward.1} parent=11 // pred_check_branch
          %1164 = sbr.rel (%p1162) target = $region120
        $region119: #{review_metadata_score_forward.1} parent=11 // pred_region
          %s1166 = ssub.s32 4096, 4096
          %1167 = vsyncadd [#allocation46], %s1166
          %s1168 = sshll.u32 [#allocation45], 4
          %s1169 = int_to_ptr.vmem [resolvable:$true] %s1168
          %1174 = dma.hbm_to_vmem [thread:$0]  %s65, 4096, %s1169, [#allocation46], 128, 128, 8
        $region120: #{review_metadata_score_forward.1} parent=11 // pred_fallthru
          _
        // Predicated region
        $region121: #{review_metadata_score_forward.1} parent=11 // pred_check
          %p1175 = pneg %p750
        $region122: #{review_metadata_score_forward.1} parent=11 // pred_check_branch
          %1177 = sbr.rel (%p1175) target = $region124
        $region123: #{review_metadata_score_forward.1} parent=11 // pred_region
          %s1179 = ssub.s32 4096, 4096
          %1180 = vsyncadd [#allocation46], %s1179
          %s1181 = sshll.u32 [#allocation47], 4
          %s1182 = int_to_ptr.vmem [resolvable:$true] %s1181
          %1187 = dma.hbm_to_vmem [thread:$0]  %s67, 4096, %s1182, [#allocation46], 128, 128, 8
        $region124: #{review_metadata_score_forward.1} parent=11 // pred_fallthru
          _
        // Predicated region
        $region125: #{review_metadata_score_forward.1} parent=11 // pred_check
          %p1188 = pneg %p771
        $region126: #{review_metadata_score_forward.1} parent=11 // pred_check_branch
          %1190 = sbr.rel (%p1188) target = $region128
        $region127: #{review_metadata_score_forward.1} parent=11 // pred_region
          %s1192 = ssub.s32 32, 32
          %1193 = vsyncadd [#allocation49], %s1192
          %s1195 = sshll.u32 [#allocation48], 4
          %s1196 = int_to_ptr.vmem [resolvable:$true] %s1195
          %1198 = dma.hbm_to_vmem [thread:$0]  %s69, 32, %s1196, [#allocation49]
        $region128: #{review_metadata_score_forward.1} parent=11 // pred_fallthru
          _
        // Predicated region
        $region129: #{review_metadata_score_forward.1} parent=11 // pred_check
          %p1199 = pneg %p792
        $region130: #{review_metadata_score_forward.1} parent=11 // pred_check_branch
          %1201 = sbr.rel (%p1199) target = $region132
        $region131: #{review_metadata_score_forward.1} parent=11 // pred_region
          _
        $region132: #{review_metadata_score_forward.1} parent=11 // pred_fallthru
          _
        // Predicated region
        $region133: #{review_metadata_score_forward.1} parent=11 // pred_check
          %p1202 = pneg %p813
        $region134: #{review_metadata_score_forward.1} parent=11 // pred_check_branch
          %1204 = sbr.rel (%p1202) target = $region136
        $region135: #{review_metadata_score_forward.1} parent=11 // pred_region
          _
        $region136: #{review_metadata_score_forward.1} parent=11 // pred_fallthru
          _
      $region12: #{review_metadata_score_forward.1} parent=5 // pred_fallthru
        _
      %p1205 = scmp.lt.s32.totalorder %s110, 2
      // Predicated region
      $region137: #{review_metadata_score_forward.1} parent=5 // pred_check
        %p1206 = pneg %p1205
      $region138: #{review_metadata_score_forward.1} parent=5 // pred_check_branch
        %1208 = sbr.rel (%p1206) target = $region140
      $region139: #{review_metadata_score_forward.1} parent=5 // pred_region
        // Predicated region
        $region141: #{review_metadata_score_forward.1} parent=139 // pred_check
          %p1209 = pneg %p130
        $region142: #{review_metadata_score_forward.1} parent=139 // pred_check_branch
          %1211 = sbr.rel (%p1209) target = $region144
        $region143: #{review_metadata_score_forward.1} parent=139 // pred_region
          %p1212 = scmp.lt.s32.totalorder %s110, 1
          %s1213 = scalar_select %p1212, %s110, 1
          %s1214 = scalar_lea.vmem %s9, %s1213
        $region144: #{review_metadata_score_forward.1} parent=139 // pred_fallthru
          _
        // Predicated region
        $region145: #{review_metadata_score_forward.1} parent=139 // pred_check
          %p1215 = pneg %p156
        $region146: #{review_metadata_score_forward.1} parent=139 // pred_check_branch
          %1217 = sbr.rel (%p1215) target = $region148
        $region147: #{review_metadata_score_forward.1} parent=139 // pred_region
          %p1218 = scmp.lt.s32.totalorder %s110, 1
          %s1219 = scalar_select %p1218, %s110, 1
          %s1220 = scalar_lea.vmem %s11, %s1219
        $region148: #{review_metadata_score_forward.1} parent=139 // pred_fallthru
          _
      $region140: #{review_metadata_score_forward.1} parent=5 // pred_fallthru
        _
      %p1221 = scmp.le.s32.totalorder 1, %s110
      %p1222 = scmp.lt.s32.totalorder %s110, 3
      %p1223 = pnand %p1221, %p1222
      %p1224 = pneg %p1223
      // Predicated region
      $region149: #{review_metadata_score_forward.1} parent=5 // pred_check
        _
      $region150: #{review_metadata_score_forward.1} parent=5 // pred_check_branch
        %1226 = sbr.rel (%p1223) target = $region152
      $region151: #{review_metadata_score_forward.1} parent=5 // pred_region
        %s1227 = ssub.s32 %s110, 1
        // Predicated region
        $region153: #{review_metadata_score_forward.1} parent=151 // pred_check
          %p1228 = pneg %p204
        $region154: #{review_metadata_score_forward.1} parent=151 // pred_check_branch
          %1230 = sbr.rel (%p1228) target = $region156
        $region155: #{review_metadata_score_forward.1} parent=151 // pred_region
          %1231 = dma.done [#allocation11], 16
        $region156: #{review_metadata_score_forward.1} parent=151 // pred_fallthru
          _
        // Predicated region
        $region157: #{review_metadata_score_forward.1} parent=151 // pred_check
          %p1232 = pneg %p225
        $region158: #{review_metadata_score_forward.1} parent=151 // pred_check_branch
          %1234 = sbr.rel (%p1232) target = $region160
        $region159: #{review_metadata_score_forward.1} parent=151 // pred_region
          %1235 = dma.done [#allocation13], 16
        $region160: #{review_metadata_score_forward.1} parent=151 // pred_fallthru
          _
        // Predicated region
        $region161: #{review_metadata_score_forward.1} parent=151 // pred_check
          %p1236 = pneg %p246
        $region162: #{review_metadata_score_forward.1} parent=151 // pred_check_branch
          %1238 = sbr.rel (%p1236) target = $region164
        $region163: #{review_metadata_score_forward.1} parent=151 // pred_region
          %1239 = dma.done [#allocation13], 3072
        $region164: #{review_metadata_score_forward.1} parent=151 // pred_fallthru
          _
        // Predicated region
        $region165: #{review_metadata_score_forward.1} parent=151 // pred_check
          %p1240 = pneg %p267
        $region166: #{review_metadata_score_forward.1} parent=151 // pred_check_branch
          %1242 = sbr.rel (%p1240) target = $region168
        $region167: #{review_metadata_score_forward.1} parent=151 // pred_region
          %1243 = dma.done [#allocation16], 48
        $region168: #{review_metadata_score_forward.1} parent=151 // pred_fallthru
          _
        // Predicated region
        $region169: #{review_metadata_score_forward.1} parent=151 // pred_check
          %p1244 = pneg %p288
        $region170: #{review_metadata_score_forward.1} parent=151 // pred_check_branch
          %1246 = sbr.rel (%p1244) target = $region172
        $region171: #{review_metadata_score_forward.1} parent=151 // pred_region
          %1247 = dma.done [#allocation16], 1024
        $region172: #{review_metadata_score_forward.1} parent=151 // pred_fallthru
          _
        // Predicated region
        $region173: #{review_metadata_score_forward.1} parent=151 // pred_check
          %p1248 = pneg %p309
        $region174: #{review_metadata_score_forward.1} parent=151 // pred_check_branch
          %1250 = sbr.rel (%p1248) target = $region176
        $region175: #{review_metadata_score_forward.1} parent=151 // pred_region
          %1251 = dma.done [#allocation19], 16
        $region176: #{review_metadata_score_forward.1} parent=151 // pred_fallthru
          _
        // Predicated region
        $region177: #{review_metadata_score_forward.1} parent=151 // pred_check
          %p1252 = pneg %p330
        $region178: #{review_metadata_score_forward.1} parent=151 // pred_check_branch
          %1254 = sbr.rel (%p1252) target = $region180
        $region179: #{review_metadata_score_forward.1} parent=151 // pred_region
          %1255 = dma.done [#allocation19], 16
        $region180: #{review_metadata_score_forward.1} parent=151 // pred_fallthru
          _
        // Predicated region
        $region181: #{review_metadata_score_forward.1} parent=151 // pred_check
          %p1256 = pneg %p351
        $region182: #{review_metadata_score_forward.1} parent=151 // pred_check_branch
          %1258 = sbr.rel (%p1256) target = $region184
        $region183: #{review_metadata_score_forward.1} parent=151 // pred_region
          %1259 = dma.done [#allocation22], 16
        $region184: #{review_metadata_score_forward.1} parent=151 // pred_fallthru
          _
        // Predicated region
        $region185: #{review_metadata_score_forward.1} parent=151 // pred_check
          %p1260 = pneg %p372
        $region186: #{review_metadata_score_forward.1} parent=151 // pred_check_branch
          %1262 = sbr.rel (%p1260) target = $region188
        $region187: #{review_metadata_score_forward.1} parent=151 // pred_region
          %1263 = dma.done [#allocation22], 4096
        $region188: #{review_metadata_score_forward.1} parent=151 // pred_fallthru
          _
        // Predicated region
        $region189: #{review_metadata_score_forward.1} parent=151 // pred_check
          %p1264 = pneg %p414
        $region190: #{review_metadata_score_forward.1} parent=151 // pred_check_branch
          %1266 = sbr.rel (%p1264) target = $region192
        $region191: #{review_metadata_score_forward.1} parent=151 // pred_region
          %1267 = dma.done [#allocation25], 4096
        $region192: #{review_metadata_score_forward.1} parent=151 // pred_fallthru
          _
        // Predicated region
        $region193: #{review_metadata_score_forward.1} parent=151 // pred_check
          %p1268 = pneg %p435
        $region194: #{review_metadata_score_forward.1} parent=151 // pred_check_branch
          %1270 = sbr.rel (%p1268) target = $region196
        $region195: #{review_metadata_score_forward.1} parent=151 // pred_region
          %1271 = dma.done [#allocation25], 16
        $region196: #{review_metadata_score_forward.1} parent=151 // pred_fallthru
          _
        // Predicated region
        $region197: #{review_metadata_score_forward.1} parent=151 // pred_check
          %p1272 = pneg %p456
        $region198: #{review_metadata_score_forward.1} parent=151 // pred_check_branch
          %1274 = sbr.rel (%p1272) target = $region200
        $region199: #{review_metadata_score_forward.1} parent=151 // pred_region
          %1275 = dma.done [#allocation28], 16
        $region200: #{review_metadata_score_forward.1} parent=151 // pred_fallthru
          _
        // Predicated region
        $region201: #{review_metadata_score_forward.1} parent=151 // pred_check
          %p1276 = pneg %p477
        $region202: #{review_metadata_score_forward.1} parent=151 // pred_check_branch
          %1278 = sbr.rel (%p1276) target = $region204
        $region203: #{review_metadata_score_forward.1} parent=151 // pred_region
          %1279 = dma.done [#allocation28], 16
        $region204: #{review_metadata_score_forward.1} parent=151 // pred_fallthru
          _
        // Predicated region
        $region205: #{review_metadata_score_forward.1} parent=151 // pred_check
          %p1280 = pneg %p498
        $region206: #{review_metadata_score_forward.1} parent=151 // pred_check_branch
          %1282 = sbr.rel (%p1280) target = $region208
        $region207: #{review_metadata_score_forward.1} parent=151 // pred_region
          %1283 = dma.done [#allocation31], 1024
        $region208: #{review_metadata_score_forward.1} parent=151 // pred_fallthru
          _
        // Predicated region
        $region209: #{review_metadata_score_forward.1} parent=151 // pred_check
          %p1284 = pneg %p519
        $region210: #{review_metadata_score_forward.1} parent=151 // pred_check_branch
          %1286 = sbr.rel (%p1284) target = $region212
        $region211: #{review_metadata_score_forward.1} parent=151 // pred_region
          %1287 = dma.done [#allocation31], 1024
        $region212: #{review_metadata_score_forward.1} parent=151 // pred_fallthru
          _
        // Predicated region
        $region213: #{review_metadata_score_forward.1} parent=151 // pred_check
          %p1288 = pneg %p540
        $region214: #{review_metadata_score_forward.1} parent=151 // pred_check_branch
          %1290 = sbr.rel (%p1288) target = $region216
        $region215: #{review_metadata_score_forward.1} parent=151 // pred_region
          %1291 = dma.done [#allocation34], 1024
        $region216: #{review_metadata_score_forward.1} parent=151 // pred_fallthru
          _
        // Predicated region
        $region217: #{review_metadata_score_forward.1} parent=151 // pred_check
          %p1292 = pneg %p561
        $region218: #{review_metadata_score_forward.1} parent=151 // pred_check_branch
          %1294 = sbr.rel (%p1292) target = $region220
        $region219: #{review_metadata_score_forward.1} parent=151 // pred_region
          %1295 = dma.done [#allocation34], 16
        $region220: #{review_metadata_score_forward.1} parent=151 // pred_fallthru
          _
        // Predicated region
        $region221: #{review_metadata_score_forward.1} parent=151 // pred_check
          %p1296 = pneg %p582
        $region222: #{review_metadata_score_forward.1} parent=151 // pred_check_branch
          %1298 = sbr.rel (%p1296) target = $region224
        $region223: #{review_metadata_score_forward.1} parent=151 // pred_region
          %1299 = dma.done [#allocation37], 2048
        $region224: #{review_metadata_score_forward.1} parent=151 // pred_fallthru
          _
        // Predicated region
        $region225: #{review_metadata_score_forward.1} parent=151 // pred_check
          %p1300 = pneg %p603
        $region226: #{review_metadata_score_forward.1} parent=151 // pred_check_branch
          %1302 = sbr.rel (%p1300) target = $region228
        $region227: #{review_metadata_score_forward.1} parent=151 // pred_region
          %1303 = dma.done [#allocation37], 32
        $region228: #{review_metadata_score_forward.1} parent=151 // pred_fallthru
          _
        // Predicated region
        $region229: #{review_metadata_score_forward.1} parent=151 // pred_check
          %p1304 = pneg %p645
        $region230: #{review_metadata_score_forward.1} parent=151 // pred_check_branch
          %1306 = sbr.rel (%p1304) target = $region232
        $region231: #{review_metadata_score_forward.1} parent=151 // pred_region
          %1307 = dma.done [#allocation40], 16
        $region232: #{review_metadata_score_forward.1} parent=151 // pred_fallthru
          _
        // Predicated region
        $region233: #{review_metadata_score_forward.1} parent=151 // pred_check
          %p1308 = pneg %p666
        $region234: #{review_metadata_score_forward.1} parent=151 // pred_check_branch
          %1310 = sbr.rel (%p1308) target = $region236
        $region235: #{review_metadata_score_forward.1} parent=151 // pred_region
          %1311 = dma.done [#allocation40], 2048
        $region236: #{review_metadata_score_forward.1} parent=151 // pred_fallthru
          _
        // Predicated region
        $region237: #{review_metadata_score_forward.1} parent=151 // pred_check
          %p1312 = pneg %p687
        $region238: #{review_metadata_score_forward.1} parent=151 // pred_check_branch
          %1314 = sbr.rel (%p1312) target = $region240
        $region239: #{review_metadata_score_forward.1} parent=151 // pred_region
          %1315 = dma.done [#allocation43], 1024
        $region240: #{review_metadata_score_forward.1} parent=151 // pred_fallthru
          _
        // Predicated region
        $region241: #{review_metadata_score_forward.1} parent=151 // pred_check
          %p1316 = pneg %p708
        $region242: #{review_metadata_score_forward.1} parent=151 // pred_check_branch
          %1318 = sbr.rel (%p1316) target = $region244
        $region243: #{review_metadata_score_forward.1} parent=151 // pred_region
          %1319 = dma.done [#allocation43], 32
        $region244: #{review_metadata_score_forward.1} parent=151 // pred_fallthru
          _
        // Predicated region
        $region245: #{review_metadata_score_forward.1} parent=151 // pred_check
          %p1320 = pneg %p729
        $region246: #{review_metadata_score_forward.1} parent=151 // pred_check_branch
          %1322 = sbr.rel (%p1320) target = $region248
        $region247: #{review_metadata_score_forward.1} parent=151 // pred_region
          %1323 = dma.done [#allocation46], 4096
        $region248: #{review_metadata_score_forward.1} parent=151 // pred_fallthru
          _
        // Predicated region
        $region249: #{review_metadata_score_forward.1} parent=151 // pred_check
          %p1324 = pneg %p750
        $region250: #{review_metadata_score_forward.1} parent=151 // pred_check_branch
          %1326 = sbr.rel (%p1324) target = $region252
        $region251: #{review_metadata_score_forward.1} parent=151 // pred_region
          %1327 = dma.done [#allocation46], 4096
        $region252: #{review_metadata_score_forward.1} parent=151 // pred_fallthru
          _
        // Predicated region
        $region253: #{review_metadata_score_forward.1} parent=151 // pred_check
          %p1328 = pneg %p771
        $region254: #{review_metadata_score_forward.1} parent=151 // pred_check_branch
          %1330 = sbr.rel (%p1328) target = $region256
        $region255: #{review_metadata_score_forward.1} parent=151 // pred_region
          %1331 = dma.done [#allocation49], 32
        $region256: #{review_metadata_score_forward.1} parent=151 // pred_fallthru
          _
        %p1332 = scmp.lt.s32.totalorder %s115, 1
        %s1333 = scalar_select %p1332, %s115, 1
        %s1334 = scalar_lea.vmem %s9, %s1333
        %p1335 = pneg %p136
        %p1336 = pneg %p133
        %p1337 = scmp.lt.s32.totalorder %s115, 1
        %s1338 = scalar_select %p1337, %s115, 1
        %s1339 = scalar_lea.vmem %s11, %s1338
        %p1340 = pneg %p162
        %p1341 = pneg %p159
        %p1342 = pneg %p183
        %p1343 = pneg %p180
        %p1344 = pneg %p204
        %p1345 = pneg %p201
        %p1346 = pneg %p225
        %p1347 = pneg %p222
        %p1348 = pneg %p246
        %p1349 = pneg %p243
        %p1350 = pneg %p267
        %p1351 = pneg %p264
        %p1352 = pneg %p288
        %p1353 = pneg %p285
        %p1354 = pneg %p309
        %p1355 = pneg %p306
        %p1356 = pneg %p330
        %p1357 = pneg %p327
        %p1358 = pneg %p351
        %p1359 = pneg %p348
        %p1360 = pneg %p372
        %p1361 = pneg %p369
        %p1362 = pneg %p393
        %p1363 = pneg %p390
        %p1364 = pneg %p414
        %p1365 = pneg %p411
        %p1366 = pneg %p435
        %p1367 = pneg %p432
        %p1368 = pneg %p456
        %p1369 = pneg %p453
        %p1370 = pneg %p477
        %p1371 = pneg %p474
        %p1372 = pneg %p498
        %p1373 = pneg %p495
        %p1374 = pneg %p519
        %p1375 = pneg %p516
        %p1376 = pneg %p540
        %p1377 = pneg %p537
        %p1378 = pneg %p561
        %p1379 = pneg %p558
        %p1380 = pneg %p582
        %p1381 = pneg %p579
        %p1382 = pneg %p603
        %p1383 = pneg %p600
        %p1384 = pneg %p624
        %p1385 = pneg %p621
        %p1386 = pneg %p645
        %p1387 = pneg %p642
        %p1388 = pneg %p666
        %p1389 = pneg %p663
        %p1390 = pneg %p687
        %p1391 = pneg %p684
        %p1392 = pneg %p708
        %p1393 = pneg %p705
        %p1394 = pneg %p729
        %p1395 = pneg %p726
        %p1396 = pneg %p750
        %p1397 = pneg %p747
        %p1398 = pneg %p771
        %p1399 = pneg %p768
        %p1400 = pneg %p792
        %p1401 = pneg %p789
        %p1402 = pneg %p813
        %p1403 = pneg %p810
        %p1404 = pneg %p839
        %p1405 = pneg %p836
        %p1406 = scmp.lt.s32.totalorder %s115, 1
        %s1407 = scalar_select %p1406, %s115, 1
        %s1408 = scalar_lea.vmem %s75, %s1407
        %p1409 = pneg %p865
        %p1410 = pneg %p862
        %p1411 = scmp.lt.s32.totalorder %s115, 1
        %s1412 = scalar_select %p1411, %s115, 1
        %s1413 = smul.addr %s1412, 2
        %s1414 = scalar_lea.vmem %s77, %s1413
        %p1415 = scmp.lt.s32.totalorder %s115, 1
        %s1416 = scalar_select %p1415, %s115, 1
        %s1417 = scalar_lea.vmem %s9, %s1416
        %p1418 = scmp.lt.s32.totalorder %s115, 1
        %s1419 = scalar_select %p1418, %s115, 1
        %s1420 = scalar_lea.vmem %s11, %s1419
        %p1421 = scmp.lt.s32.totalorder %s115, 1
        %s1422 = scalar_select %p1421, %s115, 1
        %s1423 = scalar_lea.vmem %s75, %s1422
        %p1424 = scmp.lt.s32.totalorder %s115, 1
        %s1425 = scalar_select %p1424, %s115, 1
        %s1426 = smul.addr %s1425, 2
        %s1427 = scalar_lea.vmem %s77, %s1426
        %s1429 = smul.u32 %s115, 128
        %s1430 = sld [smem:[#allocation7 + %s1429]]
        %s1431 = smul.addr %s1430, 16
        %s1432 = scalar_lea.hbm %s5, %s1431
        // Predicated region
        $region257: #{review_metadata_score_forward.1} parent=151 // pred_check
          _
        $region258: #{review_metadata_score_forward.1} parent=151 // pred_check_branch
          %1434 = sbr.rel target = $region260
        $region259: #{review_metadata_score_forward.1} parent=151 // pred_region
          %1435 = sst [smem:[#allocation52]] [#allocation51]
          %1436 = sst [smem:[#allocation53]] [#allocation50]
        $region260: #{review_metadata_score_forward.1} parent=151 // pred_fallthru
          _
        %1438 = shalt.err (0)
        %s1440 = sshll.u32 [#allocation2], 4
        %s1441 = int_to_ptr.vmem [resolvable:$true] %s1440
        %1443 = dma.hbm_to_vmem [thread:$0]  %s1432, 16, %s1441, [#allocation4]
        %s1444 = sadd.s32 %s1429, 1
        %s1445 = sld [smem:[#allocation7 + %s1444]]
        %s1446 = smul.addr %s1445, 16
        %s1447 = scalar_lea.hbm %s5, %s1446
        %s1448 = scalar_lea.vmem [#allocation2], 1
        %s1449 = scalar_lea.sflag [#allocation4], 1
        // Predicated region
        $region261: #{review_metadata_score_forward.1} parent=151 // pred_check
          _
        $region262: #{review_metadata_score_forward.1} parent=151 // pred_check_branch
          %1451 = sbr.rel target = $region264
        $region263: #{review_metadata_score_forward.1} parent=151 // pred_region
          %1452 = sst [smem:[#allocation52]] [#allocation55]
          %1453 = sst [smem:[#allocation53]] [#allocation54]
        $region264: #{review_metadata_score_forward.1} parent=151 // pred_fallthru
          _
        %1455 = shalt.err (0)
        %s1457 = sshll.u32 %s1448, 4
        %s1458 = int_to_ptr.vmem [resolvable:$true] %s1457
        %1460 = dma.hbm_to_vmem [thread:$0]  %s1447, 16, %s1458, %s1449
        %s1461 = sadd.s32 %s1429, 2
        %s1462 = sld [smem:[#allocation7 + %s1461]]
        %s1463 = smul.addr %s1462, 16
        %s1464 = scalar_lea.hbm %s5, %s1463
        %s1465 = scalar_lea.vmem [#allocation2], 2
        %s1466 = scalar_lea.sflag [#allocation4], 2
        // Predicated region
        $region265: #{review_metadata_score_forward.1} parent=151 // pred_check
          _
        $region266: #{review_metadata_score_forward.1} parent=151 // pred_check_branch
          %1468 = sbr.rel target = $region268
        $region267: #{review_metadata_score_forward.1} parent=151 // pred_region
          %1469 = sst [smem:[#allocation52]] [#allocation57]
          %1470 = sst [smem:[#allocation53]] [#allocation56]
        $region268: #{review_metadata_score_forward.1} parent=151 // pred_fallthru
          _
        %1472 = shalt.err (0)
        %s1474 = sshll.u32 %s1465, 4
        %s1475 = int_to_ptr.vmem [resolvable:$true] %s1474
        %1477 = dma.hbm_to_vmem [thread:$0]  %s1464, 16, %s1475, %s1466
        %s1478 = sadd.s32 %s1429, 3
        %s1479 = sld [smem:[#allocation7 + %s1478]]
        %s1480 = smul.addr %s1479, 16
        %s1481 = scalar_lea.hbm %s5, %s1480
        %s1482 = scalar_lea.vmem [#allocation2], 3
        %s1483 = scalar_lea.sflag [#allocation4], 3
        // Predicated region
        $region269: #{review_metadata_score_forward.1} parent=151 // pred_check
          _
        $region270: #{review_metadata_score_forward.1} parent=151 // pred_check_branch
          %1485 = sbr.rel target = $region272
        $region271: #{review_metadata_score_forward.1} parent=151 // pred_region
          %1486 = sst [smem:[#allocation52]] [#allocation59]
          %1487 = sst [smem:[#allocation53]] [#allocation58]
        $region272: #{review_metadata_score_forward.1} parent=151 // pred_fallthru
          _
        %1489 = shalt.err (0)
        %s1491 = sshll.u32 %s1482, 4
        %s1492 = int_to_ptr.vmem [resolvable:$true] %s1491
        %1494 = dma.hbm_to_vmem [thread:$0]  %s1481, 16, %s1492, %s1483
        %s1495 = sadd.s32 %s1429, 4
        %s1496 = sld [smem:[#allocation7 + %s1495]]
        %s1497 = smul.addr %s1496, 16
        %s1498 = scalar_lea.hbm %s5, %s1497
        %s1499 = scalar_lea.vmem [#allocation2], 4
        %s1500 = scalar_lea.sflag [#allocation4], 4
        // Predicated region
        $region273: #{review_metadata_score_forward.1} parent=151 // pred_check
          _
        $region274: #{review_metadata_score_forward.1} parent=151 // pred_check_branch
          %1502 = sbr.rel target = $region276
        $region275: #{review_metadata_score_forward.1} parent=151 // pred_region
          %1503 = sst [smem:[#allocation52]] [#allocation61]
          %1504 = sst [smem:[#allocation53]] [#allocation60]
        $region276: #{review_metadata_score_forward.1} parent=151 // pred_fallthru
          _
        %1506 = shalt.err (0)
        %s1508 = sshll.u32 %s1499, 4
        %s1509 = int_to_ptr.vmem [resolvable:$true] %s1508
        %1511 = dma.hbm_to_vmem [thread:$0]  %s1498, 16, %s1509, %s1500
        %s1512 = sadd.s32 %s1429, 5
        %s1513 = sld [smem:[#allocation7 + %s1512]]
        %s1514 = smul.addr %s1513, 16
        %s1515 = scalar_lea.hbm %s5, %s1514
        %s1516 = scalar_lea.vmem [#allocation2], 5
        %s1517 = scalar_lea.sflag [#allocation4], 5
        // Predicated region
        $region277: #{review_metadata_score_forward.1} parent=151 // pred_check
          _
        $region278: #{review_metadata_score_forward.1} parent=151 // pred_check_branch
          %1519 = sbr.rel target = $region280
        $region279: #{review_metadata_score_forward.1} parent=151 // pred_region
          %1520 = sst [smem:[#allocation52]] [#allocation63]
          %1521 = sst [smem:[#allocation53]] [#allocation62]
        $region280: #{review_metadata_score_forward.1} parent=151 // pred_fallthru
          _
        %1523 = shalt.err (0)
        %s1525 = sshll.u32 %s1516, 4
        %s1526 = int_to_ptr.vmem [resolvable:$true] %s1525
        %1528 = dma.hbm_to_vmem [thread:$0]  %s1515, 16, %s1526, %s1517
        %s1529 = sadd.s32 %s1429, 6
        %s1530 = sld [smem:[#allocation7 + %s1529]]
        %s1531 = smul.addr %s1530, 16
        %s1532 = scalar_lea.hbm %s5, %s1531
        %s1533 = scalar_lea.vmem [#allocation2], 6
        %s1534 = scalar_lea.sflag [#allocation4], 6
        // Predicated region
        $region281: #{review_metadata_score_forward.1} parent=151 // pred_check
          _
        $region282: #{review_metadata_score_forward.1} parent=151 // pred_check_branch
          %1536 = sbr.rel target = $region284
        $region283: #{review_metadata_score_forward.1} parent=151 // pred_region
          %1537 = sst [smem:[#allocation52]] [#allocation65]
          %1538 = sst [smem:[#allocation53]] [#allocation64]
        $region284: #{review_metadata_score_forward.1} parent=151 // pred_fallthru
          _
        %1540 = shalt.err (0)
        %s1542 = sshll.u32 %s1533, 4
        %s1543 = int_to_ptr.vmem [resolvable:$true] %s1542
        %1545 = dma.hbm_to_vmem [thread:$0]  %s1532, 16, %s1543, %s1534
        %s1546 = sadd.s32 %s1429, 7
        %s1547 = sld [smem:[#allocation7 + %s1546]]
        %s1548 = smul.addr %s1547, 16
        %s1549 = scalar_lea.hbm %s5, %s1548
        %s1550 = scalar_lea.vmem [#allocation2], 7
        %s1551 = scalar_lea.sflag [#allocation4], 7
        // Predicated region
        $region285: #{review_metadata_score_forward.1} parent=151 // pred_check
          _
        $region286: #{review_metadata_score_forward.1} parent=151 // pred_check_branch
          %1553 = sbr.rel target = $region288
        $region287: #{review_metadata_score_forward.1} parent=151 // pred_region
          %1554 = sst [smem:[#allocation52]] [#allocation67]
          %1555 = sst [smem:[#allocation53]] [#allocation66]
        $region288: #{review_metadata_score_forward.1} parent=151 // pred_fallthru
          _
        %1557 = shalt.err (0)
        %s1559 = sshll.u32 %s1550, 4
        %s1560 = int_to_ptr.vmem [resolvable:$true] %s1559
        %1562 = dma.hbm_to_vmem [thread:$0]  %s1549, 16, %s1560, %s1551
        %s1563 = sld [smem:[#allocation8 + %s1429]]
        %s1564 = scalar_lea.vmem %s7, %s1563
        %p1566 = scmp.lt.u32.totalorder 1, 8
        %p1567 = pneg %p1566
        // Predicated region
        $region289: #{review_metadata_score_forward.1} parent=151 // pred_check
          _
        $region290: #{review_metadata_score_forward.1} parent=151 // pred_check_branch
          %1569 = sbr.rel (%p1566) target = $region292
        $region291: #{review_metadata_score_forward.1} parent=151 // pred_region
          %s1585 = sand.u32 1, 7
          %p1586 = scmp.eq.s32.totalorder %s1585, 0
          %p1587 = pneg %p1586
          // Predicated region
          $region304: #{review_metadata_score_forward.1} parent=291 // pred_check
            _
          $region305: #{review_metadata_score_forward.1} parent=291 // pred_check_branch
            %1589 = sbr.rel (%p1586) target = $region307
          $region306: #{review_metadata_score_forward.1} parent=291 // pred_region
            %s1590 = sand.u32 1, 7
            %s1591 = ssub.s32 1, %s1590
            %s1592 = scalar_lea.vmem %s1564, %s1591
            %s1593 = ssub.s32 1, %s1590
            %s1594 = scalar_lea.vmem [#allocation3], %s1593
            %s1595 = sshll.u32 1, %s1590
            %s1596 = ssub.s32 %s1595, 1
            loop: start=0, step=1, limit=1
            $region308: #{review_metadata_score_forward.1} parent=306 // loop_pre_header
              _
            $region309: #{review_metadata_score_forward.1} parent=306 // loop_header
              %s1598 = sphi 0, %s1602
              %p1599 = scmp.ge.s32.totalorder %s1598, 1
              %s1603 = sphi %s1592, %s1592
              %s1604 = sphi %s1594, %s1594
            $region310: #{review_metadata_score_forward.1} parent=306 // loop_header_branch
              %1601 = sbr.rel (%p1599) target = $region314
            $region311: #{review_metadata_score_forward.1} parent=306 // loop_body
              %v1605 = vld [vmem:[%s1603] sm:%s1596]
              %1606 = vst [vmem:[%s1604] sm:%s1596] %v1605
            $region312: #{review_metadata_score_forward.1} parent=306 // loop_footer
              %s1602 = sadd.s32 1, %s1598
            $region313: #{review_metadata_score_forward.1} parent=306 // loop_footer_branch
              %1597 = sbr.rel target = $region309
            $region314: #{review_metadata_score_forward.1} parent=306 // loop_exit
              _
          $region307: #{review_metadata_score_forward.1} parent=291 // pred_fallthru
            _
        $region292: #{review_metadata_score_forward.1} parent=151 // pred_fallthru
          _
        // Predicated region
        $region293: #{review_metadata_score_forward.1} parent=151 // pred_check
          %p1570 = pneg %p1566
        $region294: #{review_metadata_score_forward.1} parent=151 // pred_check_branch
          %1572 = sbr.rel (%p1570) target = $region296
        $region295: #{review_metadata_score_forward.1} parent=151 // pred_region
          %s1573 = sshll.u32 1, 1
          %s1574 = ssub.s32 %s1573, 1
          loop: start=0, step=1, limit=1
          $region297: #{review_metadata_score_forward.1} parent=295 // loop_pre_header
            _
          $region298: #{review_metadata_score_forward.1} parent=295 // loop_header
            %s1576 = sphi 0, %s1580
            %p1577 = scmp.ge.s32.totalorder %s1576, 1
            %s1581 = sphi %s1564, %s1564
            %s1582 = sphi [#allocation3], [#allocation3]
          $region299: #{review_metadata_score_forward.1} parent=295 // loop_header_branch
            %1579 = sbr.rel (%p1577) target = $region303
          $region300: #{review_metadata_score_forward.1} parent=295 // loop_body
            %v1583 = vld [vmem:[%s1581] sm:%s1574]
            %1584 = vst [vmem:[%s1582] sm:%s1574] %v1583
          $region301: #{review_metadata_score_forward.1} parent=295 // loop_footer
            %s1580 = sadd.s32 1, %s1576
          $region302: #{review_metadata_score_forward.1} parent=295 // loop_footer_branch
            %1575 = sbr.rel target = $region298
          $region303: #{review_metadata_score_forward.1} parent=295 // loop_exit
            _
        $region296: #{review_metadata_score_forward.1} parent=151 // pred_fallthru
          _
        // Predicated region
        $region315: #{review_metadata_score_forward.1} parent=151 // pred_check
          _
        $region316: #{review_metadata_score_forward.1} parent=151 // pred_check_branch
          %1609 = sbr.rel (0) target = $region318
        $region317: #{review_metadata_score_forward.1} parent=151 // pred_region
          %1610 = vsyncadd [#allocation5], 16
        $region318: #{review_metadata_score_forward.1} parent=151 // pred_fallthru
          _
        %s1611 = sld [smem:[#allocation8 + %s1444]]
        %s1612 = scalar_lea.vmem %s7, %s1611
        %s1613 = scalar_lea.vmem [#allocation3], 1
        %s1614 = scalar_lea.sflag [#allocation5], 1
        %p1616 = scmp.lt.u32.totalorder 1, 8
        %p1617 = pneg %p1616
        // Predicated region
        $region319: #{review_metadata_score_forward.1} parent=151 // pred_check
          _
        $region320: #{review_metadata_score_forward.1} parent=151 // pred_check_branch
          %1619 = sbr.rel (%p1616) target = $region322
        $region321: #{review_metadata_score_forward.1} parent=151 // pred_region
          %s1635 = sand.u32 1, 7
          %p1636 = scmp.eq.s32.totalorder %s1635, 0
          %p1637 = pneg %p1636
          // Predicated region
          $region334: #{review_metadata_score_forward.1} parent=321 // pred_check
            _
          $region335: #{review_metadata_score_forward.1} parent=321 // pred_check_branch
            %1639 = sbr.rel (%p1636) target = $region337
          $region336: #{review_metadata_score_forward.1} parent=321 // pred_region
            %s1640 = sand.u32 1, 7
            %s1641 = ssub.s32 1, %s1640
            %s1642 = scalar_lea.vmem %s1612, %s1641
            %s1643 = ssub.s32 1, %s1640
            %s1644 = scalar_lea.vmem %s1613, %s1643 [#allocation3]
            %s1645 = sshll.u32 1, %s1640
            %s1646 = ssub.s32 %s1645, 1
            loop: start=0, step=1, limit=1
            $region338: #{review_metadata_score_forward.1} parent=336 // loop_pre_header
              _
            $region339: #{review_metadata_score_forward.1} parent=336 // loop_header
              %s1648 = sphi 0, %s1652
              %p1649 = scmp.ge.s32.totalorder %s1648, 1
              %s1653 = sphi %s1642, %s1642
              %s1654 = sphi %s1644, %s1644
            $region340: #{review_metadata_score_forward.1} parent=336 // loop_header_branch
              %1651 = sbr.rel (%p1649) target = $region344
            $region341: #{review_metadata_score_forward.1} parent=336 // loop_body
              %v1655 = vld [vmem:[%s1653] sm:%s1646]
              %1656 = vst [vmem:[%s1654] sm:%s1646] %v1655
            $region342: #{review_metadata_score_forward.1} parent=336 // loop_footer
              %s1652 = sadd.s32 1, %s1648
            $region343: #{review_metadata_score_forward.1} parent=336 // loop_footer_branch
              %1647 = sbr.rel target = $region339
            $region344: #{review_metadata_score_forward.1} parent=336 // loop_exit
              _
          $region337: #{review_metadata_score_forward.1} parent=321 // pred_fallthru
            _
        $region322: #{review_metadata_score_forward.1} parent=151 // pred_fallthru
          _
        // Predicated region
        $region323: #{review_metadata_score_forward.1} parent=151 // pred_check
          %p1620 = pneg %p1616
        $region324: #{review_metadata_score_forward.1} parent=151 // pred_check_branch
          %1622 = sbr.rel (%p1620) target = $region326
        $region325: #{review_metadata_score_forward.1} parent=151 // pred_region
          %s1623 = sshll.u32 1, 1
          %s1624 = ssub.s32 %s1623, 1
          loop: start=0, step=1, limit=1
          $region327: #{review_metadata_score_forward.1} parent=325 // loop_pre_header
            _
          $region328: #{review_metadata_score_forward.1} parent=325 // loop_header
            %s1626 = sphi 0, %s1630
            %p1627 = scmp.ge.s32.totalorder %s1626, 1
            %s1631 = sphi %s1612, %s1612
            %s1632 = sphi %s1613, %s1613
          $region329: #{review_metadata_score_forward.1} parent=325 // loop_header_branch
            %1629 = sbr.rel (%p1627) target = $region333
          $region330: #{review_metadata_score_forward.1} parent=325 // loop_body
            %v1633 = vld [vmem:[%s1631] sm:%s1624]
            %1634 = vst [vmem:[%s1632] sm:%s1624] %v1633
          $region331: #{review_metadata_score_forward.1} parent=325 // loop_footer
            %s1630 = sadd.s32 1, %s1626
          $region332: #{review_metadata_score_forward.1} parent=325 // loop_footer_branch
            %1625 = sbr.rel target = $region328
          $region333: #{review_metadata_score_forward.1} parent=325 // loop_exit
            _
        $region326: #{review_metadata_score_forward.1} parent=151 // pred_fallthru
          _
        // Predicated region
        $region345: #{review_metadata_score_forward.1} parent=151 // pred_check
          _
        $region346: #{review_metadata_score_forward.1} parent=151 // pred_check_branch
          %1659 = sbr.rel (0) target = $region348
        $region347: #{review_metadata_score_forward.1} parent=151 // pred_region
          %1660 = vsyncadd %s1614, 16
        $region348: #{review_metadata_score_forward.1} parent=151 // pred_fallthru
          _
        %s1661 = sld [smem:[#allocation8 + %s1461]]
        %s1662 = scalar_lea.vmem %s7, %s1661
        %s1663 = scalar_lea.vmem [#allocation3], 2
        %s1664 = scalar_lea.sflag [#allocation5], 2
        %p1666 = scmp.lt.u32.totalorder 1, 8
        %p1667 = pneg %p1666
        // Predicated region
        $region349: #{review_metadata_score_forward.1} parent=151 // pred_check
          _
        $region350: #{review_metadata_score_forward.1} parent=151 // pred_check_branch
          %1669 = sbr.rel (%p1666) target = $region352
        $region351: #{review_metadata_score_forward.1} parent=151 // pred_region
          %s1685 = sand.u32 1, 7
          %p1686 = scmp.eq.s32.totalorder %s1685, 0
          %p1687 = pneg %p1686
          // Predicated region
          $region364: #{review_metadata_score_forward.1} parent=351 // pred_check
            _
          $region365: #{review_metadata_score_forward.1} parent=351 // pred_check_branch
            %1689 = sbr.rel (%p1686) target = $region367
          $region366: #{review_metadata_score_forward.1} parent=351 // pred_region
            %s1690 = sand.u32 1, 7
            %s1691 = ssub.s32 1, %s1690
            %s1692 = scalar_lea.vmem %s1662, %s1691
            %s1693 = ssub.s32 1, %s1690
            %s1694 = scalar_lea.vmem %s1663, %s1693 [#allocation3]
            %s1695 = sshll.u32 1, %s1690
            %s1696 = ssub.s32 %s1695, 1
            loop: start=0, step=1, limit=1
            $region368: #{review_metadata_score_forward.1} parent=366 // loop_pre_header
              _
            $region369: #{review_metadata_score_forward.1} parent=366 // loop_header
              %s1698 = sphi 0, %s1702
              %p1699 = scmp.ge.s32.totalorder %s1698, 1
              %s1703 = sphi %s1692, %s1692
              %s1704 = sphi %s1694, %s1694
            $region370: #{review_metadata_score_forward.1} parent=366 // loop_header_branch
              %1701 = sbr.rel (%p1699) target = $region374
            $region371: #{review_metadata_score_forward.1} parent=366 // loop_body
              %v1705 = vld [vmem:[%s1703] sm:%s1696]
              %1706 = vst [vmem:[%s1704] sm:%s1696] %v1705
            $region372: #{review_metadata_score_forward.1} parent=366 // loop_footer
              %s1702 = sadd.s32 1, %s1698
            $region373: #{review_metadata_score_forward.1} parent=366 // loop_footer_branch
              %1697 = sbr.rel target = $region369
            $region374: #{review_metadata_score_forward.1} parent=366 // loop_exit
              _
          $region367: #{review_metadata_score_forward.1} parent=351 // pred_fallthru
            _
        $region352: #{review_metadata_score_forward.1} parent=151 // pred_fallthru
          _
        // Predicated region
        $region353: #{review_metadata_score_forward.1} parent=151 // pred_check
          %p1670 = pneg %p1666
        $region354: #{review_metadata_score_forward.1} parent=151 // pred_check_branch
          %1672 = sbr.rel (%p1670) target = $region356
        $region355: #{review_metadata_score_forward.1} parent=151 // pred_region
          %s1673 = sshll.u32 1, 1
          %s1674 = ssub.s32 %s1673, 1
          loop: start=0, step=1, limit=1
          $region357: #{review_metadata_score_forward.1} parent=355 // loop_pre_header
            _
          $region358: #{review_metadata_score_forward.1} parent=355 // loop_header
            %s1676 = sphi 0, %s1680
            %p1677 = scmp.ge.s32.totalorder %s1676, 1
            %s1681 = sphi %s1662, %s1662
            %s1682 = sphi %s1663, %s1663
          $region359: #{review_metadata_score_forward.1} parent=355 // loop_header_branch
            %1679 = sbr.rel (%p1677) target = $region363
          $region360: #{review_metadata_score_forward.1} parent=355 // loop_body
            %v1683 = vld [vmem:[%s1681] sm:%s1674]
            %1684 = vst [vmem:[%s1682] sm:%s1674] %v1683
          $region361: #{review_metadata_score_forward.1} parent=355 // loop_footer
            %s1680 = sadd.s32 1, %s1676
          $region362: #{review_metadata_score_forward.1} parent=355 // loop_footer_branch
            %1675 = sbr.rel target = $region358
          $region363: #{review_metadata_score_forward.1} parent=355 // loop_exit
            _
        $region356: #{review_metadata_score_forward.1} parent=151 // pred_fallthru
          _
        // Predicated region
        $region375: #{review_metadata_score_forward.1} parent=151 // pred_check
          _
        $region376: #{review_metadata_score_forward.1} parent=151 // pred_check_branch
          %1709 = sbr.rel (0) target = $region378
        $region377: #{review_metadata_score_forward.1} parent=151 // pred_region
          %1710 = vsyncadd %s1664, 16
        $region378: #{review_metadata_score_forward.1} parent=151 // pred_fallthru
          _
        %s1711 = sld [smem:[#allocation8 + %s1478]]
        %s1712 = scalar_lea.vmem %s7, %s1711
        %s1713 = scalar_lea.vmem [#allocation3], 3
        %s1714 = scalar_lea.sflag [#allocation5], 3
        %p1716 = scmp.lt.u32.totalorder 1, 8
        %p1717 = pneg %p1716
        // Predicated region
        $region379: #{review_metadata_score_forward.1} parent=151 // pred_check
          _
        $region380: #{review_metadata_score_forward.1} parent=151 // pred_check_branch
          %1719 = sbr.rel (%p1716) target = $region382
        $region381: #{review_metadata_score_forward.1} parent=151 // pred_region
          %s1735 = sand.u32 1, 7
          %p1736 = scmp.eq.s32.totalorder %s1735, 0
          %p1737 = pneg %p1736
          // Predicated region
          $region394: #{review_metadata_score_forward.1} parent=381 // pred_check
            _
          $region395: #{review_metadata_score_forward.1} parent=381 // pred_check_branch
            %1739 = sbr.rel (%p1736) target = $region397
          $region396: #{review_metadata_score_forward.1} parent=381 // pred_region
            %s1740 = sand.u32 1, 7
            %s1741 = ssub.s32 1, %s1740
            %s1742 = scalar_lea.vmem %s1712, %s1741
            %s1743 = ssub.s32 1, %s1740
            %s1744 = scalar_lea.vmem %s1713, %s1743 [#allocation3]
            %s1745 = sshll.u32 1, %s1740
            %s1746 = ssub.s32 %s1745, 1
            loop: start=0, step=1, limit=1
            $region398: #{review_metadata_score_forward.1} parent=396 // loop_pre_header
              _
            $region399: #{review_metadata_score_forward.1} parent=396 // loop_header
              %s1748 = sphi 0, %s1752
              %p1749 = scmp.ge.s32.totalorder %s1748, 1
              %s1753 = sphi %s1742, %s1742
              %s1754 = sphi %s1744, %s1744
            $region400: #{review_metadata_score_forward.1} parent=396 // loop_header_branch
              %1751 = sbr.rel (%p1749) target = $region404
            $region401: #{review_metadata_score_forward.1} parent=396 // loop_body
              %v1755 = vld [vmem:[%s1753] sm:%s1746]
              %1756 = vst [vmem:[%s1754] sm:%s1746] %v1755
            $region402: #{review_metadata_score_forward.1} parent=396 // loop_footer
              %s1752 = sadd.s32 1, %s1748
            $region403: #{review_metadata_score_forward.1} parent=396 // loop_footer_branch
              %1747 = sbr.rel target = $region399
            $region404: #{review_metadata_score_forward.1} parent=396 // loop_exit
              _
          $region397: #{review_metadata_score_forward.1} parent=381 // pred_fallthru
            _
        $region382: #{review_metadata_score_forward.1} parent=151 // pred_fallthru
          _
        // Predicated region
        $region383: #{review_metadata_score_forward.1} parent=151 // pred_check
          %p1720 = pneg %p1716
        $region384: #{review_metadata_score_forward.1} parent=151 // pred_check_branch
          %1722 = sbr.rel (%p1720) target = $region386
        $region385: #{review_metadata_score_forward.1} parent=151 // pred_region
          %s1723 = sshll.u32 1, 1
          %s1724 = ssub.s32 %s1723, 1
          loop: start=0, step=1, limit=1
          $region387: #{review_metadata_score_forward.1} parent=385 // loop_pre_header
            _
          $region388: #{review_metadata_score_forward.1} parent=385 // loop_header
            %s1726 = sphi 0, %s1730
            %p1727 = scmp.ge.s32.totalorder %s1726, 1
            %s1731 = sphi %s1712, %s1712
            %s1732 = sphi %s1713, %s1713
          $region389: #{review_metadata_score_forward.1} parent=385 // loop_header_branch
            %1729 = sbr.rel (%p1727) target = $region393
          $region390: #{review_metadata_score_forward.1} parent=385 // loop_body
            %v1733 = vld [vmem:[%s1731] sm:%s1724]
            %1734 = vst [vmem:[%s1732] sm:%s1724] %v1733
          $region391: #{review_metadata_score_forward.1} parent=385 // loop_footer
            %s1730 = sadd.s32 1, %s1726
          $region392: #{review_metadata_score_forward.1} parent=385 // loop_footer_branch
            %1725 = sbr.rel target = $region388
          $region393: #{review_metadata_score_forward.1} parent=385 // loop_exit
            _
        $region386: #{review_metadata_score_forward.1} parent=151 // pred_fallthru
          _
        // Predicated region
        $region405: #{review_metadata_score_forward.1} parent=151 // pred_check
          _
        $region406: #{review_metadata_score_forward.1} parent=151 // pred_check_branch
          %1759 = sbr.rel (0) target = $region408
        $region407: #{review_metadata_score_forward.1} parent=151 // pred_region
          %1760 = vsyncadd %s1714, 16
        $region408: #{review_metadata_score_forward.1} parent=151 // pred_fallthru
          _
        %s1761 = sld [smem:[#allocation8 + %s1495]]
        %s1762 = scalar_lea.vmem %s7, %s1761
        %s1763 = scalar_lea.vmem [#allocation3], 4
        %s1764 = scalar_lea.sflag [#allocation5], 4
        %p1766 = scmp.lt.u32.totalorder 1, 8
        %p1767 = pneg %p1766
        // Predicated region
        $region409: #{review_metadata_score_forward.1} parent=151 // pred_check
          _
        $region410: #{review_metadata_score_forward.1} parent=151 // pred_check_branch
          %1769 = sbr.rel (%p1766) target = $region412
        $region411: #{review_metadata_score_forward.1} parent=151 // pred_region
          %s1785 = sand.u32 1, 7
          %p1786 = scmp.eq.s32.totalorder %s1785, 0
          %p1787 = pneg %p1786
          // Predicated region
          $region424: #{review_metadata_score_forward.1} parent=411 // pred_check
            _
          $region425: #{review_metadata_score_forward.1} parent=411 // pred_check_branch
            %1789 = sbr.rel (%p1786) target = $region427
          $region426: #{review_metadata_score_forward.1} parent=411 // pred_region
            %s1790 = sand.u32 1, 7
            %s1791 = ssub.s32 1, %s1790
            %s1792 = scalar_lea.vmem %s1762, %s1791
            %s1793 = ssub.s32 1, %s1790
            %s1794 = scalar_lea.vmem %s1763, %s1793 [#allocation3]
            %s1795 = sshll.u32 1, %s1790
            %s1796 = ssub.s32 %s1795, 1
            loop: start=0, step=1, limit=1
            $region428: #{review_metadata_score_forward.1} parent=426 // loop_pre_header
              _
            $region429: #{review_metadata_score_forward.1} parent=426 // loop_header
              %s1798 = sphi 0, %s1802
              %p1799 = scmp.ge.s32.totalorder %s1798, 1
              %s1803 = sphi %s1792, %s1792
              %s1804 = sphi %s1794, %s1794
            $region430: #{review_metadata_score_forward.1} parent=426 // loop_header_branch
              %1801 = sbr.rel (%p1799) target = $region434
            $region431: #{review_metadata_score_forward.1} parent=426 // loop_body
              %v1805 = vld [vmem:[%s1803] sm:%s1796]
              %1806 = vst [vmem:[%s1804] sm:%s1796] %v1805
            $region432: #{review_metadata_score_forward.1} parent=426 // loop_footer
              %s1802 = sadd.s32 1, %s1798
            $region433: #{review_metadata_score_forward.1} parent=426 // loop_footer_branch
              %1797 = sbr.rel target = $region429
            $region434: #{review_metadata_score_forward.1} parent=426 // loop_exit
              _
          $region427: #{review_metadata_score_forward.1} parent=411 // pred_fallthru
            _
        $region412: #{review_metadata_score_forward.1} parent=151 // pred_fallthru
          _
        // Predicated region
        $region413: #{review_metadata_score_forward.1} parent=151 // pred_check
          %p1770 = pneg %p1766
        $region414: #{review_metadata_score_forward.1} parent=151 // pred_check_branch
          %1772 = sbr.rel (%p1770) target = $region416
        $region415: #{review_metadata_score_forward.1} parent=151 // pred_region
          %s1773 = sshll.u32 1, 1
          %s1774 = ssub.s32 %s1773, 1
          loop: start=0, step=1, limit=1
          $region417: #{review_metadata_score_forward.1} parent=415 // loop_pre_header
            _
          $region418: #{review_metadata_score_forward.1} parent=415 // loop_header
            %s1776 = sphi 0, %s1780
            %p1777 = scmp.ge.s32.totalorder %s1776, 1
            %s1781 = sphi %s1762, %s1762
            %s1782 = sphi %s1763, %s1763
          $region419: #{review_metadata_score_forward.1} parent=415 // loop_header_branch
            %1779 = sbr.rel (%p1777) target = $region423
          $region420: #{review_metadata_score_forward.1} parent=415 // loop_body
            %v1783 = vld [vmem:[%s1781] sm:%s1774]
            %1784 = vst [vmem:[%s1782] sm:%s1774] %v1783
          $region421: #{review_metadata_score_forward.1} parent=415 // loop_footer
            %s1780 = sadd.s32 1, %s1776
          $region422: #{review_metadata_score_forward.1} parent=415 // loop_footer_branch
            %1775 = sbr.rel target = $region418
          $region423: #{review_metadata_score_forward.1} parent=415 // loop_exit
            _
        $region416: #{review_metadata_score_forward.1} parent=151 // pred_fallthru
          _
        // Predicated region
        $region435: #{review_metadata_score_forward.1} parent=151 // pred_check
          _
        $region436: #{review_metadata_score_forward.1} parent=151 // pred_check_branch
          %1809 = sbr.rel (0) target = $region438
        $region437: #{review_metadata_score_forward.1} parent=151 // pred_region
          %1810 = vsyncadd %s1764, 16
        $region438: #{review_metadata_score_forward.1} parent=151 // pred_fallthru
          _
        %s1811 = sld [smem:[#allocation8 + %s1512]]
        %s1812 = scalar_lea.vmem %s7, %s1811
        %s1813 = scalar_lea.vmem [#allocation3], 5
        %s1814 = scalar_lea.sflag [#allocation5], 5
        %p1816 = scmp.lt.u32.totalorder 1, 8
        %p1817 = pneg %p1816
        // Predicated region
        $region439: #{review_metadata_score_forward.1} parent=151 // pred_check
          _
        $region440: #{review_metadata_score_forward.1} parent=151 // pred_check_branch
          %1819 = sbr.rel (%p1816) target = $region442
        $region441: #{review_metadata_score_forward.1} parent=151 // pred_region
          %s1835 = sand.u32 1, 7
          %p1836 = scmp.eq.s32.totalorder %s1835, 0
          %p1837 = pneg %p1836
          // Predicated region
          $region454: #{review_metadata_score_forward.1} parent=441 // pred_check
            _
          $region455: #{review_metadata_score_forward.1} parent=441 // pred_check_branch
            %1839 = sbr.rel (%p1836) target = $region457
          $region456: #{review_metadata_score_forward.1} parent=441 // pred_region
            %s1840 = sand.u32 1, 7
            %s1841 = ssub.s32 1, %s1840
            %s1842 = scalar_lea.vmem %s1812, %s1841
            %s1843 = ssub.s32 1, %s1840
            %s1844 = scalar_lea.vmem %s1813, %s1843 [#allocation3]
            %s1845 = sshll.u32 1, %s1840
            %s1846 = ssub.s32 %s1845, 1
            loop: start=0, step=1, limit=1
            $region458: #{review_metadata_score_forward.1} parent=456 // loop_pre_header
              _
            $region459: #{review_metadata_score_forward.1} parent=456 // loop_header
              %s1848 = sphi 0, %s1852
              %p1849 = scmp.ge.s32.totalorder %s1848, 1
              %s1853 = sphi %s1842, %s1842
              %s1854 = sphi %s1844, %s1844
            $region460: #{review_metadata_score_forward.1} parent=456 // loop_header_branch
              %1851 = sbr.rel (%p1849) target = $region464
            $region461: #{review_metadata_score_forward.1} parent=456 // loop_body
              %v1855 = vld [vmem:[%s1853] sm:%s1846]
              %1856 = vst [vmem:[%s1854] sm:%s1846] %v1855
            $region462: #{review_metadata_score_forward.1} parent=456 // loop_footer
              %s1852 = sadd.s32 1, %s1848
            $region463: #{review_metadata_score_forward.1} parent=456 // loop_footer_branch
              %1847 = sbr.rel target = $region459
            $region464: #{review_metadata_score_forward.1} parent=456 // loop_exit
              _
          $region457: #{review_metadata_score_forward.1} parent=441 // pred_fallthru
            _
        $region442: #{review_metadata_score_forward.1} parent=151 // pred_fallthru
          _
        // Predicated region
        $region443: #{review_metadata_score_forward.1} parent=151 // pred_check
          %p1820 = pneg %p1816
        $region444: #{review_metadata_score_forward.1} parent=151 // pred_check_branch
          %1822 = sbr.rel (%p1820) target = $region446
        $region445: #{review_metadata_score_forward.1} parent=151 // pred_region
          %s1823 = sshll.u32 1, 1
          %s1824 = ssub.s32 %s1823, 1
          loop: start=0, step=1, limit=1
          $region447: #{review_metadata_score_forward.1} parent=445 // loop_pre_header
            _
          $region448: #{review_metadata_score_forward.1} parent=445 // loop_header
            %s1826 = sphi 0, %s1830
            %p1827 = scmp.ge.s32.totalorder %s1826, 1
            %s1831 = sphi %s1812, %s1812
            %s1832 = sphi %s1813, %s1813
          $region449: #{review_metadata_score_forward.1} parent=445 // loop_header_branch
            %1829 = sbr.rel (%p1827) target = $region453
          $region450: #{review_metadata_score_forward.1} parent=445 // loop_body
            %v1833 = vld [vmem:[%s1831] sm:%s1824]
            %1834 = vst [vmem:[%s1832] sm:%s1824] %v1833
          $region451: #{review_metadata_score_forward.1} parent=445 // loop_footer
            %s1830 = sadd.s32 1, %s1826
          $region452: #{review_metadata_score_forward.1} parent=445 // loop_footer_branch
            %1825 = sbr.rel target = $region448
          $region453: #{review_metadata_score_forward.1} parent=445 // loop_exit
            _
        $region446: #{review_metadata_score_forward.1} parent=151 // pred_fallthru
          _
        // Predicated region
        $region465: #{review_metadata_score_forward.1} parent=151 // pred_check
          _
        $region466: #{review_metadata_score_forward.1} parent=151 // pred_check_branch
          %1859 = sbr.rel (0) target = $region468
        $region467: #{review_metadata_score_forward.1} parent=151 // pred_region
          %1860 = vsyncadd %s1814, 16
        $region468: #{review_metadata_score_forward.1} parent=151 // pred_fallthru
          _
        %s1861 = sld [smem:[#allocation8 + %s1529]]
        %s1862 = scalar_lea.vmem %s7, %s1861
        %s1863 = scalar_lea.vmem [#allocation3], 6
        %s1864 = scalar_lea.sflag [#allocation5], 6
        %p1866 = scmp.lt.u32.totalorder 1, 8
        %p1867 = pneg %p1866
        // Predicated region
        $region469: #{review_metadata_score_forward.1} parent=151 // pred_check
          _
        $region470: #{review_metadata_score_forward.1} parent=151 // pred_check_branch
          %1869 = sbr.rel (%p1866) target = $region472
        $region471: #{review_metadata_score_forward.1} parent=151 // pred_region
          %s1885 = sand.u32 1, 7
          %p1886 = scmp.eq.s32.totalorder %s1885, 0
          %p1887 = pneg %p1886
          // Predicated region
          $region484: #{review_metadata_score_forward.1} parent=471 // pred_check
            _
          $region485: #{review_metadata_score_forward.1} parent=471 // pred_check_branch
            %1889 = sbr.rel (%p1886) target = $region487
          $region486: #{review_metadata_score_forward.1} parent=471 // pred_region
            %s1890 = sand.u32 1, 7
            %s1891 = ssub.s32 1, %s1890
            %s1892 = scalar_lea.vmem %s1862, %s1891
            %s1893 = ssub.s32 1, %s1890
            %s1894 = scalar_lea.vmem %s1863, %s1893 [#allocation3]
            %s1895 = sshll.u32 1, %s1890
            %s1896 = ssub.s32 %s1895, 1
            loop: start=0, step=1, limit=1
            $region488: #{review_metadata_score_forward.1} parent=486 // loop_pre_header
              _
            $region489: #{review_metadata_score_forward.1} parent=486 // loop_header
              %s1898 = sphi 0, %s1902
              %p1899 = scmp.ge.s32.totalorder %s1898, 1
              %s1903 = sphi %s1892, %s1892
              %s1904 = sphi %s1894, %s1894
            $region490: #{review_metadata_score_forward.1} parent=486 // loop_header_branch
              %1901 = sbr.rel (%p1899) target = $region494
            $region491: #{review_metadata_score_forward.1} parent=486 // loop_body
              %v1905 = vld [vmem:[%s1903] sm:%s1896]
              %1906 = vst [vmem:[%s1904] sm:%s1896] %v1905
            $region492: #{review_metadata_score_forward.1} parent=486 // loop_footer
              %s1902 = sadd.s32 1, %s1898
            $region493: #{review_metadata_score_forward.1} parent=486 // loop_footer_branch
              %1897 = sbr.rel target = $region489
            $region494: #{review_metadata_score_forward.1} parent=486 // loop_exit
              _
          $region487: #{review_metadata_score_forward.1} parent=471 // pred_fallthru
            _
        $region472: #{review_metadata_score_forward.1} parent=151 // pred_fallthru
          _
        // Predicated region
        $region473: #{review_metadata_score_forward.1} parent=151 // pred_check
          %p1870 = pneg %p1866
        $region474: #{review_metadata_score_forward.1} parent=151 // pred_check_branch
          %1872 = sbr.rel (%p1870) target = $region476
        $region475: #{review_metadata_score_forward.1} parent=151 // pred_region
          %s1873 = sshll.u32 1, 1
          %s1874 = ssub.s32 %s1873, 1
          loop: start=0, step=1, limit=1
          $region477: #{review_metadata_score_forward.1} parent=475 // loop_pre_header
            _
          $region478: #{review_metadata_score_forward.1} parent=475 // loop_header
            %s1876 = sphi 0, %s1880
            %p1877 = scmp.ge.s32.totalorder %s1876, 1
            %s1881 = sphi %s1862, %s1862
            %s1882 = sphi %s1863, %s1863
          $region479: #{review_metadata_score_forward.1} parent=475 // loop_header_branch
            %1879 = sbr.rel (%p1877) target = $region483
          $region480: #{review_metadata_score_forward.1} parent=475 // loop_body
            %v1883 = vld [vmem:[%s1881] sm:%s1874]
            %1884 = vst [vmem:[%s1882] sm:%s1874] %v1883
          $region481: #{review_metadata_score_forward.1} parent=475 // loop_footer
            %s1880 = sadd.s32 1, %s1876
          $region482: #{review_metadata_score_forward.1} parent=475 // loop_footer_branch
            %1875 = sbr.rel target = $region478
          $region483: #{review_metadata_score_forward.1} parent=475 // loop_exit
            _
        $region476: #{review_metadata_score_forward.1} parent=151 // pred_fallthru
          _
        // Predicated region
        $region495: #{review_metadata_score_forward.1} parent=151 // pred_check
          _
        $region496: #{review_metadata_score_forward.1} parent=151 // pred_check_branch
          %1909 = sbr.rel (0) target = $region498
        $region497: #{review_metadata_score_forward.1} parent=151 // pred_region
          %1910 = vsyncadd %s1864, 16
        $region498: #{review_metadata_score_forward.1} parent=151 // pred_fallthru
          _
        %s1911 = sld [smem:[#allocation8 + %s1546]]
        %s1912 = scalar_lea.vmem %s7, %s1911
        %s1913 = scalar_lea.vmem [#allocation3], 7
        %s1914 = scalar_lea.sflag [#allocation5], 7
        %p1916 = scmp.lt.u32.totalorder 1, 8
        %p1917 = pneg %p1916
        // Predicated region
        $region499: #{review_metadata_score_forward.1} parent=151 // pred_check
          _
        $region500: #{review_metadata_score_forward.1} parent=151 // pred_check_branch
          %1919 = sbr.rel (%p1916) target = $region502
        $region501: #{review_metadata_score_forward.1} parent=151 // pred_region
          %s1935 = sand.u32 1, 7
          %p1936 = scmp.eq.s32.totalorder %s1935, 0
          %p1937 = pneg %p1936
          // Predicated region
          $region514: #{review_metadata_score_forward.1} parent=501 // pred_check
            _
          $region515: #{review_metadata_score_forward.1} parent=501 // pred_check_branch
            %1939 = sbr.rel (%p1936) target = $region517
          $region516: #{review_metadata_score_forward.1} parent=501 // pred_region
            %s1940 = sand.u32 1, 7
            %s1941 = ssub.s32 1, %s1940
            %s1942 = scalar_lea.vmem %s1912, %s1941
            %s1943 = ssub.s32 1, %s1940
            %s1944 = scalar_lea.vmem %s1913, %s1943 [#allocation3]
            %s1945 = sshll.u32 1, %s1940
            %s1946 = ssub.s32 %s1945, 1
            loop: start=0, step=1, limit=1
            $region518: #{review_metadata_score_forward.1} parent=516 // loop_pre_header
              _
            $region519: #{review_metadata_score_forward.1} parent=516 // loop_header
              %s1948 = sphi 0, %s1952
              %p1949 = scmp.ge.s32.totalorder %s1948, 1
              %s1953 = sphi %s1942, %s1942
              %s1954 = sphi %s1944, %s1944
            $region520: #{review_metadata_score_forward.1} parent=516 // loop_header_branch
              %1951 = sbr.rel (%p1949) target = $region524
            $region521: #{review_metadata_score_forward.1} parent=516 // loop_body
              %v1955 = vld [vmem:[%s1953] sm:%s1946]
              %1956 = vst [vmem:[%s1954] sm:%s1946] %v1955
            $region522: #{review_metadata_score_forward.1} parent=516 // loop_footer
              %s1952 = sadd.s32 1, %s1948
            $region523: #{review_metadata_score_forward.1} parent=516 // loop_footer_branch
              %1947 = sbr.rel target = $region519
            $region524: #{review_metadata_score_forward.1} parent=516 // loop_exit
              _
          $region517: #{review_metadata_score_forward.1} parent=501 // pred_fallthru
            _
        $region502: #{review_metadata_score_forward.1} parent=151 // pred_fallthru
          _
        // Predicated region
        $region503: #{review_metadata_score_forward.1} parent=151 // pred_check
          %p1920 = pneg %p1916
        $region504: #{review_metadata_score_forward.1} parent=151 // pred_check_branch
          %1922 = sbr.rel (%p1920) target = $region506
        $region505: #{review_metadata_score_forward.1} parent=151 // pred_region
          %s1923 = sshll.u32 1, 1
          %s1924 = ssub.s32 %s1923, 1
          loop: start=0, step=1, limit=1
          $region507: #{review_metadata_score_forward.1} parent=505 // loop_pre_header
            _
          $region508: #{review_metadata_score_forward.1} parent=505 // loop_header
            %s1926 = sphi 0, %s1930
            %p1927 = scmp.ge.s32.totalorder %s1926, 1
            %s1931 = sphi %s1912, %s1912
            %s1932 = sphi %s1913, %s1913
          $region509: #{review_metadata_score_forward.1} parent=505 // loop_header_branch
            %1929 = sbr.rel (%p1927) target = $region513
          $region510: #{review_metadata_score_forward.1} parent=505 // loop_body
            %v1933 = vld [vmem:[%s1931] sm:%s1924]
            %1934 = vst [vmem:[%s1932] sm:%s1924] %v1933
          $region511: #{review_metadata_score_forward.1} parent=505 // loop_footer
            %s1930 = sadd.s32 1, %s1926
          $region512: #{review_metadata_score_forward.1} parent=505 // loop_footer_branch
            %1925 = sbr.rel target = $region508
          $region513: #{review_metadata_score_forward.1} parent=505 // loop_exit
            _
        $region506: #{review_metadata_score_forward.1} parent=151 // pred_fallthru
          _
        // Predicated region
        $region525: #{review_metadata_score_forward.1} parent=151 // pred_check
          _
        $region526: #{review_metadata_score_forward.1} parent=151 // pred_check_branch
          %1959 = sbr.rel (0) target = $region528
        $region527: #{review_metadata_score_forward.1} parent=151 // pred_region
          %1960 = vsyncadd %s1914, 16
        $region528: #{review_metadata_score_forward.1} parent=151 // pred_fallthru
          _
        %s1961 = sadd.s32 %s1429, 8
        %s1962 = sld [smem:[#allocation8 + %s1961]]
        %s1963 = scalar_lea.vmem %s7, %s1962
        %s1964 = scalar_lea.vmem [#allocation3], 8
        %s1965 = scalar_lea.sflag [#allocation5], 8
        %p1967 = scmp.lt.u32.totalorder 1, 8
        %p1968 = pneg %p1967
        // Predicated region
        $region529: #{review_metadata_score_forward.1} parent=151 // pred_check
          _
        $region530: #{review_metadata_score_forward.1} parent=151 // pred_check_branch
          %1970 = sbr.rel (%p1967) target = $region532
        $region531: #{review_metadata_score_forward.1} parent=151 // pred_region
          %s1986 = sand.u32 1, 7
          %p1987 = scmp.eq.s32.totalorder %s1986, 0
          %p1988 = pneg %p1987
          // Predicated region
          $region544: #{review_metadata_score_forward.1} parent=531 // pred_check
            _
          $region545: #{review_metadata_score_forward.1} parent=531 // pred_check_branch
            %1990 = sbr.rel (%p1987) target = $region547
          $region546: #{review_metadata_score_forward.1} parent=531 // pred_region
            %s1991 = sand.u32 1, 7
            %s1992 = ssub.s32 1, %s1991
            %s1993 = scalar_lea.vmem %s1963, %s1992
            %s1994 = ssub.s32 1, %s1991
            %s1995 = scalar_lea.vmem %s1964, %s1994 [#allocation3]
            %s1996 = sshll.u32 1, %s1991
            %s1997 = ssub.s32 %s1996, 1
            loop: start=0, step=1, limit=1
            $region548: #{review_metadata_score_forward.1} parent=546 // loop_pre_header
              _
            $region549: #{review_metadata_score_forward.1} parent=546 // loop_header
              %s1999 = sphi 0, %s2003
              %p2000 = scmp.ge.s32.totalorder %s1999, 1
              %s2004 = sphi %s1993, %s1993
              %s2005 = sphi %s1995, %s1995
            $region550: #{review_metadata_score_forward.1} parent=546 // loop_header_branch
              %2002 = sbr.rel (%p2000) target = $region554
            $region551: #{review_metadata_score_forward.1} parent=546 // loop_body
              %v2006 = vld [vmem:[%s2004] sm:%s1997]
              %2007 = vst [vmem:[%s2005] sm:%s1997] %v2006
            $region552: #{review_metadata_score_forward.1} parent=546 // loop_footer
              %s2003 = sadd.s32 1, %s1999
            $region553: #{review_metadata_score_forward.1} parent=546 // loop_footer_branch
              %1998 = sbr.rel target = $region549
            $region554: #{review_metadata_score_forward.1} parent=546 // loop_exit
              _
          $region547: #{review_metadata_score_forward.1} parent=531 // pred_fallthru
            _
        $region532: #{review_metadata_score_forward.1} parent=151 // pred_fallthru
          _
        // Predicated region
        $region533: #{review_metadata_score_forward.1} parent=151 // pred_check
          %p1971 = pneg %p1967
        $region534: #{review_metadata_score_forward.1} parent=151 // pred_check_branch
          %1973 = sbr.rel (%p1971) target = $region536
        $region535: #{review_metadata_score_forward.1} parent=151 // pred_region
          %s1974 = sshll.u32 1, 1
          %s1975 = ssub.s32 %s1974, 1
          loop: start=0, step=1, limit=1
          $region537: #{review_metadata_score_forward.1} parent=535 // loop_pre_header
            _
          $region538: #{review_metadata_score_forward.1} parent=535 // loop_header
            %s1977 = sphi 0, %s1981
            %p1978 = scmp.ge.s32.totalorder %s1977, 1
            %s1982 = sphi %s1963, %s1963
            %s1983 = sphi %s1964, %s1964
          $region539: #{review_metadata_score_forward.1} parent=535 // loop_header_branch
            %1980 = sbr.rel (%p1978) target = $region543
          $region540: #{review_metadata_score_forward.1} parent=535 // loop_body
            %v1984 = vld [vmem:[%s1982] sm:%s1975]
            %1985 = vst [vmem:[%s1983] sm:%s1975] %v1984
          $region541: #{review_metadata_score_forward.1} parent=535 // loop_footer
            %s1981 = sadd.s32 1, %s1977
          $region542: #{review_metadata_score_forward.1} parent=535 // loop_footer_branch
            %1976 = sbr.rel target = $region538
          $region543: #{review_metadata_score_forward.1} parent=535 // loop_exit
            _
        $region536: #{review_metadata_score_forward.1} parent=151 // pred_fallthru
          _
        // Predicated region
        $region555: #{review_metadata_score_forward.1} parent=151 // pred_check
          _
        $region556: #{review_metadata_score_forward.1} parent=151 // pred_check_branch
          %2010 = sbr.rel (0) target = $region558
        $region557: #{review_metadata_score_forward.1} parent=151 // pred_region
          %2011 = vsyncadd %s1965, 16
        $region558: #{review_metadata_score_forward.1} parent=151 // pred_fallthru
          _
        %s2012 = sadd.s32 %s1429, 9
        %s2013 = sld [smem:[#allocation8 + %s2012]]
        %s2014 = scalar_lea.vmem %s7, %s2013
        %s2015 = scalar_lea.vmem [#allocation3], 9
        %s2016 = scalar_lea.sflag [#allocation5], 9
        %p2018 = scmp.lt.u32.totalorder 1, 8
        %p2019 = pneg %p2018
        // Predicated region
        $region559: #{review_metadata_score_forward.1} parent=151 // pred_check
          _
        $region560: #{review_metadata_score_forward.1} parent=151 // pred_check_branch
          %2021 = sbr.rel (%p2018) target = $region562
        $region561: #{review_metadata_score_forward.1} parent=151 // pred_region
          %s2037 = sand.u32 1, 7
          %p2038 = scmp.eq.s32.totalorder %s2037, 0
          %p2039 = pneg %p2038
          // Predicated region
          $region574: #{review_metadata_score_forward.1} parent=561 // pred_check
            _
          $region575: #{review_metadata_score_forward.1} parent=561 // pred_check_branch
            %2041 = sbr.rel (%p2038) target = $region577
          $region576: #{review_metadata_score_forward.1} parent=561 // pred_region
            %s2042 = sand.u32 1, 7
            %s2043 = ssub.s32 1, %s2042
            %s2044 = scalar_lea.vmem %s2014, %s2043
            %s2045 = ssub.s32 1, %s2042
            %s2046 = scalar_lea.vmem %s2015, %s2045 [#allocation3]
            %s2047 = sshll.u32 1, %s2042
            %s2048 = ssub.s32 %s2047, 1
            loop: start=0, step=1, limit=1
            $region578: #{review_metadata_score_forward.1} parent=576 // loop_pre_header
              _
            $region579: #{review_metadata_score_forward.1} parent=576 // loop_header
              %s2050 = sphi 0, %s2054
              %p2051 = scmp.ge.s32.totalorder %s2050, 1
              %s2055 = sphi %s2044, %s2044
              %s2056 = sphi %s2046, %s2046
            $region580: #{review_metadata_score_forward.1} parent=576 // loop_header_branch
              %2053 = sbr.rel (%p2051) target = $region584
            $region581: #{review_metadata_score_forward.1} parent=576 // loop_body
              %v2057 = vld [vmem:[%s2055] sm:%s2048]
              %2058 = vst [vmem:[%s2056] sm:%s2048] %v2057
            $region582: #{review_metadata_score_forward.1} parent=576 // loop_footer
              %s2054 = sadd.s32 1, %s2050
            $region583: #{review_metadata_score_forward.1} parent=576 // loop_footer_branch
              %2049 = sbr.rel target = $region579
            $region584: #{review_metadata_score_forward.1} parent=576 // loop_exit
              _
          $region577: #{review_metadata_score_forward.1} parent=561 // pred_fallthru
            _
        $region562: #{review_metadata_score_forward.1} parent=151 // pred_fallthru
          _
        // Predicated region
        $region563: #{review_metadata_score_forward.1} parent=151 // pred_check
          %p2022 = pneg %p2018
        $region564: #{review_metadata_score_forward.1} parent=151 // pred_check_branch
          %2024 = sbr.rel (%p2022) target = $region566
        $region565: #{review_metadata_score_forward.1} parent=151 // pred_region
          %s2025 = sshll.u32 1, 1
          %s2026 = ssub.s32 %s2025, 1
          loop: start=0, step=1, limit=1
          $region567: #{review_metadata_score_forward.1} parent=565 // loop_pre_header
            _
          $region568: #{review_metadata_score_forward.1} parent=565 // loop_header
            %s2028 = sphi 0, %s2032
            %p2029 = scmp.ge.s32.totalorder %s2028, 1
            %s2033 = sphi %s2014, %s2014
            %s2034 = sphi %s2015, %s2015
          $region569: #{review_metadata_score_forward.1} parent=565 // loop_header_branch
            %2031 = sbr.rel (%p2029) target = $region573
          $region570: #{review_metadata_score_forward.1} parent=565 // loop_body
            %v2035 = vld [vmem:[%s2033] sm:%s2026]
            %2036 = vst [vmem:[%s2034] sm:%s2026] %v2035
          $region571: #{review_metadata_score_forward.1} parent=565 // loop_footer
            %s2032 = sadd.s32 1, %s2028
          $region572: #{review_metadata_score_forward.1} parent=565 // loop_footer_branch
            %2027 = sbr.rel target = $region568
          $region573: #{review_metadata_score_forward.1} parent=565 // loop_exit
            _
        $region566: #{review_metadata_score_forward.1} parent=151 // pred_fallthru
          _
        // Predicated region
        $region585: #{review_metadata_score_forward.1} parent=151 // pred_check
          _
        $region586: #{review_metadata_score_forward.1} parent=151 // pred_check_branch
          %2061 = sbr.rel (0) target = $region588
        $region587: #{review_metadata_score_forward.1} parent=151 // pred_region
          %2062 = vsyncadd %s2016, 16
        $region588: #{review_metadata_score_forward.1} parent=151 // pred_fallthru
          _
        %s2063 = sadd.s32 %s1429, 10
        %s2064 = sld [smem:[#allocation8 + %s2063]]
        %s2065 = scalar_lea.vmem %s7, %s2064
        %s2066 = scalar_lea.vmem [#allocation3], 10
        %s2067 = scalar_lea.sflag [#allocation5], 10
        %p2069 = scmp.lt.u32.totalorder 1, 8
        %p2070 = pneg %p2069
        // Predicated region
        $region589: #{review_metadata_score_forward.1} parent=151 // pred_check
          _
        $region590: #{review_metadata_score_forward.1} parent=151 // pred_check_branch
          %2072 = sbr.rel (%p2069) target = $region592
        $region591: #{review_metadata_score_forward.1} parent=151 // pred_region
          %s2088 = sand.u32 1, 7
          %p2089 = scmp.eq.s32.totalorder %s2088, 0
          %p2090 = pneg %p2089
          // Predicated region
          $region604: #{review_metadata_score_forward.1} parent=591 // pred_check
            _
          $region605: #{review_metadata_score_forward.1} parent=591 // pred_check_branch
            %2092 = sbr.rel (%p2089) target = $region607
          $region606: #{review_metadata_score_forward.1} parent=591 // pred_region
            %s2093 = sand.u32 1, 7
            %s2094 = ssub.s32 1, %s2093
            %s2095 = scalar_lea.vmem %s2065, %s2094
            %s2096 = ssub.s32 1, %s2093
            %s2097 = scalar_lea.vmem %s2066, %s2096 [#allocation3]
            %s2098 = sshll.u32 1, %s2093
            %s2099 = ssub.s32 %s2098, 1
            loop: start=0, step=1, limit=1
            $region608: #{review_metadata_score_forward.1} parent=606 // loop_pre_header
              _
            $region609: #{review_metadata_score_forward.1} parent=606 // loop_header
              %s2101 = sphi 0, %s2105
              %p2102 = scmp.ge.s32.totalorder %s2101, 1
              %s2106 = sphi %s2095, %s2095
              %s2107 = sphi %s2097, %s2097
            $region610: #{review_metadata_score_forward.1} parent=606 // loop_header_branch
              %2104 = sbr.rel (%p2102) target = $region614
            $region611: #{review_metadata_score_forward.1} parent=606 // loop_body
              %v2108 = vld [vmem:[%s2106] sm:%s2099]
              %2109 = vst [vmem:[%s2107] sm:%s2099] %v2108
            $region612: #{review_metadata_score_forward.1} parent=606 // loop_footer
              %s2105 = sadd.s32 1, %s2101
            $region613: #{review_metadata_score_forward.1} parent=606 // loop_footer_branch
              %2100 = sbr.rel target = $region609
            $region614: #{review_metadata_score_forward.1} parent=606 // loop_exit
              _
          $region607: #{review_metadata_score_forward.1} parent=591 // pred_fallthru
            _
        $region592: #{review_metadata_score_forward.1} parent=151 // pred_fallthru
          _
        // Predicated region
        $region593: #{review_metadata_score_forward.1} parent=151 // pred_check
          %p2073 = pneg %p2069
        $region594: #{review_metadata_score_forward.1} parent=151 // pred_check_branch
          %2075 = sbr.rel (%p2073) target = $region596
        $region595: #{review_metadata_score_forward.1} parent=151 // pred_region
          %s2076 = sshll.u32 1, 1
          %s2077 = ssub.s32 %s2076, 1
          loop: start=0, step=1, limit=1
          $region597: #{review_metadata_score_forward.1} parent=595 // loop_pre_header
            _
          $region598: #{review_metadata_score_forward.1} parent=595 // loop_header
            %s2079 = sphi 0, %s2083
            %p2080 = scmp.ge.s32.totalorder %s2079, 1
            %s2084 = sphi %s2065, %s2065
            %s2085 = sphi %s2066, %s2066
          $region599: #{review_metadata_score_forward.1} parent=595 // loop_header_branch
            %2082 = sbr.rel (%p2080) target = $region603
          $region600: #{review_metadata_score_forward.1} parent=595 // loop_body
            %v2086 = vld [vmem:[%s2084] sm:%s2077]
            %2087 = vst [vmem:[%s2085] sm:%s2077] %v2086
          $region601: #{review_metadata_score_forward.1} parent=595 // loop_footer
            %s2083 = sadd.s32 1, %s2079
          $region602: #{review_metadata_score_forward.1} parent=595 // loop_footer_branch
            %2078 = sbr.rel target = $region598
          $region603: #{review_metadata_score_forward.1} parent=595 // loop_exit
            _
        $region596: #{review_metadata_score_forward.1} parent=151 // pred_fallthru
          _
        // Predicated region
        $region615: #{review_metadata_score_forward.1} parent=151 // pred_check
          _
        $region616: #{review_metadata_score_forward.1} parent=151 // pred_check_branch
          %2112 = sbr.rel (0) target = $region618
        $region617: #{review_metadata_score_forward.1} parent=151 // pred_region
          %2113 = vsyncadd %s2067, 16
        $region618: #{review_metadata_score_forward.1} parent=151 // pred_fallthru
          _
        %s2114 = sadd.s32 %s1429, 11
        %s2115 = sld [smem:[#allocation8 + %s2114]]
        %s2116 = scalar_lea.vmem %s7, %s2115
        %s2117 = scalar_lea.vmem [#allocation3], 11
        %s2118 = scalar_lea.sflag [#allocation5], 11
        %p2120 = scmp.lt.u32.totalorder 1, 8
        %p2121 = pneg %p2120
        // Predicated region
        $region619: #{review_metadata_score_forward.1} parent=151 // pred_check
          _
        $region620: #{review_metadata_score_forward.1} parent=151 // pred_check_branch
          %2123 = sbr.rel (%p2120) target = $region622
        $region621: #{review_metadata_score_forward.1} parent=151 // pred_region
          %s2139 = sand.u32 1, 7
          %p2140 = scmp.eq.s32.totalorder %s2139, 0
          %p2141 = pneg %p2140
          // Predicated region
          $region634: #{review_metadata_score_forward.1} parent=621 // pred_check
            _
          $region635: #{review_metadata_score_forward.1} parent=621 // pred_check_branch
            %2143 = sbr.rel (%p2140) target = $region637
          $region636: #{review_metadata_score_forward.1} parent=621 // pred_region
            %s2144 = sand.u32 1, 7
            %s2145 = ssub.s32 1, %s2144
            %s2146 = scalar_lea.vmem %s2116, %s2145
            %s2147 = ssub.s32 1, %s2144
            %s2148 = scalar_lea.vmem %s2117, %s2147 [#allocation3]
            %s2149 = sshll.u32 1, %s2144
            %s2150 = ssub.s32 %s2149, 1
            loop: start=0, step=1, limit=1
            $region638: #{review_metadata_score_forward.1} parent=636 // loop_pre_header
              _
            $region639: #{review_metadata_score_forward.1} parent=636 // loop_header
              %s2152 = sphi 0, %s2156
              %p2153 = scmp.ge.s32.totalorder %s2152, 1
              %s2157 = sphi %s2146, %s2146
              %s2158 = sphi %s2148, %s2148
            $region640: #{review_metadata_score_forward.1} parent=636 // loop_header_branch
              %2155 = sbr.rel (%p2153) target = $region644
            $region641: #{review_metadata_score_forward.1} parent=636 // loop_body
              %v2159 = vld [vmem:[%s2157] sm:%s2150]
              %2160 = vst [vmem:[%s2158] sm:%s2150] %v2159
            $region642: #{review_metadata_score_forward.1} parent=636 // loop_footer
              %s2156 = sadd.s32 1, %s2152
            $region643: #{review_metadata_score_forward.1} parent=636 // loop_footer_branch
              %2151 = sbr.rel target = $region639
            $region644: #{review_metadata_score_forward.1} parent=636 // loop_exit
              _
          $region637: #{review_metadata_score_forward.1} parent=621 // pred_fallthru
            _
        $region622: #{review_metadata_score_forward.1} parent=151 // pred_fallthru
          _
        // Predicated region
        $region623: #{review_metadata_score_forward.1} parent=151 // pred_check
          %p2124 = pneg %p2120
        $region624: #{review_metadata_score_forward.1} parent=151 // pred_check_branch
          %2126 = sbr.rel (%p2124) target = $region626
        $region625: #{review_metadata_score_forward.1} parent=151 // pred_region
          %s2127 = sshll.u32 1, 1
          %s2128 = ssub.s32 %s2127, 1
          loop: start=0, step=1, limit=1
          $region627: #{review_metadata_score_forward.1} parent=625 // loop_pre_header
            _
          $region628: #{review_metadata_score_forward.1} parent=625 // loop_header
            %s2130 = sphi 0, %s2134
            %p2131 = scmp.ge.s32.totalorder %s2130, 1
            %s2135 = sphi %s2116, %s2116
            %s2136 = sphi %s2117, %s2117
          $region629: #{review_metadata_score_forward.1} parent=625 // loop_header_branch
            %2133 = sbr.rel (%p2131) target = $region633
          $region630: #{review_metadata_score_forward.1} parent=625 // loop_body
            %v2137 = vld [vmem:[%s2135] sm:%s2128]
            %2138 = vst [vmem:[%s2136] sm:%s2128] %v2137
          $region631: #{review_metadata_score_forward.1} parent=625 // loop_footer
            %s2134 = sadd.s32 1, %s2130
          $region632: #{review_metadata_score_forward.1} parent=625 // loop_footer_branch
            %2129 = sbr.rel target = $region628
          $region633: #{review_metadata_score_forward.1} parent=625 // loop_exit
            _
        $region626: #{review_metadata_score_forward.1} parent=151 // pred_fallthru
          _
        // Predicated region
        $region645: #{review_metadata_score_forward.1} parent=151 // pred_check
          _
        $region646: #{review_metadata_score_forward.1} parent=151 // pred_check_branch
          %2163 = sbr.rel (0) target = $region648
        $region647: #{review_metadata_score_forward.1} parent=151 // pred_region
          %2164 = vsyncadd %s2118, 16
        $region648: #{review_metadata_score_forward.1} parent=151 // pred_fallthru
          _
        %s2165 = sadd.s32 %s1429, 12
        %s2166 = sld [smem:[#allocation8 + %s2165]]
        %s2167 = scalar_lea.vmem %s7, %s2166
        %s2168 = scalar_lea.vmem [#allocation3], 12
        %s2169 = scalar_lea.sflag [#allocation5], 12
        %p2171 = scmp.lt.u32.totalorder 1, 8
        %p2172 = pneg %p2171
        // Predicated region
        $region649: #{review_metadata_score_forward.1} parent=151 // pred_check
          _
        $region650: #{review_metadata_score_forward.1} parent=151 // pred_check_branch
          %2174 = sbr.rel (%p2171) target = $region652
        $region651: #{review_metadata_score_forward.1} parent=151 // pred_region
          %s2190 = sand.u32 1, 7
          %p2191 = scmp.eq.s32.totalorder %s2190, 0
          %p2192 = pneg %p2191
          // Predicated region
          $region664: #{review_metadata_score_forward.1} parent=651 // pred_check
            _
          $region665: #{review_metadata_score_forward.1} parent=651 // pred_check_branch
            %2194 = sbr.rel (%p2191) target = $region667
          $region666: #{review_metadata_score_forward.1} parent=651 // pred_region
            %s2195 = sand.u32 1, 7
            %s2196 = ssub.s32 1, %s2195
            %s2197 = scalar_lea.vmem %s2167, %s2196
            %s2198 = ssub.s32 1, %s2195
            %s2199 = scalar_lea.vmem %s2168, %s2198 [#allocation3]
            %s2200 = sshll.u32 1, %s2195
            %s2201 = ssub.s32 %s2200, 1
            loop: start=0, step=1, limit=1
            $region668: #{review_metadata_score_forward.1} parent=666 // loop_pre_header
              _
            $region669: #{review_metadata_score_forward.1} parent=666 // loop_header
              %s2203 = sphi 0, %s2207
              %p2204 = scmp.ge.s32.totalorder %s2203, 1
              %s2208 = sphi %s2197, %s2197
              %s2209 = sphi %s2199, %s2199
            $region670: #{review_metadata_score_forward.1} parent=666 // loop_header_branch
              %2206 = sbr.rel (%p2204) target = $region674
            $region671: #{review_metadata_score_forward.1} parent=666 // loop_body
              %v2210 = vld [vmem:[%s2208] sm:%s2201]
              %2211 = vst [vmem:[%s2209] sm:%s2201] %v2210
            $region672: #{review_metadata_score_forward.1} parent=666 // loop_footer
              %s2207 = sadd.s32 1, %s2203
            $region673: #{review_metadata_score_forward.1} parent=666 // loop_footer_branch
              %2202 = sbr.rel target = $region669
            $region674: #{review_metadata_score_forward.1} parent=666 // loop_exit
              _
          $region667: #{review_metadata_score_forward.1} parent=651 // pred_fallthru
            _
        $region652: #{review_metadata_score_forward.1} parent=151 // pred_fallthru
          _
        // Predicated region
        $region653: #{review_metadata_score_forward.1} parent=151 // pred_check
          %p2175 = pneg %p2171
        $region654: #{review_metadata_score_forward.1} parent=151 // pred_check_branch
          %2177 = sbr.rel (%p2175) target = $region656
        $region655: #{review_metadata_score_forward.1} parent=151 // pred_region
          %s2178 = sshll.u32 1, 1
          %s2179 = ssub.s32 %s2178, 1
          loop: start=0, step=1, limit=1
          $region657: #{review_metadata_score_forward.1} parent=655 // loop_pre_header
            _
          $region658: #{review_metadata_score_forward.1} parent=655 // loop_header
            %s2181 = sphi 0, %s2185
            %p2182 = scmp.ge.s32.totalorder %s2181, 1
            %s2186 = sphi %s2167, %s2167
            %s2187 = sphi %s2168, %s2168
          $region659: #{review_metadata_score_forward.1} parent=655 // loop_header_branch
            %2184 = sbr.rel (%p2182) target = $region663
          $region660: #{review_metadata_score_forward.1} parent=655 // loop_body
            %v2188 = vld [vmem:[%s2186] sm:%s2179]
            %2189 = vst [vmem:[%s2187] sm:%s2179] %v2188
          $region661: #{review_metadata_score_forward.1} parent=655 // loop_footer
            %s2185 = sadd.s32 1, %s2181
          $region662: #{review_metadata_score_forward.1} parent=655 // loop_footer_branch
            %2180 = sbr.rel target = $region658
          $region663: #{review_metadata_score_forward.1} parent=655 // loop_exit
            _
        $region656: #{review_metadata_score_forward.1} parent=151 // pred_fallthru
          _
        // Predicated region
        $region675: #{review_metadata_score_forward.1} parent=151 // pred_check
          _
        $region676: #{review_metadata_score_forward.1} parent=151 // pred_check_branch
          %2214 = sbr.rel (0) target = $region678
        $region677: #{review_metadata_score_forward.1} parent=151 // pred_region
          %2215 = vsyncadd %s2169, 16
        $region678: #{review_metadata_score_forward.1} parent=151 // pred_fallthru
          _
        %s2216 = sadd.s32 %s1429, 13
        %s2217 = sld [smem:[#allocation8 + %s2216]]
        %s2218 = scalar_lea.vmem %s7, %s2217
        %s2219 = scalar_lea.vmem [#allocation3], 13
        %s2220 = scalar_lea.sflag [#allocation5], 13
        %p2222 = scmp.lt.u32.totalorder 1, 8
        %p2223 = pneg %p2222
        // Predicated region
        $region679: #{review_metadata_score_forward.1} parent=151 // pred_check
          _
        $region680: #{review_metadata_score_forward.1} parent=151 // pred_check_branch
          %2225 = sbr.rel (%p2222) target = $region682
        $region681: #{review_metadata_score_forward.1} parent=151 // pred_region
          %s2241 = sand.u32 1, 7
          %p2242 = scmp.eq.s32.totalorder %s2241, 0
          %p2243 = pneg %p2242
          // Predicated region
          $region694: #{review_metadata_score_forward.1} parent=681 // pred_check
            _
          $region695: #{review_metadata_score_forward.1} parent=681 // pred_check_branch
            %2245 = sbr.rel (%p2242) target = $region697
          $region696: #{review_metadata_score_forward.1} parent=681 // pred_region
            %s2246 = sand.u32 1, 7
            %s2247 = ssub.s32 1, %s2246
            %s2248 = scalar_lea.vmem %s2218, %s2247
            %s2249 = ssub.s32 1, %s2246
            %s2250 = scalar_lea.vmem %s2219, %s2249 [#allocation3]
            %s2251 = sshll.u32 1, %s2246
            %s2252 = ssub.s32 %s2251, 1
            loop: start=0, step=1, limit=1
            $region698: #{review_metadata_score_forward.1} parent=696 // loop_pre_header
              _
            $region699: #{review_metadata_score_forward.1} parent=696 // loop_header
              %s2254 = sphi 0, %s2258
              %p2255 = scmp.ge.s32.totalorder %s2254, 1
              %s2259 = sphi %s2248, %s2248
              %s2260 = sphi %s2250, %s2250
            $region700: #{review_metadata_score_forward.1} parent=696 // loop_header_branch
              %2257 = sbr.rel (%p2255) target = $region704
            $region701: #{review_metadata_score_forward.1} parent=696 // loop_body
              %v2261 = vld [vmem:[%s2259] sm:%s2252]
              %2262 = vst [vmem:[%s2260] sm:%s2252] %v2261
            $region702: #{review_metadata_score_forward.1} parent=696 // loop_footer
              %s2258 = sadd.s32 1, %s2254
            $region703: #{review_metadata_score_forward.1} parent=696 // loop_footer_branch
              %2253 = sbr.rel target = $region699
            $region704: #{review_metadata_score_forward.1} parent=696 // loop_exit
              _
          $region697: #{review_metadata_score_forward.1} parent=681 // pred_fallthru
            _
        $region682: #{review_metadata_score_forward.1} parent=151 // pred_fallthru
          _
        // Predicated region
        $region683: #{review_metadata_score_forward.1} parent=151 // pred_check
          %p2226 = pneg %p2222
        $region684: #{review_metadata_score_forward.1} parent=151 // pred_check_branch
          %2228 = sbr.rel (%p2226) target = $region686
        $region685: #{review_metadata_score_forward.1} parent=151 // pred_region
          %s2229 = sshll.u32 1, 1
          %s2230 = ssub.s32 %s2229, 1
          loop: start=0, step=1, limit=1
          $region687: #{review_metadata_score_forward.1} parent=685 // loop_pre_header
            _
          $region688: #{review_metadata_score_forward.1} parent=685 // loop_header
            %s2232 = sphi 0, %s2236
            %p2233 = scmp.ge.s32.totalorder %s2232, 1
            %s2237 = sphi %s2218, %s2218
            %s2238 = sphi %s2219, %s2219
          $region689: #{review_metadata_score_forward.1} parent=685 // loop_header_branch
            %2235 = sbr.rel (%p2233) target = $region693
          $region690: #{review_metadata_score_forward.1} parent=685 // loop_body
            %v2239 = vld [vmem:[%s2237] sm:%s2230]
            %2240 = vst [vmem:[%s2238] sm:%s2230] %v2239
          $region691: #{review_metadata_score_forward.1} parent=685 // loop_footer
            %s2236 = sadd.s32 1, %s2232
          $region692: #{review_metadata_score_forward.1} parent=685 // loop_footer_branch
            %2231 = sbr.rel target = $region688
          $region693: #{review_metadata_score_forward.1} parent=685 // loop_exit
            _
        $region686: #{review_metadata_score_forward.1} parent=151 // pred_fallthru
          _
        // Predicated region
        $region705: #{review_metadata_score_forward.1} parent=151 // pred_check
          _
        $region706: #{review_metadata_score_forward.1} parent=151 // pred_check_branch
          %2265 = sbr.rel (0) target = $region708
        $region707: #{review_metadata_score_forward.1} parent=151 // pred_region
          %2266 = vsyncadd %s2220, 16
        $region708: #{review_metadata_score_forward.1} parent=151 // pred_fallthru
          _
        %s2267 = sadd.s32 %s1429, 14
        %s2268 = sld [smem:[#allocation8 + %s2267]]
        %s2269 = scalar_lea.vmem %s7, %s2268
        %s2270 = scalar_lea.vmem [#allocation3], 14
        %s2271 = scalar_lea.sflag [#allocation5], 14
        %p2273 = scmp.lt.u32.totalorder 1, 8
        %p2274 = pneg %p2273
        // Predicated region
        $region709: #{review_metadata_score_forward.1} parent=151 // pred_check
          _
        $region710: #{review_metadata_score_forward.1} parent=151 // pred_check_branch
          %2276 = sbr.rel (%p2273) target = $region712
        $region711: #{review_metadata_score_forward.1} parent=151 // pred_region
          %s2292 = sand.u32 1, 7
          %p2293 = scmp.eq.s32.totalorder %s2292, 0
          %p2294 = pneg %p2293
          // Predicated region
          $region724: #{review_metadata_score_forward.1} parent=711 // pred_check
            _
          $region725: #{review_metadata_score_forward.1} parent=711 // pred_check_branch
            %2296 = sbr.rel (%p2293) target = $region727
          $region726: #{review_metadata_score_forward.1} parent=711 // pred_region
            %s2297 = sand.u32 1, 7
            %s2298 = ssub.s32 1, %s2297
            %s2299 = scalar_lea.vmem %s2269, %s2298
            %s2300 = ssub.s32 1, %s2297
            %s2301 = scalar_lea.vmem %s2270, %s2300 [#allocation3]
            %s2302 = sshll.u32 1, %s2297
            %s2303 = ssub.s32 %s2302, 1
            loop: start=0, step=1, limit=1
            $region728: #{review_metadata_score_forward.1} parent=726 // loop_pre_header
              _
            $region729: #{review_metadata_score_forward.1} parent=726 // loop_header
              %s2305 = sphi 0, %s2309
              %p2306 = scmp.ge.s32.totalorder %s2305, 1
              %s2310 = sphi %s2299, %s2299
              %s2311 = sphi %s2301, %s2301
            $region730: #{review_metadata_score_forward.1} parent=726 // loop_header_branch
              %2308 = sbr.rel (%p2306) target = $region734
            $region731: #{review_metadata_score_forward.1} parent=726 // loop_body
              %v2312 = vld [vmem:[%s2310] sm:%s2303]
              %2313 = vst [vmem:[%s2311] sm:%s2303] %v2312
            $region732: #{review_metadata_score_forward.1} parent=726 // loop_footer
              %s2309 = sadd.s32 1, %s2305
            $region733: #{review_metadata_score_forward.1} parent=726 // loop_footer_branch
              %2304 = sbr.rel target = $region729
            $region734: #{review_metadata_score_forward.1} parent=726 // loop_exit
              _
          $region727: #{review_metadata_score_forward.1} parent=711 // pred_fallthru
            _
        $region712: #{review_metadata_score_forward.1} parent=151 // pred_fallthru
          _
        // Predicated region
        $region713: #{review_metadata_score_forward.1} parent=151 // pred_check
          %p2277 = pneg %p2273
        $region714: #{review_metadata_score_forward.1} parent=151 // pred_check_branch
          %2279 = sbr.rel (%p2277) target = $region716
        $region715: #{review_metadata_score_forward.1} parent=151 // pred_region
          %s2280 = sshll.u32 1, 1
          %s2281 = ssub.s32 %s2280, 1
          loop: start=0, step=1, limit=1
          $region717: #{review_metadata_score_forward.1} parent=715 // loop_pre_header
            _
          $region718: #{review_metadata_score_forward.1} parent=715 // loop_header
            %s2283 = sphi 0, %s2287
            %p2284 = scmp.ge.s32.totalorder %s2283, 1
            %s2288 = sphi %s2269, %s2269
            %s2289 = sphi %s2270, %s2270
          $region719: #{review_metadata_score_forward.1} parent=715 // loop_header_branch
            %2286 = sbr.rel (%p2284) target = $region723
          $region720: #{review_metadata_score_forward.1} parent=715 // loop_body
            %v2290 = vld [vmem:[%s2288] sm:%s2281]
            %2291 = vst [vmem:[%s2289] sm:%s2281] %v2290
          $region721: #{review_metadata_score_forward.1} parent=715 // loop_footer
            %s2287 = sadd.s32 1, %s2283
          $region722: #{review_metadata_score_forward.1} parent=715 // loop_footer_branch
            %2282 = sbr.rel target = $region718
          $region723: #{review_metadata_score_forward.1} parent=715 // loop_exit
            _
        $region716: #{review_metadata_score_forward.1} parent=151 // pred_fallthru
          _
        // Predicated region
        $region735: #{review_metadata_score_forward.1} parent=151 // pred_check
          _
        $region736: #{review_metadata_score_forward.1} parent=151 // pred_check_branch
          %2316 = sbr.rel (0) target = $region738
        $region737: #{review_metadata_score_forward.1} parent=151 // pred_region
          %2317 = vsyncadd %s2271, 16
        $region738: #{review_metadata_score_forward.1} parent=151 // pred_fallthru
          _
        %s2318 = sadd.s32 %s1429, 15
        %s2319 = sld [smem:[#allocation8 + %s2318]]
        %s2320 = scalar_lea.vmem %s7, %s2319
        %s2321 = scalar_lea.vmem [#allocation3], 15
        %s2322 = scalar_lea.sflag [#allocation5], 15
        %p2324 = scmp.lt.u32.totalorder 1, 8
        %p2325 = pneg %p2324
        // Predicated region
        $region739: #{review_metadata_score_forward.1} parent=151 // pred_check
          _
        $region740: #{review_metadata_score_forward.1} parent=151 // pred_check_branch
          %2327 = sbr.rel (%p2324) target = $region742
        $region741: #{review_metadata_score_forward.1} parent=151 // pred_region
          %s2343 = sand.u32 1, 7
          %p2344 = scmp.eq.s32.totalorder %s2343, 0
          %p2345 = pneg %p2344
          // Predicated region
          $region754: #{review_metadata_score_forward.1} parent=741 // pred_check
            _
          $region755: #{review_metadata_score_forward.1} parent=741 // pred_check_branch
            %2347 = sbr.rel (%p2344) target = $region757
          $region756: #{review_metadata_score_forward.1} parent=741 // pred_region
            %s2348 = sand.u32 1, 7
            %s2349 = ssub.s32 1, %s2348
            %s2350 = scalar_lea.vmem %s2320, %s2349
            %s2351 = ssub.s32 1, %s2348
            %s2352 = scalar_lea.vmem %s2321, %s2351 [#allocation3]
            %s2353 = sshll.u32 1, %s2348
            %s2354 = ssub.s32 %s2353, 1
            loop: start=0, step=1, limit=1
            $region758: #{review_metadata_score_forward.1} parent=756 // loop_pre_header
              _
            $region759: #{review_metadata_score_forward.1} parent=756 // loop_header
              %s2356 = sphi 0, %s2360
              %p2357 = scmp.ge.s32.totalorder %s2356, 1
              %s2361 = sphi %s2350, %s2350
              %s2362 = sphi %s2352, %s2352
            $region760: #{review_metadata_score_forward.1} parent=756 // loop_header_branch
              %2359 = sbr.rel (%p2357) target = $region764
            $region761: #{review_metadata_score_forward.1} parent=756 // loop_body
              %v2363 = vld [vmem:[%s2361] sm:%s2354]
              %2364 = vst [vmem:[%s2362] sm:%s2354] %v2363
            $region762: #{review_metadata_score_forward.1} parent=756 // loop_footer
              %s2360 = sadd.s32 1, %s2356
            $region763: #{review_metadata_score_forward.1} parent=756 // loop_footer_branch
              %2355 = sbr.rel target = $region759
            $region764: #{review_metadata_score_forward.1} parent=756 // loop_exit
              _
          $region757: #{review_metadata_score_forward.1} parent=741 // pred_fallthru
            _
        $region742: #{review_metadata_score_forward.1} parent=151 // pred_fallthru
          _
        // Predicated region
        $region743: #{review_metadata_score_forward.1} parent=151 // pred_check
          %p2328 = pneg %p2324
        $region744: #{review_metadata_score_forward.1} parent=151 // pred_check_branch
          %2330 = sbr.rel (%p2328) target = $region746
        $region745: #{review_metadata_score_forward.1} parent=151 // pred_region
          %s2331 = sshll.u32 1, 1
          %s2332 = ssub.s32 %s2331, 1
          loop: start=0, step=1, limit=1
          $region747: #{review_metadata_score_forward.1} parent=745 // loop_pre_header
            _
          $region748: #{review_metadata_score_forward.1} parent=745 // loop_header
            %s2334 = sphi 0, %s2338
            %p2335 = scmp.ge.s32.totalorder %s2334, 1
            %s2339 = sphi %s2320, %s2320
            %s2340 = sphi %s2321, %s2321
          $region749: #{review_metadata_score_forward.1} parent=745 // loop_header_branch
            %2337 = sbr.rel (%p2335) target = $region753
          $region750: #{review_metadata_score_forward.1} parent=745 // loop_body
            %v2341 = vld [vmem:[%s2339] sm:%s2332]
            %2342 = vst [vmem:[%s2340] sm:%s2332] %v2341
          $region751: #{review_metadata_score_forward.1} parent=745 // loop_footer
            %s2338 = sadd.s32 1, %s2334
          $region752: #{review_metadata_score_forward.1} parent=745 // loop_footer_branch
            %2333 = sbr.rel target = $region748
          $region753: #{review_metadata_score_forward.1} parent=745 // loop_exit
            _
        $region746: #{review_metadata_score_forward.1} parent=151 // pred_fallthru
          _
        // Predicated region
        $region765: #{review_metadata_score_forward.1} parent=151 // pred_check
          _
        $region766: #{review_metadata_score_forward.1} parent=151 // pred_check_branch
          %2367 = sbr.rel (0) target = $region768
        $region767: #{review_metadata_score_forward.1} parent=151 // pred_region
          %2368 = vsyncadd %s2322, 16
        $region768: #{review_metadata_score_forward.1} parent=151 // pred_fallthru
          _
        %s2369 = smul.u32 1, 1
        %s2370 = sshll.u32 %s2369, 4
        %2371 = dma.done [#allocation4], %s2370
        %s2372 = sshll.u32 %s2369, 4
        %2373 = dma.done %s1449, %s2372
        %s2374 = sshll.u32 %s2369, 4
        %2375 = dma.done %s1466, %s2374
        %s2376 = sshll.u32 %s2369, 4
        %2377 = dma.done %s1483, %s2376
        %s2378 = sshll.u32 %s2369, 4
        %2379 = dma.done %s1500, %s2378
        %s2380 = sshll.u32 %s2369, 4
        %2381 = dma.done %s1517, %s2380
        %s2382 = sshll.u32 %s2369, 4
        %2383 = dma.done %s1534, %s2382
        %s2384 = sshll.u32 %s2369, 4
        %2385 = dma.done %s1551, %s2384
        %s2386 = sshll.u32 %s2369, 4
        %2387 = dma.done [#allocation5], %s2386
        %s2388 = sshll.u32 %s2369, 4
        %2389 = dma.done %s1614, %s2388
        %s2390 = sshll.u32 %s2369, 4
        %2391 = dma.done %s1664, %s2390
        %s2392 = sshll.u32 %s2369, 4
        %2393 = dma.done %s1714, %s2392
        %s2394 = sshll.u32 %s2369, 4
        %2395 = dma.done %s1764, %s2394
        %s2396 = sshll.u32 %s2369, 4
        %2397 = dma.done %s1814, %s2396
        %s2398 = sshll.u32 %s2369, 4
        %2399 = dma.done %s1864, %s2398
        %s2400 = sshll.u32 %s2369, 4
        %2401 = dma.done %s1914, %s2400
        %s2402 = sshll.u32 %s2369, 4
        %2403 = dma.done %s1965, %s2402
        %s2404 = sshll.u32 %s2369, 4
        %2405 = dma.done %s2016, %s2404
        %s2406 = sshll.u32 %s2369, 4
        %2407 = dma.done %s2067, %s2406
        %s2408 = sshll.u32 %s2369, 4
        %2409 = dma.done %s2118, %s2408
        %s2410 = sshll.u32 %s2369, 4
        %2411 = dma.done %s2169, %s2410
        %s2412 = sshll.u32 %s2369, 4
        %2413 = dma.done %s2220, %s2412
        %s2414 = sshll.u32 %s2369, 4
        %2415 = dma.done %s2271, %s2414
        %s2416 = sshll.u32 %s2369, 4
        %2417 = dma.done %s2322, %s2416
        %v2418 = vld [vmem:[#allocation2] sm:$0xff]
        %v2419 = vld [vmem:[%s13] sm:$0xff]
        %v2420 = vadd.f32 %v2418, %v2419
        %v2421 = vld [vmem:[#allocation10] sm:$0x1]
        %v2422 = vld [vmem:[#allocation12] sm:$0x1]
        %2423 = vadd.xlane.f32.xlu0 %v2420
        %v2424 = vpop.xlane.xlu0 %2423
        %v2425 = vrcp.pop 128.0
        %v2426 = vmul.f32 %v2424, %v2425
        %v2427 = vsub.f32 %v2420, %v2426
        %v2428 = vmul.f32 %v2427, %v2427
        %2429 = vadd.xlane.f32.xlu0 %v2428
        %v2430 = vpop.xlane.xlu0 %2429
        %v2431 = vmul.f32 %v2430, %v2425
        %v2432 = vadd.f32 %v2431, 1e-12
        %v2433 = vrsqrt.pop %v2432
        %v2434 = vmul.f32 %v2427, %v2433
        %v2436 = vlaneseq
        %v2437 = vshrl.u32 %v2436, 7
        %v2438 = vsub.s32 0, %v2437
        %v2439 = vrot.slane %v2421, %v2438
        %v2441 = vmul.f32 %v2434, %v2439
        %v2443 = vlaneseq
        %v2444 = vshrl.u32 %v2443, 7
        %v2445 = vsub.s32 0, %v2444
        %v2446 = vrot.slane %v2422, %v2445
        %v2448 = vadd.f32 %v2441, %v2446
        %v2449 = vld [vmem:[#allocation14] sm:$0xff]
        %v2450 = vld [vmem:[#allocation14 + $0x8] sm:$0xf]
        %v2451 = vld [vmem:[#allocation14 + $0xc] sm:$0xff]
        %v2452 = vld [vmem:[#allocation14 + $0x14] sm:$0xf]
        %v2453 = vld [vmem:[#allocation14 + $0x18] sm:$0xff]
        %v2454 = vld [vmem:[#allocation14 + $0x20] sm:$0xf]
        %v2455 = vld [vmem:[#allocation14 + $0x24] sm:$0xff]
        %v2456 = vld [vmem:[#allocation14 + $0x2c] sm:$0xf]
        %v2457 = vld [vmem:[#allocation14 + $0x30] sm:$0xff]
        %v2458 = vld [vmem:[#allocation14 + $0x38] sm:$0xf]
        %v2459 = vld [vmem:[#allocation14 + $0x3c] sm:$0xff]
        %v2460 = vld [vmem:[#allocation14 + $0x44] sm:$0xf]
        %v2461 = vld [vmem:[#allocation14 + $0x48] sm:$0xff]
        %v2462 = vld [vmem:[#allocation14 + $0x50] sm:$0xf]
        %v2463 = vld [vmem:[#allocation14 + $0x54] sm:$0xff]
        %v2464 = vld [vmem:[#allocation14 + $0x5c] sm:$0xf]
        %v2465 = vld [vmem:[#allocation14 + $0x60] sm:$0xff]
        %v2466 = vld [vmem:[#allocation14 + $0x68] sm:$0xf]
        %v2467 = vld [vmem:[#allocation14 + $0x6c] sm:$0xff]
        %v2468 = vld [vmem:[#allocation14 + $0x74] sm:$0xf]
        %v2469 = vld [vmem:[#allocation14 + $0x78] sm:$0xff]
        %v2470 = vld [vmem:[#allocation14 + $0x80] sm:$0xf]
        %v2471 = vld [vmem:[#allocation14 + $0x84] sm:$0xff]
        %v2472 = vld [vmem:[#allocation14 + $0x8c] sm:$0xf]
        %v2473 = vld [vmem:[#allocation14 + $0x90] sm:$0xff]
        %v2474 = vld [vmem:[#allocation14 + $0x98] sm:$0xf]
        %v2475 = vld [vmem:[#allocation14 + $0x9c] sm:$0xff]
        %v2476 = vld [vmem:[#allocation14 + $0xa4] sm:$0xf]
        %v2477 = vld [vmem:[#allocation14 + $0xa8] sm:$0xff]
        %v2478 = vld [vmem:[#allocation14 + $0xb0] sm:$0xf]
        %v2479 = vld [vmem:[#allocation14 + $0xb4] sm:$0xff]
        %v2480 = vld [vmem:[#allocation14 + $0xbc] sm:$0xf]
        %v2481 = vpack.c.bf16 %v2448, %v2448
        %v2482 = vld [vmem:[#allocation15] sm:$0x7]
        %v2484 = vlaneseq
        %v2485 = vshrl.u32 %v2484, 7
        %v2486 = vsub.s32 0, %v2485
        %v2487 = vrot.slane %v2482, %v2486
        %v2488 = vlaneseq
        %v2489 = vshrl.u32 %v2488, 7
        %v2490 = vsub.s32 1, %v2489
        %v2491 = vrot.slane %v2482, %v2490
        %v2492 = vlaneseq
        %v2493 = vshrl.u32 %v2492, 7
        %v2494 = vsub.s32 2, %v2493
        %v2495 = vrot.slane %v2482, %v2494
        %v2531 = vunpack.c.l.b16 %v2449
        %v2532 = vunpack.c.h.b16 %v2449
        %v2533 = vunpack.c.l.b16 %v2450
        %v2534 = vunpack.c.l.b16 %v2451
        %v2535 = vunpack.c.h.b16 %v2451
        %v2536 = vunpack.c.l.b16 %v2452
        %v2537 = vunpack.c.l.b16 %v2453
        %v2538 = vunpack.c.h.b16 %v2453
        %v2539 = vunpack.c.l.b16 %v2454
        %v2540 = vunpack.c.l.b16 %v2455
        %v2541 = vunpack.c.h.b16 %v2455
        %v2542 = vunpack.c.l.b16 %v2456
        %v2543 = vunpack.c.l.b16 %v2457
        %v2544 = vunpack.c.h.b16 %v2457
        %v2545 = vunpack.c.l.b16 %v2458
        %v2546 = vunpack.c.l.b16 %v2459
        %v2547 = vunpack.c.h.b16 %v2459
        %v2548 = vunpack.c.l.b16 %v2460
        %v2549 = vunpack.c.l.b16 %v2461
        %v2550 = vunpack.c.h.b16 %v2461
        %v2551 = vunpack.c.l.b16 %v2462
        %v2552 = vunpack.c.l.b16 %v2463
        %v2553 = vunpack.c.h.b16 %v2463
        %v2554 = vunpack.c.l.b16 %v2464
        %v2555 = vunpack.c.l.b16 %v2465
        %v2556 = vunpack.c.h.b16 %v2465
        %v2557 = vunpack.c.l.b16 %v2466
        %v2558 = vunpack.c.l.b16 %v2467
        %v2559 = vunpack.c.h.b16 %v2467
        %v2560 = vunpack.c.l.b16 %v2468
        %v2561 = vunpack.c.l.b16 %v2469
        %v2562 = vunpack.c.h.b16 %v2469
        %v2563 = vunpack.c.l.b16 %v2470
        %v2564 = vunpack.c.l.b16 %v2471
        %v2565 = vunpack.c.h.b16 %v2471
        %v2566 = vunpack.c.l.b16 %v2472
        %v2567 = vunpack.c.l.b16 %v2473
        %v2568 = vunpack.c.h.b16 %v2473
        %v2569 = vunpack.c.l.b16 %v2474
        %v2570 = vunpack.c.l.b16 %v2475
        %v2571 = vunpack.c.h.b16 %v2475
        %v2572 = vunpack.c.l.b16 %v2476
        %v2573 = vunpack.c.l.b16 %v2477
        %v2574 = vunpack.c.h.b16 %v2477
        %v2575 = vunpack.c.l.b16 %v2478
        %v2576 = vunpack.c.l.b16 %v2479
        %v2577 = vunpack.c.h.b16 %v2479
        %v2578 = vunpack.c.l.b16 %v2480
        %v2579 = vpack.c.b16 %v2534, %v2531
        %v2580 = vpack.c.b16 %v2535, %v2532
        %v2581 = vpack.c.b16 %v2536, %v2533
        %v2582 = vpack.c.b16 %v2540, %v2537
        %v2583 = vpack.c.b16 %v2541, %v2538
        %v2584 = vpack.c.b16 %v2542, %v2539
        %v2585 = vpack.c.b16 %v2546, %v2543
        %v2586 = vpack.c.b16 %v2547, %v2544
        %v2587 = vpack.c.b16 %v2548, %v2545
        %v2588 = vpack.c.b16 %v2552, %v2549
        %v2589 = vpack.c.b16 %v2553, %v2550
        %v2590 = vpack.c.b16 %v2554, %v2551
        %v2591 = vpack.c.b16 %v2558, %v2555
        %v2592 = vpack.c.b16 %v2559, %v2556
        %v2593 = vpack.c.b16 %v2560, %v2557
        %v2594 = vpack.c.b16 %v2564, %v2561
        %v2595 = vpack.c.b16 %v2565, %v2562
        %v2596 = vpack.c.b16 %v2566, %v2563
        %v2597 = vpack.c.b16 %v2570, %v2567
        %v2598 = vpack.c.b16 %v2571, %v2568
        %v2599 = vpack.c.b16 %v2572, %v2569
        %v2600 = vpack.c.b16 %v2576, %v2573
        %v2601 = vpack.c.b16 %v2577, %v2574
        %v2602 = vpack.c.b16 %v2578, %v2575
        %2627 = vmatprep.subr.bf16.mxu0 %v2601
        %2628 = vmatpush1.bf16.msra.mxu0 %v2600
        %2629 = vmatprep.subr.bf16.mxu0 %v2598
        %2630 = vmatpush1.bf16.msra.mxu0 %v2597
        %2631 = vmatprep.subr.bf16.mxu0 %v2595
        %2632 = vmatpush1.bf16.msra.mxu0 %v2594
        %2633 = vmatprep.subr.bf16.mxu0 %v2592
        %2634 = vmatpush1.bf16.msra.mxu0 %v2591
        %2635 = vmatprep.subr.bf16.mxu0 %v2589
        %2636 = vmatpush1.bf16.msra.mxu0 %v2588
        %2637 = vmatprep.subr.bf16.mxu0 %v2586
        %2638 = vmatpush1.bf16.msra.mxu0 %v2585
        %2639 = vmatprep.subr.bf16.mxu0 %v2583
        %2640 = vmatpush1.bf16.msra.mxu0 %v2582
        %2641 = vmatprep.subr.bf16.mxu0 %v2580
        %2642 = vmatpush1.bf16.msra.mxu0 %v2579
        %2643 = vmatprep.subr.bf16.mxu0 0
        %2644 = vmatpush2.bf16.msra.mxu0 0
        %2645 = vmatprep.subr.bf16.mxu0 0
        %2646 = vmatpush2.bf16.msra.mxu0 0
        %2647 = vmatprep.subr.bf16.mxu0 0
        %2648 = vmatpush2.bf16.msra.mxu0 0
        %2649 = vmatprep.subr.bf16.mxu0 0
        %2650 = vmatpush2.bf16.msra.mxu0 0
        %2651 = vmatprep.subr.bf16.mxu0 0
        %2652 = vmatpush2.bf16.msra.mxu0 0
        %2653 = vmatprep.subr.bf16.mxu0 0
        %2654 = vmatpush2.bf16.msra.mxu0 0
        %2655 = vmatprep.subr.bf16.mxu0 0
        %2656 = vmatpush2.bf16.msra.mxu0 0
        %2657 = vmatprep.subr.bf16.mxu0 0
        %2658 = vmatpush2.bf16.msra.mxu0 0
        %2659 = vmatprep.mubr.bf16.mxu0 0
        %2660 = vmatmul.mubr.bf16.gmra.mxu0 %v2481
        %v2661 = vpop.f32.mrf.mxu0
        %v2662 = vadd.f32 %v2487, %v2661
        %v2663 = vpop.f32.mrf.mxu0
        %v2664 = vadd.f32 %v2491, %v2663
        %v2665 = vpop.f32.mrf.mxu0
        %v2666 = vpop.f32.mrf.mxu0
        %2667 = vdwg.mxu0
        %2668 = vmatprep.subr.bf16.mxu0 0
        %2669 = vmatpush1.bf16.msra.mxu0 %v2602
        %2670 = vmatprep.subr.bf16.mxu0 0
        %2671 = vmatpush1.bf16.msra.mxu0 %v2599
        %2672 = vmatprep.subr.bf16.mxu0 0
        %2673 = vmatpush1.bf16.msra.mxu0 %v2596
        %2674 = vmatprep.subr.bf16.mxu0 0
        %2675 = vmatpush1.bf16.msra.mxu0 %v2593
        %2676 = vmatprep.subr.bf16.mxu0 0
        %2677 = vmatpush1.bf16.msra.mxu0 %v2590
        %2678 = vmatprep.subr.bf16.mxu0 0
        %2679 = vmatpush1.bf16.msra.mxu0 %v2587
        %2680 = vmatprep.subr.bf16.mxu0 0
        %2681 = vmatpush1.bf16.msra.mxu0 %v2584
        %2682 = vmatprep.subr.bf16.mxu0 0
        %2683 = vmatpush1.bf16.msra.mxu0 %v2581
        %2684 = vmatprep.subr.bf16.mxu0 0
        %2685 = vmatpush2.bf16.msra.mxu0 0
        %2686 = vmatprep.subr.bf16.mxu0 0
        %2687 = vmatpush2.bf16.msra.mxu0 0
        %2688 = vmatprep.subr.bf16.mxu0 0
        %2689 = vmatpush2.bf16.msra.mxu0 0
        %2690 = vmatprep.subr.bf16.mxu0 0
        %2691 = vmatpush2.bf16.msra.mxu0 0
        %2692 = vmatprep.subr.bf16.mxu0 0
        %2693 = vmatpush2.bf16.msra.mxu0 0
        %2694 = vmatprep.subr.bf16.mxu0 0
        %2695 = vmatpush2.bf16.msra.mxu0 0
        %2696 = vmatprep.subr.bf16.mxu0 0
        %2697 = vmatpush2.bf16.msra.mxu0 0
        %2698 = vmatprep.subr.bf16.mxu0 0
        %2699 = vmatpush2.bf16.msra.mxu0 0
        %2700 = vmatprep.mubr.bf16.mxu0 0
        %2701 = vmatmul.mubr.bf16.gmra.mxu0 %v2481
        %v2702 = vpop.f32.mrf.mxu0
        %v2703 = vadd.f32 %v2495, %v2702
        %v2704 = vpop.f32.mrf.mxu0
        %v2705 = vpop.f32.mrf.mxu0
        %v2706 = vpop.f32.mrf.mxu0
        %2707 = vdwg.mxu0
        %v2708 = vpack.c.bf16 %v2662, %v2662
        %v2709 = vpack.c.bf16 %v2664, %v2664
        %2710 = vmatprep.subr.bf16.mxu0 0
        %2711 = vmatpush1.bf16.xpose.msra.mxu0 0
        %2712 = vmatprep.subr.bf16.mxu0 0
        %2713 = vmatpush1.bf16.xpose.msra.mxu0 0
        %2714 = vmatprep.subr.bf16.mxu0 0
        %2715 = vmatpush1.bf16.xpose.msra.mxu0 0
        %2716 = vmatprep.subr.bf16.mxu0 0
        %2717 = vmatpush1.bf16.xpose.msra.mxu0 0
        %2718 = vmatprep.subr.bf16.mxu0 0
        %2719 = vmatpush1.bf16.xpose.msra.mxu0 0
        %2720 = vmatprep.subr.bf16.mxu0 0
        %2721 = vmatpush1.bf16.xpose.msra.mxu0 0
        %2722 = vmatprep.subr.bf16.mxu0 0
        %2723 = vmatpush1.bf16.xpose.msra.mxu0 0
        %2724 = vmatprep.subr.bf16.mxu0 0
        %2725 = vmatpush1.bf16.xpose.msra.mxu0 %v2709
        %2726 = vmatprep.subr.bf16.mxu0 0
        %2727 = vmatpush2.bf16.xpose.msra.mxu0 0
        %2728 = vmatprep.subr.bf16.mxu0 0
        %2729 = vmatpush2.bf16.xpose.msra.mxu0 0
        %2730 = vmatprep.subr.bf16.mxu0 0
        %2731 = vmatpush2.bf16.xpose.msra.mxu0 0
        %2732 = vmatprep.subr.bf16.mxu0 0
        %2733 = vmatpush2.bf16.xpose.msra.mxu0 0
        %2734 = vmatprep.subr.bf16.mxu0 0
        %2735 = vmatpush2.bf16.xpose.msra.mxu0 0
        %2736 = vmatprep.subr.bf16.mxu0 0
        %2737 = vmatpush2.bf16.xpose.msra.mxu0 0
        %2738 = vmatprep.subr.bf16.mxu0 0
        %2739 = vmatpush2.bf16.xpose.msra.mxu0 0
        %2740 = vmatprep.subr.bf16.mxu0 0
        %2741 = vmatpush2.bf16.xpose.msra.mxu0 0
        %2742 = vmatprep.mubr.bf16.mxu0 0
        %2743 = vmatmul.mubr.bf16.gmra.mxu0 %v2708
        %v2744 = vpop.f32.mrf.mxu0
        %v2745 = vadd.f32 0.0, %v2744
        %v2746 = vpop.f32.mrf.mxu0
        %v2747 = vpop.f32.mrf.mxu0
        %v2748 = vpop.f32.mrf.mxu0
        %2749 = vdwg.mxu0
        %v2750 = vmul.f32 %v2745, 0.088388346
        %v2751 = vld [vmem:[%s1417] sm:$0x1]
        %v2753 = vlaneseq
        %v2754 = vshrl.u32 %v2753, 7
        %v2755 = vsub.s32 0, %v2754
        %v2756 = vrot.slane %v2751, %v2755
        %v2758 = vadd.f32 %v2750, %v2756
        %vm2759 = vcmask 64512
        %v2760 = vsel %vm2759, %v2758, -inf
        %2761 = vmax.xlane.f32.xlu0 %v2760
        %v2762 = vpop.xlane.xlu0 %2761
        %v2763 = vsub.f32 %v2758, %v2762
        %v2764 = vmul.f32 %v2763, 1.442695
        %v2765 = vpow.pop %v2764
        %v2766 = vsel %vm2759, %v2765, 0.0
        %2767 = vadd.xlane.f32.xlu0 %v2766
        %v2768 = vpop.xlane.xlu0 %2767
        %v2769 = vrcp.pop %v2768
        %v2770 = vmul.f32 %v2765, %v2769
        %v2771 = vpack.c.bf16 %v2770, %v2770
        %v2772 = vpack.c.bf16 %v2703, %v2703
        %v2774 = vsel %vm2759, %v2771, 0
        %vm2776 = vcmask 1043456
        %v2778 = vsel %vm2776, %v2772, 0
        %2780 = vmatprep.subr.bf16.mxu0 0
        %2781 = vmatpush1.bf16.msra.mxu0 0
        %2782 = vmatprep.subr.bf16.mxu0 0
        %2783 = vmatpush1.bf16.msra.mxu0 0
        %2784 = vmatprep.subr.bf16.mxu0 0
        %2785 = vmatpush1.bf16.msra.mxu0 0
        %2786 = vmatprep.subr.bf16.mxu0 0
        %2787 = vmatpush1.bf16.msra.mxu0 0
        %2788 = vmatprep.subr.bf16.mxu0 0
        %2789 = vmatpush1.bf16.msra.mxu0 0
        %2790 = vmatprep.subr.bf16.mxu0 0
        %2791 = vmatpush1.bf16.msra.mxu0 0
        %2792 = vmatprep.subr.bf16.mxu0 0
        %2793 = vmatpush1.bf16.msra.mxu0 0
        %2794 = vmatprep.subr.bf16.mxu0 0
        %2795 = vmatpush1.bf16.msra.mxu0 %v2778
        %2796 = vmatprep.subr.bf16.mxu0 0
        %2797 = vmatpush2.bf16.msra.mxu0 0
        %2798 = vmatprep.subr.bf16.mxu0 0
        %2799 = vmatpush2.bf16.msra.mxu0 0
        %2800 = vmatprep.subr.bf16.mxu0 0
        %2801 = vmatpush2.bf16.msra.mxu0 0
        %2802 = vmatprep.subr.bf16.mxu0 0
        %2803 = vmatpush2.bf16.msra.mxu0 0
        %2804 = vmatprep.subr.bf16.mxu0 0
        %2805 = vmatpush2.bf16.msra.mxu0 0
        %2806 = vmatprep.subr.bf16.mxu0 0
        %2807 = vmatpush2.bf16.msra.mxu0 0
        %2808 = vmatprep.subr.bf16.mxu0 0
        %2809 = vmatpush2.bf16.msra.mxu0 0
        %2810 = vmatprep.subr.bf16.mxu0 0
        %2811 = vmatpush2.bf16.msra.mxu0 0
        %2812 = vmatprep.mubr.bf16.mxu0 0
        %2813 = vmatmul.mubr.bf16.gmra.mxu0 %v2774
        %v2814 = vpop.f32.mrf.mxu0
        %v2815 = vadd.f32 0.0, %v2814
        %v2816 = vpop.f32.mrf.mxu0
        %v2817 = vpop.f32.mrf.mxu0
        %v2818 = vpop.f32.mrf.mxu0
        %2819 = vdwg.mxu0
        %v2820 = vld [vmem:[#allocation17] sm:$0xf]
        %v2821 = vld [vmem:[#allocation17 + $0x4] sm:$0xf]
        %v2822 = vld [vmem:[#allocation17 + $0x8] sm:$0xf]
        %v2823 = vld [vmem:[#allocation17 + $0xc] sm:$0xf]
        %v2824 = vld [vmem:[#allocation17 + $0x10] sm:$0xf]
        %v2825 = vld [vmem:[#allocation17 + $0x14] sm:$0xf]
        %v2826 = vld [vmem:[#allocation17 + $0x18] sm:$0xf]
        %v2827 = vld [vmem:[#allocation17 + $0x1c] sm:$0xf]
        %v2828 = vld [vmem:[#allocation17 + $0x20] sm:$0xf]
        %v2829 = vld [vmem:[#allocation17 + $0x24] sm:$0xf]
        %v2830 = vld [vmem:[#allocation17 + $0x28] sm:$0xf]
        %v2831 = vld [vmem:[#allocation17 + $0x2c] sm:$0xf]
        %v2832 = vld [vmem:[#allocation17 + $0x30] sm:$0xf]
        %v2833 = vld [vmem:[#allocation17 + $0x34] sm:$0xf]
        %v2834 = vld [vmem:[#allocation17 + $0x38] sm:$0xf]
        %v2835 = vld [vmem:[#allocation17 + $0x3c] sm:$0xf]
        %v2836 = vpack.c.bf16 %v2815, %v2815
        %v2853 = vunpack.c.l.b16 %v2820
        %v2854 = vunpack.c.l.b16 %v2821
        %v2855 = vunpack.c.l.b16 %v2822
        %v2856 = vunpack.c.l.b16 %v2823
        %v2857 = vunpack.c.l.b16 %v2824
        %v2858 = vunpack.c.l.b16 %v2825
        %v2859 = vunpack.c.l.b16 %v2826
        %v2860 = vunpack.c.l.b16 %v2827
        %v2861 = vunpack.c.l.b16 %v2828
        %v2862 = vunpack.c.l.b16 %v2829
        %v2863 = vunpack.c.l.b16 %v2830
        %v2864 = vunpack.c.l.b16 %v2831
        %v2865 = vunpack.c.l.b16 %v2832
        %v2866 = vunpack.c.l.b16 %v2833
        %v2867 = vunpack.c.l.b16 %v2834
        %v2868 = vunpack.c.l.b16 %v2835
        %v2869 = vpack.c.b16 %v2854, %v2853
        %v2870 = vpack.c.b16 %v2856, %v2855
        %v2871 = vpack.c.b16 %v2858, %v2857
        %v2872 = vpack.c.b16 %v2860, %v2859
        %v2873 = vpack.c.b16 %v2862, %v2861
        %v2874 = vpack.c.b16 %v2864, %v2863
        %v2875 = vpack.c.b16 %v2866, %v2865
        %v2876 = vpack.c.b16 %v2868, %v2867
        %2885 = vmatprep.subr.bf16.mxu0 0
        %2886 = vmatpush1.bf16.msra.mxu0 %v2876
        %2887 = vmatprep.subr.bf16.mxu0 0
        %2888 = vmatpush1.bf16.msra.mxu0 %v2875
        %2889 = vmatprep.subr.bf16.mxu0 0
        %2890 = vmatpush1.bf16.msra.mxu0 %v2874
        %2891 = vmatprep.subr.bf16.mxu0 0
        %2892 = vmatpush1.bf16.msra.mxu0 %v2873
        %2893 = vmatprep.subr.bf16.mxu0 0
        %2894 = vmatpush1.bf16.msra.mxu0 %v2872
        %2895 = vmatprep.subr.bf16.mxu0 0
        %2896 = vmatpush1.bf16.msra.mxu0 %v2871
        %2897 = vmatprep.subr.bf16.mxu0 0
        %2898 = vmatpush1.bf16.msra.mxu0 %v2870
        %2899 = vmatprep.subr.bf16.mxu0 0
        %2900 = vmatpush1.bf16.msra.mxu0 %v2869
        %2901 = vmatprep.subr.bf16.mxu0 0
        %2902 = vmatpush2.bf16.msra.mxu0 0
        %2903 = vmatprep.subr.bf16.mxu0 0
        %2904 = vmatpush2.bf16.msra.mxu0 0
        %2905 = vmatprep.subr.bf16.mxu0 0
        %2906 = vmatpush2.bf16.msra.mxu0 0
        %2907 = vmatprep.subr.bf16.mxu0 0
        %2908 = vmatpush2.bf16.msra.mxu0 0
        %2909 = vmatprep.subr.bf16.mxu0 0
        %2910 = vmatpush2.bf16.msra.mxu0 0
        %2911 = vmatprep.subr.bf16.mxu0 0
        %2912 = vmatpush2.bf16.msra.mxu0 0
        %2913 = vmatprep.subr.bf16.mxu0 0
        %2914 = vmatpush2.bf16.msra.mxu0 0
        %2915 = vmatprep.subr.bf16.mxu0 0
        %2916 = vmatpush2.bf16.msra.mxu0 0
        %2917 = vmatprep.mubr.bf16.mxu0 0
        %2918 = vmatmul.mubr.bf16.gmra.mxu0 %v2836
        %v2919 = vpop.f32.mrf.mxu0
        %v2920 = vadd.f32 0.0, %v2919
        %v2921 = vpop.f32.mrf.mxu0
        %v2922 = vpop.f32.mrf.mxu0
        %v2923 = vpop.f32.mrf.mxu0
        %2924 = vdwg.mxu0
        %v2925 = vadd.f32 %v2448, %v2920
        %v2926 = vld [vmem:[#allocation18] sm:$0x1]
        %v2928 = vlaneseq
        %v2929 = vshrl.u32 %v2928, 7
        %v2930 = vsub.s32 0, %v2929
        %v2931 = vrot.slane %v2926, %v2930
        %v2933 = vadd.f32 %v2925, %v2931
        %v2934 = vld [vmem:[#allocation20] sm:$0x1]
        %v2935 = vld [vmem:[#allocation21] sm:$0x1]
        %2936 = vadd.xlane.f32.xlu0 %v2933
        %v2937 = vpop.xlane.xlu0 %2936
        %v2938 = vmul.f32 %v2937, %v2425
        %v2939 = vsub.f32 %v2933, %v2938
        %v2940 = vmul.f32 %v2939, %v2939
        %2941 = vadd.xlane.f32.xlu0 %v2940
        %v2942 = vpop.xlane.xlu0 %2941
        %v2943 = vmul.f32 %v2942, %v2425
        %v2944 = vadd.f32 %v2943, 1e-12
        %v2945 = vrsqrt.pop %v2944
        %v2946 = vmul.f32 %v2939, %v2945
        %v2948 = vlaneseq
        %v2949 = vshrl.u32 %v2948, 7
        %v2950 = vsub.s32 0, %v2949
        %v2951 = vrot.slane %v2934, %v2950
        %v2953 = vmul.f32 %v2946, %v2951
        %v2955 = vlaneseq
        %v2956 = vshrl.u32 %v2955, 7
        %v2957 = vsub.s32 0, %v2956
        %v2958 = vrot.slane %v2935, %v2957
        %v2960 = vadd.f32 %v2953, %v2958
        %v2961 = vld [vmem:[#allocation23] sm:$0xff]
        %v2962 = vld [vmem:[#allocation23 + $0x8] sm:$0xff]
        %v2963 = vld [vmem:[#allocation23 + $0x10] sm:$0xff]
        %v2964 = vld [vmem:[#allocation23 + $0x18] sm:$0xff]
        %v2965 = vld [vmem:[#allocation23 + $0x20] sm:$0xff]
        %v2966 = vld [vmem:[#allocation23 + $0x28] sm:$0xff]
        %v2967 = vld [vmem:[#allocation23 + $0x30] sm:$0xff]
        %v2968 = vld [vmem:[#allocation23 + $0x38] sm:$0xff]
        %v2969 = vld [vmem:[#allocation23 + $0x40] sm:$0xff]
        %v2970 = vld [vmem:[#allocation23 + $0x48] sm:$0xff]
        %v2971 = vld [vmem:[#allocation23 + $0x50] sm:$0xff]
        %v2972 = vld [vmem:[#allocation23 + $0x58] sm:$0xff]
        %v2973 = vld [vmem:[#allocation23 + $0x60] sm:$0xff]
        %v2974 = vld [vmem:[#allocation23 + $0x68] sm:$0xff]
        %v2975 = vld [vmem:[#allocation23 + $0x70] sm:$0xff]
        %v2976 = vld [vmem:[#allocation23 + $0x78] sm:$0xff]
        %v2977 = vld [vmem:[#allocation23 + $0x80] sm:$0xff]
        %v2978 = vld [vmem:[#allocation23 + $0x88] sm:$0xff]
        %v2979 = vld [vmem:[#allocation23 + $0x90] sm:$0xff]
        %v2980 = vld [vmem:[#allocation23 + $0x98] sm:$0xff]
        %v2981 = vld [vmem:[#allocation23 + $0xa0] sm:$0xff]
        %v2982 = vld [vmem:[#allocation23 + $0xa8] sm:$0xff]
        %v2983 = vld [vmem:[#allocation23 + $0xb0] sm:$0xff]
        %v2984 = vld [vmem:[#allocation23 + $0xb8] sm:$0xff]
        %v2985 = vld [vmem:[#allocation23 + $0xc0] sm:$0xff]
        %v2986 = vld [vmem:[#allocation23 + $0xc8] sm:$0xff]
        %v2987 = vld [vmem:[#allocation23 + $0xd0] sm:$0xff]
        %v2988 = vld [vmem:[#allocation23 + $0xd8] sm:$0xff]
        %v2989 = vld [vmem:[#allocation23 + $0xe0] sm:$0xff]
        %v2990 = vld [vmem:[#allocation23 + $0xe8] sm:$0xff]
        %v2991 = vld [vmem:[#allocation23 + $0xf0] sm:$0xff]
        %v2992 = vld [vmem:[#allocation23 + $0xf8] sm:$0xff]
        %v2993 = vpack.c.bf16 %v2960, %v2960
        %v2994 = vld [vmem:[%s33] sm:$0xf]
        %v2996 = vlaneseq
        %v2997 = vshrl.u32 %v2996, 7
        %v2998 = vsub.s32 0, %v2997
        %v2999 = vrot.slane %v2994, %v2998
        %v3000 = vlaneseq
        %v3001 = vshrl.u32 %v3000, 7
        %v3002 = vsub.s32 1, %v3001
        %v3003 = vrot.slane %v2994, %v3002
        %v3004 = vlaneseq
        %v3005 = vshrl.u32 %v3004, 7
        %v3006 = vsub.s32 2, %v3005
        %v3007 = vrot.slane %v2994, %v3006
        %v3008 = vlaneseq
        %v3009 = vshrl.u32 %v3008, 7
        %v3010 = vsub.s32 3, %v3009
        %v3011 = vrot.slane %v2994, %v3010
        %v3048 = vunpack.c.l.b16 %v2961
        %v3049 = vunpack.c.h.b16 %v2961
        %v3050 = vunpack.c.l.b16 %v2962
        %v3051 = vunpack.c.h.b16 %v2962
        %v3052 = vunpack.c.l.b16 %v2963
        %v3053 = vunpack.c.h.b16 %v2963
        %v3054 = vunpack.c.l.b16 %v2964
        %v3055 = vunpack.c.h.b16 %v2964
        %v3056 = vunpack.c.l.b16 %v2965
        %v3057 = vunpack.c.h.b16 %v2965
        %v3058 = vunpack.c.l.b16 %v2966
        %v3059 = vunpack.c.h.b16 %v2966
        %v3060 = vunpack.c.l.b16 %v2967
        %v3061 = vunpack.c.h.b16 %v2967
        %v3062 = vunpack.c.l.b16 %v2968
        %v3063 = vunpack.c.h.b16 %v2968
        %v3064 = vunpack.c.l.b16 %v2969
        %v3065 = vunpack.c.h.b16 %v2969
        %v3066 = vunpack.c.l.b16 %v2970
        %v3067 = vunpack.c.h.b16 %v2970
        %v3068 = vunpack.c.l.b16 %v2971
        %v3069 = vunpack.c.h.b16 %v2971
        %v3070 = vunpack.c.l.b16 %v2972
        %v3071 = vunpack.c.h.b16 %v2972
        %v3072 = vunpack.c.l.b16 %v2973
        %v3073 = vunpack.c.h.b16 %v2973
        %v3074 = vunpack.c.l.b16 %v2974
        %v3075 = vunpack.c.h.b16 %v2974
        %v3076 = vunpack.c.l.b16 %v2975
        %v3077 = vunpack.c.h.b16 %v2975
        %v3078 = vunpack.c.l.b16 %v2976
        %v3079 = vunpack.c.h.b16 %v2976
        %v3080 = vunpack.c.l.b16 %v2977
        %v3081 = vunpack.c.h.b16 %v2977
        %v3082 = vunpack.c.l.b16 %v2978
        %v3083 = vunpack.c.h.b16 %v2978
        %v3084 = vunpack.c.l.b16 %v2979
        %v3085 = vunpack.c.h.b16 %v2979
        %v3086 = vunpack.c.l.b16 %v2980
        %v3087 = vunpack.c.h.b16 %v2980
        %v3088 = vunpack.c.l.b16 %v2981
        %v3089 = vunpack.c.h.b16 %v2981
        %v3090 = vunpack.c.l.b16 %v2982
        %v3091 = vunpack.c.h.b16 %v2982
        %v3092 = vunpack.c.l.b16 %v2983
        %v3093 = vunpack.c.h.b16 %v2983
        %v3094 = vunpack.c.l.b16 %v2984
        %v3095 = vunpack.c.h.b16 %v2984
        %v3096 = vunpack.c.l.b16 %v2985
        %v3097 = vunpack.c.h.b16 %v2985
        %v3098 = vunpack.c.l.b16 %v2986
        %v3099 = vunpack.c.h.b16 %v2986
        %v3100 = vunpack.c.l.b16 %v2987
        %v3101 = vunpack.c.h.b16 %v2987
        %v3102 = vunpack.c.l.b16 %v2988
        %v3103 = vunpack.c.h.b16 %v2988
        %v3104 = vunpack.c.l.b16 %v2989
        %v3105 = vunpack.c.h.b16 %v2989
        %v3106 = vunpack.c.l.b16 %v2990
        %v3107 = vunpack.c.h.b16 %v2990
        %v3108 = vunpack.c.l.b16 %v2991
        %v3109 = vunpack.c.h.b16 %v2991
        %v3110 = vunpack.c.l.b16 %v2992
        %v3111 = vunpack.c.h.b16 %v2992
        %v3112 = vpack.c.b16 %v3052, %v3048
        %v3113 = vpack.c.b16 %v3053, %v3049
        %v3114 = vpack.c.b16 %v3054, %v3050
        %v3115 = vpack.c.b16 %v3055, %v3051
        %v3116 = vpack.c.b16 %v3060, %v3056
        %v3117 = vpack.c.b16 %v3061, %v3057
        %v3118 = vpack.c.b16 %v3062, %v3058
        %v3119 = vpack.c.b16 %v3063, %v3059
        %v3120 = vpack.c.b16 %v3068, %v3064
        %v3121 = vpack.c.b16 %v3069, %v3065
        %v3122 = vpack.c.b16 %v3070, %v3066
        %v3123 = vpack.c.b16 %v3071, %v3067
        %v3124 = vpack.c.b16 %v3076, %v3072
        %v3125 = vpack.c.b16 %v3077, %v3073
        %v3126 = vpack.c.b16 %v3078, %v3074
        %v3127 = vpack.c.b16 %v3079, %v3075
        %v3128 = vpack.c.b16 %v3084, %v3080
        %v3129 = vpack.c.b16 %v3085, %v3081
        %v3130 = vpack.c.b16 %v3086, %v3082
        %v3131 = vpack.c.b16 %v3087, %v3083
        %v3132 = vpack.c.b16 %v3092, %v3088
        %v3133 = vpack.c.b16 %v3093, %v3089
        %v3134 = vpack.c.b16 %v3094, %v3090
        %v3135 = vpack.c.b16 %v3095, %v3091
        %v3136 = vpack.c.b16 %v3100, %v3096
        %v3137 = vpack.c.b16 %v3101, %v3097
        %v3138 = vpack.c.b16 %v3102, %v3098
        %v3139 = vpack.c.b16 %v3103, %v3099
        %v3140 = vpack.c.b16 %v3108, %v3104
        %v3141 = vpack.c.b16 %v3109, %v3105
        %v3142 = vpack.c.b16 %v3110, %v3106
        %v3143 = vpack.c.b16 %v3111, %v3107
        %3176 = vmatprep.subr.bf16.mxu0 %v3141
        %3177 = vmatpush1.bf16.msra.mxu0 %v3140
        %3178 = vmatprep.subr.bf16.mxu0 %v3137
        %3179 = vmatpush1.bf16.msra.mxu0 %v3136
        %3180 = vmatprep.subr.bf16.mxu0 %v3133
        %3181 = vmatpush1.bf16.msra.mxu0 %v3132
        %3182 = vmatprep.subr.bf16.mxu0 %v3129
        %3183 = vmatpush1.bf16.msra.mxu0 %v3128
        %3184 = vmatprep.subr.bf16.mxu0 %v3125
        %3185 = vmatpush1.bf16.msra.mxu0 %v3124
        %3186 = vmatprep.subr.bf16.mxu0 %v3121
        %3187 = vmatpush1.bf16.msra.mxu0 %v3120
        %3188 = vmatprep.subr.bf16.mxu0 %v3117
        %3189 = vmatpush1.bf16.msra.mxu0 %v3116
        %3190 = vmatprep.subr.bf16.mxu0 %v3113
        %3191 = vmatpush1.bf16.msra.mxu0 %v3112
        %3192 = vmatprep.subr.bf16.mxu0 0
        %3193 = vmatpush2.bf16.msra.mxu0 0
        %3194 = vmatprep.subr.bf16.mxu0 0
        %3195 = vmatpush2.bf16.msra.mxu0 0
        %3196 = vmatprep.subr.bf16.mxu0 0
        %3197 = vmatpush2.bf16.msra.mxu0 0
        %3198 = vmatprep.subr.bf16.mxu0 0
        %3199 = vmatpush2.bf16.msra.mxu0 0
        %3200 = vmatprep.subr.bf16.mxu0 0
        %3201 = vmatpush2.bf16.msra.mxu0 0
        %3202 = vmatprep.subr.bf16.mxu0 0
        %3203 = vmatpush2.bf16.msra.mxu0 0
        %3204 = vmatprep.subr.bf16.mxu0 0
        %3205 = vmatpush2.bf16.msra.mxu0 0
        %3206 = vmatprep.subr.bf16.mxu0 0
        %3207 = vmatpush2.bf16.msra.mxu0 0
        %3208 = vmatprep.mubr.bf16.mxu0 0
        %3209 = vmatmul.mubr.bf16.gmra.mxu0 %v2993
        %v3210 = vpop.f32.mrf.mxu0
        %v3211 = vadd.f32 %v2999, %v3210
        %v3212 = vpop.f32.mrf.mxu0
        %v3213 = vadd.f32 %v3003, %v3212
        %v3214 = vpop.f32.mrf.mxu0
        %v3215 = vpop.f32.mrf.mxu0
        %3216 = vdwg.mxu0
        %3217 = vmatprep.subr.bf16.mxu0 %v3143
        %3218 = vmatpush1.bf16.msra.mxu0 %v3142
        %3219 = vmatprep.subr.bf16.mxu0 %v3139
        %3220 = vmatpush1.bf16.msra.mxu0 %v3138
        %3221 = vmatprep.subr.bf16.mxu0 %v3135
        %3222 = vmatpush1.bf16.msra.mxu0 %v3134
        %3223 = vmatprep.subr.bf16.mxu0 %v3131
        %3224 = vmatpush1.bf16.msra.mxu0 %v3130
        %3225 = vmatprep.subr.bf16.mxu0 %v3127
        %3226 = vmatpush1.bf16.msra.mxu0 %v3126
        %3227 = vmatprep.subr.bf16.mxu0 %v3123
        %3228 = vmatpush1.bf16.msra.mxu0 %v3122
        %3229 = vmatprep.subr.bf16.mxu0 %v3119
        %3230 = vmatpush1.bf16.msra.mxu0 %v3118
        %3231 = vmatprep.subr.bf16.mxu0 %v3115
        %3232 = vmatpush1.bf16.msra.mxu0 %v3114
        %3233 = vmatprep.subr.bf16.mxu0 0
        %3234 = vmatpush2.bf16.msra.mxu0 0
        %3235 = vmatprep.subr.bf16.mxu0 0
        %3236 = vmatpush2.bf16.msra.mxu0 0
        %3237 = vmatprep.subr.bf16.mxu0 0
        %3238 = vmatpush2.bf16.msra.mxu0 0
        %3239 = vmatprep.subr.bf16.mxu0 0
        %3240 = vmatpush2.bf16.msra.mxu0 0
        %3241 = vmatprep.subr.bf16.mxu0 0
        %3242 = vmatpush2.bf16.msra.mxu0 0
        %3243 = vmatprep.subr.bf16.mxu0 0
        %3244 = vmatpush2.bf16.msra.mxu0 0
        %3245 = vmatprep.subr.bf16.mxu0 0
        %3246 = vmatpush2.bf16.msra.mxu0 0
        %3247 = vmatprep.subr.bf16.mxu0 0
        %3248 = vmatpush2.bf16.msra.mxu0 0
        %3249 = vmatprep.mubr.bf16.mxu0 0
        %3250 = vmatmul.mubr.bf16.gmra.mxu0 %v2993
        %v3251 = vpop.f32.mrf.mxu0
        %v3252 = vadd.f32 %v3007, %v3251
        %v3253 = vpop.f32.mrf.mxu0
        %v3254 = vadd.f32 %v3011, %v3253
        %v3255 = vpop.f32.mrf.mxu0
        %v3256 = vpop.f32.mrf.mxu0
        %3257 = vdwg.mxu0
        %v3258 = vmul.f32 %v3211, %v3211
        %v3259 = vmul.f32 %v3213, %v3213
        %v3260 = vmul.f32 %v3252, %v3252
        %v3261 = vmul.f32 %v3254, %v3254
        %v3262 = vmul.f32 %v3211, %v3258
        %v3263 = vmul.f32 %v3213, %v3259
        %v3264 = vmul.f32 %v3252, %v3260
        %v3265 = vmul.f32 %v3254, %v3261
        %v3266 = vmul.f32 %v3262, 0.044715
        %v3267 = vmul.f32 %v3263, 0.044715
        %v3268 = vmul.f32 %v3264, 0.044715
        %v3269 = vmul.f32 %v3265, 0.044715
        %v3270 = vadd.f32 %v3211, %v3266
        %v3271 = vadd.f32 %v3213, %v3267
        %v3272 = vadd.f32 %v3252, %v3268
        %v3273 = vadd.f32 %v3254, %v3269
        %v3274 = vmul.f32 %v3270, 0.7978846
        %v3275 = vmul.f32 %v3271, 0.7978846
        %v3276 = vmul.f32 %v3272, 0.7978846
        %v3277 = vmul.f32 %v3273, 0.7978846
        %v3278 = vtanh.pop %v3274
        %v3279 = vtanh.pop %v3275
        %v3280 = vtanh.pop %v3276
        %v3281 = vtanh.pop %v3277
        %v3282 = vadd.f32 %v3278, 1.0
        %v3283 = vadd.f32 %v3279, 1.0
        %v3284 = vadd.f32 %v3280, 1.0
        %v3285 = vadd.f32 %v3281, 1.0
        %v3286 = vmul.f32 %v3282, 0.5
        %v3287 = vmul.f32 %v3283, 0.5
        %v3288 = vmul.f32 %v3284, 0.5
        %v3289 = vmul.f32 %v3285, 0.5
        %v3290 = vmul.f32 %v3211, %v3286
        %v3291 = vmul.f32 %v3213, %v3287
        %v3292 = vmul.f32 %v3252, %v3288
        %v3293 = vmul.f32 %v3254, %v3289
        %v3294 = vld [vmem:[#allocation24] sm:$0xf]
        %v3295 = vld [vmem:[#allocation24 + $0x4] sm:$0xf]
        %v3296 = vld [vmem:[#allocation24 + $0x8] sm:$0xf]
        %v3297 = vld [vmem:[#allocation24 + $0xc] sm:$0xf]
        %v3298 = vld [vmem:[#allocation24 + $0x10] sm:$0xf]
        %v3299 = vld [vmem:[#allocation24 + $0x14] sm:$0xf]
        %v3300 = vld [vmem:[#allocation24 + $0x18] sm:$0xf]
        %v3301 = vld [vmem:[#allocation24 + $0x1c] sm:$0xf]
        %v3302 = vld [vmem:[#allocation24 + $0x20] sm:$0xf]
        %v3303 = vld [vmem:[#allocation24 + $0x24] sm:$0xf]
        %v3304 = vld [vmem:[#allocation24 + $0x28] sm:$0xf]
        %v3305 = vld [vmem:[#allocation24 + $0x2c] sm:$0xf]
        %v3306 = vld [vmem:[#allocation24 + $0x30] sm:$0xf]
        %v3307 = vld [vmem:[#allocation24 + $0x34] sm:$0xf]
        %v3308 = vld [vmem:[#allocation24 + $0x38] sm:$0xf]
        %v3309 = vld [vmem:[#allocation24 + $0x3c] sm:$0xf]
        %v3310 = vld [vmem:[#allocation24 + $0x40] sm:$0xf]
        %v3311 = vld [vmem:[#allocation24 + $0x44] sm:$0xf]
        %v3312 = vld [vmem:[#allocation24 + $0x48] sm:$0xf]
        %v3313 = vld [vmem:[#allocation24 + $0x4c] sm:$0xf]
        %v3314 = vld [vmem:[#allocation24 + $0x50] sm:$0xf]
        %v3315 = vld [vmem:[#allocation24 + $0x54] sm:$0xf]
        %v3316 = vld [vmem:[#allocation24 + $0x58] sm:$0xf]
        %v3317 = vld [vmem:[#allocation24 + $0x5c] sm:$0xf]
        %v3318 = vld [vmem:[#allocation24 + $0x60] sm:$0xf]
        %v3319 = vld [vmem:[#allocation24 + $0x64] sm:$0xf]
        %v3320 = vld [vmem:[#allocation24 + $0x68] sm:$0xf]
        %v3321 = vld [vmem:[#allocation24 + $0x6c] sm:$0xf]
        %v3322 = vld [vmem:[#allocation24 + $0x70] sm:$0xf]
        %v3323 = vld [vmem:[#allocation24 + $0x74] sm:$0xf]
        %v3324 = vld [vmem:[#allocation24 + $0x78] sm:$0xf]
        %v3325 = vld [vmem:[#allocation24 + $0x7c] sm:$0xf]
        %v3326 = vld [vmem:[#allocation24 + $0x80] sm:$0xf]
        %v3327 = vld [vmem:[#allocation24 + $0x84] sm:$0xf]
        %v3328 = vld [vmem:[#allocation24 + $0x88] sm:$0xf]
        %v3329 = vld [vmem:[#allocation24 + $0x8c] sm:$0xf]
        %v3330 = vld [vmem:[#allocation24 + $0x90] sm:$0xf]
        %v3331 = vld [vmem:[#allocation24 + $0x94] sm:$0xf]
        %v3332 = vld [vmem:[#allocation24 + $0x98] sm:$0xf]
        %v3333 = vld [vmem:[#allocation24 + $0x9c] sm:$0xf]
        %v3334 = vld [vmem:[#allocation24 + $0xa0] sm:$0xf]
        %v3335 = vld [vmem:[#allocation24 + $0xa4] sm:$0xf]
        %v3336 = vld [vmem:[#allocation24 + $0xa8] sm:$0xf]
        %v3337 = vld [vmem:[#allocation24 + $0xac] sm:$0xf]
        %v3338 = vld [vmem:[#allocation24 + $0xb0] sm:$0xf]
        %v3339 = vld [vmem:[#allocation24 + $0xb4] sm:$0xf]
        %v3340 = vld [vmem:[#allocation24 + $0xb8] sm:$0xf]
        %v3341 = vld [vmem:[#allocation24 + $0xbc] sm:$0xf]
        %v3342 = vld [vmem:[#allocation24 + $0xc0] sm:$0xf]
        %v3343 = vld [vmem:[#allocation24 + $0xc4] sm:$0xf]
        %v3344 = vld [vmem:[#allocation24 + $0xc8] sm:$0xf]
        %v3345 = vld [vmem:[#allocation24 + $0xcc] sm:$0xf]
        %v3346 = vld [vmem:[#allocation24 + $0xd0] sm:$0xf]
        %v3347 = vld [vmem:[#allocation24 + $0xd4] sm:$0xf]
        %v3348 = vld [vmem:[#allocation24 + $0xd8] sm:$0xf]
        %v3349 = vld [vmem:[#allocation24 + $0xdc] sm:$0xf]
        %v3350 = vld [vmem:[#allocation24 + $0xe0] sm:$0xf]
        %v3351 = vld [vmem:[#allocation24 + $0xe4] sm:$0xf]
        %v3352 = vld [vmem:[#allocation24 + $0xe8] sm:$0xf]
        %v3353 = vld [vmem:[#allocation24 + $0xec] sm:$0xf]
        %v3354 = vld [vmem:[#allocation24 + $0xf0] sm:$0xf]
        %v3355 = vld [vmem:[#allocation24 + $0xf4] sm:$0xf]
        %v3356 = vld [vmem:[#allocation24 + $0xf8] sm:$0xf]
        %v3357 = vld [vmem:[#allocation24 + $0xfc] sm:$0xf]
        %v3358 = vpack.c.bf16 %v3290, %v3290
        %v3359 = vpack.c.bf16 %v3291, %v3291
        %v3360 = vpack.c.bf16 %v3292, %v3292
        %v3361 = vpack.c.bf16 %v3293, %v3293
        %v3426 = vunpack.c.l.b16 %v3294
        %v3427 = vunpack.c.l.b16 %v3295
        %v3428 = vunpack.c.l.b16 %v3296
        %v3429 = vunpack.c.l.b16 %v3297
        %v3430 = vunpack.c.l.b16 %v3298
        %v3431 = vunpack.c.l.b16 %v3299
        %v3432 = vunpack.c.l.b16 %v3300
        %v3433 = vunpack.c.l.b16 %v3301
        %v3434 = vunpack.c.l.b16 %v3302
        %v3435 = vunpack.c.l.b16 %v3303
        %v3436 = vunpack.c.l.b16 %v3304
        %v3437 = vunpack.c.l.b16 %v3305
        %v3438 = vunpack.c.l.b16 %v3306
        %v3439 = vunpack.c.l.b16 %v3307
        %v3440 = vunpack.c.l.b16 %v3308
        %v3441 = vunpack.c.l.b16 %v3309
        %v3442 = vunpack.c.l.b16 %v3310
        %v3443 = vunpack.c.l.b16 %v3311
        %v3444 = vunpack.c.l.b16 %v3312
        %v3445 = vunpack.c.l.b16 %v3313
        %v3446 = vunpack.c.l.b16 %v3314
        %v3447 = vunpack.c.l.b16 %v3315
        %v3448 = vunpack.c.l.b16 %v3316
        %v3449 = vunpack.c.l.b16 %v3317
        %v3450 = vunpack.c.l.b16 %v3318
        %v3451 = vunpack.c.l.b16 %v3319
        %v3452 = vunpack.c.l.b16 %v3320
        %v3453 = vunpack.c.l.b16 %v3321
        %v3454 = vunpack.c.l.b16 %v3322
        %v3455 = vunpack.c.l.b16 %v3323
        %v3456 = vunpack.c.l.b16 %v3324
        %v3457 = vunpack.c.l.b16 %v3325
        %v3458 = vunpack.c.l.b16 %v3326
        %v3459 = vunpack.c.l.b16 %v3327
        %v3460 = vunpack.c.l.b16 %v3328
        %v3461 = vunpack.c.l.b16 %v3329
        %v3462 = vunpack.c.l.b16 %v3330
        %v3463 = vunpack.c.l.b16 %v3331
        %v3464 = vunpack.c.l.b16 %v3332
        %v3465 = vunpack.c.l.b16 %v3333
        %v3466 = vunpack.c.l.b16 %v3334
        %v3467 = vunpack.c.l.b16 %v3335
        %v3468 = vunpack.c.l.b16 %v3336
        %v3469 = vunpack.c.l.b16 %v3337
        %v3470 = vunpack.c.l.b16 %v3338
        %v3471 = vunpack.c.l.b16 %v3339
        %v3472 = vunpack.c.l.b16 %v3340
        %v3473 = vunpack.c.l.b16 %v3341
        %v3474 = vunpack.c.l.b16 %v3342
        %v3475 = vunpack.c.l.b16 %v3343
        %v3476 = vunpack.c.l.b16 %v3344
        %v3477 = vunpack.c.l.b16 %v3345
        %v3478 = vunpack.c.l.b16 %v3346
        %v3479 = vunpack.c.l.b16 %v3347
        %v3480 = vunpack.c.l.b16 %v3348
        %v3481 = vunpack.c.l.b16 %v3349
        %v3482 = vunpack.c.l.b16 %v3350
        %v3483 = vunpack.c.l.b16 %v3351
        %v3484 = vunpack.c.l.b16 %v3352
        %v3485 = vunpack.c.l.b16 %v3353
        %v3486 = vunpack.c.l.b16 %v3354
        %v3487 = vunpack.c.l.b16 %v3355
        %v3488 = vunpack.c.l.b16 %v3356
        %v3489 = vunpack.c.l.b16 %v3357
        %v3490 = vpack.c.b16 %v3427, %v3426
        %v3491 = vpack.c.b16 %v3429, %v3428
        %v3492 = vpack.c.b16 %v3431, %v3430
        %v3493 = vpack.c.b16 %v3433, %v3432
        %v3494 = vpack.c.b16 %v3435, %v3434
        %v3495 = vpack.c.b16 %v3437, %v3436
        %v3496 = vpack.c.b16 %v3439, %v3438
        %v3497 = vpack.c.b16 %v3441, %v3440
        %v3498 = vpack.c.b16 %v3443, %v3442
        %v3499 = vpack.c.b16 %v3445, %v3444
        %v3500 = vpack.c.b16 %v3447, %v3446
        %v3501 = vpack.c.b16 %v3449, %v3448
        %v3502 = vpack.c.b16 %v3451, %v3450
        %v3503 = vpack.c.b16 %v3453, %v3452
        %v3504 = vpack.c.b16 %v3455, %v3454
        %v3505 = vpack.c.b16 %v3457, %v3456
        %v3506 = vpack.c.b16 %v3459, %v3458
        %v3507 = vpack.c.b16 %v3461, %v3460
        %v3508 = vpack.c.b16 %v3463, %v3462
        %v3509 = vpack.c.b16 %v3465, %v3464
        %v3510 = vpack.c.b16 %v3467, %v3466
        %v3511 = vpack.c.b16 %v3469, %v3468
        %v3512 = vpack.c.b16 %v3471, %v3470
        %v3513 = vpack.c.b16 %v3473, %v3472
        %v3514 = vpack.c.b16 %v3475, %v3474
        %v3515 = vpack.c.b16 %v3477, %v3476
        %v3516 = vpack.c.b16 %v3479, %v3478
        %v3517 = vpack.c.b16 %v3481, %v3480
        %v3518 = vpack.c.b16 %v3483, %v3482
        %v3519 = vpack.c.b16 %v3485, %v3484
        %v3520 = vpack.c.b16 %v3487, %v3486
        %v3521 = vpack.c.b16 %v3489, %v3488
        %3554 = vmatprep.subr.bf16.mxu0 0
        %3555 = vmatpush1.bf16.msra.mxu0 %v3497
        %3556 = vmatprep.subr.bf16.mxu0 0
        %3557 = vmatpush1.bf16.msra.mxu0 %v3496
        %3558 = vmatprep.subr.bf16.mxu0 0
        %3559 = vmatpush1.bf16.msra.mxu0 %v3495
        %3560 = vmatprep.subr.bf16.mxu0 0
        %3561 = vmatpush1.bf16.msra.mxu0 %v3494
        %3562 = vmatprep.subr.bf16.mxu0 0
        %3563 = vmatpush1.bf16.msra.mxu0 %v3493
        %3564 = vmatprep.subr.bf16.mxu0 0
        %3565 = vmatpush1.bf16.msra.mxu0 %v3492
        %3566 = vmatprep.subr.bf16.mxu0 0
        %3567 = vmatpush1.bf16.msra.mxu0 %v3491
        %3568 = vmatprep.subr.bf16.mxu0 0
        %3569 = vmatpush1.bf16.msra.mxu0 %v3490
        %3570 = vmatprep.subr.bf16.mxu0 0
        %3571 = vmatpush2.bf16.msra.mxu0 %v3505
        %3572 = vmatprep.subr.bf16.mxu0 0
        %3573 = vmatpush2.bf16.msra.mxu0 %v3504
        %3574 = vmatprep.subr.bf16.mxu0 0
        %3575 = vmatpush2.bf16.msra.mxu0 %v3503
        %3576 = vmatprep.subr.bf16.mxu0 0
        %3577 = vmatpush2.bf16.msra.mxu0 %v3502
        %3578 = vmatprep.subr.bf16.mxu0 0
        %3579 = vmatpush2.bf16.msra.mxu0 %v3501
        %3580 = vmatprep.subr.bf16.mxu0 0
        %3581 = vmatpush2.bf16.msra.mxu0 %v3500
        %3582 = vmatprep.subr.bf16.mxu0 0
        %3583 = vmatpush2.bf16.msra.mxu0 %v3499
        %3584 = vmatprep.subr.bf16.mxu0 0
        %3585 = vmatpush2.bf16.msra.mxu0 %v3498
        %3586 = vmatprep.mubr.bf16.mxu0 %v3359
        %3587 = vmatmul.mubr.bf16.gmra.mxu0 %v3358
        %v3588 = vpop.f32.mrf.mxu0
        %v3589 = vadd.f32 0.0, %v3588
        %v3590 = vpop.f32.mrf.mxu0
        %v3591 = vpop.f32.mrf.mxu0
        %v3592 = vpop.f32.mrf.mxu0
        %3593 = vdwg.mxu0
        %3594 = vmatprep.subr.bf16.mxu0 0
        %3595 = vmatpush1.bf16.msra.mxu0 %v3513
        %3596 = vmatprep.subr.bf16.mxu0 0
        %3597 = vmatpush1.bf16.msra.mxu0 %v3512
        %3598 = vmatprep.subr.bf16.mxu0 0
        %3599 = vmatpush1.bf16.msra.mxu0 %v3511
        %3600 = vmatprep.subr.bf16.mxu0 0
        %3601 = vmatpush1.bf16.msra.mxu0 %v3510
        %3602 = vmatprep.subr.bf16.mxu0 0
        %3603 = vmatpush1.bf16.msra.mxu0 %v3509
        %3604 = vmatprep.subr.bf16.mxu0 0
        %3605 = vmatpush1.bf16.msra.mxu0 %v3508
        %3606 = vmatprep.subr.bf16.mxu0 0
        %3607 = vmatpush1.bf16.msra.mxu0 %v3507
        %3608 = vmatprep.subr.bf16.mxu0 0
        %3609 = vmatpush1.bf16.msra.mxu0 %v3506
        %3610 = vmatprep.subr.bf16.mxu0 0
        %3611 = vmatpush2.bf16.msra.mxu0 %v3521
        %3612 = vmatprep.subr.bf16.mxu0 0
        %3613 = vmatpush2.bf16.msra.mxu0 %v3520
        %3614 = vmatprep.subr.bf16.mxu0 0
        %3615 = vmatpush2.bf16.msra.mxu0 %v3519
        %3616 = vmatprep.subr.bf16.mxu0 0
        %3617 = vmatpush2.bf16.msra.mxu0 %v3518
        %3618 = vmatprep.subr.bf16.mxu0 0
        %3619 = vmatpush2.bf16.msra.mxu0 %v3517
        %3620 = vmatprep.subr.bf16.mxu0 0
        %3621 = vmatpush2.bf16.msra.mxu0 %v3516
        %3622 = vmatprep.subr.bf16.mxu0 0
        %3623 = vmatpush2.bf16.msra.mxu0 %v3515
        %3624 = vmatprep.subr.bf16.mxu0 0
        %3625 = vmatpush2.bf16.msra.mxu0 %v3514
        %3626 = vmatprep.mubr.bf16.mxu0 %v3361
        %3627 = vmatmul.mubr.bf16.gmra.mxu0 %v3360
        %v3628 = vpop.f32.mrf.mxu0
        %v3629 = vadd.f32 %v3589, %v3628
        %v3630 = vpop.f32.mrf.mxu0
        %v3631 = vpop.f32.mrf.mxu0
        %v3632 = vpop.f32.mrf.mxu0
        %3633 = vdwg.mxu0
        %v3634 = vadd.f32 %v2960, %v3629
        %v3635 = vld [vmem:[#allocation26] sm:$0x1]
        %v3637 = vlaneseq
        %v3638 = vshrl.u32 %v3637, 7
        %v3639 = vsub.s32 0, %v3638
        %v3640 = vrot.slane %v3635, %v3639
        %v3642 = vadd.f32 %v3634, %v3640
        %v3643 = vld [vmem:[#allocation27] sm:$0x1]
        %v3644 = vld [vmem:[#allocation29] sm:$0x1]
        %3645 = vadd.xlane.f32.xlu0 %v3642
        %v3646 = vpop.xlane.xlu0 %3645
        %v3647 = vmul.f32 %v3646, %v2425
        %v3648 = vsub.f32 %v3642, %v3647
        %v3649 = vmul.f32 %v3648, %v3648
        %3650 = vadd.xlane.f32.xlu0 %v3649
        %v3651 = vpop.xlane.xlu0 %3650
        %v3652 = vmul.f32 %v3651, %v2425
        %v3653 = vadd.f32 %v3652, 1e-12
        %v3654 = vrsqrt.pop %v3653
        %v3655 = vmul.f32 %v3648, %v3654
        %v3657 = vlaneseq
        %v3658 = vshrl.u32 %v3657, 7
        %v3659 = vsub.s32 0, %v3658
        %v3660 = vrot.slane %v3643, %v3659
        %v3662 = vmul.f32 %v3655, %v3660
        %v3664 = vlaneseq
        %v3665 = vshrl.u32 %v3664, 7
        %v3666 = vsub.s32 0, %v3665
        %v3667 = vrot.slane %v3644, %v3666
        %v3669 = vadd.f32 %v3662, %v3667
        %v3670 = vld [vmem:[#allocation3] sm:$0xff]
        %v3671 = vld [vmem:[#allocation3 + $0x8] sm:$0xff]
        %v3672 = vlaneseq
        %v3673 = vshrl.u32 %v3672, 7
        %v3674 = vadd.s32 %v3673, 8
        %vm3675 = vcmp.eq.s32.totalorder %v3673, 0
        %vm3676 = vcmp.eq.s32.totalorder %v3674, 0
        %v3677 = vrot.slane %v3670, 7
        %v3678 = vrot.slane %v3671, 7
        %vm3679 = vcmp.lt.s32.totalorder %v3673, 1
        %v3680 = vsel %vm3679, %v3677, %v3678
        %v3681 = vsel %vm3679, %v3678, %v3677
        %v3682 = vsel %vm3675, 0.0, %v3681
        %v3683 = vsel %vm3676, 0.0, %v3680
        %vm3684 = vcmp.eq.s32.totalorder %v3673, 15
        %vm3685 = vcmp.eq.s32.totalorder %v3674, 15
        %v3686 = vrot.slane %v3670, 1
        %v3687 = vrot.slane %v3671, 1
        %vm3688 = vcmp.lt.s32.totalorder %v3673, 7
        %v3689 = vsel %vm3688, %v3686, %v3687
        %v3690 = vsel %vm3688, %v3687, %v3686
        %v3691 = vsel %vm3684, 0.0, %v3689
        %v3692 = vsel %vm3685, 0.0, %v3690
        %v3693 = vld [vmem:[#allocation30] sm:$0xf]
        %v3694 = vld [vmem:[#allocation30 + $0x4] sm:$0xf]
        %v3695 = vld [vmem:[#allocation30 + $0x8] sm:$0xf]
        %v3696 = vld [vmem:[#allocation30 + $0xc] sm:$0xf]
        %v3697 = vld [vmem:[#allocation30 + $0x10] sm:$0xf]
        %v3698 = vld [vmem:[#allocation30 + $0x14] sm:$0xf]
        %v3699 = vld [vmem:[#allocation30 + $0x18] sm:$0xf]
        %v3700 = vld [vmem:[#allocation30 + $0x1c] sm:$0xf]
        %v3701 = vld [vmem:[#allocation30 + $0x20] sm:$0xf]
        %v3702 = vld [vmem:[#allocation30 + $0x24] sm:$0xf]
        %v3703 = vld [vmem:[#allocation30 + $0x28] sm:$0xf]
        %v3704 = vld [vmem:[#allocation30 + $0x2c] sm:$0xf]
        %v3705 = vld [vmem:[#allocation30 + $0x30] sm:$0xf]
        %v3706 = vld [vmem:[#allocation30 + $0x34] sm:$0xf]
        %v3707 = vld [vmem:[#allocation30 + $0x38] sm:$0xf]
        %v3708 = vld [vmem:[#allocation30 + $0x3c] sm:$0xf]
        %v3709 = vpack.c.bf16 %v3683, %v3682
        %v3710 = vld [vmem:[#allocation32] sm:$0xf]
        %v3711 = vld [vmem:[#allocation32 + $0x4] sm:$0xf]
        %v3712 = vld [vmem:[#allocation32 + $0x8] sm:$0xf]
        %v3713 = vld [vmem:[#allocation32 + $0xc] sm:$0xf]
        %v3714 = vld [vmem:[#allocation32 + $0x10] sm:$0xf]
        %v3715 = vld [vmem:[#allocation32 + $0x14] sm:$0xf]
        %v3716 = vld [vmem:[#allocation32 + $0x18] sm:$0xf]
        %v3717 = vld [vmem:[#allocation32 + $0x1c] sm:$0xf]
        %v3718 = vld [vmem:[#allocation32 + $0x20] sm:$0xf]
        %v3719 = vld [vmem:[#allocation32 + $0x24] sm:$0xf]
        %v3720 = vld [vmem:[#allocation32 + $0x28] sm:$0xf]
        %v3721 = vld [vmem:[#allocation32 + $0x2c] sm:$0xf]
        %v3722 = vld [vmem:[#allocation32 + $0x30] sm:$0xf]
        %v3723 = vld [vmem:[#allocation32 + $0x34] sm:$0xf]
        %v3724 = vld [vmem:[#allocation32 + $0x38] sm:$0xf]
        %v3725 = vld [vmem:[#allocation32 + $0x3c] sm:$0xf]
        %v3726 = vpack.c.bf16 %v3671, %v3670
        %v3743 = vunpack.c.l.b16 %v3710
        %v3744 = vunpack.c.l.b16 %v3711
        %v3745 = vunpack.c.l.b16 %v3712
        %v3746 = vunpack.c.l.b16 %v3713
        %v3747 = vunpack.c.l.b16 %v3714
        %v3748 = vunpack.c.l.b16 %v3715
        %v3749 = vunpack.c.l.b16 %v3716
        %v3750 = vunpack.c.l.b16 %v3717
        %v3751 = vunpack.c.l.b16 %v3718
        %v3752 = vunpack.c.l.b16 %v3719
        %v3753 = vunpack.c.l.b16 %v3720
        %v3754 = vunpack.c.l.b16 %v3721
        %v3755 = vunpack.c.l.b16 %v3722
        %v3756 = vunpack.c.l.b16 %v3723
        %v3757 = vunpack.c.l.b16 %v3724
        %v3758 = vunpack.c.l.b16 %v3725
        %v3759 = vpack.c.b16 %v3744, %v3743
        %v3760 = vpack.c.b16 %v3746, %v3745
        %v3761 = vpack.c.b16 %v3748, %v3747
        %v3762 = vpack.c.b16 %v3750, %v3749
        %v3763 = vpack.c.b16 %v3752, %v3751
        %v3764 = vpack.c.b16 %v3754, %v3753
        %v3765 = vpack.c.b16 %v3756, %v3755
        %v3766 = vpack.c.b16 %v3758, %v3757
        %3775 = vmatprep.subr.bf16.mxu0 0
        %3776 = vmatpush1.bf16.msra.mxu0 %v3766
        %3777 = vmatprep.subr.bf16.mxu0 0
        %3778 = vmatpush1.bf16.msra.mxu0 %v3765
        %3779 = vmatprep.subr.bf16.mxu0 0
        %3780 = vmatpush1.bf16.msra.mxu0 %v3764
        %3781 = vmatprep.subr.bf16.mxu0 0
        %3782 = vmatpush1.bf16.msra.mxu0 %v3763
        %3783 = vmatprep.subr.bf16.mxu0 0
        %3784 = vmatpush1.bf16.msra.mxu0 %v3762
        %3785 = vmatprep.subr.bf16.mxu0 0
        %3786 = vmatpush1.bf16.msra.mxu0 %v3761
        %3787 = vmatprep.subr.bf16.mxu0 0
        %3788 = vmatpush1.bf16.msra.mxu0 %v3760
        %3789 = vmatprep.subr.bf16.mxu0 0
        %3790 = vmatpush1.bf16.msra.mxu0 %v3759
        %3791 = vmatprep.subr.bf16.mxu0 0
        %3792 = vmatpush2.bf16.msra.mxu0 0
        %3793 = vmatprep.subr.bf16.mxu0 0
        %3794 = vmatpush2.bf16.msra.mxu0 0
        %3795 = vmatprep.subr.bf16.mxu0 0
        %3796 = vmatpush2.bf16.msra.mxu0 0
        %3797 = vmatprep.subr.bf16.mxu0 0
        %3798 = vmatpush2.bf16.msra.mxu0 0
        %3799 = vmatprep.subr.bf16.mxu0 0
        %3800 = vmatpush2.bf16.msra.mxu0 0
        %3801 = vmatprep.subr.bf16.mxu0 0
        %3802 = vmatpush2.bf16.msra.mxu0 0
        %3803 = vmatprep.subr.bf16.mxu0 0
        %3804 = vmatpush2.bf16.msra.mxu0 0
        %3805 = vmatprep.subr.bf16.mxu0 0
        %3806 = vmatpush2.bf16.msra.mxu0 0
        %3807 = vmatprep.mubr.bf16.mxu0 0
        %3808 = vmatmul.mubr.bf16.gmra.mxu0 %v3726
        %v3809 = vpop.f32.mrf.mxu0
        %v3810 = vadd.f32 0.0, %v3809
        %v3811 = vpop.f32.mrf.mxu0
        %v3812 = vpop.f32.mrf.mxu0
        %v3813 = vadd.f32 0.0, %v3812
        %v3814 = vpop.f32.mrf.mxu0
        %3815 = vdwg.mxu0
        %v3832 = vunpack.c.l.b16 %v3693
        %v3833 = vunpack.c.l.b16 %v3694
        %v3834 = vunpack.c.l.b16 %v3695
        %v3835 = vunpack.c.l.b16 %v3696
        %v3836 = vunpack.c.l.b16 %v3697
        %v3837 = vunpack.c.l.b16 %v3698
        %v3838 = vunpack.c.l.b16 %v3699
        %v3839 = vunpack.c.l.b16 %v3700
        %v3840 = vunpack.c.l.b16 %v3701
        %v3841 = vunpack.c.l.b16 %v3702
        %v3842 = vunpack.c.l.b16 %v3703
        %v3843 = vunpack.c.l.b16 %v3704
        %v3844 = vunpack.c.l.b16 %v3705
        %v3845 = vunpack.c.l.b16 %v3706
        %v3846 = vunpack.c.l.b16 %v3707
        %v3847 = vunpack.c.l.b16 %v3708
        %v3848 = vpack.c.b16 %v3833, %v3832
        %v3849 = vpack.c.b16 %v3835, %v3834
        %v3850 = vpack.c.b16 %v3837, %v3836
        %v3851 = vpack.c.b16 %v3839, %v3838
        %v3852 = vpack.c.b16 %v3841, %v3840
        %v3853 = vpack.c.b16 %v3843, %v3842
        %v3854 = vpack.c.b16 %v3845, %v3844
        %v3855 = vpack.c.b16 %v3847, %v3846
        %3864 = vmatprep.subr.bf16.mxu0 0
        %3865 = vmatpush1.bf16.msra.mxu0 %v3855
        %3866 = vmatprep.subr.bf16.mxu0 0
        %3867 = vmatpush1.bf16.msra.mxu0 %v3854
        %3868 = vmatprep.subr.bf16.mxu0 0
        %3869 = vmatpush1.bf16.msra.mxu0 %v3853
        %3870 = vmatprep.subr.bf16.mxu0 0
        %3871 = vmatpush1.bf16.msra.mxu0 %v3852
        %3872 = vmatprep.subr.bf16.mxu0 0
        %3873 = vmatpush1.bf16.msra.mxu0 %v3851
        %3874 = vmatprep.subr.bf16.mxu0 0
        %3875 = vmatpush1.bf16.msra.mxu0 %v3850
        %3876 = vmatprep.subr.bf16.mxu0 0
        %3877 = vmatpush1.bf16.msra.mxu0 %v3849
        %3878 = vmatprep.subr.bf16.mxu0 0
        %3879 = vmatpush1.bf16.msra.mxu0 %v3848
        %3880 = vmatprep.subr.bf16.mxu0 0
        %3881 = vmatpush2.bf16.msra.mxu0 0
        %3882 = vmatprep.subr.bf16.mxu0 0
        %3883 = vmatpush2.bf16.msra.mxu0 0
        %3884 = vmatprep.subr.bf16.mxu0 0
        %3885 = vmatpush2.bf16.msra.mxu0 0
        %3886 = vmatprep.subr.bf16.mxu0 0
        %3887 = vmatpush2.bf16.msra.mxu0 0
        %3888 = vmatprep.subr.bf16.mxu0 0
        %3889 = vmatpush2.bf16.msra.mxu0 0
        %3890 = vmatprep.subr.bf16.mxu0 0
        %3891 = vmatpush2.bf16.msra.mxu0 0
        %3892 = vmatprep.subr.bf16.mxu0 0
        %3893 = vmatpush2.bf16.msra.mxu0 0
        %3894 = vmatprep.subr.bf16.mxu0 0
        %3895 = vmatpush2.bf16.msra.mxu0 0
        %3896 = vmatprep.mubr.bf16.mxu0 0
        %3897 = vmatmul.mubr.bf16.gmra.mxu0 %v3709
        %v3898 = vpop.f32.mrf.mxu0
        %v3899 = vadd.f32 %v3810, %v3898
        %v3900 = vpop.f32.mrf.mxu0
        %v3901 = vpop.f32.mrf.mxu0
        %v3902 = vadd.f32 %v3813, %v3901
        %v3903 = vpop.f32.mrf.mxu0
        %3904 = vdwg.mxu0
        %v3905 = vld [vmem:[#allocation33] sm:$0xf]
        %v3906 = vld [vmem:[#allocation33 + $0x4] sm:$0xf]
        %v3907 = vld [vmem:[#allocation33 + $0x8] sm:$0xf]
        %v3908 = vld [vmem:[#allocation33 + $0xc] sm:$0xf]
        %v3909 = vld [vmem:[#allocation33 + $0x10] sm:$0xf]
        %v3910 = vld [vmem:[#allocation33 + $0x14] sm:$0xf]
        %v3911 = vld [vmem:[#allocation33 + $0x18] sm:$0xf]
        %v3912 = vld [vmem:[#allocation33 + $0x1c] sm:$0xf]
        %v3913 = vld [vmem:[#allocation33 + $0x20] sm:$0xf]
        %v3914 = vld [vmem:[#allocation33 + $0x24] sm:$0xf]
        %v3915 = vld [vmem:[#allocation33 + $0x28] sm:$0xf]
        %v3916 = vld [vmem:[#allocation33 + $0x2c] sm:$0xf]
        %v3917 = vld [vmem:[#allocation33 + $0x30] sm:$0xf]
        %v3918 = vld [vmem:[#allocation33 + $0x34] sm:$0xf]
        %v3919 = vld [vmem:[#allocation33 + $0x38] sm:$0xf]
        %v3920 = vld [vmem:[#allocation33 + $0x3c] sm:$0xf]
        %v3921 = vpack.c.bf16 %v3692, %v3691
        %v3938 = vunpack.c.l.b16 %v3905
        %v3939 = vunpack.c.l.b16 %v3906
        %v3940 = vunpack.c.l.b16 %v3907
        %v3941 = vunpack.c.l.b16 %v3908
        %v3942 = vunpack.c.l.b16 %v3909
        %v3943 = vunpack.c.l.b16 %v3910
        %v3944 = vunpack.c.l.b16 %v3911
        %v3945 = vunpack.c.l.b16 %v3912
        %v3946 = vunpack.c.l.b16 %v3913
        %v3947 = vunpack.c.l.b16 %v3914
        %v3948 = vunpack.c.l.b16 %v3915
        %v3949 = vunpack.c.l.b16 %v3916
        %v3950 = vunpack.c.l.b16 %v3917
        %v3951 = vunpack.c.l.b16 %v3918
        %v3952 = vunpack.c.l.b16 %v3919
        %v3953 = vunpack.c.l.b16 %v3920
        %v3954 = vpack.c.b16 %v3939, %v3938
        %v3955 = vpack.c.b16 %v3941, %v3940
        %v3956 = vpack.c.b16 %v3943, %v3942
        %v3957 = vpack.c.b16 %v3945, %v3944
        %v3958 = vpack.c.b16 %v3947, %v3946
        %v3959 = vpack.c.b16 %v3949, %v3948
        %v3960 = vpack.c.b16 %v3951, %v3950
        %v3961 = vpack.c.b16 %v3953, %v3952
        %3970 = vmatprep.subr.bf16.mxu0 0
        %3971 = vmatpush1.bf16.msra.mxu0 %v3961
        %3972 = vmatprep.subr.bf16.mxu0 0
        %3973 = vmatpush1.bf16.msra.mxu0 %v3960
        %3974 = vmatprep.subr.bf16.mxu0 0
        %3975 = vmatpush1.bf16.msra.mxu0 %v3959
        %3976 = vmatprep.subr.bf16.mxu0 0
        %3977 = vmatpush1.bf16.msra.mxu0 %v3958
        %3978 = vmatprep.subr.bf16.mxu0 0
        %3979 = vmatpush1.bf16.msra.mxu0 %v3957
        %3980 = vmatprep.subr.bf16.mxu0 0
        %3981 = vmatpush1.bf16.msra.mxu0 %v3956
        %3982 = vmatprep.subr.bf16.mxu0 0
        %3983 = vmatpush1.bf16.msra.mxu0 %v3955
        %3984 = vmatprep.subr.bf16.mxu0 0
        %3985 = vmatpush1.bf16.msra.mxu0 %v3954
        %3986 = vmatprep.subr.bf16.mxu0 0
        %3987 = vmatpush2.bf16.msra.mxu0 0
        %3988 = vmatprep.subr.bf16.mxu0 0
        %3989 = vmatpush2.bf16.msra.mxu0 0
        %3990 = vmatprep.subr.bf16.mxu0 0
        %3991 = vmatpush2.bf16.msra.mxu0 0
        %3992 = vmatprep.subr.bf16.mxu0 0
        %3993 = vmatpush2.bf16.msra.mxu0 0
        %3994 = vmatprep.subr.bf16.mxu0 0
        %3995 = vmatpush2.bf16.msra.mxu0 0
        %3996 = vmatprep.subr.bf16.mxu0 0
        %3997 = vmatpush2.bf16.msra.mxu0 0
        %3998 = vmatprep.subr.bf16.mxu0 0
        %3999 = vmatpush2.bf16.msra.mxu0 0
        %4000 = vmatprep.subr.bf16.mxu0 0
        %4001 = vmatpush2.bf16.msra.mxu0 0
        %4002 = vmatprep.mubr.bf16.mxu0 0
        %4003 = vmatmul.mubr.bf16.gmra.mxu0 %v3921
        %v4004 = vpop.f32.mrf.mxu0
        %v4005 = vadd.f32 0.0, %v4004
        %v4006 = vpop.f32.mrf.mxu0
        %v4007 = vpop.f32.mrf.mxu0
        %v4008 = vadd.f32 0.0, %v4007
        %v4009 = vpop.f32.mrf.mxu0
        %4010 = vdwg.mxu0
        %v4011 = vadd.f32 %v3899, %v4005
        %v4012 = vadd.f32 %v3902, %v4008
        %v4013 = vld [vmem:[#allocation35] sm:$0x1]
        %v4015 = vlaneseq
        %v4016 = vshrl.u32 %v4015, 7
        %v4017 = vsub.s32 0, %v4016
        %v4018 = vrot.slane %v4013, %v4017
        %v4020 = vadd.f32 %v4011, %v4018
        %v4021 = vadd.f32 %v4012, %v4018
        %v4022 = vmax.f32 %v4020, 0.0
        %v4023 = vmax.f32 %v4021, 0.0
        %v4024 = vmax.f32 %v4022, %v4023
        %v4025 = vrot.slane %v4024, 4
        %v4026 = vmax.f32 %v4024, %v4025
        %v4027 = vrot.slane %v4026, 2
        %v4028 = vmax.f32 %v4026, %v4027
        %v4029 = vrot.slane %v4028, 1
        %v4030 = vmax.f32 %v4028, %v4029
        %v4031 = vld [vmem:[#allocation36] sm:$0xff]
        %v4032 = vld [vmem:[#allocation36 + $0x8] sm:$0xff]
        %v4033 = vld [vmem:[#allocation36 + $0x10] sm:$0xff]
        %v4034 = vld [vmem:[#allocation36 + $0x18] sm:$0xff]
        %v4035 = vld [vmem:[#allocation36 + $0x20] sm:$0xff]
        %v4036 = vld [vmem:[#allocation36 + $0x28] sm:$0xff]
        %v4037 = vld [vmem:[#allocation36 + $0x30] sm:$0xff]
        %v4038 = vld [vmem:[#allocation36 + $0x38] sm:$0xff]
        %v4039 = vld [vmem:[#allocation36 + $0x40] sm:$0xff]
        %v4040 = vld [vmem:[#allocation36 + $0x48] sm:$0xff]
        %v4041 = vld [vmem:[#allocation36 + $0x50] sm:$0xff]
        %v4042 = vld [vmem:[#allocation36 + $0x58] sm:$0xff]
        %v4043 = vld [vmem:[#allocation36 + $0x60] sm:$0xff]
        %v4044 = vld [vmem:[#allocation36 + $0x68] sm:$0xff]
        %v4045 = vld [vmem:[#allocation36 + $0x70] sm:$0xff]
        %v4046 = vld [vmem:[#allocation36 + $0x78] sm:$0xff]
        %v4047 = vpack.c.bf16 %v3669, %v3669
        %v4048 = vld [vmem:[#allocation38] sm:$0x3]
        %v4065 = vunpack.c.l.b16 %v4031
        %v4066 = vunpack.c.h.b16 %v4031
        %v4067 = vunpack.c.l.b16 %v4032
        %v4068 = vunpack.c.h.b16 %v4032
        %v4069 = vunpack.c.l.b16 %v4033
        %v4070 = vunpack.c.h.b16 %v4033
        %v4071 = vunpack.c.l.b16 %v4034
        %v4072 = vunpack.c.h.b16 %v4034
        %v4073 = vunpack.c.l.b16 %v4035
        %v4074 = vunpack.c.h.b16 %v4035
        %v4075 = vunpack.c.l.b16 %v4036
        %v4076 = vunpack.c.h.b16 %v4036
        %v4077 = vunpack.c.l.b16 %v4037
        %v4078 = vunpack.c.h.b16 %v4037
        %v4079 = vunpack.c.l.b16 %v4038
        %v4080 = vunpack.c.h.b16 %v4038
        %v4081 = vunpack.c.l.b16 %v4039
        %v4082 = vunpack.c.h.b16 %v4039
        %v4083 = vunpack.c.l.b16 %v4040
        %v4084 = vunpack.c.h.b16 %v4040
        %v4085 = vunpack.c.l.b16 %v4041
        %v4086 = vunpack.c.h.b16 %v4041
        %v4087 = vunpack.c.l.b16 %v4042
        %v4088 = vunpack.c.h.b16 %v4042
        %v4089 = vunpack.c.l.b16 %v4043
        %v4090 = vunpack.c.h.b16 %v4043
        %v4091 = vunpack.c.l.b16 %v4044
        %v4092 = vunpack.c.h.b16 %v4044
        %v4093 = vunpack.c.l.b16 %v4045
        %v4094 = vunpack.c.h.b16 %v4045
        %v4095 = vunpack.c.l.b16 %v4046
        %v4096 = vunpack.c.h.b16 %v4046
        %v4097 = vpack.c.b16 %v4067, %v4065
        %v4098 = vpack.c.b16 %v4068, %v4066
        %v4099 = vpack.c.b16 %v4071, %v4069
        %v4100 = vpack.c.b16 %v4072, %v4070
        %v4101 = vpack.c.b16 %v4075, %v4073
        %v4102 = vpack.c.b16 %v4076, %v4074
        %v4103 = vpack.c.b16 %v4079, %v4077
        %v4104 = vpack.c.b16 %v4080, %v4078
        %v4105 = vpack.c.b16 %v4083, %v4081
        %v4106 = vpack.c.b16 %v4084, %v4082
        %v4107 = vpack.c.b16 %v4087, %v4085
        %v4108 = vpack.c.b16 %v4088, %v4086
        %v4109 = vpack.c.b16 %v4091, %v4089
        %v4110 = vpack.c.b16 %v4092, %v4090
        %v4111 = vpack.c.b16 %v4095, %v4093
        %v4112 = vpack.c.b16 %v4096, %v4094
        %v4130 = vlaneseq
        %v4131 = vshrl.u32 %v4130, 7
        %v4132 = vsub.s32 0, %v4131
        %v4133 = vrot.slane %v4048, %v4132
        %v4134 = vlaneseq
        %v4135 = vshrl.u32 %v4134, 7
        %v4136 = vsub.s32 1, %v4135
        %v4137 = vrot.slane %v4048, %v4136
        %4140 = vmatprep.subr.bf16.mxu0 %v4112
        %4141 = vmatpush1.bf16.msra.mxu0 %v4111
        %4142 = vmatprep.subr.bf16.mxu0 %v4110
        %4143 = vmatpush1.bf16.msra.mxu0 %v4109
        %4144 = vmatprep.subr.bf16.mxu0 %v4108
        %4145 = vmatpush1.bf16.msra.mxu0 %v4107
        %4146 = vmatprep.subr.bf16.mxu0 %v4106
        %4147 = vmatpush1.bf16.msra.mxu0 %v4105
        %4148 = vmatprep.subr.bf16.mxu0 %v4104
        %4149 = vmatpush1.bf16.msra.mxu0 %v4103
        %4150 = vmatprep.subr.bf16.mxu0 %v4102
        %4151 = vmatpush1.bf16.msra.mxu0 %v4101
        %4152 = vmatprep.subr.bf16.mxu0 %v4100
        %4153 = vmatpush1.bf16.msra.mxu0 %v4099
        %4154 = vmatprep.subr.bf16.mxu0 %v4098
        %4155 = vmatpush1.bf16.msra.mxu0 %v4097
        %4156 = vmatprep.subr.bf16.mxu0 0
        %4157 = vmatpush2.bf16.msra.mxu0 0
        %4158 = vmatprep.subr.bf16.mxu0 0
        %4159 = vmatpush2.bf16.msra.mxu0 0
        %4160 = vmatprep.subr.bf16.mxu0 0
        %4161 = vmatpush2.bf16.msra.mxu0 0
        %4162 = vmatprep.subr.bf16.mxu0 0
        %4163 = vmatpush2.bf16.msra.mxu0 0
        %4164 = vmatprep.subr.bf16.mxu0 0
        %4165 = vmatpush2.bf16.msra.mxu0 0
        %4166 = vmatprep.subr.bf16.mxu0 0
        %4167 = vmatpush2.bf16.msra.mxu0 0
        %4168 = vmatprep.subr.bf16.mxu0 0
        %4169 = vmatpush2.bf16.msra.mxu0 0
        %4170 = vmatprep.subr.bf16.mxu0 0
        %4171 = vmatpush2.bf16.msra.mxu0 0
        %4172 = vmatprep.mubr.bf16.mxu0 0
        %4173 = vmatmul.mubr.bf16.gmra.mxu0 %v4047
        %v4174 = vpop.f32.mrf.mxu0
        %v4175 = vadd.f32 %v4133, %v4174
        %v4176 = vpop.f32.mrf.mxu0
        %v4177 = vadd.f32 %v4137, %v4176
        %v4178 = vpop.f32.mrf.mxu0
        %v4179 = vpop.f32.mrf.mxu0
        %4180 = vdwg.mxu0
        %v4181 = vld [vmem:[%s1420] sm:$0x1]
        %v4182 = vld [vmem:[%s55] sm:$0x1]
        %4184 = vset.pattern.permute.xlu0 0
        %4185 = vperm.xlu0 %4184, %v4181
        %v4186 = vpop.permute.xlu0 %4185
        %v4188 = vlaneseq
        %v4189 = vshrl.u32 %v4188, 7
        %v4190 = vsub.s32 0, %v4189
        %v4191 = vrot.slane %v4186, %v4190
        %v4192 = vmul.f32 %v4191, %v4182
        %v4193 = vld [vmem:[#allocation39] sm:$0x1]
        %v4194 = vadd.f32 %v4192, %v4193
        %v4195 = vmax.f32 %v4194, 0.0
        %v4196 = vld [vmem:[#allocation41] sm:$0xff]
        %v4197 = vld [vmem:[#allocation41 + $0x8] sm:$0xff]
        %v4198 = vld [vmem:[#allocation41 + $0x10] sm:$0xff]
        %v4199 = vld [vmem:[#allocation41 + $0x18] sm:$0xff]
        %v4200 = vld [vmem:[#allocation41 + $0x20] sm:$0xff]
        %v4201 = vld [vmem:[#allocation41 + $0x28] sm:$0xff]
        %v4202 = vld [vmem:[#allocation41 + $0x30] sm:$0xff]
        %v4203 = vld [vmem:[#allocation41 + $0x38] sm:$0xff]
        %v4204 = vld [vmem:[#allocation41 + $0x40] sm:$0xff]
        %v4205 = vld [vmem:[#allocation41 + $0x48] sm:$0xff]
        %v4206 = vld [vmem:[#allocation41 + $0x50] sm:$0xff]
        %v4207 = vld [vmem:[#allocation41 + $0x58] sm:$0xff]
        %v4208 = vld [vmem:[#allocation41 + $0x60] sm:$0xff]
        %v4209 = vld [vmem:[#allocation41 + $0x68] sm:$0xff]
        %v4210 = vld [vmem:[#allocation41 + $0x70] sm:$0xff]
        %v4211 = vld [vmem:[#allocation41 + $0x78] sm:$0xff]
        %v4212 = vpack.c.bf16 %v4030, %v4030
        %v4213 = vld [vmem:[#allocation42] sm:$0xff]
        %v4214 = vld [vmem:[#allocation42 + $0x8] sm:$0xff]
        %v4215 = vld [vmem:[#allocation42 + $0x10] sm:$0xff]
        %v4216 = vld [vmem:[#allocation42 + $0x18] sm:$0xff]
        %v4217 = vld [vmem:[#allocation42 + $0x20] sm:$0xff]
        %v4218 = vld [vmem:[#allocation42 + $0x28] sm:$0xff]
        %v4219 = vld [vmem:[#allocation42 + $0x30] sm:$0xff]
        %v4220 = vld [vmem:[#allocation42 + $0x38] sm:$0xff]
        %v4221 = vpack.c.bf16 %v4195, %v4195
        %v4230 = vunpack.c.l.b16 %v4213
        %v4231 = vunpack.c.h.b16 %v4213
        %v4232 = vunpack.c.l.b16 %v4214
        %v4233 = vunpack.c.h.b16 %v4214
        %v4234 = vunpack.c.l.b16 %v4215
        %v4235 = vunpack.c.h.b16 %v4215
        %v4236 = vunpack.c.l.b16 %v4216
        %v4237 = vunpack.c.h.b16 %v4216
        %v4238 = vunpack.c.l.b16 %v4217
        %v4239 = vunpack.c.h.b16 %v4217
        %v4240 = vunpack.c.l.b16 %v4218
        %v4241 = vunpack.c.h.b16 %v4218
        %v4242 = vunpack.c.l.b16 %v4219
        %v4243 = vunpack.c.h.b16 %v4219
        %v4244 = vunpack.c.l.b16 %v4220
        %v4245 = vunpack.c.h.b16 %v4220
        %v4246 = vpack.c.b16 %v4232, %v4230
        %v4247 = vpack.c.b16 %v4233, %v4231
        %v4248 = vpack.c.b16 %v4236, %v4234
        %v4249 = vpack.c.b16 %v4237, %v4235
        %v4250 = vpack.c.b16 %v4240, %v4238
        %v4251 = vpack.c.b16 %v4241, %v4239
        %v4252 = vpack.c.b16 %v4244, %v4242
        %v4253 = vpack.c.b16 %v4245, %v4243
        %vm4262 = vcmask 523264
        %v4264 = vsel %vm4262, %v4221, 0
        %4266 = vmatprep.subr.bf16.mxu0 0
        %4267 = vmatpush1.bf16.msra.mxu0 0
        %4268 = vmatprep.subr.bf16.mxu0 0
        %4269 = vmatpush1.bf16.msra.mxu0 0
        %4270 = vmatprep.subr.bf16.mxu0 0
        %4271 = vmatpush1.bf16.msra.mxu0 0
        %4272 = vmatprep.subr.bf16.mxu0 0
        %4273 = vmatpush1.bf16.msra.mxu0 0
        %4274 = vmatprep.subr.bf16.mxu0 %v4253
        %4275 = vmatpush1.bf16.msra.mxu0 %v4252
        %4276 = vmatprep.subr.bf16.mxu0 %v4251
        %4277 = vmatpush1.bf16.msra.mxu0 %v4250
        %4278 = vmatprep.subr.bf16.mxu0 %v4249
        %4279 = vmatpush1.bf16.msra.mxu0 %v4248
        %4280 = vmatprep.subr.bf16.mxu0 %v4247
        %4281 = vmatpush1.bf16.msra.mxu0 %v4246
        %4282 = vmatprep.subr.bf16.mxu0 0
        %4283 = vmatpush2.bf16.msra.mxu0 0
        %4284 = vmatprep.subr.bf16.mxu0 0
        %4285 = vmatpush2.bf16.msra.mxu0 0
        %4286 = vmatprep.subr.bf16.mxu0 0
        %4287 = vmatpush2.bf16.msra.mxu0 0
        %4288 = vmatprep.subr.bf16.mxu0 0
        %4289 = vmatpush2.bf16.msra.mxu0 0
        %4290 = vmatprep.subr.bf16.mxu0 0
        %4291 = vmatpush2.bf16.msra.mxu0 0
        %4292 = vmatprep.subr.bf16.mxu0 0
        %4293 = vmatpush2.bf16.msra.mxu0 0
        %4294 = vmatprep.subr.bf16.mxu0 0
        %4295 = vmatpush2.bf16.msra.mxu0 0
        %4296 = vmatprep.subr.bf16.mxu0 0
        %4297 = vmatpush2.bf16.msra.mxu0 0
        %4298 = vmatprep.mubr.bf16.mxu0 0
        %4299 = vmatmul.mubr.bf16.gmra.mxu0 %v4264
        %v4300 = vpop.f32.mrf.mxu0
        %v4301 = vadd.f32 0.0, %v4300
        %v4302 = vpop.f32.mrf.mxu0
        %v4303 = vadd.f32 0.0, %v4302
        %v4304 = vpop.f32.mrf.mxu0
        %v4305 = vpop.f32.mrf.mxu0
        %4306 = vdwg.mxu0
        %v4323 = vunpack.c.l.b16 %v4196
        %v4324 = vunpack.c.h.b16 %v4196
        %v4325 = vunpack.c.l.b16 %v4197
        %v4326 = vunpack.c.h.b16 %v4197
        %v4327 = vunpack.c.l.b16 %v4198
        %v4328 = vunpack.c.h.b16 %v4198
        %v4329 = vunpack.c.l.b16 %v4199
        %v4330 = vunpack.c.h.b16 %v4199
        %v4331 = vunpack.c.l.b16 %v4200
        %v4332 = vunpack.c.h.b16 %v4200
        %v4333 = vunpack.c.l.b16 %v4201
        %v4334 = vunpack.c.h.b16 %v4201
        %v4335 = vunpack.c.l.b16 %v4202
        %v4336 = vunpack.c.h.b16 %v4202
        %v4337 = vunpack.c.l.b16 %v4203
        %v4338 = vunpack.c.h.b16 %v4203
        %v4339 = vunpack.c.l.b16 %v4204
        %v4340 = vunpack.c.h.b16 %v4204
        %v4341 = vunpack.c.l.b16 %v4205
        %v4342 = vunpack.c.h.b16 %v4205
        %v4343 = vunpack.c.l.b16 %v4206
        %v4344 = vunpack.c.h.b16 %v4206
        %v4345 = vunpack.c.l.b16 %v4207
        %v4346 = vunpack.c.h.b16 %v4207
        %v4347 = vunpack.c.l.b16 %v4208
        %v4348 = vunpack.c.h.b16 %v4208
        %v4349 = vunpack.c.l.b16 %v4209
        %v4350 = vunpack.c.h.b16 %v4209
        %v4351 = vunpack.c.l.b16 %v4210
        %v4352 = vunpack.c.h.b16 %v4210
        %v4353 = vunpack.c.l.b16 %v4211
        %v4354 = vunpack.c.h.b16 %v4211
        %v4355 = vpack.c.b16 %v4325, %v4323
        %v4356 = vpack.c.b16 %v4326, %v4324
        %v4357 = vpack.c.b16 %v4329, %v4327
        %v4358 = vpack.c.b16 %v4330, %v4328
        %v4359 = vpack.c.b16 %v4333, %v4331
        %v4360 = vpack.c.b16 %v4334, %v4332
        %v4361 = vpack.c.b16 %v4337, %v4335
        %v4362 = vpack.c.b16 %v4338, %v4336
        %v4363 = vpack.c.b16 %v4341, %v4339
        %v4364 = vpack.c.b16 %v4342, %v4340
        %v4365 = vpack.c.b16 %v4345, %v4343
        %v4366 = vpack.c.b16 %v4346, %v4344
        %v4367 = vpack.c.b16 %v4349, %v4347
        %v4368 = vpack.c.b16 %v4350, %v4348
        %v4369 = vpack.c.b16 %v4353, %v4351
        %v4370 = vpack.c.b16 %v4354, %v4352
        %4387 = vmatprep.subr.bf16.mxu0 %v4370
        %4388 = vmatpush1.bf16.msra.mxu0 %v4369
        %4389 = vmatprep.subr.bf16.mxu0 %v4368
        %4390 = vmatpush1.bf16.msra.mxu0 %v4367
        %4391 = vmatprep.subr.bf16.mxu0 %v4366
        %4392 = vmatpush1.bf16.msra.mxu0 %v4365
        %4393 = vmatprep.subr.bf16.mxu0 %v4364
        %4394 = vmatpush1.bf16.msra.mxu0 %v4363
        %4395 = vmatprep.subr.bf16.mxu0 %v4362
        %4396 = vmatpush1.bf16.msra.mxu0 %v4361
        %4397 = vmatprep.subr.bf16.mxu0 %v4360
        %4398 = vmatpush1.bf16.msra.mxu0 %v4359
        %4399 = vmatprep.subr.bf16.mxu0 %v4358
        %4400 = vmatpush1.bf16.msra.mxu0 %v4357
        %4401 = vmatprep.subr.bf16.mxu0 %v4356
        %4402 = vmatpush1.bf16.msra.mxu0 %v4355
        %4403 = vmatprep.subr.bf16.mxu0 0
        %4404 = vmatpush2.bf16.msra.mxu0 0
        %4405 = vmatprep.subr.bf16.mxu0 0
        %4406 = vmatpush2.bf16.msra.mxu0 0
        %4407 = vmatprep.subr.bf16.mxu0 0
        %4408 = vmatpush2.bf16.msra.mxu0 0
        %4409 = vmatprep.subr.bf16.mxu0 0
        %4410 = vmatpush2.bf16.msra.mxu0 0
        %4411 = vmatprep.subr.bf16.mxu0 0
        %4412 = vmatpush2.bf16.msra.mxu0 0
        %4413 = vmatprep.subr.bf16.mxu0 0
        %4414 = vmatpush2.bf16.msra.mxu0 0
        %4415 = vmatprep.subr.bf16.mxu0 0
        %4416 = vmatpush2.bf16.msra.mxu0 0
        %4417 = vmatprep.subr.bf16.mxu0 0
        %4418 = vmatpush2.bf16.msra.mxu0 0
        %4419 = vmatprep.mubr.bf16.mxu0 0
        %4420 = vmatmul.mubr.bf16.gmra.mxu0 %v4212
        %v4421 = vpop.f32.mrf.mxu0
        %v4422 = vadd.f32 %v4301, %v4421
        %v4423 = vpop.f32.mrf.mxu0
        %v4424 = vadd.f32 %v4303, %v4423
        %v4425 = vpop.f32.mrf.mxu0
        %v4426 = vpop.f32.mrf.mxu0
        %4427 = vdwg.mxu0
        %v4428 = vld [vmem:[#allocation44] sm:$0x3]
        %v4430 = vlaneseq
        %v4431 = vshrl.u32 %v4430, 7
        %v4432 = vsub.s32 0, %v4431
        %v4433 = vrot.slane %v4428, %v4432
        %v4434 = vlaneseq
        %v4435 = vshrl.u32 %v4434, 7
        %v4436 = vsub.s32 1, %v4435
        %v4437 = vrot.slane %v4428, %v4436
        %v4440 = vadd.f32 %v4422, %v4433
        %v4441 = vadd.f32 %v4424, %v4437
        %v4442 = vmax.f32 %v4440, 0.0
        %v4443 = vmax.f32 %v4441, 0.0
        %v4444 = vld [vmem:[#allocation45] sm:$0xff]
        %v4445 = vld [vmem:[#allocation45 + $0x8] sm:$0xff]
        %v4446 = vld [vmem:[#allocation45 + $0x10] sm:$0xff]
        %v4447 = vld [vmem:[#allocation45 + $0x18] sm:$0xff]
        %v4448 = vld [vmem:[#allocation45 + $0x20] sm:$0xff]
        %v4449 = vld [vmem:[#allocation45 + $0x28] sm:$0xff]
        %v4450 = vld [vmem:[#allocation45 + $0x30] sm:$0xff]
        %v4451 = vld [vmem:[#allocation45 + $0x38] sm:$0xff]
        %v4452 = vld [vmem:[#allocation45 + $0x40] sm:$0xff]
        %v4453 = vld [vmem:[#allocation45 + $0x48] sm:$0xff]
        %v4454 = vld [vmem:[#allocation45 + $0x50] sm:$0xff]
        %v4455 = vld [vmem:[#allocation45 + $0x58] sm:$0xff]
        %v4456 = vld [vmem:[#allocation45 + $0x60] sm:$0xff]
        %v4457 = vld [vmem:[#allocation45 + $0x68] sm:$0xff]
        %v4458 = vld [vmem:[#allocation45 + $0x70] sm:$0xff]
        %v4459 = vld [vmem:[#allocation45 + $0x78] sm:$0xff]
        %v4460 = vld [vmem:[#allocation45 + $0x80] sm:$0xff]
        %v4461 = vld [vmem:[#allocation45 + $0x88] sm:$0xff]
        %v4462 = vld [vmem:[#allocation45 + $0x90] sm:$0xff]
        %v4463 = vld [vmem:[#allocation45 + $0x98] sm:$0xff]
        %v4464 = vld [vmem:[#allocation45 + $0xa0] sm:$0xff]
        %v4465 = vld [vmem:[#allocation45 + $0xa8] sm:$0xff]
        %v4466 = vld [vmem:[#allocation45 + $0xb0] sm:$0xff]
        %v4467 = vld [vmem:[#allocation45 + $0xb8] sm:$0xff]
        %v4468 = vld [vmem:[#allocation45 + $0xc0] sm:$0xff]
        %v4469 = vld [vmem:[#allocation45 + $0xc8] sm:$0xff]
        %v4470 = vld [vmem:[#allocation45 + $0xd0] sm:$0xff]
        %v4471 = vld [vmem:[#allocation45 + $0xd8] sm:$0xff]
        %v4472 = vld [vmem:[#allocation45 + $0xe0] sm:$0xff]
        %v4473 = vld [vmem:[#allocation45 + $0xe8] sm:$0xff]
        %v4474 = vld [vmem:[#allocation45 + $0xf0] sm:$0xff]
        %v4475 = vld [vmem:[#allocation45 + $0xf8] sm:$0xff]
        %v4476 = vpack.c.bf16 %v4175, %v4175
        %v4477 = vpack.c.bf16 %v4177, %v4177
        %v4478 = vld [vmem:[#allocation47] sm:$0xff]
        %v4479 = vld [vmem:[#allocation47 + $0x8] sm:$0xff]
        %v4480 = vld [vmem:[#allocation47 + $0x10] sm:$0xff]
        %v4481 = vld [vmem:[#allocation47 + $0x18] sm:$0xff]
        %v4482 = vld [vmem:[#allocation47 + $0x20] sm:$0xff]
        %v4483 = vld [vmem:[#allocation47 + $0x28] sm:$0xff]
        %v4484 = vld [vmem:[#allocation47 + $0x30] sm:$0xff]
        %v4485 = vld [vmem:[#allocation47 + $0x38] sm:$0xff]
        %v4486 = vld [vmem:[#allocation47 + $0x40] sm:$0xff]
        %v4487 = vld [vmem:[#allocation47 + $0x48] sm:$0xff]
        %v4488 = vld [vmem:[#allocation47 + $0x50] sm:$0xff]
        %v4489 = vld [vmem:[#allocation47 + $0x58] sm:$0xff]
        %v4490 = vld [vmem:[#allocation47 + $0x60] sm:$0xff]
        %v4491 = vld [vmem:[#allocation47 + $0x68] sm:$0xff]
        %v4492 = vld [vmem:[#allocation47 + $0x70] sm:$0xff]
        %v4493 = vld [vmem:[#allocation47 + $0x78] sm:$0xff]
        %v4494 = vld [vmem:[#allocation47 + $0x80] sm:$0xff]
        %v4495 = vld [vmem:[#allocation47 + $0x88] sm:$0xff]
        %v4496 = vld [vmem:[#allocation47 + $0x90] sm:$0xff]
        %v4497 = vld [vmem:[#allocation47 + $0x98] sm:$0xff]
        %v4498 = vld [vmem:[#allocation47 + $0xa0] sm:$0xff]
        %v4499 = vld [vmem:[#allocation47 + $0xa8] sm:$0xff]
        %v4500 = vld [vmem:[#allocation47 + $0xb0] sm:$0xff]
        %v4501 = vld [vmem:[#allocation47 + $0xb8] sm:$0xff]
        %v4502 = vld [vmem:[#allocation47 + $0xc0] sm:$0xff]
        %v4503 = vld [vmem:[#allocation47 + $0xc8] sm:$0xff]
        %v4504 = vld [vmem:[#allocation47 + $0xd0] sm:$0xff]
        %v4505 = vld [vmem:[#allocation47 + $0xd8] sm:$0xff]
        %v4506 = vld [vmem:[#allocation47 + $0xe0] sm:$0xff]
        %v4507 = vld [vmem:[#allocation47 + $0xe8] sm:$0xff]
        %v4508 = vld [vmem:[#allocation47 + $0xf0] sm:$0xff]
        %v4509 = vld [vmem:[#allocation47 + $0xf8] sm:$0xff]
        %v4510 = vpack.c.bf16 %v4442, %v4442
        %v4511 = vpack.c.bf16 %v4443, %v4443
        %v4544 = vunpack.c.l.b16 %v4478
        %v4545 = vunpack.c.h.b16 %v4478
        %v4546 = vunpack.c.l.b16 %v4479
        %v4547 = vunpack.c.h.b16 %v4479
        %v4548 = vunpack.c.l.b16 %v4480
        %v4549 = vunpack.c.h.b16 %v4480
        %v4550 = vunpack.c.l.b16 %v4481
        %v4551 = vunpack.c.h.b16 %v4481
        %v4552 = vunpack.c.l.b16 %v4482
        %v4553 = vunpack.c.h.b16 %v4482
        %v4554 = vunpack.c.l.b16 %v4483
        %v4555 = vunpack.c.h.b16 %v4483
        %v4556 = vunpack.c.l.b16 %v4484
        %v4557 = vunpack.c.h.b16 %v4484
        %v4558 = vunpack.c.l.b16 %v4485
        %v4559 = vunpack.c.h.b16 %v4485
        %v4560 = vunpack.c.l.b16 %v4486
        %v4561 = vunpack.c.h.b16 %v4486
        %v4562 = vunpack.c.l.b16 %v4487
        %v4563 = vunpack.c.h.b16 %v4487
        %v4564 = vunpack.c.l.b16 %v4488
        %v4565 = vunpack.c.h.b16 %v4488
        %v4566 = vunpack.c.l.b16 %v4489
        %v4567 = vunpack.c.h.b16 %v4489
        %v4568 = vunpack.c.l.b16 %v4490
        %v4569 = vunpack.c.h.b16 %v4490
        %v4570 = vunpack.c.l.b16 %v4491
        %v4571 = vunpack.c.h.b16 %v4491
        %v4572 = vunpack.c.l.b16 %v4492
        %v4573 = vunpack.c.h.b16 %v4492
        %v4574 = vunpack.c.l.b16 %v4493
        %v4575 = vunpack.c.h.b16 %v4493
        %v4576 = vunpack.c.l.b16 %v4494
        %v4577 = vunpack.c.h.b16 %v4494
        %v4578 = vunpack.c.l.b16 %v4495
        %v4579 = vunpack.c.h.b16 %v4495
        %v4580 = vunpack.c.l.b16 %v4496
        %v4581 = vunpack.c.h.b16 %v4496
        %v4582 = vunpack.c.l.b16 %v4497
        %v4583 = vunpack.c.h.b16 %v4497
        %v4584 = vunpack.c.l.b16 %v4498
        %v4585 = vunpack.c.h.b16 %v4498
        %v4586 = vunpack.c.l.b16 %v4499
        %v4587 = vunpack.c.h.b16 %v4499
        %v4588 = vunpack.c.l.b16 %v4500
        %v4589 = vunpack.c.h.b16 %v4500
        %v4590 = vunpack.c.l.b16 %v4501
        %v4591 = vunpack.c.h.b16 %v4501
        %v4592 = vunpack.c.l.b16 %v4502
        %v4593 = vunpack.c.h.b16 %v4502
        %v4594 = vunpack.c.l.b16 %v4503
        %v4595 = vunpack.c.h.b16 %v4503
        %v4596 = vunpack.c.l.b16 %v4504
        %v4597 = vunpack.c.h.b16 %v4504
        %v4598 = vunpack.c.l.b16 %v4505
        %v4599 = vunpack.c.h.b16 %v4505
        %v4600 = vunpack.c.l.b16 %v4506
        %v4601 = vunpack.c.h.b16 %v4506
        %v4602 = vunpack.c.l.b16 %v4507
        %v4603 = vunpack.c.h.b16 %v4507
        %v4604 = vunpack.c.l.b16 %v4508
        %v4605 = vunpack.c.h.b16 %v4508
        %v4606 = vunpack.c.l.b16 %v4509
        %v4607 = vunpack.c.h.b16 %v4509
        %v4608 = vpack.c.b16 %v4546, %v4544
        %v4609 = vpack.c.b16 %v4547, %v4545
        %v4610 = vpack.c.b16 %v4550, %v4548
        %v4611 = vpack.c.b16 %v4551, %v4549
        %v4612 = vpack.c.b16 %v4554, %v4552
        %v4613 = vpack.c.b16 %v4555, %v4553
        %v4614 = vpack.c.b16 %v4558, %v4556
        %v4615 = vpack.c.b16 %v4559, %v4557
        %v4616 = vpack.c.b16 %v4562, %v4560
        %v4617 = vpack.c.b16 %v4563, %v4561
        %v4618 = vpack.c.b16 %v4566, %v4564
        %v4619 = vpack.c.b16 %v4567, %v4565
        %v4620 = vpack.c.b16 %v4570, %v4568
        %v4621 = vpack.c.b16 %v4571, %v4569
        %v4622 = vpack.c.b16 %v4574, %v4572
        %v4623 = vpack.c.b16 %v4575, %v4573
        %v4624 = vpack.c.b16 %v4578, %v4576
        %v4625 = vpack.c.b16 %v4579, %v4577
        %v4626 = vpack.c.b16 %v4582, %v4580
        %v4627 = vpack.c.b16 %v4583, %v4581
        %v4628 = vpack.c.b16 %v4586, %v4584
        %v4629 = vpack.c.b16 %v4587, %v4585
        %v4630 = vpack.c.b16 %v4590, %v4588
        %v4631 = vpack.c.b16 %v4591, %v4589
        %v4632 = vpack.c.b16 %v4594, %v4592
        %v4633 = vpack.c.b16 %v4595, %v4593
        %v4634 = vpack.c.b16 %v4598, %v4596
        %v4635 = vpack.c.b16 %v4599, %v4597
        %v4636 = vpack.c.b16 %v4602, %v4600
        %v4637 = vpack.c.b16 %v4603, %v4601
        %v4638 = vpack.c.b16 %v4606, %v4604
        %v4639 = vpack.c.b16 %v4607, %v4605
        %4672 = vmatprep.subr.bf16.mxu0 %v4623
        %4673 = vmatpush1.bf16.msra.mxu0 %v4622
        %4674 = vmatprep.subr.bf16.mxu0 %v4621
        %4675 = vmatpush1.bf16.msra.mxu0 %v4620
        %4676 = vmatprep.subr.bf16.mxu0 %v4619
        %4677 = vmatpush1.bf16.msra.mxu0 %v4618
        %4678 = vmatprep.subr.bf16.mxu0 %v4617
        %4679 = vmatpush1.bf16.msra.mxu0 %v4616
        %4680 = vmatprep.subr.bf16.mxu0 %v4615
        %4681 = vmatpush1.bf16.msra.mxu0 %v4614
        %4682 = vmatprep.subr.bf16.mxu0 %v4613
        %4683 = vmatpush1.bf16.msra.mxu0 %v4612
        %4684 = vmatprep.subr.bf16.mxu0 %v4611
        %4685 = vmatpush1.bf16.msra.mxu0 %v4610
        %4686 = vmatprep.subr.bf16.mxu0 %v4609
        %4687 = vmatpush1.bf16.msra.mxu0 %v4608
        %4688 = vmatprep.subr.bf16.mxu0 %v4639
        %4689 = vmatpush2.bf16.msra.mxu0 %v4638
        %4690 = vmatprep.subr.bf16.mxu0 %v4637
        %4691 = vmatpush2.bf16.msra.mxu0 %v4636
        %4692 = vmatprep.subr.bf16.mxu0 %v4635
        %4693 = vmatpush2.bf16.msra.mxu0 %v4634
        %4694 = vmatprep.subr.bf16.mxu0 %v4633
        %4695 = vmatpush2.bf16.msra.mxu0 %v4632
        %4696 = vmatprep.subr.bf16.mxu0 %v4631
        %4697 = vmatpush2.bf16.msra.mxu0 %v4630
        %4698 = vmatprep.subr.bf16.mxu0 %v4629
        %4699 = vmatpush2.bf16.msra.mxu0 %v4628
        %4700 = vmatprep.subr.bf16.mxu0 %v4627
        %4701 = vmatpush2.bf16.msra.mxu0 %v4626
        %4702 = vmatprep.subr.bf16.mxu0 %v4625
        %4703 = vmatpush2.bf16.msra.mxu0 %v4624
        %4704 = vmatprep.mubr.bf16.mxu0 %v4511
        %4705 = vmatmul.mubr.bf16.gmra.mxu0 %v4510
        %v4706 = vpop.f32.mrf.mxu0
        %v4707 = vadd.f32 0.0, %v4706
        %v4708 = vpop.f32.mrf.mxu0
        %v4709 = vadd.f32 0.0, %v4708
        %v4710 = vpop.f32.mrf.mxu0
        %v4711 = vpop.f32.mrf.mxu0
        %4712 = vdwg.mxu0
        %v4745 = vunpack.c.l.b16 %v4444
        %v4746 = vunpack.c.h.b16 %v4444
        %v4747 = vunpack.c.l.b16 %v4445
        %v4748 = vunpack.c.h.b16 %v4445
        %v4749 = vunpack.c.l.b16 %v4446
        %v4750 = vunpack.c.h.b16 %v4446
        %v4751 = vunpack.c.l.b16 %v4447
        %v4752 = vunpack.c.h.b16 %v4447
        %v4753 = vunpack.c.l.b16 %v4448
        %v4754 = vunpack.c.h.b16 %v4448
        %v4755 = vunpack.c.l.b16 %v4449
        %v4756 = vunpack.c.h.b16 %v4449
        %v4757 = vunpack.c.l.b16 %v4450
        %v4758 = vunpack.c.h.b16 %v4450
        %v4759 = vunpack.c.l.b16 %v4451
        %v4760 = vunpack.c.h.b16 %v4451
        %v4761 = vunpack.c.l.b16 %v4452
        %v4762 = vunpack.c.h.b16 %v4452
        %v4763 = vunpack.c.l.b16 %v4453
        %v4764 = vunpack.c.h.b16 %v4453
        %v4765 = vunpack.c.l.b16 %v4454
        %v4766 = vunpack.c.h.b16 %v4454
        %v4767 = vunpack.c.l.b16 %v4455
        %v4768 = vunpack.c.h.b16 %v4455
        %v4769 = vunpack.c.l.b16 %v4456
        %v4770 = vunpack.c.h.b16 %v4456
        %v4771 = vunpack.c.l.b16 %v4457
        %v4772 = vunpack.c.h.b16 %v4457
        %v4773 = vunpack.c.l.b16 %v4458
        %v4774 = vunpack.c.h.b16 %v4458
        %v4775 = vunpack.c.l.b16 %v4459
        %v4776 = vunpack.c.h.b16 %v4459
        %v4777 = vunpack.c.l.b16 %v4460
        %v4778 = vunpack.c.h.b16 %v4460
        %v4779 = vunpack.c.l.b16 %v4461
        %v4780 = vunpack.c.h.b16 %v4461
        %v4781 = vunpack.c.l.b16 %v4462
        %v4782 = vunpack.c.h.b16 %v4462
        %v4783 = vunpack.c.l.b16 %v4463
        %v4784 = vunpack.c.h.b16 %v4463
        %v4785 = vunpack.c.l.b16 %v4464
        %v4786 = vunpack.c.h.b16 %v4464
        %v4787 = vunpack.c.l.b16 %v4465
        %v4788 = vunpack.c.h.b16 %v4465
        %v4789 = vunpack.c.l.b16 %v4466
        %v4790 = vunpack.c.h.b16 %v4466
        %v4791 = vunpack.c.l.b16 %v4467
        %v4792 = vunpack.c.h.b16 %v4467
        %v4793 = vunpack.c.l.b16 %v4468
        %v4794 = vunpack.c.h.b16 %v4468
        %v4795 = vunpack.c.l.b16 %v4469
        %v4796 = vunpack.c.h.b16 %v4469
        %v4797 = vunpack.c.l.b16 %v4470
        %v4798 = vunpack.c.h.b16 %v4470
        %v4799 = vunpack.c.l.b16 %v4471
        %v4800 = vunpack.c.h.b16 %v4471
        %v4801 = vunpack.c.l.b16 %v4472
        %v4802 = vunpack.c.h.b16 %v4472
        %v4803 = vunpack.c.l.b16 %v4473
        %v4804 = vunpack.c.h.b16 %v4473
        %v4805 = vunpack.c.l.b16 %v4474
        %v4806 = vunpack.c.h.b16 %v4474
        %v4807 = vunpack.c.l.b16 %v4475
        %v4808 = vunpack.c.h.b16 %v4475
        %v4809 = vpack.c.b16 %v4747, %v4745
        %v4810 = vpack.c.b16 %v4748, %v4746
        %v4811 = vpack.c.b16 %v4751, %v4749
        %v4812 = vpack.c.b16 %v4752, %v4750
        %v4813 = vpack.c.b16 %v4755, %v4753
        %v4814 = vpack.c.b16 %v4756, %v4754
        %v4815 = vpack.c.b16 %v4759, %v4757
        %v4816 = vpack.c.b16 %v4760, %v4758
        %v4817 = vpack.c.b16 %v4763, %v4761
        %v4818 = vpack.c.b16 %v4764, %v4762
        %v4819 = vpack.c.b16 %v4767, %v4765
        %v4820 = vpack.c.b16 %v4768, %v4766
        %v4821 = vpack.c.b16 %v4771, %v4769
        %v4822 = vpack.c.b16 %v4772, %v4770
        %v4823 = vpack.c.b16 %v4775, %v4773
        %v4824 = vpack.c.b16 %v4776, %v4774
        %v4825 = vpack.c.b16 %v4779, %v4777
        %v4826 = vpack.c.b16 %v4780, %v4778
        %v4827 = vpack.c.b16 %v4783, %v4781
        %v4828 = vpack.c.b16 %v4784, %v4782
        %v4829 = vpack.c.b16 %v4787, %v4785
        %v4830 = vpack.c.b16 %v4788, %v4786
        %v4831 = vpack.c.b16 %v4791, %v4789
        %v4832 = vpack.c.b16 %v4792, %v4790
        %v4833 = vpack.c.b16 %v4795, %v4793
        %v4834 = vpack.c.b16 %v4796, %v4794
        %v4835 = vpack.c.b16 %v4799, %v4797
        %v4836 = vpack.c.b16 %v4800, %v4798
        %v4837 = vpack.c.b16 %v4803, %v4801
        %v4838 = vpack.c.b16 %v4804, %v4802
        %v4839 = vpack.c.b16 %v4807, %v4805
        %v4840 = vpack.c.b16 %v4808, %v4806
        %4873 = vmatprep.subr.bf16.mxu0 %v4824
        %4874 = vmatpush1.bf16.msra.mxu0 %v4823
        %4875 = vmatprep.subr.bf16.mxu0 %v4822
        %4876 = vmatpush1.bf16.msra.mxu0 %v4821
        %4877 = vmatprep.subr.bf16.mxu0 %v4820
        %4878 = vmatpush1.bf16.msra.mxu0 %v4819
        %4879 = vmatprep.subr.bf16.mxu0 %v4818
        %4880 = vmatpush1.bf16.msra.mxu0 %v4817
        %4881 = vmatprep.subr.bf16.mxu0 %v4816
        %4882 = vmatpush1.bf16.msra.mxu0 %v4815
        %4883 = vmatprep.subr.bf16.mxu0 %v4814
        %4884 = vmatpush1.bf16.msra.mxu0 %v4813
        %4885 = vmatprep.subr.bf16.mxu0 %v4812
        %4886 = vmatpush1.bf16.msra.mxu0 %v4811
        %4887 = vmatprep.subr.bf16.mxu0 %v4810
        %4888 = vmatpush1.bf16.msra.mxu0 %v4809
        %4889 = vmatprep.subr.bf16.mxu0 %v4840
        %4890 = vmatpush2.bf16.msra.mxu0 %v4839
        %4891 = vmatprep.subr.bf16.mxu0 %v4838
        %4892 = vmatpush2.bf16.msra.mxu0 %v4837
        %4893 = vmatprep.subr.bf16.mxu0 %v4836
        %4894 = vmatpush2.bf16.msra.mxu0 %v4835
        %4895 = vmatprep.subr.bf16.mxu0 %v4834
        %4896 = vmatpush2.bf16.msra.mxu0 %v4833
        %4897 = vmatprep.subr.bf16.mxu0 %v4832
        %4898 = vmatpush2.bf16.msra.mxu0 %v4831
        %4899 = vmatprep.subr.bf16.mxu0 %v4830
        %4900 = vmatpush2.bf16.msra.mxu0 %v4829
        %4901 = vmatprep.subr.bf16.mxu0 %v4828
        %4902 = vmatpush2.bf16.msra.mxu0 %v4827
        %4903 = vmatprep.subr.bf16.mxu0 %v4826
        %4904 = vmatpush2.bf16.msra.mxu0 %v4825
        %4905 = vmatprep.mubr.bf16.mxu0 %v4477
        %4906 = vmatmul.mubr.bf16.gmra.mxu0 %v4476
        %v4907 = vpop.f32.mrf.mxu0
        %v4908 = vadd.f32 %v4707, %v4907
        %v4909 = vpop.f32.mrf.mxu0
        %v4910 = vadd.f32 %v4709, %v4909
        %v4911 = vpop.f32.mrf.mxu0
        %v4912 = vpop.f32.mrf.mxu0
        %4913 = vdwg.mxu0
        %v4914 = vld [vmem:[#allocation48] sm:$0x3]
        %v4916 = vlaneseq
        %v4917 = vshrl.u32 %v4916, 7
        %v4918 = vsub.s32 0, %v4917
        %v4919 = vrot.slane %v4914, %v4918
        %v4920 = vlaneseq
        %v4921 = vshrl.u32 %v4920, 7
        %v4922 = vsub.s32 1, %v4921
        %v4923 = vrot.slane %v4914, %v4922
        %v4926 = vadd.f32 %v4908, %v4919
        %v4927 = vadd.f32 %v4910, %v4923
        %v4928 = vmax.f32 %v4926, 0.0
        %v4929 = vmax.f32 %v4927, 0.0
        %v4932 = vcombine.low %v4928, %v4929
        %v4934 = vunpack.c.l.s4 1966171168
        %v4935 = vunpack.c.0.s8 %v4934
        %v4936 = vlaneseq
        %v4937 = vshrl.u32 %v4936, 7
        %v4938 = vsub.s32 %v4935, %v4937
        %v4939 = vrot.slane %v4932, %v4938
        %v4941 = vunpack.c.l.s4 1966171168
        %v4942 = vunpack.c.0.s8 %v4941
        %v4943 = vlaneseq
        %v4944 = vshrl.u32 %v4943, 7
        %v4945 = vsub.s32 %v4942, %v4944
        %v4946 = vrot.slane %v4939, %v4945
        %v4948 = vlaneseq
        %vm4949 = vcmp.ge.s32.totalorder %v4948, 0
        %vm4950 = vcmp.lt.s32.totalorder %v4948, 256
        %vm4951 = vmand %vm4949, %vm4950
        %4952 = vst.msk [vmem:[%s1427] sm:$0x3] %vm4951, %v4946
        %v4953 = vld [vmem:[%s71] sm:$0x3]
        %v4955 = vlaneseq
        %v4956 = vshrl.u32 %v4955, 7
        %v4957 = vsub.s32 0, %v4956
        %v4958 = vrot.slane %v4953, %v4957
        %v4959 = vlaneseq
        %v4960 = vshrl.u32 %v4959, 7
        %v4961 = vsub.s32 1, %v4960
        %v4962 = vrot.slane %v4953, %v4961
        %v4965 = vmul.f32 %v4928, %v4958
        %v4966 = vmul.f32 %v4929, %v4962
        %vm4967 = vcmask 1040384
        %v4968 = vsel %vm4967, %v4965, 0.0
        %v4969 = vsel %vm4967, %v4966, 0.0
        %v4970 = vadd.f32 %v4968, %v4969
        %4971 = vadd.xlane.f32.xlu0 %v4970
        %v4972 = vpop.xlane.xlu0 %4971
        %v4973 = vld [vmem:[#allocation9] sm:$0x1]
        %v4974 = vadd.f32 %v4972, %v4973
        %4976 = vset.pattern.permute.xlu0 0
        %4977 = vperm.xlu0 %4976, %v4974
        %v4978 = vpop.permute.xlu0 %4977
        %4980 = vst [vmem:[%s1423] sm:$0x1] %v4978
        %p4981 = scmp.lt.s32.totalorder %s115, 1
        %s4982 = scalar_select %p4981, %s115, 1
        %s4983 = scalar_lea.vmem %s75, %s4982
        %p4984 = scmp.lt.s32.totalorder %s115, 1
        %s4985 = scalar_select %p4984, %s115, 1
        %s4986 = smul.addr %s4985, 2
        %s4987 = scalar_lea.vmem %s77, %s4986
        // Predicated region
        $region769: #{review_metadata_score_forward.1} parent=151 // pred_check
          %p4988 = pneg %p836
        $region770: #{review_metadata_score_forward.1} parent=151 // pred_check_branch
          %4990 = sbr.rel (%p4988) target = $region772
        $region771: #{review_metadata_score_forward.1} parent=151 // pred_region
          _
        $region772: #{review_metadata_score_forward.1} parent=151 // pred_fallthru
          _
        // Predicated region
        $region773: #{review_metadata_score_forward.1} parent=151 // pred_check
          %p4991 = pneg %p862
        $region774: #{review_metadata_score_forward.1} parent=151 // pred_check_branch
          %4993 = sbr.rel (%p4991) target = $region776
        $region775: #{review_metadata_score_forward.1} parent=151 // pred_region
          _
        $region776: #{review_metadata_score_forward.1} parent=151 // pred_fallthru
          _
      $region152: #{review_metadata_score_forward.1} parent=5 // pred_fallthru
        _
      %p4994 = scmp.le.s32.totalorder 2, %s110
      // Predicated region
      $region777: #{review_metadata_score_forward.1} parent=5 // pred_check
        %p4995 = pneg %p4994
      $region778: #{review_metadata_score_forward.1} parent=5 // pred_check_branch
        %4997 = sbr.rel (%p4995) target = $region780
      $region779: #{review_metadata_score_forward.1} parent=5 // pred_region
        %s4998 = ssub.s32 %s110, 2
        // Predicated region
        $region781: #{review_metadata_score_forward.1} parent=779 // pred_check
          %p4999 = pneg %p842
        $region782: #{review_metadata_score_forward.1} parent=779 // pred_check_branch
          %5001 = sbr.rel (%p4999) target = $region784
        $region783: #{review_metadata_score_forward.1} parent=779 // pred_region
          %p5002 = scmp.lt.s32.totalorder %s116, 1
          %s5003 = scalar_select %p5002, %s116, 1
          %s5004 = scalar_lea.vmem %s75, %s5003
        $region784: #{review_metadata_score_forward.1} parent=779 // pred_fallthru
          _
        // Predicated region
        $region785: #{review_metadata_score_forward.1} parent=779 // pred_check
          %p5005 = pneg %p868
        $region786: #{review_metadata_score_forward.1} parent=779 // pred_check_branch
          %5007 = sbr.rel (%p5005) target = $region788
        $region787: #{review_metadata_score_forward.1} parent=779 // pred_region
          %p5008 = scmp.lt.s32.totalorder %s116, 1
          %s5009 = scalar_select %p5008, %s116, 1
          %s5010 = smul.addr %s5009, 2
          %s5011 = scalar_lea.vmem %s77, %s5010
        $region788: #{review_metadata_score_forward.1} parent=779 // pred_fallthru
          _
      $region780: #{review_metadata_score_forward.1} parent=5 // pred_fallthru
        _
    $region6: #{review_metadata_score_forward.1} parent=1 // loop_footer
      %s114 = sadd.s32 1, %s110
    $region7: #{review_metadata_score_forward.1} parent=1 // loop_footer_branch
      %109 = sbr.rel target = $region3
    $region8: #{review_metadata_score_forward.1} parent=1 // loop_exit
      _
    %5012 = vsyncpa [#allocation11], 1
    %s5013 = scalar_lea.sflag [#allocation11], 1
    %5014 = vsyncpa %s5013, 1
    %5015 = vsyncpa [#allocation13], 1
    %5016 = vsyncpa [#allocation16], 1
    %5017 = vsyncpa [#allocation19], 1
    %5018 = vsyncpa [#allocation22], 1
    %5019 = vsyncpa [#allocation25], 1
    %5020 = vsyncpa [#allocation28], 1
    %5021 = vsyncpa [#allocation31], 1
    %5022 = vsyncpa [#allocation34], 1
    %5023 = vsyncpa [#allocation37], 1
    %5024 = vsyncpa [#allocation40], 1
    %5025 = vsyncpa [#allocation43], 1
    %5026 = vsyncpa [#allocation46], 1
    %5027 = vsyncpa [#allocation49], 1
  %5028 = vsyncmov [#allocation4]
  %s5029 = vpop.sfrf %5028
  %p5030 = scmp.eq.s32.totalorder %s5029, 0
  %p5031 = pneg %p5030
  %5033 = shalt.err (%p5031)
  %s5034 = scalar_lea.sflag [#allocation4], 1
  %5035 = vsyncmov %s5034
  %s5036 = vpop.sfrf %5035
  %p5037 = scmp.eq.s32.totalorder %s5036, 0
  %p5038 = pneg %p5037
  %5040 = shalt.err (%p5038)
  %s5041 = scalar_lea.sflag [#allocation4], 2
  %5042 = vsyncmov %s5041
  %s5043 = vpop.sfrf %5042
  %p5044 = scmp.eq.s32.totalorder %s5043, 0
  %p5045 = pneg %p5044
  %5047 = shalt.err (%p5045)
  %s5048 = scalar_lea.sflag [#allocation4], 3
  %5049 = vsyncmov %s5048
  %s5050 = vpop.sfrf %5049
  %p5051 = scmp.eq.s32.totalorder %s5050, 0
  %p5052 = pneg %p5051
  %5054 = shalt.err (%p5052)
  %s5055 = scalar_lea.sflag [#allocation4], 4
  %5056 = vsyncmov %s5055
  %s5057 = vpop.sfrf %5056
  %p5058 = scmp.eq.s32.totalorder %s5057, 0
  %p5059 = pneg %p5058
  %5061 = shalt.err (%p5059)
  %s5062 = scalar_lea.sflag [#allocation4], 5
  %5063 = vsyncmov %s5062
  %s5064 = vpop.sfrf %5063
  %p5065 = scmp.eq.s32.totalorder %s5064, 0
  %p5066 = pneg %p5065
  %5068 = shalt.err (%p5066)
  %s5069 = scalar_lea.sflag [#allocation4], 6
  %5070 = vsyncmov %s5069
  %s5071 = vpop.sfrf %5070
  %p5072 = scmp.eq.s32.totalorder %s5071, 0
  %p5073 = pneg %p5072
  %5075 = shalt.err (%p5073)
  %s5076 = scalar_lea.sflag [#allocation4], 7
  %5077 = vsyncmov %s5076
  %s5078 = vpop.sfrf %5077
  %p5079 = scmp.eq.s32.totalorder %s5078, 0
  %p5080 = pneg %p5079
  %5082 = shalt.err (%p5080)
  %5083 = vsyncmov [#allocation5]
  %s5084 = vpop.sfrf %5083
  %p5085 = scmp.eq.s32.totalorder %s5084, 0
  %p5086 = pneg %p5085
  %5088 = shalt.err (%p5086)
  %s5089 = scalar_lea.sflag [#allocation5], 1
  %5090 = vsyncmov %s5089
  %s5091 = vpop.sfrf %5090
  %p5092 = scmp.eq.s32.totalorder %s5091, 0
  %p5093 = pneg %p5092
  %5095 = shalt.err (%p5093)
  %s5096 = scalar_lea.sflag [#allocation5], 2
  %5097 = vsyncmov %s5096
  %s5098 = vpop.sfrf %5097
  %p5099 = scmp.eq.s32.totalorder %s5098, 0
  %p5100 = pneg %p5099
  %5102 = shalt.err (%p5100)
  %s5103 = scalar_lea.sflag [#allocation5], 3
  %5104 = vsyncmov %s5103
  %s5105 = vpop.sfrf %5104
  %p5106 = scmp.eq.s32.totalorder %s5105, 0
  %p5107 = pneg %p5106
  %5109 = shalt.err (%p5107)
  %s5110 = scalar_lea.sflag [#allocation5], 4
  %5111 = vsyncmov %s5110
  %s5112 = vpop.sfrf %5111
  %p5113 = scmp.eq.s32.totalorder %s5112, 0
  %p5114 = pneg %p5113
  %5116 = shalt.err (%p5114)
  %s5117 = scalar_lea.sflag [#allocation5], 5
  %5118 = vsyncmov %s5117
  %s5119 = vpop.sfrf %5118
  %p5120 = scmp.eq.s32.totalorder %s5119, 0
  %p5121 = pneg %p5120
  %5123 = shalt.err (%p5121)
  %s5124 = scalar_lea.sflag [#allocation5], 6
  %5125 = vsyncmov %s5124
  %s5126 = vpop.sfrf %5125
  %p5127 = scmp.eq.s32.totalorder %s5126, 0
  %p5128 = pneg %p5127
  %5130 = shalt.err (%p5128)
  %s5131 = scalar_lea.sflag [#allocation5], 7
  %5132 = vsyncmov %s5131
  %s5133 = vpop.sfrf %5132
  %p5134 = scmp.eq.s32.totalorder %s5133, 0
  %p5135 = pneg %p5134
  %5137 = shalt.err (%p5135)
  %s5138 = scalar_lea.sflag [#allocation5], 8
  %5139 = vsyncmov %s5138
  %s5140 = vpop.sfrf %5139
  %p5141 = scmp.eq.s32.totalorder %s5140, 0
  %p5142 = pneg %p5141
  %5144 = shalt.err (%p5142)
  %s5145 = scalar_lea.sflag [#allocation5], 9
  %5146 = vsyncmov %s5145
  %s5147 = vpop.sfrf %5146
  %p5148 = scmp.eq.s32.totalorder %s5147, 0
  %p5149 = pneg %p5148
  %5151 = shalt.err (%p5149)
  %s5152 = scalar_lea.sflag [#allocation5], 10
  %5153 = vsyncmov %s5152
  %s5154 = vpop.sfrf %5153
  %p5155 = scmp.eq.s32.totalorder %s5154, 0
  %p5156 = pneg %p5155
  %5158 = shalt.err (%p5156)
  %s5159 = scalar_lea.sflag [#allocation5], 11
  %5160 = vsyncmov %s5159
  %s5161 = vpop.sfrf %5160
  %p5162 = scmp.eq.s32.totalorder %s5161, 0
  %p5163 = pneg %p5162
  %5165 = shalt.err (%p5163)
  %s5166 = scalar_lea.sflag [#allocation5], 12
  %5167 = vsyncmov %s5166
  %s5168 = vpop.sfrf %5167
  %p5169 = scmp.eq.s32.totalorder %s5168, 0
  %p5170 = pneg %p5169
  %5172 = shalt.err (%p5170)
  %s5173 = scalar_lea.sflag [#allocation5], 13
  %5174 = vsyncmov %s5173
  %s5175 = vpop.sfrf %5174
  %p5176 = scmp.eq.s32.totalorder %s5175, 0
  %p5177 = pneg %p5176
  %5179 = shalt.err (%p5177)
  %s5180 = scalar_lea.sflag [#allocation5], 14
  %5181 = vsyncmov %s5180
  %s5182 = vpop.sfrf %5181
  %p5183 = scmp.eq.s32.totalorder %s5182, 0
  %p5184 = pneg %p5183
  %5186 = shalt.err (%p5184)
  %s5187 = scalar_lea.sflag [#allocation5], 15
  %5188 = vsyncmov %s5187
  %s5189 = vpop.sfrf %5188
  %p5190 = scmp.eq.s32.totalorder %s5189, 0
  %p5191 = pneg %p5190
  %5193 = shalt.err (%p5191)

</llo_original>
